<compile_context>
chip_gen: v6e
topology: v6e:2x2x1
jax: 0.10.0
libtpu: 0.0.40
codegen_flags: <defaults>
</compile_context>

<pallas_src>
import jax
import jax.numpy as jnp
from jax.experimental import pallas as pl
from jax.experimental.pallas import tpu as pltpu


def cnn_kernel(x_ref,        # (TB, L, C)   channels-last input tile, f32
               w1_ref,       # (3*C, H)     conv1 im2col weights (tap-major)
               wstk_ref,     # (3, 3*H, H)  [conv2 | conv3 | fc1] im2col/stacked
               fc2w_ref,     # (H, H)
               ow_ref,       # (H, NCP)     output weights, lane-padded to 128
               bstk_ref,     # (5, H)       [b1 | b2 | b3 | fc1b | fc2b], f32
               ob_ref,       # (1, NCP)     output bias, lane-padded, f32
               out_ref):     # (TB, NCP)    f32
    TB, L, C = x_ref.shape
    H = w1_ref.shape[1]
    M = TB * L
    f32 = jnp.float32

    # Row position inside each sequence of the flattened (TB, L) -> M layout.
    pos = jax.lax.broadcasted_iota(jnp.int32, (M, 1), 0) % L
    not_first = pos != 0          # left neighbour exists inside the sequence
    not_last = pos != (L - 1)     # right neighbour exists inside the sequence

    # Hoisted full-width boundary masks (reused by every conv layer).
    nf_h = jnp.broadcast_to(not_first, (M, H))
    nl_h = jnp.broadcast_to(not_last, (M, H))
    if C == H:
        nf_c, nl_c = nf_h, nl_h
    else:
        nf_c = jnp.broadcast_to(not_first, (M, C))
        nl_c = jnp.broadcast_to(not_last, (M, C))

    def conv_relu(h, w, b, nf, nl):
        # Conv1d(k=3, pad=1) + ReLU as ONE (M, 3*Cin) @ (3*Cin, H) MXU matmul.
        # Neighbours via XLU sublane roll + boundary zero-mask (f32), then
        # [left | center | right] is the K = 3*Cin im2col row (cast for MXU).
        left = jnp.where(nf, pltpu.roll(h, 1, axis=0), 0.0)        # h[i-1]
        right = jnp.where(nl, pltpu.roll(h, M - 1, axis=0), 0.0)   # h[i+1]
        xcat = jnp.concatenate([left, h, right], axis=-1).astype(w.dtype)
        y = jnp.dot(xcat, w, preferred_element_type=f32) + b
        return jnp.maximum(y, 0.0)

    w2 = wstk_ref[0]
    w3 = wstk_ref[1]
    fc1w = wstk_ref[2]
    bstk = bstk_ref[...]
    b1, b2, b3 = bstk[0:1, :], bstk[1:2, :], bstk[2:3, :]
    fc1b, fc2b = bstk[3:4, :], bstk[4:5, :]

    h = conv_relu(x_ref[...].reshape(M, C), w1_ref[...], b1, nf_c, nl_c)  # (M, H)
    h = conv_relu(h, w2, b2, nf_h, nl_h)                                  # (M, H)
    h = conv_relu(h, w3, b3, nf_h, nl_h)                                  # (M, H)

    h3 = h.reshape(TB, L, H)
    avg = jnp.mean(h3, axis=1)                                            # (TB, H)
    mx = jnp.max(h3, axis=1)                                              # (TB, H)
    last = h3[:, L - 1, :]                                                # (TB, H)

    # fc1 on cat([avg, max, last]) as a single (TB, 3H) @ (3H, H) matmul.
    z = jnp.concatenate([avg, mx, last], axis=-1).astype(fc1w.dtype)      # (TB, 3H)
    z = jnp.maximum(jnp.dot(z, fc1w, preferred_element_type=f32) + fc1b, 0.0)
    z = jnp.maximum(
        jnp.dot(z.astype(fc2w_ref.dtype), fc2w_ref[...],
                preferred_element_type=f32) + fc2b, 0.0)
    out = (jnp.dot(z.astype(ow_ref.dtype), ow_ref[...],
                   preferred_element_type=f32) + ob_ref[...])
    out_ref[...] = out.astype(out_ref.dtype)                              # (TB, NCP)


def cnn_forward(embedded, params, *, tb=128, matmul_dtype=jnp.bfloat16,
                vmem_limit_mb=48):
    """embedded: (B, L, C) float32 -- equivalent to PyTorch forward(embedded)."""
    (w1, b1, w2, b2, w3, b3, fc1w, fc1b, fc2w, fc2b, ow, ob) = params
    B, L, C = embedded.shape
    H = w2.shape[2]
    NC = ow.shape[1]
    NCP = 128 * pl.cdiv(NC, 128)          # lane-dense (128-wide) output

    # ---- batch tile selection: as few grid steps as possible, multiple of 8,
    # clamped by a rough per-step VMEM estimate (safe for v7x's 64 MiB VMEM).
    TB = min(tb, 8 * pl.cdiv(B, 8))
    TB = max(8, (TB // 8) * 8)

    def step_bytes(t):
        # double-buffered input block + im2col/activation temps + padded output
        act = t * L * 4 * (2 * C + 3 * max(C, H) + 4 * H)
        out = t * NCP * 4 * 2
        return act + out

    budget = (vmem_limit_mb << 20) - (8 << 20)   # headroom for resident weights
    while TB > 8 and step_bytes(TB) > budget:
        TB -= 8

    nb = pl.cdiv(B, TB)
    Bp = nb * TB
    if Bp != B:
        embedded = jnp.pad(embedded, ((0, Bp - B), (0, 0), (0, 0)))
    # NOTE: on v7x (2 TCs) keeping nb a multiple of 2 feeds both cores; on
    # v5e/v6e (1 TC) the fewest grid steps wins, which is what this picks.

    mm = matmul_dtype
    # Conv / fc1 weights in im2col (tap-major) layout, pre-cast for the MXU.
    w1k = w1.reshape(3 * C, H).astype(mm)
    wstk = jnp.stack([w2.reshape(3 * H, H),
                      w3.reshape(3 * H, H),
                      fc1w.reshape(3 * H, H)]).astype(mm)         # (3, 3H, H)
    fc2wk = fc2w.astype(mm)
    # Lane-pad the classifier to 128 lanes (unmasked stores / dense last dot).
    owp = jnp.zeros((H, NCP), jnp.float32).at[:, :NC].set(ow).astype(mm)
    obp = jnp.zeros((1, NCP), jnp.float32).at[:, :NC].set(ob)
    # Biases stay f32 (added after the f32-accumulated matmuls).
    bstk = jnp.concatenate([b1, b2, b3, fc1b, fc2b], axis=0)      # (5, H)

    rep2 = lambda b: (0, 0)     # weights/biases: same block every step -> VMEM-resident
    rep3 = lambda b: (0, 0, 0)

    out = pl.pallas_call(
        cnn_kernel,
        out_shape=jax.ShapeDtypeStruct((Bp, NCP), jnp.float32),
        grid=(nb,),
        in_specs=[
            pl.BlockSpec((TB, L, C), lambda b: (b, 0, 0)),
            pl.BlockSpec((3 * C, H), rep2),
            pl.BlockSpec((3, 3 * H, H), rep3),
            pl.BlockSpec((H, H), rep2),
            pl.BlockSpec((H, NCP), rep2),
            pl.BlockSpec((5, H), rep2),
            pl.BlockSpec((1, NCP), rep2),
        ],
        out_specs=pl.BlockSpec((TB, NCP), lambda b: (b, 0)),
        compiler_params=pltpu.CompilerParams(
            dimension_semantics=("parallel",),
            vmem_limit_bytes=vmem_limit_mb << 20),
    )(embedded, w1k, wstk, fc2wk, owp, bstk, obp)
    return out[:B, :NC]


def ref_forward(embedded, params):
    """Pure-JAX reference (same math as the PyTorch module)."""
    (w1, b1, w2, b2, w3, b3, fc1w, fc1b, fc2w, fc2b, ow, ob) = params
    B, L, C = embedded.shape

    def conv_relu(x, w, b):
        xp = jnp.pad(x, ((0, 0), (1, 1), (0, 0)))
        y = xp[:, 0:L] @ w[0] + xp[:, 1:L + 1] @ w[1] + xp[:, 2:L + 2] @ w[2] + b
        return jax.nn.relu(y)

    h = conv_relu(embedded, w1, b1)
    h = conv_relu(h, w2, b2)
    h = conv_relu(h, w3, b3)
    avg = h.mean(axis=1)
    mx = h.max(axis=1)
    last = h[:, -1]
    z = jax.nn.relu(avg @ fc1w[0] + mx @ fc1w[1] + last @ fc1w[2] + fc1b)
    z = jax.nn.relu(z @ fc2w + fc2b)
    return z @ ow + ob


def init_params(key, nc, hidden, num_classes):
    ks = jax.random.split(key, 12)
    s = 0.1

    def n(k, shape):
        return (s * jax.random.normal(k, shape)).astype(jnp.float32)

    w1 = n(ks[0], (3, nc, hidden));        b1 = n(ks[1], (1, hidden))
    w2 = n(ks[2], (3, hidden, hidden));    b2 = n(ks[3], (1, hidden))
    w3 = n(ks[4], (3, hidden, hidden));    b3 = n(ks[5], (1, hidden))
    fc1w = n(ks[6], (3, hidden, hidden));  fc1b = n(ks[7], (1, hidden))  # fc1 on [avg|max|last]
    fc2w = n(ks[8], (hidden, hidden));     fc2b = n(ks[9], (1, hidden))
    ow = n(ks[10], (hidden, num_classes)); ob = n(ks[11], (1, num_classes))
    return (w1, b1, w2, b2, w3, b3, fc1w, fc1b, fc2w, fc2b, ow, ob)


if __name__ == "__main__":
    # Small shapes consistent with the module (num_classes=6, nl=2), scaled
    # down: batch=64, seq=16, emb(nc)=32, hidden_sz=32.  TB covers the whole
    # batch in one grid step (M = TB*L = 1024 matmul rows).
    B, L, C_EMB, H, NCLS = 64, 16, 32, 32, 6
    key = jax.random.PRNGKey(0)
    k_x, k_p = jax.random.split(key)
    embedded = jax.random.normal(k_x, (B, L, C_EMB), dtype=jnp.float32)
    params = init_params(k_p, C_EMB, H, NCLS)

    ref = ref_forward(embedded, params)

    # f32 matmul path: tight numerical check of the kernel structure.
    out_f32 = jax.block_until_ready(
        cnn_forward(embedded, params, matmul_dtype=jnp.float32))
    assert out_f32.shape == (B, NCLS)
    assert jnp.allclose(out_f32, ref, atol=1e-4, rtol=1e-4)

    # bf16 matmul path (default, ~2x MXU rate): loosened tolerance.
    out_bf16 = jax.block_until_ready(cnn_forward(embedded, params))
    assert out_bf16.shape == (B, NCLS)
    assert jnp.allclose(out_bf16, ref, atol=5e-2, rtol=5e-2)

    print("KERNEL_OK")
</pallas_src>

<mosaic_0001>
module attributes {stable_mosaic.version = 11 : i64} {
  func.func @cnn_kernel(%arg0: i32, %arg1: memref<64x16x32xf32, #tpu.memory_space<vmem>>, %arg2: memref<96x32xf32, #tpu.memory_space<vmem>>, %arg3: memref<3x96x32xf32, #tpu.memory_space<vmem>>, %arg4: memref<32x32xf32, #tpu.memory_space<vmem>>, %arg5: memref<32x128xf32, #tpu.memory_space<vmem>>, %arg6: memref<5x32xf32, #tpu.memory_space<vmem>>, %arg7: memref<1x128xf32, #tpu.memory_space<vmem>>, %arg8: memref<64x128xf32, #tpu.memory_space<vmem>>) attributes {dimension_semantics = [#tpu.dimension_semantics<parallel>], iteration_bounds = array<i64: 1>, scalar_prefetch = 0 : i64, scratch_operands = 0 : i64, tpu.core_type = #tpu.core_type<tc>, window_params = [{transform_indices = @transform_0, window_bounds = array<i64: 64, 16, 32>}, {pipeline_mode = #tpu.pipeline_mode<synchronous>, transform_indices = @transform_1, window_bounds = array<i64: 96, 32>}, {pipeline_mode = #tpu.pipeline_mode<synchronous>, transform_indices = @transform_2, window_bounds = array<i64: 3, 96, 32>}, {pipeline_mode = #tpu.pipeline_mode<synchronous>, transform_indices = @transform_3, window_bounds = array<i64: 32, 32>}, {pipeline_mode = #tpu.pipeline_mode<synchronous>, transform_indices = @transform_4, window_bounds = array<i64: 32, 128>}, {pipeline_mode = #tpu.pipeline_mode<synchronous>, transform_indices = @transform_5, window_bounds = array<i64: 5, 32>}, {pipeline_mode = #tpu.pipeline_mode<synchronous>, transform_indices = @transform_6, window_bounds = array<i64: 1, 128>}, {transform_indices = @transform_7, window_bounds = array<i64: 64, 128>}]} {
    %0 = tpu.iota {dimensions = array<i32: 0>} : vector<1024x1xi32>
    %c16_i32 = arith.constant 16 : i32
    %c0_i32 = arith.constant 0 : i32
    %1 = arith.cmpi eq, %c16_i32, %c0_i32 : i32
    %c1_i32 = arith.constant 1 : i32
    %2 = arith.select %1, %c1_i32, %c16_i32 : i32
    %3 = vector.broadcast %2 : i32 to vector<1024x1xi32>
    %4 = arith.remsi %0, %3 : vector<1024x1xi32>
    %c0_i32_0 = arith.constant 0 : i32
    %5 = vector.broadcast %c0_i32_0 : i32 to vector<1024x1xi32>
    %6 = arith.cmpi ne, %4, %5 : vector<1024x1xi32>
    %c0_i32_1 = arith.constant 0 : i32
    %7 = vector.broadcast %c0_i32_1 : i32 to vector<1024x1xi32>
    %8 = arith.cmpi slt, %4, %7 : vector<1024x1xi32>
    %c0_i32_2 = arith.constant 0 : i32
    %9 = arith.cmpi slt, %2, %c0_i32_2 : i32
    %10 = vector.broadcast %9 : i1 to vector<1024x1xi1>
    %11 = vector.broadcast %10 : vector<1024x1xi1> to vector<1024x1xi1>
    %12 = arith.xori %8, %11 : vector<1024x1xi1>
    %13 = arith.andi %12, %6 : vector<1024x1xi1>
    %14 = vector.broadcast %2 : i32 to vector<1024x1xi32>
    %15 = arith.addi %4, %14 : vector<1024x1xi32>
    %16 = arith.select %13, %15, %4 : vector<1024x1xi1>, vector<1024x1xi32>
    %c0_i32_3 = arith.constant 0 : i32
    %17 = vector.broadcast %c0_i32_3 : i32 to vector<1024x1xi32>
    %18 = arith.cmpi ne, %16, %17 : vector<1024x1xi32>
    %c15_i32 = arith.constant 15 : i32
    %19 = vector.broadcast %c15_i32 : i32 to vector<1024x1xi32>
    %20 = arith.cmpi ne, %16, %19 : vector<1024x1xi32>
    %21 = vector.shape_cast %18 : vector<1024x1xi1> to vector<1024x1xi1>
    %22 = vector.broadcast %21 : vector<1024x1xi1> to vector<1024x32xi1>
    %23 = vector.shape_cast %20 : vector<1024x1xi1> to vector<1024x1xi1>
    %24 = vector.broadcast %23 : vector<1024x1xi1> to vector<1024x32xi1>
    %c0 = arith.constant 0 : index
    %c0_4 = arith.constant 0 : index
    %c0_5 = arith.constant 0 : index
    %25 = vector.load %arg3[%c0, %c0_4, %c0_5] : memref<3x96x32xf32, #tpu.memory_space<vmem>>, vector<1x96x32xf32>
    %26 = vector.shape_cast %25 : vector<1x96x32xf32> to vector<96x32xf32>
    %c1 = arith.constant 1 : index
    %c0_6 = arith.constant 0 : index
    %c0_7 = arith.constant 0 : index
    %27 = vector.load %arg3[%c1, %c0_6, %c0_7] : memref<3x96x32xf32, #tpu.memory_space<vmem>>, vector<1x96x32xf32>
    %28 = vector.shape_cast %27 : vector<1x96x32xf32> to vector<96x32xf32>
    %c2 = arith.constant 2 : index
    %c0_8 = arith.constant 0 : index
    %c0_9 = arith.constant 0 : index
    %29 = vector.load %arg3[%c2, %c0_8, %c0_9] : memref<3x96x32xf32, #tpu.memory_space<vmem>>, vector<1x96x32xf32>
    %30 = vector.shape_cast %29 : vector<1x96x32xf32> to vector<96x32xf32>
    %c0_10 = arith.constant 0 : index
    %c0_11 = arith.constant 0 : index
    %31 = vector.load %arg6[%c0_10, %c0_11] : memref<5x32xf32, #tpu.memory_space<vmem>>, vector<5x32xf32>
    %32 = vector.extract_strided_slice %31 {offsets = [0, 0], sizes = [1, 32], strides = [1, 1]} : vector<5x32xf32> to vector<1x32xf32>
    %33 = vector.extract_strided_slice %31 {offsets = [1, 0], sizes = [1, 32], strides = [1, 1]} : vector<5x32xf32> to vector<1x32xf32>
    %34 = vector.extract_strided_slice %31 {offsets = [2, 0], sizes = [1, 32], strides = [1, 1]} : vector<5x32xf32> to vector<1x32xf32>
    %35 = vector.extract_strided_slice %31 {offsets = [3, 0], sizes = [1, 32], strides = [1, 1]} : vector<5x32xf32> to vector<1x32xf32>
    %36 = vector.extract_strided_slice %31 {offsets = [4, 0], sizes = [1, 32], strides = [1, 1]} : vector<5x32xf32> to vector<1x32xf32>
    %c0_12 = arith.constant 0 : index
    %c0_13 = arith.constant 0 : index
    %c0_14 = arith.constant 0 : index
    %37 = vector.load %arg1[%c0_12, %c0_13, %c0_14] : memref<64x16x32xf32, #tpu.memory_space<vmem>>, vector<64x16x32xf32>
    %38 = vector.shape_cast %37 : vector<64x16x32xf32> to vector<1024x32xf32>
    %c0_15 = arith.constant 0 : index
    %c0_16 = arith.constant 0 : index
    %39 = vector.load %arg2[%c0_15, %c0_16] : memref<96x32xf32, #tpu.memory_space<vmem>>, vector<96x32xf32>
    %c1_i32_17 = arith.constant 1 : i32
    %40 = tpu.dynamic_rotate %38 by %c1_i32_17 dim 0 : vector<1024x32xf32>, i32 -> vector<1024x32xf32>
    %cst = arith.constant 0.000000e+00 : f32
    %41 = vector.broadcast %cst : f32 to vector<1024x32xf32>
    %42 = arith.select %22, %40, %41 : vector<1024x32xi1>, vector<1024x32xf32>
    %c1023_i32 = arith.constant 1023 : i32
    %43 = tpu.dynamic_rotate %38 by %c1023_i32 dim 0 : vector<1024x32xf32>, i32 -> vector<1024x32xf32>
    %cst_18 = arith.constant 0.000000e+00 : f32
    %44 = vector.broadcast %cst_18 : f32 to vector<1024x32xf32>
    %45 = arith.select %24, %43, %44 : vector<1024x32xi1>, vector<1024x32xf32>
    %46 = tpu.concatenate %42, %38, %45 in 1 : vector<1024x32xf32>, vector<1024x32xf32>, vector<1024x32xf32> -> vector<1024x96xf32>
    %cst_19 = arith.constant dense<0.000000e+00> : vector<1024x32xf32>
    %47 = tpu.matmul %46, %39, %cst_19 {dimension_numbers = #tpu.dot_dimension_numbers<[1], [0], [0], [1], [0, 0, 1, 1], [], []>} : vector<1024x96xf32>, vector<96x32xf32>, vector<1024x32xf32> -> vector<1024x32xf32>
    %48 = vector.broadcast %32 : vector<1x32xf32> to vector<1024x32xf32>
    %49 = arith.addf %47, %48 : vector<1024x32xf32>
    %cst_20 = arith.constant 0.000000e+00 : f32
    %50 = vector.broadcast %cst_20 : f32 to vector<1024x32xf32>
    %51 = arith.maximumf %49, %50 : vector<1024x32xf32>
    %c1_i32_21 = arith.constant 1 : i32
    %52 = tpu.dynamic_rotate %51 by %c1_i32_21 dim 0 : vector<1024x32xf32>, i32 -> vector<1024x32xf32>
    %cst_22 = arith.constant 0.000000e+00 : f32
    %53 = vector.broadcast %cst_22 : f32 to vector<1024x32xf32>
    %54 = arith.select %22, %52, %53 : vector<1024x32xi1>, vector<1024x32xf32>
    %c1023_i32_23 = arith.constant 1023 : i32
    %55 = tpu.dynamic_rotate %51 by %c1023_i32_23 dim 0 : vector<1024x32xf32>, i32 -> vector<1024x32xf32>
    %cst_24 = arith.constant 0.000000e+00 : f32
    %56 = vector.broadcast %cst_24 : f32 to vector<1024x32xf32>
    %57 = arith.select %24, %55, %56 : vector<1024x32xi1>, vector<1024x32xf32>
    %58 = tpu.concatenate %54, %51, %57 in 1 : vector<1024x32xf32>, vector<1024x32xf32>, vector<1024x32xf32> -> vector<1024x96xf32>
    %cst_25 = arith.constant dense<0.000000e+00> : vector<1024x32xf32>
    %59 = tpu.matmul %58, %26, %cst_25 {dimension_numbers = #tpu.dot_dimension_numbers<[1], [0], [0], [1], [0, 0, 1, 1], [], []>} : vector<1024x96xf32>, vector<96x32xf32>, vector<1024x32xf32> -> vector<1024x32xf32>
    %60 = vector.broadcast %33 : vector<1x32xf32> to vector<1024x32xf32>
    %61 = arith.addf %59, %60 : vector<1024x32xf32>
    %cst_26 = arith.constant 0.000000e+00 : f32
    %62 = vector.broadcast %cst_26 : f32 to vector<1024x32xf32>
    %63 = arith.maximumf %61, %62 : vector<1024x32xf32>
    %c1_i32_27 = arith.constant 1 : i32
    %64 = tpu.dynamic_rotate %63 by %c1_i32_27 dim 0 : vector<1024x32xf32>, i32 -> vector<1024x32xf32>
    %cst_28 = arith.constant 0.000000e+00 : f32
    %65 = vector.broadcast %cst_28 : f32 to vector<1024x32xf32>
    %66 = arith.select %22, %64, %65 : vector<1024x32xi1>, vector<1024x32xf32>
    %c1023_i32_29 = arith.constant 1023 : i32
    %67 = tpu.dynamic_rotate %63 by %c1023_i32_29 dim 0 : vector<1024x32xf32>, i32 -> vector<1024x32xf32>
    %cst_30 = arith.constant 0.000000e+00 : f32
    %68 = vector.broadcast %cst_30 : f32 to vector<1024x32xf32>
    %69 = arith.select %24, %67, %68 : vector<1024x32xi1>, vector<1024x32xf32>
    %70 = tpu.concatenate %66, %63, %69 in 1 : vector<1024x32xf32>, vector<1024x32xf32>, vector<1024x32xf32> -> vector<1024x96xf32>
    %cst_31 = arith.constant dense<0.000000e+00> : vector<1024x32xf32>
    %71 = tpu.matmul %70, %28, %cst_31 {dimension_numbers = #tpu.dot_dimension_numbers<[1], [0], [0], [1], [0, 0, 1, 1], [], []>} : vector<1024x96xf32>, vector<96x32xf32>, vector<1024x32xf32> -> vector<1024x32xf32>
    %72 = vector.broadcast %34 : vector<1x32xf32> to vector<1024x32xf32>
    %73 = arith.addf %71, %72 : vector<1024x32xf32>
    %cst_32 = arith.constant 0.000000e+00 : f32
    %74 = vector.broadcast %cst_32 : f32 to vector<1024x32xf32>
    %75 = arith.maximumf %73, %74 : vector<1024x32xf32>
    %76 = vector.shape_cast %75 : vector<1024x32xf32> to vector<64x16x32xf32>
    %cst_33 = arith.constant dense<0.000000e+00> : vector<64x32xf32>
    %77 = vector.multi_reduction <add>, %76, %cst_33 [1] : vector<64x16x32xf32> to vector<64x32xf32>
    %cst_34 = arith.constant 1.600000e+01 : f32
    %78 = vector.broadcast %cst_34 : f32 to vector<64x32xf32>
    %79 = arith.divf %77, %78 : vector<64x32xf32>
    %cst_35 = arith.constant dense<0xFF800000> : vector<64x32xf32>
    %80 = vector.multi_reduction <maximumf>, %76, %cst_35 [1] : vector<64x16x32xf32> to vector<64x32xf32>
    %81 = vector.extract_strided_slice %76 {offsets = [0, 15, 0], sizes = [64, 1, 32], strides = [1, 1, 1]} : vector<64x16x32xf32> to vector<64x1x32xf32>
    %82 = vector.shape_cast %81 : vector<64x1x32xf32> to vector<64x32xf32>
    %83 = tpu.concatenate %79, %80, %82 in 1 : vector<64x32xf32>, vector<64x32xf32>, vector<64x32xf32> -> vector<64x96xf32>
    %cst_36 = arith.constant dense<0.000000e+00> : vector<64x32xf32>
    %84 = tpu.matmul %83, %30, %cst_36 {dimension_numbers = #tpu.dot_dimension_numbers<[1], [0], [0], [1], [0, 0, 1, 1], [], []>} : vector<64x96xf32>, vector<96x32xf32>, vector<64x32xf32> -> vector<64x32xf32>
    %85 = vector.broadcast %35 : vector<1x32xf32> to vector<64x32xf32>
    %86 = arith.addf %84, %85 : vector<64x32xf32>
    %cst_37 = arith.constant 0.000000e+00 : f32
    %87 = vector.broadcast %cst_37 : f32 to vector<64x32xf32>
    %88 = arith.maximumf %86, %87 : vector<64x32xf32>
    %c0_38 = arith.constant 0 : index
    %c0_39 = arith.constant 0 : index
    %89 = vector.load %arg4[%c0_38, %c0_39] : memref<32x32xf32, #tpu.memory_space<vmem>>, vector<32x32xf32>
    %cst_40 = arith.constant dense<0.000000e+00> : vector<64x32xf32>
    %90 = tpu.matmul %88, %89, %cst_40 {dimension_numbers = #tpu.dot_dimension_numbers<[1], [0], [0], [1], [0, 0, 1, 1], [], []>} : vector<64x32xf32>, vector<32x32xf32>, vector<64x32xf32> -> vector<64x32xf32>
    %91 = vector.broadcast %36 : vector<1x32xf32> to vector<64x32xf32>
    %92 = arith.addf %90, %91 : vector<64x32xf32>
    %cst_41 = arith.constant 0.000000e+00 : f32
    %93 = vector.broadcast %cst_41 : f32 to vector<64x32xf32>
    %94 = arith.maximumf %92, %93 : vector<64x32xf32>
    %c0_42 = arith.constant 0 : index
    %c0_43 = arith.constant 0 : index
    %95 = vector.load %arg5[%c0_42, %c0_43] : memref<32x128xf32, #tpu.memory_space<vmem>>, vector<32x128xf32>
    %cst_44 = arith.constant dense<0.000000e+00> : vector<64x128xf32>
    %96 = tpu.matmul %94, %95, %cst_44 {dimension_numbers = #tpu.dot_dimension_numbers<[1], [0], [0], [1], [0, 0, 1, 1], [], []>} : vector<64x32xf32>, vector<32x128xf32>, vector<64x128xf32> -> vector<64x128xf32>
    %c0_45 = arith.constant 0 : index
    %c0_46 = arith.constant 0 : index
    %97 = vector.load %arg7[%c0_45, %c0_46] : memref<1x128xf32, #tpu.memory_space<vmem>>, vector<1x128xf32>
    %98 = vector.broadcast %97 : vector<1x128xf32> to vector<64x128xf32>
    %99 = arith.addf %96, %98 : vector<64x128xf32>
    %c0_47 = arith.constant 0 : index
    %c0_48 = arith.constant 0 : index
    %100 = vector.load %arg8[%c0_47, %c0_48] : memref<64x128xf32, #tpu.memory_space<vmem>>, vector<64x128xf32>
    tpu.vector_store %arg8[%c0_47, %c0_48], %99 {strides = array<i32>} : memref<64x128xf32, #tpu.memory_space<vmem>>, vector<64x128xf32>,
    return
  }
  func.func @transform_0(%arg0: i32) -> (i32, i32, i32) {
    %c0_i32 = arith.constant 0 : i32
    %c0_i32_0 = arith.constant 0 : i32
    %c0_i32_1 = arith.constant 0 : i32
    return %arg0, %c0_i32, %c0_i32_0 : i32, i32, i32
  }
  func.func @transform_1(%arg0: i32) -> (i32, i32) {
    %c0_i32 = arith.constant 0 : i32
    %c0_i32_0 = arith.constant 0 : i32
    %c0_i32_1 = arith.constant 0 : i32
    return %c0_i32, %c0_i32_0 : i32, i32
  }
  func.func @transform_2(%arg0: i32) -> (i32, i32, i32) {
    %c0_i32 = arith.constant 0 : i32
    %c0_i32_0 = arith.constant 0 : i32
    %c0_i32_1 = arith.constant 0 : i32
    %c0_i32_2 = arith.constant 0 : i32
    return %c0_i32, %c0_i32_0, %c0_i32_1 : i32, i32, i32
  }
  func.func @transform_3(%arg0: i32) -> (i32, i32) {
    %c0_i32 = arith.constant 0 : i32
    %c0_i32_0 = arith.constant 0 : i32
    %c0_i32_1 = arith.constant 0 : i32
    return %c0_i32, %c0_i32_0 : i32, i32
  }
  func.func @transform_4(%arg0: i32) -> (i32, i32) {
    %c0_i32 = arith.constant 0 : i32
    %c0_i32_0 = arith.constant 0 : i32
    %c0_i32_1 = arith.constant 0 : i32
    return %c0_i32, %c0_i32_0 : i32, i32
  }
  func.func @transform_5(%arg0: i32) -> (i32, i32) {
    %c0_i32 = arith.constant 0 : i32
    %c0_i32_0 = arith.constant 0 : i32
    %c0_i32_1 = arith.constant 0 : i32
    return %c0_i32, %c0_i32_0 : i32, i32
  }
  func.func @transform_6(%arg0: i32) -> (i32, i32) {
    %c0_i32 = arith.constant 0 : i32
    %c0_i32_0 = arith.constant 0 : i32
    %c0_i32_1 = arith.constant 0 : i32
    return %c0_i32, %c0_i32_0 : i32, i32
  }
  func.func @transform_7(%arg0: i32) -> (i32, i32) {
    %c0_i32 = arith.constant 0 : i32
    %c0_i32_0 = arith.constant 0 : i32
    return %arg0, %c0_i32 : i32, i32
  }
}

</mosaic_0001>

<llo_original>
// kernel: tpu_custom_call.1
$region0: #{tpu_custom_call.1}
  #allocation0 [shape = 'u32[]', space=smem, size = 0x4, offset = 0x4, fixed_abs, tag = 'smem constant byte address 0x4 - core index']
  #allocation1 [shape = 'u32[144,128]{1,0:T(1,128)}', space=vmem, size = 0x12000, scoped, tag = 'internal scratch']
  %s0 = inlined_call_operand.vmem [shape: f32[64,16,32], index: 0, kind: input, shape index: {}]
  %s1 = inlined_call_operand.vmem [shape: f32[96,32], index: 1, kind: input, shape index: {}]
  %s2 = inlined_call_operand.vmem [shape: f32[3,96,32], index: 2, kind: input, shape index: {}]
  %s3 = inlined_call_operand.vmem [shape: f32[32,32], index: 3, kind: input, shape index: {}]
  %s4 = inlined_call_operand.vmem [shape: f32[32,128], index: 4, kind: input, shape index: {}]
  %s5 = inlined_call_operand.vmem [shape: f32[5,32], index: 5, kind: input, shape index: {}]
  %s6 = inlined_call_operand.vmem [shape: f32[1,128], index: 6, kind: input, shape index: {}]
  %s7 = inlined_call_operand.hbm [shape: f32[64,128], index: 7, kind: output, shape index: {}]
  %s8 = sld [smem:[#allocation0]]
  $region38: #{tpu_custom_call.1} parent=0
    _
  %s10 = ssub.s32 1, %s8
  %s11 = scalar_select 0, %s10, %s8
  $region1: #{tpu_custom_call.1} parent=0
    #allocation2 [shape = 'u8[32768]{0}', space=vmem, size = 0x8000, scoped, tag = 'output window, operand 0, single buffered']
    #allocation3 [shape = 's32[1]{0}', space=sflag, size = 0x4, scoped, tag = 'scoped memory for tpu_custom_call.1']
    %12 = vsyncpa [#allocation3], 0
    // Predicated region
    $region2: #{tpu_custom_call.1} parent=1 // pred_check
      _
    $region3: #{tpu_custom_call.1} parent=1 // pred_check_branch
      %14 = sbr.rel (0) target = $region5
    $region4: #{tpu_custom_call.1} parent=1 // pred_region
      _
    $region5: #{tpu_custom_call.1} parent=1 // pred_fallthru
      _
    // Predicated region
    $region6: #{tpu_custom_call.1} parent=1 // pred_check
      _
    $region7: #{tpu_custom_call.1} parent=1 // pred_check_branch
      %16 = sbr.rel (0) target = $region9
    $region8: #{tpu_custom_call.1} parent=1 // pred_region
      _
    $region9: #{tpu_custom_call.1} parent=1 // pred_fallthru
      _
    // Predicated region
    $region10: #{tpu_custom_call.1} parent=1 // pred_check
      _
    $region11: #{tpu_custom_call.1} parent=1 // pred_check_branch
      %18 = sbr.rel (0) target = $region13
    $region12: #{tpu_custom_call.1} parent=1 // pred_region
      _
    $region13: #{tpu_custom_call.1} parent=1 // pred_fallthru
      _
    // Predicated region
    $region14: #{tpu_custom_call.1} parent=1 // pred_check
      _
    $region15: #{tpu_custom_call.1} parent=1 // pred_check_branch
      %20 = sbr.rel (0) target = $region17
    $region16: #{tpu_custom_call.1} parent=1 // pred_region
      _
    $region17: #{tpu_custom_call.1} parent=1 // pred_fallthru
      _
    // Predicated region
    $region18: #{tpu_custom_call.1} parent=1 // pred_check
      _
    $region19: #{tpu_custom_call.1} parent=1 // pred_check_branch
      %22 = sbr.rel (0) target = $region21
    $region20: #{tpu_custom_call.1} parent=1 // pred_region
      _
    $region21: #{tpu_custom_call.1} parent=1 // pred_fallthru
      _
    // Predicated region
    $region22: #{tpu_custom_call.1} parent=1 // pred_check
      _
    $region23: #{tpu_custom_call.1} parent=1 // pred_check_branch
      %24 = sbr.rel (0) target = $region25
    $region24: #{tpu_custom_call.1} parent=1 // pred_region
      _
    $region25: #{tpu_custom_call.1} parent=1 // pred_fallthru
      _
    // Predicated region
    $region26: #{tpu_custom_call.1} parent=1 // pred_check
      _
    $region27: #{tpu_custom_call.1} parent=1 // pred_check_branch
      %26 = sbr.rel (0) target = $region29
    $region28: #{tpu_custom_call.1} parent=1 // pred_region
      _
    $region29: #{tpu_custom_call.1} parent=1 // pred_fallthru
      _
    %v27 = vlaneseq
    %v28 = vshrl.u32 %v27, 7
    %v29 = vadd.s32 %v28, 8
    %v30 = vadd.s32 %v28, 16
    %v31 = vadd.s32 %v28, 24
    %v32 = vadd.s32 %v28, 32
    %v33 = vadd.s32 %v28, 40
    %v34 = vadd.s32 %v28, 48
    %v35 = vadd.s32 %v28, 56
    %v36 = vadd.s32 %v28, 64
    %v37 = vadd.s32 %v28, 72
    %v38 = vadd.s32 %v28, 80
    %v39 = vadd.s32 %v28, 88
    %v40 = vadd.s32 %v28, 96
    %v41 = vadd.s32 %v28, 104
    %v42 = vadd.s32 %v28, 112
    %v43 = vadd.s32 %v28, 120
    %v44 = vadd.s32 %v28, 128
    %v45 = vadd.s32 %v28, 136
    %v46 = vadd.s32 %v28, 144
    %v47 = vadd.s32 %v28, 152
    %v48 = vadd.s32 %v28, 160
    %v49 = vadd.s32 %v28, 168
    %v50 = vadd.s32 %v28, 176
    %v51 = vadd.s32 %v28, 184
    %v52 = vadd.s32 %v28, 192
    %v53 = vadd.s32 %v28, 200
    %v54 = vadd.s32 %v28, 208
    %v55 = vadd.s32 %v28, 216
    %v56 = vadd.s32 %v28, 224
    %v57 = vadd.s32 %v28, 232
    %v58 = vadd.s32 %v28, 240
    %v59 = vadd.s32 %v28, 248
    %v60 = vadd.s32 %v28, 256
    %v61 = vadd.s32 %v28, 264
    %v62 = vadd.s32 %v28, 272
    %v63 = vadd.s32 %v28, 280
    %v64 = vadd.s32 %v28, 288
    %v65 = vadd.s32 %v28, 296
    %v66 = vadd.s32 %v28, 304
    %v67 = vadd.s32 %v28, 312
    %v68 = vadd.s32 %v28, 320
    %v69 = vadd.s32 %v28, 328
    %v70 = vadd.s32 %v28, 336
    %v71 = vadd.s32 %v28, 344
    %v72 = vadd.s32 %v28, 352
    %v73 = vadd.s32 %v28, 360
    %v74 = vadd.s32 %v28, 368
    %v75 = vadd.s32 %v28, 376
    %v76 = vadd.s32 %v28, 384
    %v77 = vadd.s32 %v28, 392
    %v78 = vadd.s32 %v28, 400
    %v79 = vadd.s32 %v28, 408
    %v80 = vadd.s32 %v28, 416
    %v81 = vadd.s32 %v28, 424
    %v82 = vadd.s32 %v28, 432
    %v83 = vadd.s32 %v28, 440
    %v84 = vadd.s32 %v28, 448
    %v85 = vadd.s32 %v28, 456
    %v86 = vadd.s32 %v28, 464
    %v87 = vadd.s32 %v28, 472
    %v88 = vadd.s32 %v28, 480
    %v89 = vadd.s32 %v28, 488
    %v90 = vadd.s32 %v28, 496
    %v91 = vadd.s32 %v28, 504
    %v92 = vadd.s32 %v28, 512
    %v93 = vadd.s32 %v28, 520
    %v94 = vadd.s32 %v28, 528
    %v95 = vadd.s32 %v28, 536
    %v96 = vadd.s32 %v28, 544
    %v97 = vadd.s32 %v28, 552
    %v98 = vadd.s32 %v28, 560
    %v99 = vadd.s32 %v28, 568
    %v100 = vadd.s32 %v28, 576
    %v101 = vadd.s32 %v28, 584
    %v102 = vadd.s32 %v28, 592
    %v103 = vadd.s32 %v28, 600
    %v104 = vadd.s32 %v28, 608
    %v105 = vadd.s32 %v28, 616
    %v106 = vadd.s32 %v28, 624
    %v107 = vadd.s32 %v28, 632
    %v108 = vadd.s32 %v28, 640
    %v109 = vadd.s32 %v28, 648
    %v110 = vadd.s32 %v28, 656
    %v111 = vadd.s32 %v28, 664
    %v112 = vadd.s32 %v28, 672
    %v113 = vadd.s32 %v28, 680
    %v114 = vadd.s32 %v28, 688
    %v115 = vadd.s32 %v28, 696
    %v116 = vadd.s32 %v28, 704
    %v117 = vadd.s32 %v28, 712
    %v118 = vadd.s32 %v28, 720
    %v119 = vadd.s32 %v28, 728
    %v120 = vadd.s32 %v28, 736
    %v121 = vadd.s32 %v28, 744
    %v122 = vadd.s32 %v28, 752
    %v123 = vadd.s32 %v28, 760
    %v124 = vadd.s32 %v28, 768
    %v125 = vadd.s32 %v28, 776
    %v126 = vadd.s32 %v28, 784
    %v127 = vadd.s32 %v28, 792
    %v128 = vadd.s32 %v28, 800
    %v129 = vadd.s32 %v28, 808
    %v130 = vadd.s32 %v28, 816
    %v131 = vadd.s32 %v28, 824
    %v132 = vadd.s32 %v28, 832
    %v133 = vadd.s32 %v28, 840
    %v134 = vadd.s32 %v28, 848
    %v135 = vadd.s32 %v28, 856
    %v136 = vadd.s32 %v28, 864
    %v137 = vadd.s32 %v28, 872
    %v138 = vadd.s32 %v28, 880
    %v139 = vadd.s32 %v28, 888
    %v140 = vadd.s32 %v28, 896
    %v141 = vadd.s32 %v28, 904
    %v142 = vadd.s32 %v28, 912
    %v143 = vadd.s32 %v28, 920
    %v144 = vadd.s32 %v28, 928
    %v145 = vadd.s32 %v28, 936
    %v146 = vadd.s32 %v28, 944
    %v147 = vadd.s32 %v28, 952
    %v148 = vadd.s32 %v28, 960
    %v149 = vadd.s32 %v28, 968
    %v150 = vadd.s32 %v28, 976
    %v151 = vadd.s32 %v28, 984
    %v152 = vadd.s32 %v28, 992
    %v153 = vadd.s32 %v28, 1000
    %v154 = vadd.s32 %v28, 1008
    %v155 = vadd.s32 %v28, 1016
    %vm156 = vcmp.lt.s32.totalorder %v28, 0
    %v157 = vsub.s32 0, %v28
    %v158 = vsel %vm156, %v157, %v28
    %v159 = vshrl.u32 %v158, 4
    %v160 = vand.u32 %v158, 15
    %v161 = vsub.s32 0, %v160
    %v162 = vsel %vm156, %v161, %v160
    %vm163 = vcmp.lt.s32.totalorder %v29, 0
    %v164 = vsub.s32 0, %v29
    %v165 = vsel %vm163, %v164, %v29
    %v166 = vshrl.u32 %v165, 4
    %v167 = vand.u32 %v165, 15
    %v168 = vsub.s32 0, %v167
    %v169 = vsel %vm163, %v168, %v167
    %vm170 = vcmp.lt.s32.totalorder %v30, 0
    %v171 = vsub.s32 0, %v30
    %v172 = vsel %vm170, %v171, %v30
    %v173 = vshrl.u32 %v172, 4
    %v174 = vand.u32 %v172, 15
    %v175 = vsub.s32 0, %v174
    %v176 = vsel %vm170, %v175, %v174
    %vm177 = vcmp.lt.s32.totalorder %v31, 0
    %v178 = vsub.s32 0, %v31
    %v179 = vsel %vm177, %v178, %v31
    %v180 = vshrl.u32 %v179, 4
    %v181 = vand.u32 %v179, 15
    %v182 = vsub.s32 0, %v181
    %v183 = vsel %vm177, %v182, %v181
    %vm184 = vcmp.lt.s32.totalorder %v32, 0
    %v185 = vsub.s32 0, %v32
    %v186 = vsel %vm184, %v185, %v32
    %v187 = vshrl.u32 %v186, 4
    %v188 = vand.u32 %v186, 15
    %v189 = vsub.s32 0, %v188
    %v190 = vsel %vm184, %v189, %v188
    %vm191 = vcmp.lt.s32.totalorder %v33, 0
    %v192 = vsub.s32 0, %v33
    %v193 = vsel %vm191, %v192, %v33
    %v194 = vshrl.u32 %v193, 4
    %v195 = vand.u32 %v193, 15
    %v196 = vsub.s32 0, %v195
    %v197 = vsel %vm191, %v196, %v195
    %vm198 = vcmp.lt.s32.totalorder %v34, 0
    %v199 = vsub.s32 0, %v34
    %v200 = vsel %vm198, %v199, %v34
    %v201 = vshrl.u32 %v200, 4
    %v202 = vand.u32 %v200, 15
    %v203 = vsub.s32 0, %v202
    %v204 = vsel %vm198, %v203, %v202
    %vm205 = vcmp.lt.s32.totalorder %v35, 0
    %v206 = vsub.s32 0, %v35
    %v207 = vsel %vm205, %v206, %v35
    %v208 = vshrl.u32 %v207, 4
    %v209 = vand.u32 %v207, 15
    %v210 = vsub.s32 0, %v209
    %v211 = vsel %vm205, %v210, %v209
    %vm212 = vcmp.lt.s32.totalorder %v36, 0
    %v213 = vsub.s32 0, %v36
    %v214 = vsel %vm212, %v213, %v36
    %v215 = vshrl.u32 %v214, 4
    %v216 = vand.u32 %v214, 15
    %v217 = vsub.s32 0, %v216
    %v218 = vsel %vm212, %v217, %v216
    %vm219 = vcmp.lt.s32.totalorder %v37, 0
    %v220 = vsub.s32 0, %v37
    %v221 = vsel %vm219, %v220, %v37
    %v222 = vshrl.u32 %v221, 4
    %v223 = vand.u32 %v221, 15
    %v224 = vsub.s32 0, %v223
    %v225 = vsel %vm219, %v224, %v223
    %vm226 = vcmp.lt.s32.totalorder %v38, 0
    %v227 = vsub.s32 0, %v38
    %v228 = vsel %vm226, %v227, %v38
    %v229 = vshrl.u32 %v228, 4
    %v230 = vand.u32 %v228, 15
    %v231 = vsub.s32 0, %v230
    %v232 = vsel %vm226, %v231, %v230
    %vm233 = vcmp.lt.s32.totalorder %v39, 0
    %v234 = vsub.s32 0, %v39
    %v235 = vsel %vm233, %v234, %v39
    %v236 = vshrl.u32 %v235, 4
    %v237 = vand.u32 %v235, 15
    %v238 = vsub.s32 0, %v237
    %v239 = vsel %vm233, %v238, %v237
    %vm240 = vcmp.lt.s32.totalorder %v40, 0
    %v241 = vsub.s32 0, %v40
    %v242 = vsel %vm240, %v241, %v40
    %v243 = vshrl.u32 %v242, 4
    %v244 = vand.u32 %v242, 15
    %v245 = vsub.s32 0, %v244
    %v246 = vsel %vm240, %v245, %v244
    %vm247 = vcmp.lt.s32.totalorder %v41, 0
    %v248 = vsub.s32 0, %v41
    %v249 = vsel %vm247, %v248, %v41
    %v250 = vshrl.u32 %v249, 4
    %v251 = vand.u32 %v249, 15
    %v252 = vsub.s32 0, %v251
    %v253 = vsel %vm247, %v252, %v251
    %vm254 = vcmp.lt.s32.totalorder %v42, 0
    %v255 = vsub.s32 0, %v42
    %v256 = vsel %vm254, %v255, %v42
    %v257 = vshrl.u32 %v256, 4
    %v258 = vand.u32 %v256, 15
    %v259 = vsub.s32 0, %v258
    %v260 = vsel %vm254, %v259, %v258
    %vm261 = vcmp.lt.s32.totalorder %v43, 0
    %v262 = vsub.s32 0, %v43
    %v263 = vsel %vm261, %v262, %v43
    %v264 = vshrl.u32 %v263, 4
    %v265 = vand.u32 %v263, 15
    %v266 = vsub.s32 0, %v265
    %v267 = vsel %vm261, %v266, %v265
    %vm268 = vcmp.lt.s32.totalorder %v44, 0
    %v269 = vsub.s32 0, %v44
    %v270 = vsel %vm268, %v269, %v44
    %v271 = vshrl.u32 %v270, 4
    %v272 = vand.u32 %v270, 15
    %v273 = vsub.s32 0, %v272
    %v274 = vsel %vm268, %v273, %v272
    %vm275 = vcmp.lt.s32.totalorder %v45, 0
    %v276 = vsub.s32 0, %v45
    %v277 = vsel %vm275, %v276, %v45
    %v278 = vshrl.u32 %v277, 4
    %v279 = vand.u32 %v277, 15
    %v280 = vsub.s32 0, %v279
    %v281 = vsel %vm275, %v280, %v279
    %vm282 = vcmp.lt.s32.totalorder %v46, 0
    %v283 = vsub.s32 0, %v46
    %v284 = vsel %vm282, %v283, %v46
    %v285 = vshrl.u32 %v284, 4
    %v286 = vand.u32 %v284, 15
    %v287 = vsub.s32 0, %v286
    %v288 = vsel %vm282, %v287, %v286
    %vm289 = vcmp.lt.s32.totalorder %v47, 0
    %v290 = vsub.s32 0, %v47
    %v291 = vsel %vm289, %v290, %v47
    %v292 = vshrl.u32 %v291, 4
    %v293 = vand.u32 %v291, 15
    %v294 = vsub.s32 0, %v293
    %v295 = vsel %vm289, %v294, %v293
    %vm296 = vcmp.lt.s32.totalorder %v48, 0
    %v297 = vsub.s32 0, %v48
    %v298 = vsel %vm296, %v297, %v48
    %v299 = vshrl.u32 %v298, 4
    %v300 = vand.u32 %v298, 15
    %v301 = vsub.s32 0, %v300
    %v302 = vsel %vm296, %v301, %v300
    %vm303 = vcmp.lt.s32.totalorder %v49, 0
    %v304 = vsub.s32 0, %v49
    %v305 = vsel %vm303, %v304, %v49
    %v306 = vshrl.u32 %v305, 4
    %v307 = vand.u32 %v305, 15
    %v308 = vsub.s32 0, %v307
    %v309 = vsel %vm303, %v308, %v307
    %vm310 = vcmp.lt.s32.totalorder %v50, 0
    %v311 = vsub.s32 0, %v50
    %v312 = vsel %vm310, %v311, %v50
    %v313 = vshrl.u32 %v312, 4
    %v314 = vand.u32 %v312, 15
    %v315 = vsub.s32 0, %v314
    %v316 = vsel %vm310, %v315, %v314
    %vm317 = vcmp.lt.s32.totalorder %v51, 0
    %v318 = vsub.s32 0, %v51
    %v319 = vsel %vm317, %v318, %v51
    %v320 = vshrl.u32 %v319, 4
    %v321 = vand.u32 %v319, 15
    %v322 = vsub.s32 0, %v321
    %v323 = vsel %vm317, %v322, %v321
    %vm324 = vcmp.lt.s32.totalorder %v52, 0
    %v325 = vsub.s32 0, %v52
    %v326 = vsel %vm324, %v325, %v52
    %v327 = vshrl.u32 %v326, 4
    %v328 = vand.u32 %v326, 15
    %v329 = vsub.s32 0, %v328
    %v330 = vsel %vm324, %v329, %v328
    %vm331 = vcmp.lt.s32.totalorder %v53, 0
    %v332 = vsub.s32 0, %v53
    %v333 = vsel %vm331, %v332, %v53
    %v334 = vshrl.u32 %v333, 4
    %v335 = vand.u32 %v333, 15
    %v336 = vsub.s32 0, %v335
    %v337 = vsel %vm331, %v336, %v335
    %vm338 = vcmp.lt.s32.totalorder %v54, 0
    %v339 = vsub.s32 0, %v54
    %v340 = vsel %vm338, %v339, %v54
    %v341 = vshrl.u32 %v340, 4
    %v342 = vand.u32 %v340, 15
    %v343 = vsub.s32 0, %v342
    %v344 = vsel %vm338, %v343, %v342
    %vm345 = vcmp.lt.s32.totalorder %v55, 0
    %v346 = vsub.s32 0, %v55
    %v347 = vsel %vm345, %v346, %v55
    %v348 = vshrl.u32 %v347, 4
    %v349 = vand.u32 %v347, 15
    %v350 = vsub.s32 0, %v349
    %v351 = vsel %vm345, %v350, %v349
    %vm352 = vcmp.lt.s32.totalorder %v56, 0
    %v353 = vsub.s32 0, %v56
    %v354 = vsel %vm352, %v353, %v56
    %v355 = vshrl.u32 %v354, 4
    %v356 = vand.u32 %v354, 15
    %v357 = vsub.s32 0, %v356
    %v358 = vsel %vm352, %v357, %v356
    %vm359 = vcmp.lt.s32.totalorder %v57, 0
    %v360 = vsub.s32 0, %v57
    %v361 = vsel %vm359, %v360, %v57
    %v362 = vshrl.u32 %v361, 4
    %v363 = vand.u32 %v361, 15
    %v364 = vsub.s32 0, %v363
    %v365 = vsel %vm359, %v364, %v363
    %vm366 = vcmp.lt.s32.totalorder %v58, 0
    %v367 = vsub.s32 0, %v58
    %v368 = vsel %vm366, %v367, %v58
    %v369 = vshrl.u32 %v368, 4
    %v370 = vand.u32 %v368, 15
    %v371 = vsub.s32 0, %v370
    %v372 = vsel %vm366, %v371, %v370
    %vm373 = vcmp.lt.s32.totalorder %v59, 0
    %v374 = vsub.s32 0, %v59
    %v375 = vsel %vm373, %v374, %v59
    %v376 = vshrl.u32 %v375, 4
    %v377 = vand.u32 %v375, 15
    %v378 = vsub.s32 0, %v377
    %v379 = vsel %vm373, %v378, %v377
    %vm380 = vcmp.lt.s32.totalorder %v60, 0
    %v381 = vsub.s32 0, %v60
    %v382 = vsel %vm380, %v381, %v60
    %v383 = vshrl.u32 %v382, 4
    %v384 = vand.u32 %v382, 15
    %v385 = vsub.s32 0, %v384
    %v386 = vsel %vm380, %v385, %v384
    %vm387 = vcmp.lt.s32.totalorder %v61, 0
    %v388 = vsub.s32 0, %v61
    %v389 = vsel %vm387, %v388, %v61
    %v390 = vshrl.u32 %v389, 4
    %v391 = vand.u32 %v389, 15
    %v392 = vsub.s32 0, %v391
    %v393 = vsel %vm387, %v392, %v391
    %vm394 = vcmp.lt.s32.totalorder %v62, 0
    %v395 = vsub.s32 0, %v62
    %v396 = vsel %vm394, %v395, %v62
    %v397 = vshrl.u32 %v396, 4
    %v398 = vand.u32 %v396, 15
    %v399 = vsub.s32 0, %v398
    %v400 = vsel %vm394, %v399, %v398
    %vm401 = vcmp.lt.s32.totalorder %v63, 0
    %v402 = vsub.s32 0, %v63
    %v403 = vsel %vm401, %v402, %v63
    %v404 = vshrl.u32 %v403, 4
    %v405 = vand.u32 %v403, 15
    %v406 = vsub.s32 0, %v405
    %v407 = vsel %vm401, %v406, %v405
    %vm408 = vcmp.lt.s32.totalorder %v64, 0
    %v409 = vsub.s32 0, %v64
    %v410 = vsel %vm408, %v409, %v64
    %v411 = vshrl.u32 %v410, 4
    %v412 = vand.u32 %v410, 15
    %v413 = vsub.s32 0, %v412
    %v414 = vsel %vm408, %v413, %v412
    %vm415 = vcmp.lt.s32.totalorder %v65, 0
    %v416 = vsub.s32 0, %v65
    %v417 = vsel %vm415, %v416, %v65
    %v418 = vshrl.u32 %v417, 4
    %v419 = vand.u32 %v417, 15
    %v420 = vsub.s32 0, %v419
    %v421 = vsel %vm415, %v420, %v419
    %vm422 = vcmp.lt.s32.totalorder %v66, 0
    %v423 = vsub.s32 0, %v66
    %v424 = vsel %vm422, %v423, %v66
    %v425 = vshrl.u32 %v424, 4
    %v426 = vand.u32 %v424, 15
    %v427 = vsub.s32 0, %v426
    %v428 = vsel %vm422, %v427, %v426
    %vm429 = vcmp.lt.s32.totalorder %v67, 0
    %v430 = vsub.s32 0, %v67
    %v431 = vsel %vm429, %v430, %v67
    %v432 = vshrl.u32 %v431, 4
    %v433 = vand.u32 %v431, 15
    %v434 = vsub.s32 0, %v433
    %v435 = vsel %vm429, %v434, %v433
    %vm436 = vcmp.lt.s32.totalorder %v68, 0
    %v437 = vsub.s32 0, %v68
    %v438 = vsel %vm436, %v437, %v68
    %v439 = vshrl.u32 %v438, 4
    %v440 = vand.u32 %v438, 15
    %v441 = vsub.s32 0, %v440
    %v442 = vsel %vm436, %v441, %v440
    %vm443 = vcmp.lt.s32.totalorder %v69, 0
    %v444 = vsub.s32 0, %v69
    %v445 = vsel %vm443, %v444, %v69
    %v446 = vshrl.u32 %v445, 4
    %v447 = vand.u32 %v445, 15
    %v448 = vsub.s32 0, %v447
    %v449 = vsel %vm443, %v448, %v447
    %vm450 = vcmp.lt.s32.totalorder %v70, 0
    %v451 = vsub.s32 0, %v70
    %v452 = vsel %vm450, %v451, %v70
    %v453 = vshrl.u32 %v452, 4
    %v454 = vand.u32 %v452, 15
    %v455 = vsub.s32 0, %v454
    %v456 = vsel %vm450, %v455, %v454
    %vm457 = vcmp.lt.s32.totalorder %v71, 0
    %v458 = vsub.s32 0, %v71
    %v459 = vsel %vm457, %v458, %v71
    %v460 = vshrl.u32 %v459, 4
    %v461 = vand.u32 %v459, 15
    %v462 = vsub.s32 0, %v461
    %v463 = vsel %vm457, %v462, %v461
    %vm464 = vcmp.lt.s32.totalorder %v72, 0
    %v465 = vsub.s32 0, %v72
    %v466 = vsel %vm464, %v465, %v72
    %v467 = vshrl.u32 %v466, 4
    %v468 = vand.u32 %v466, 15
    %v469 = vsub.s32 0, %v468
    %v470 = vsel %vm464, %v469, %v468
    %vm471 = vcmp.lt.s32.totalorder %v73, 0
    %v472 = vsub.s32 0, %v73
    %v473 = vsel %vm471, %v472, %v73
    %v474 = vshrl.u32 %v473, 4
    %v475 = vand.u32 %v473, 15
    %v476 = vsub.s32 0, %v475
    %v477 = vsel %vm471, %v476, %v475
    %vm478 = vcmp.lt.s32.totalorder %v74, 0
    %v479 = vsub.s32 0, %v74
    %v480 = vsel %vm478, %v479, %v74
    %v481 = vshrl.u32 %v480, 4
    %v482 = vand.u32 %v480, 15
    %v483 = vsub.s32 0, %v482
    %v484 = vsel %vm478, %v483, %v482
    %vm485 = vcmp.lt.s32.totalorder %v75, 0
    %v486 = vsub.s32 0, %v75
    %v487 = vsel %vm485, %v486, %v75
    %v488 = vshrl.u32 %v487, 4
    %v489 = vand.u32 %v487, 15
    %v490 = vsub.s32 0, %v489
    %v491 = vsel %vm485, %v490, %v489
    %vm492 = vcmp.lt.s32.totalorder %v76, 0
    %v493 = vsub.s32 0, %v76
    %v494 = vsel %vm492, %v493, %v76
    %v495 = vshrl.u32 %v494, 4
    %v496 = vand.u32 %v494, 15
    %v497 = vsub.s32 0, %v496
    %v498 = vsel %vm492, %v497, %v496
    %vm499 = vcmp.lt.s32.totalorder %v77, 0
    %v500 = vsub.s32 0, %v77
    %v501 = vsel %vm499, %v500, %v77
    %v502 = vshrl.u32 %v501, 4
    %v503 = vand.u32 %v501, 15
    %v504 = vsub.s32 0, %v503
    %v505 = vsel %vm499, %v504, %v503
    %vm506 = vcmp.lt.s32.totalorder %v78, 0
    %v507 = vsub.s32 0, %v78
    %v508 = vsel %vm506, %v507, %v78
    %v509 = vshrl.u32 %v508, 4
    %v510 = vand.u32 %v508, 15
    %v511 = vsub.s32 0, %v510
    %v512 = vsel %vm506, %v511, %v510
    %vm513 = vcmp.lt.s32.totalorder %v79, 0
    %v514 = vsub.s32 0, %v79
    %v515 = vsel %vm513, %v514, %v79
    %v516 = vshrl.u32 %v515, 4
    %v517 = vand.u32 %v515, 15
    %v518 = vsub.s32 0, %v517
    %v519 = vsel %vm513, %v518, %v517
    %vm520 = vcmp.lt.s32.totalorder %v80, 0
    %v521 = vsub.s32 0, %v80
    %v522 = vsel %vm520, %v521, %v80
    %v523 = vshrl.u32 %v522, 4
    %v524 = vand.u32 %v522, 15
    %v525 = vsub.s32 0, %v524
    %v526 = vsel %vm520, %v525, %v524
    %vm527 = vcmp.lt.s32.totalorder %v81, 0
    %v528 = vsub.s32 0, %v81
    %v529 = vsel %vm527, %v528, %v81
    %v530 = vshrl.u32 %v529, 4
    %v531 = vand.u32 %v529, 15
    %v532 = vsub.s32 0, %v531
    %v533 = vsel %vm527, %v532, %v531
    %vm534 = vcmp.lt.s32.totalorder %v82, 0
    %v535 = vsub.s32 0, %v82
    %v536 = vsel %vm534, %v535, %v82
    %v537 = vshrl.u32 %v536, 4
    %v538 = vand.u32 %v536, 15
    %v539 = vsub.s32 0, %v538
    %v540 = vsel %vm534, %v539, %v538
    %vm541 = vcmp.lt.s32.totalorder %v83, 0
    %v542 = vsub.s32 0, %v83
    %v543 = vsel %vm541, %v542, %v83
    %v544 = vshrl.u32 %v543, 4
    %v545 = vand.u32 %v543, 15
    %v546 = vsub.s32 0, %v545
    %v547 = vsel %vm541, %v546, %v545
    %vm548 = vcmp.lt.s32.totalorder %v84, 0
    %v549 = vsub.s32 0, %v84
    %v550 = vsel %vm548, %v549, %v84
    %v551 = vshrl.u32 %v550, 4
    %v552 = vand.u32 %v550, 15
    %v553 = vsub.s32 0, %v552
    %v554 = vsel %vm548, %v553, %v552
    %vm555 = vcmp.lt.s32.totalorder %v85, 0
    %v556 = vsub.s32 0, %v85
    %v557 = vsel %vm555, %v556, %v85
    %v558 = vshrl.u32 %v557, 4
    %v559 = vand.u32 %v557, 15
    %v560 = vsub.s32 0, %v559
    %v561 = vsel %vm555, %v560, %v559
    %vm562 = vcmp.lt.s32.totalorder %v86, 0
    %v563 = vsub.s32 0, %v86
    %v564 = vsel %vm562, %v563, %v86
    %v565 = vshrl.u32 %v564, 4
    %v566 = vand.u32 %v564, 15
    %v567 = vsub.s32 0, %v566
    %v568 = vsel %vm562, %v567, %v566
    %vm569 = vcmp.lt.s32.totalorder %v87, 0
    %v570 = vsub.s32 0, %v87
    %v571 = vsel %vm569, %v570, %v87
    %v572 = vshrl.u32 %v571, 4
    %v573 = vand.u32 %v571, 15
    %v574 = vsub.s32 0, %v573
    %v575 = vsel %vm569, %v574, %v573
    %vm576 = vcmp.lt.s32.totalorder %v88, 0
    %v577 = vsub.s32 0, %v88
    %v578 = vsel %vm576, %v577, %v88
    %v579 = vshrl.u32 %v578, 4
    %v580 = vand.u32 %v578, 15
    %v581 = vsub.s32 0, %v580
    %v582 = vsel %vm576, %v581, %v580
    %vm583 = vcmp.lt.s32.totalorder %v89, 0
    %v584 = vsub.s32 0, %v89
    %v585 = vsel %vm583, %v584, %v89
    %v586 = vshrl.u32 %v585, 4
    %v587 = vand.u32 %v585, 15
    %v588 = vsub.s32 0, %v587
    %v589 = vsel %vm583, %v588, %v587
    %vm590 = vcmp.lt.s32.totalorder %v90, 0
    %v591 = vsub.s32 0, %v90
    %v592 = vsel %vm590, %v591, %v90
    %v593 = vshrl.u32 %v592, 4
    %v594 = vand.u32 %v592, 15
    %v595 = vsub.s32 0, %v594
    %v596 = vsel %vm590, %v595, %v594
    %vm597 = vcmp.lt.s32.totalorder %v91, 0
    %v598 = vsub.s32 0, %v91
    %v599 = vsel %vm597, %v598, %v91
    %v600 = vshrl.u32 %v599, 4
    %v601 = vand.u32 %v599, 15
    %v602 = vsub.s32 0, %v601
    %v603 = vsel %vm597, %v602, %v601
    %vm604 = vcmp.lt.s32.totalorder %v92, 0
    %v605 = vsub.s32 0, %v92
    %v606 = vsel %vm604, %v605, %v92
    %v607 = vshrl.u32 %v606, 4
    %v608 = vand.u32 %v606, 15
    %v609 = vsub.s32 0, %v608
    %v610 = vsel %vm604, %v609, %v608
    %vm611 = vcmp.lt.s32.totalorder %v93, 0
    %v612 = vsub.s32 0, %v93
    %v613 = vsel %vm611, %v612, %v93
    %v614 = vshrl.u32 %v613, 4
    %v615 = vand.u32 %v613, 15
    %v616 = vsub.s32 0, %v615
    %v617 = vsel %vm611, %v616, %v615
    %vm618 = vcmp.lt.s32.totalorder %v94, 0
    %v619 = vsub.s32 0, %v94
    %v620 = vsel %vm618, %v619, %v94
    %v621 = vshrl.u32 %v620, 4
    %v622 = vand.u32 %v620, 15
    %v623 = vsub.s32 0, %v622
    %v624 = vsel %vm618, %v623, %v622
    %vm625 = vcmp.lt.s32.totalorder %v95, 0
    %v626 = vsub.s32 0, %v95
    %v627 = vsel %vm625, %v626, %v95
    %v628 = vshrl.u32 %v627, 4
    %v629 = vand.u32 %v627, 15
    %v630 = vsub.s32 0, %v629
    %v631 = vsel %vm625, %v630, %v629
    %vm632 = vcmp.lt.s32.totalorder %v96, 0
    %v633 = vsub.s32 0, %v96
    %v634 = vsel %vm632, %v633, %v96
    %v635 = vshrl.u32 %v634, 4
    %v636 = vand.u32 %v634, 15
    %v637 = vsub.s32 0, %v636
    %v638 = vsel %vm632, %v637, %v636
    %vm639 = vcmp.lt.s32.totalorder %v97, 0
    %v640 = vsub.s32 0, %v97
    %v641 = vsel %vm639, %v640, %v97
    %v642 = vshrl.u32 %v641, 4
    %v643 = vand.u32 %v641, 15
    %v644 = vsub.s32 0, %v643
    %v645 = vsel %vm639, %v644, %v643
    %vm646 = vcmp.lt.s32.totalorder %v98, 0
    %v647 = vsub.s32 0, %v98
    %v648 = vsel %vm646, %v647, %v98
    %v649 = vshrl.u32 %v648, 4
    %v650 = vand.u32 %v648, 15
    %v651 = vsub.s32 0, %v650
    %v652 = vsel %vm646, %v651, %v650
    %vm653 = vcmp.lt.s32.totalorder %v99, 0
    %v654 = vsub.s32 0, %v99
    %v655 = vsel %vm653, %v654, %v99
    %v656 = vshrl.u32 %v655, 4
    %v657 = vand.u32 %v655, 15
    %v658 = vsub.s32 0, %v657
    %v659 = vsel %vm653, %v658, %v657
    %vm660 = vcmp.lt.s32.totalorder %v100, 0
    %v661 = vsub.s32 0, %v100
    %v662 = vsel %vm660, %v661, %v100
    %v663 = vshrl.u32 %v662, 4
    %v664 = vand.u32 %v662, 15
    %v665 = vsub.s32 0, %v664
    %v666 = vsel %vm660, %v665, %v664
    %vm667 = vcmp.lt.s32.totalorder %v101, 0
    %v668 = vsub.s32 0, %v101
    %v669 = vsel %vm667, %v668, %v101
    %v670 = vshrl.u32 %v669, 4
    %v671 = vand.u32 %v669, 15
    %v672 = vsub.s32 0, %v671
    %v673 = vsel %vm667, %v672, %v671
    %vm674 = vcmp.lt.s32.totalorder %v102, 0
    %v675 = vsub.s32 0, %v102
    %v676 = vsel %vm674, %v675, %v102
    %v677 = vshrl.u32 %v676, 4
    %v678 = vand.u32 %v676, 15
    %v679 = vsub.s32 0, %v678
    %v680 = vsel %vm674, %v679, %v678
    %vm681 = vcmp.lt.s32.totalorder %v103, 0
    %v682 = vsub.s32 0, %v103
    %v683 = vsel %vm681, %v682, %v103
    %v684 = vshrl.u32 %v683, 4
    %v685 = vand.u32 %v683, 15
    %v686 = vsub.s32 0, %v685
    %v687 = vsel %vm681, %v686, %v685
    %vm688 = vcmp.lt.s32.totalorder %v104, 0
    %v689 = vsub.s32 0, %v104
    %v690 = vsel %vm688, %v689, %v104
    %v691 = vshrl.u32 %v690, 4
    %v692 = vand.u32 %v690, 15
    %v693 = vsub.s32 0, %v692
    %v694 = vsel %vm688, %v693, %v692
    %vm695 = vcmp.lt.s32.totalorder %v105, 0
    %v696 = vsub.s32 0, %v105
    %v697 = vsel %vm695, %v696, %v105
    %v698 = vshrl.u32 %v697, 4
    %v699 = vand.u32 %v697, 15
    %v700 = vsub.s32 0, %v699
    %v701 = vsel %vm695, %v700, %v699
    %vm702 = vcmp.lt.s32.totalorder %v106, 0
    %v703 = vsub.s32 0, %v106
    %v704 = vsel %vm702, %v703, %v106
    %v705 = vshrl.u32 %v704, 4
    %v706 = vand.u32 %v704, 15
    %v707 = vsub.s32 0, %v706
    %v708 = vsel %vm702, %v707, %v706
    %vm709 = vcmp.lt.s32.totalorder %v107, 0
    %v710 = vsub.s32 0, %v107
    %v711 = vsel %vm709, %v710, %v107
    %v712 = vshrl.u32 %v711, 4
    %v713 = vand.u32 %v711, 15
    %v714 = vsub.s32 0, %v713
    %v715 = vsel %vm709, %v714, %v713
    %vm716 = vcmp.lt.s32.totalorder %v108, 0
    %v717 = vsub.s32 0, %v108
    %v718 = vsel %vm716, %v717, %v108
    %v719 = vshrl.u32 %v718, 4
    %v720 = vand.u32 %v718, 15
    %v721 = vsub.s32 0, %v720
    %v722 = vsel %vm716, %v721, %v720
    %vm723 = vcmp.lt.s32.totalorder %v109, 0
    %v724 = vsub.s32 0, %v109
    %v725 = vsel %vm723, %v724, %v109
    %v726 = vshrl.u32 %v725, 4
    %v727 = vand.u32 %v725, 15
    %v728 = vsub.s32 0, %v727
    %v729 = vsel %vm723, %v728, %v727
    %vm730 = vcmp.lt.s32.totalorder %v110, 0
    %v731 = vsub.s32 0, %v110
    %v732 = vsel %vm730, %v731, %v110
    %v733 = vshrl.u32 %v732, 4
    %v734 = vand.u32 %v732, 15
    %v735 = vsub.s32 0, %v734
    %v736 = vsel %vm730, %v735, %v734
    %vm737 = vcmp.lt.s32.totalorder %v111, 0
    %v738 = vsub.s32 0, %v111
    %v739 = vsel %vm737, %v738, %v111
    %v740 = vshrl.u32 %v739, 4
    %v741 = vand.u32 %v739, 15
    %v742 = vsub.s32 0, %v741
    %v743 = vsel %vm737, %v742, %v741
    %vm744 = vcmp.lt.s32.totalorder %v112, 0
    %v745 = vsub.s32 0, %v112
    %v746 = vsel %vm744, %v745, %v112
    %v747 = vshrl.u32 %v746, 4
    %v748 = vand.u32 %v746, 15
    %v749 = vsub.s32 0, %v748
    %v750 = vsel %vm744, %v749, %v748
    %vm751 = vcmp.lt.s32.totalorder %v113, 0
    %v752 = vsub.s32 0, %v113
    %v753 = vsel %vm751, %v752, %v113
    %v754 = vshrl.u32 %v753, 4
    %v755 = vand.u32 %v753, 15
    %v756 = vsub.s32 0, %v755
    %v757 = vsel %vm751, %v756, %v755
    %vm758 = vcmp.lt.s32.totalorder %v114, 0
    %v759 = vsub.s32 0, %v114
    %v760 = vsel %vm758, %v759, %v114
    %v761 = vshrl.u32 %v760, 4
    %v762 = vand.u32 %v760, 15
    %v763 = vsub.s32 0, %v762
    %v764 = vsel %vm758, %v763, %v762
    %vm765 = vcmp.lt.s32.totalorder %v115, 0
    %v766 = vsub.s32 0, %v115
    %v767 = vsel %vm765, %v766, %v115
    %v768 = vshrl.u32 %v767, 4
    %v769 = vand.u32 %v767, 15
    %v770 = vsub.s32 0, %v769
    %v771 = vsel %vm765, %v770, %v769
    %vm772 = vcmp.lt.s32.totalorder %v116, 0
    %v773 = vsub.s32 0, %v116
    %v774 = vsel %vm772, %v773, %v116
    %v775 = vshrl.u32 %v774, 4
    %v776 = vand.u32 %v774, 15
    %v777 = vsub.s32 0, %v776
    %v778 = vsel %vm772, %v777, %v776
    %vm779 = vcmp.lt.s32.totalorder %v117, 0
    %v780 = vsub.s32 0, %v117
    %v781 = vsel %vm779, %v780, %v117
    %v782 = vshrl.u32 %v781, 4
    %v783 = vand.u32 %v781, 15
    %v784 = vsub.s32 0, %v783
    %v785 = vsel %vm779, %v784, %v783
    %vm786 = vcmp.lt.s32.totalorder %v118, 0
    %v787 = vsub.s32 0, %v118
    %v788 = vsel %vm786, %v787, %v118
    %v789 = vshrl.u32 %v788, 4
    %v790 = vand.u32 %v788, 15
    %v791 = vsub.s32 0, %v790
    %v792 = vsel %vm786, %v791, %v790
    %vm793 = vcmp.lt.s32.totalorder %v119, 0
    %v794 = vsub.s32 0, %v119
    %v795 = vsel %vm793, %v794, %v119
    %v796 = vshrl.u32 %v795, 4
    %v797 = vand.u32 %v795, 15
    %v798 = vsub.s32 0, %v797
    %v799 = vsel %vm793, %v798, %v797
    %vm800 = vcmp.lt.s32.totalorder %v120, 0
    %v801 = vsub.s32 0, %v120
    %v802 = vsel %vm800, %v801, %v120
    %v803 = vshrl.u32 %v802, 4
    %v804 = vand.u32 %v802, 15
    %v805 = vsub.s32 0, %v804
    %v806 = vsel %vm800, %v805, %v804
    %vm807 = vcmp.lt.s32.totalorder %v121, 0
    %v808 = vsub.s32 0, %v121
    %v809 = vsel %vm807, %v808, %v121
    %v810 = vshrl.u32 %v809, 4
    %v811 = vand.u32 %v809, 15
    %v812 = vsub.s32 0, %v811
    %v813 = vsel %vm807, %v812, %v811
    %vm814 = vcmp.lt.s32.totalorder %v122, 0
    %v815 = vsub.s32 0, %v122
    %v816 = vsel %vm814, %v815, %v122
    %v817 = vshrl.u32 %v816, 4
    %v818 = vand.u32 %v816, 15
    %v819 = vsub.s32 0, %v818
    %v820 = vsel %vm814, %v819, %v818
    %vm821 = vcmp.lt.s32.totalorder %v123, 0
    %v822 = vsub.s32 0, %v123
    %v823 = vsel %vm821, %v822, %v123
    %v824 = vshrl.u32 %v823, 4
    %v825 = vand.u32 %v823, 15
    %v826 = vsub.s32 0, %v825
    %v827 = vsel %vm821, %v826, %v825
    %vm828 = vcmp.lt.s32.totalorder %v124, 0
    %v829 = vsub.s32 0, %v124
    %v830 = vsel %vm828, %v829, %v124
    %v831 = vshrl.u32 %v830, 4
    %v832 = vand.u32 %v830, 15
    %v833 = vsub.s32 0, %v832
    %v834 = vsel %vm828, %v833, %v832
    %vm835 = vcmp.lt.s32.totalorder %v125, 0
    %v836 = vsub.s32 0, %v125
    %v837 = vsel %vm835, %v836, %v125
    %v838 = vshrl.u32 %v837, 4
    %v839 = vand.u32 %v837, 15
    %v840 = vsub.s32 0, %v839
    %v841 = vsel %vm835, %v840, %v839
    %vm842 = vcmp.lt.s32.totalorder %v126, 0
    %v843 = vsub.s32 0, %v126
    %v844 = vsel %vm842, %v843, %v126
    %v845 = vshrl.u32 %v844, 4
    %v846 = vand.u32 %v844, 15
    %v847 = vsub.s32 0, %v846
    %v848 = vsel %vm842, %v847, %v846
    %vm849 = vcmp.lt.s32.totalorder %v127, 0
    %v850 = vsub.s32 0, %v127
    %v851 = vsel %vm849, %v850, %v127
    %v852 = vshrl.u32 %v851, 4
    %v853 = vand.u32 %v851, 15
    %v854 = vsub.s32 0, %v853
    %v855 = vsel %vm849, %v854, %v853
    %vm856 = vcmp.lt.s32.totalorder %v128, 0
    %v857 = vsub.s32 0, %v128
    %v858 = vsel %vm856, %v857, %v128
    %v859 = vshrl.u32 %v858, 4
    %v860 = vand.u32 %v858, 15
    %v861 = vsub.s32 0, %v860
    %v862 = vsel %vm856, %v861, %v860
    %vm863 = vcmp.lt.s32.totalorder %v129, 0
    %v864 = vsub.s32 0, %v129
    %v865 = vsel %vm863, %v864, %v129
    %v866 = vshrl.u32 %v865, 4
    %v867 = vand.u32 %v865, 15
    %v868 = vsub.s32 0, %v867
    %v869 = vsel %vm863, %v868, %v867
    %vm870 = vcmp.lt.s32.totalorder %v130, 0
    %v871 = vsub.s32 0, %v130
    %v872 = vsel %vm870, %v871, %v130
    %v873 = vshrl.u32 %v872, 4
    %v874 = vand.u32 %v872, 15
    %v875 = vsub.s32 0, %v874
    %v876 = vsel %vm870, %v875, %v874
    %vm877 = vcmp.lt.s32.totalorder %v131, 0
    %v878 = vsub.s32 0, %v131
    %v879 = vsel %vm877, %v878, %v131
    %v880 = vshrl.u32 %v879, 4
    %v881 = vand.u32 %v879, 15
    %v882 = vsub.s32 0, %v881
    %v883 = vsel %vm877, %v882, %v881
    %vm884 = vcmp.lt.s32.totalorder %v132, 0
    %v885 = vsub.s32 0, %v132
    %v886 = vsel %vm884, %v885, %v132
    %v887 = vshrl.u32 %v886, 4
    %v888 = vand.u32 %v886, 15
    %v889 = vsub.s32 0, %v888
    %v890 = vsel %vm884, %v889, %v888
    %vm891 = vcmp.lt.s32.totalorder %v133, 0
    %v892 = vsub.s32 0, %v133
    %v893 = vsel %vm891, %v892, %v133
    %v894 = vshrl.u32 %v893, 4
    %v895 = vand.u32 %v893, 15
    %v896 = vsub.s32 0, %v895
    %v897 = vsel %vm891, %v896, %v895
    %vm898 = vcmp.lt.s32.totalorder %v134, 0
    %v899 = vsub.s32 0, %v134
    %v900 = vsel %vm898, %v899, %v134
    %v901 = vshrl.u32 %v900, 4
    %v902 = vand.u32 %v900, 15
    %v903 = vsub.s32 0, %v902
    %v904 = vsel %vm898, %v903, %v902
    %vm905 = vcmp.lt.s32.totalorder %v135, 0
    %v906 = vsub.s32 0, %v135
    %v907 = vsel %vm905, %v906, %v135
    %v908 = vshrl.u32 %v907, 4
    %v909 = vand.u32 %v907, 15
    %v910 = vsub.s32 0, %v909
    %v911 = vsel %vm905, %v910, %v909
    %vm912 = vcmp.lt.s32.totalorder %v136, 0
    %v913 = vsub.s32 0, %v136
    %v914 = vsel %vm912, %v913, %v136
    %v915 = vshrl.u32 %v914, 4
    %v916 = vand.u32 %v914, 15
    %v917 = vsub.s32 0, %v916
    %v918 = vsel %vm912, %v917, %v916
    %vm919 = vcmp.lt.s32.totalorder %v137, 0
    %v920 = vsub.s32 0, %v137
    %v921 = vsel %vm919, %v920, %v137
    %v922 = vshrl.u32 %v921, 4
    %v923 = vand.u32 %v921, 15
    %v924 = vsub.s32 0, %v923
    %v925 = vsel %vm919, %v924, %v923
    %vm926 = vcmp.lt.s32.totalorder %v138, 0
    %v927 = vsub.s32 0, %v138
    %v928 = vsel %vm926, %v927, %v138
    %v929 = vshrl.u32 %v928, 4
    %v930 = vand.u32 %v928, 15
    %v931 = vsub.s32 0, %v930
    %v932 = vsel %vm926, %v931, %v930
    %vm933 = vcmp.lt.s32.totalorder %v139, 0
    %v934 = vsub.s32 0, %v139
    %v935 = vsel %vm933, %v934, %v139
    %v936 = vshrl.u32 %v935, 4
    %v937 = vand.u32 %v935, 15
    %v938 = vsub.s32 0, %v937
    %v939 = vsel %vm933, %v938, %v937
    %vm940 = vcmp.lt.s32.totalorder %v140, 0
    %v941 = vsub.s32 0, %v140
    %v942 = vsel %vm940, %v941, %v140
    %v943 = vshrl.u32 %v942, 4
    %v944 = vand.u32 %v942, 15
    %v945 = vsub.s32 0, %v944
    %v946 = vsel %vm940, %v945, %v944
    %vm947 = vcmp.lt.s32.totalorder %v141, 0
    %v948 = vsub.s32 0, %v141
    %v949 = vsel %vm947, %v948, %v141
    %v950 = vshrl.u32 %v949, 4
    %v951 = vand.u32 %v949, 15
    %v952 = vsub.s32 0, %v951
    %v953 = vsel %vm947, %v952, %v951
    %vm954 = vcmp.lt.s32.totalorder %v142, 0
    %v955 = vsub.s32 0, %v142
    %v956 = vsel %vm954, %v955, %v142
    %v957 = vshrl.u32 %v956, 4
    %v958 = vand.u32 %v956, 15
    %v959 = vsub.s32 0, %v958
    %v960 = vsel %vm954, %v959, %v958
    %vm961 = vcmp.lt.s32.totalorder %v143, 0
    %v962 = vsub.s32 0, %v143
    %v963 = vsel %vm961, %v962, %v143
    %v964 = vshrl.u32 %v963, 4
    %v965 = vand.u32 %v963, 15
    %v966 = vsub.s32 0, %v965
    %v967 = vsel %vm961, %v966, %v965
    %vm968 = vcmp.lt.s32.totalorder %v144, 0
    %v969 = vsub.s32 0, %v144
    %v970 = vsel %vm968, %v969, %v144
    %v971 = vshrl.u32 %v970, 4
    %v972 = vand.u32 %v970, 15
    %v973 = vsub.s32 0, %v972
    %v974 = vsel %vm968, %v973, %v972
    %vm975 = vcmp.lt.s32.totalorder %v145, 0
    %v976 = vsub.s32 0, %v145
    %v977 = vsel %vm975, %v976, %v145
    %v978 = vshrl.u32 %v977, 4
    %v979 = vand.u32 %v977, 15
    %v980 = vsub.s32 0, %v979
    %v981 = vsel %vm975, %v980, %v979
    %vm982 = vcmp.lt.s32.totalorder %v146, 0
    %v983 = vsub.s32 0, %v146
    %v984 = vsel %vm982, %v983, %v146
    %v985 = vshrl.u32 %v984, 4
    %v986 = vand.u32 %v984, 15
    %v987 = vsub.s32 0, %v986
    %v988 = vsel %vm982, %v987, %v986
    %vm989 = vcmp.lt.s32.totalorder %v147, 0
    %v990 = vsub.s32 0, %v147
    %v991 = vsel %vm989, %v990, %v147
    %v992 = vshrl.u32 %v991, 4
    %v993 = vand.u32 %v991, 15
    %v994 = vsub.s32 0, %v993
    %v995 = vsel %vm989, %v994, %v993
    %vm996 = vcmp.lt.s32.totalorder %v148, 0
    %v997 = vsub.s32 0, %v148
    %v998 = vsel %vm996, %v997, %v148
    %v999 = vshrl.u32 %v998, 4
    %v1000 = vand.u32 %v998, 15
    %v1001 = vsub.s32 0, %v1000
    %v1002 = vsel %vm996, %v1001, %v1000
    %vm1003 = vcmp.lt.s32.totalorder %v149, 0
    %v1004 = vsub.s32 0, %v149
    %v1005 = vsel %vm1003, %v1004, %v149
    %v1006 = vshrl.u32 %v1005, 4
    %v1007 = vand.u32 %v1005, 15
    %v1008 = vsub.s32 0, %v1007
    %v1009 = vsel %vm1003, %v1008, %v1007
    %vm1010 = vcmp.lt.s32.totalorder %v150, 0
    %v1011 = vsub.s32 0, %v150
    %v1012 = vsel %vm1010, %v1011, %v150
    %v1013 = vshrl.u32 %v1012, 4
    %v1014 = vand.u32 %v1012, 15
    %v1015 = vsub.s32 0, %v1014
    %v1016 = vsel %vm1010, %v1015, %v1014
    %vm1017 = vcmp.lt.s32.totalorder %v151, 0
    %v1018 = vsub.s32 0, %v151
    %v1019 = vsel %vm1017, %v1018, %v151
    %v1020 = vshrl.u32 %v1019, 4
    %v1021 = vand.u32 %v1019, 15
    %v1022 = vsub.s32 0, %v1021
    %v1023 = vsel %vm1017, %v1022, %v1021
    %vm1024 = vcmp.lt.s32.totalorder %v152, 0
    %v1025 = vsub.s32 0, %v152
    %v1026 = vsel %vm1024, %v1025, %v152
    %v1027 = vshrl.u32 %v1026, 4
    %v1028 = vand.u32 %v1026, 15
    %v1029 = vsub.s32 0, %v1028
    %v1030 = vsel %vm1024, %v1029, %v1028
    %vm1031 = vcmp.lt.s32.totalorder %v153, 0
    %v1032 = vsub.s32 0, %v153
    %v1033 = vsel %vm1031, %v1032, %v153
    %v1034 = vshrl.u32 %v1033, 4
    %v1035 = vand.u32 %v1033, 15
    %v1036 = vsub.s32 0, %v1035
    %v1037 = vsel %vm1031, %v1036, %v1035
    %vm1038 = vcmp.lt.s32.totalorder %v154, 0
    %v1039 = vsub.s32 0, %v154
    %v1040 = vsel %vm1038, %v1039, %v154
    %v1041 = vshrl.u32 %v1040, 4
    %v1042 = vand.u32 %v1040, 15
    %v1043 = vsub.s32 0, %v1042
    %v1044 = vsel %vm1038, %v1043, %v1042
    %vm1045 = vcmp.lt.s32.totalorder %v155, 0
    %v1046 = vsub.s32 0, %v155
    %v1047 = vsel %vm1045, %v1046, %v155
    %v1048 = vshrl.u32 %v1047, 4
    %v1049 = vand.u32 %v1047, 15
    %v1050 = vsub.s32 0, %v1049
    %v1051 = vsel %vm1045, %v1050, %v1049
    %vm1052 = vcmp.ne.s32.totalorder %v162, 0
    %vm1053 = vcmp.ne.s32.totalorder %v169, 0
    %vm1054 = vcmp.ne.s32.totalorder %v176, 0
    %vm1055 = vcmp.ne.s32.totalorder %v183, 0
    %vm1056 = vcmp.ne.s32.totalorder %v190, 0
    %vm1057 = vcmp.ne.s32.totalorder %v197, 0
    %vm1058 = vcmp.ne.s32.totalorder %v204, 0
    %vm1059 = vcmp.ne.s32.totalorder %v211, 0
    %vm1060 = vcmp.ne.s32.totalorder %v218, 0
    %vm1061 = vcmp.ne.s32.totalorder %v225, 0
    %vm1062 = vcmp.ne.s32.totalorder %v232, 0
    %vm1063 = vcmp.ne.s32.totalorder %v239, 0
    %vm1064 = vcmp.ne.s32.totalorder %v246, 0
    %vm1065 = vcmp.ne.s32.totalorder %v253, 0
    %vm1066 = vcmp.ne.s32.totalorder %v260, 0
    %vm1067 = vcmp.ne.s32.totalorder %v267, 0
    %vm1068 = vcmp.ne.s32.totalorder %v274, 0
    %vm1069 = vcmp.ne.s32.totalorder %v281, 0
    %vm1070 = vcmp.ne.s32.totalorder %v288, 0
    %vm1071 = vcmp.ne.s32.totalorder %v295, 0
    %vm1072 = vcmp.ne.s32.totalorder %v302, 0
    %vm1073 = vcmp.ne.s32.totalorder %v309, 0
    %vm1074 = vcmp.ne.s32.totalorder %v316, 0
    %vm1075 = vcmp.ne.s32.totalorder %v323, 0
    %vm1076 = vcmp.ne.s32.totalorder %v330, 0
    %vm1077 = vcmp.ne.s32.totalorder %v337, 0
    %vm1078 = vcmp.ne.s32.totalorder %v344, 0
    %vm1079 = vcmp.ne.s32.totalorder %v351, 0
    %vm1080 = vcmp.ne.s32.totalorder %v358, 0
    %vm1081 = vcmp.ne.s32.totalorder %v365, 0
    %vm1082 = vcmp.ne.s32.totalorder %v372, 0
    %vm1083 = vcmp.ne.s32.totalorder %v379, 0
    %vm1084 = vcmp.ne.s32.totalorder %v386, 0
    %vm1085 = vcmp.ne.s32.totalorder %v393, 0
    %vm1086 = vcmp.ne.s32.totalorder %v400, 0
    %vm1087 = vcmp.ne.s32.totalorder %v407, 0
    %vm1088 = vcmp.ne.s32.totalorder %v414, 0
    %vm1089 = vcmp.ne.s32.totalorder %v421, 0
    %vm1090 = vcmp.ne.s32.totalorder %v428, 0
    %vm1091 = vcmp.ne.s32.totalorder %v435, 0
    %vm1092 = vcmp.ne.s32.totalorder %v442, 0
    %vm1093 = vcmp.ne.s32.totalorder %v449, 0
    %vm1094 = vcmp.ne.s32.totalorder %v456, 0
    %vm1095 = vcmp.ne.s32.totalorder %v463, 0
    %vm1096 = vcmp.ne.s32.totalorder %v470, 0
    %vm1097 = vcmp.ne.s32.totalorder %v477, 0
    %vm1098 = vcmp.ne.s32.totalorder %v484, 0
    %vm1099 = vcmp.ne.s32.totalorder %v491, 0
    %vm1100 = vcmp.ne.s32.totalorder %v498, 0
    %vm1101 = vcmp.ne.s32.totalorder %v505, 0
    %vm1102 = vcmp.ne.s32.totalorder %v512, 0
    %vm1103 = vcmp.ne.s32.totalorder %v519, 0
    %vm1104 = vcmp.ne.s32.totalorder %v526, 0
    %vm1105 = vcmp.ne.s32.totalorder %v533, 0
    %vm1106 = vcmp.ne.s32.totalorder %v540, 0
    %vm1107 = vcmp.ne.s32.totalorder %v547, 0
    %vm1108 = vcmp.ne.s32.totalorder %v554, 0
    %vm1109 = vcmp.ne.s32.totalorder %v561, 0
    %vm1110 = vcmp.ne.s32.totalorder %v568, 0
    %vm1111 = vcmp.ne.s32.totalorder %v575, 0
    %vm1112 = vcmp.ne.s32.totalorder %v582, 0
    %vm1113 = vcmp.ne.s32.totalorder %v589, 0
    %vm1114 = vcmp.ne.s32.totalorder %v596, 0
    %vm1115 = vcmp.ne.s32.totalorder %v603, 0
    %vm1116 = vcmp.ne.s32.totalorder %v610, 0
    %vm1117 = vcmp.ne.s32.totalorder %v617, 0
    %vm1118 = vcmp.ne.s32.totalorder %v624, 0
    %vm1119 = vcmp.ne.s32.totalorder %v631, 0
    %vm1120 = vcmp.ne.s32.totalorder %v638, 0
    %vm1121 = vcmp.ne.s32.totalorder %v645, 0
    %vm1122 = vcmp.ne.s32.totalorder %v652, 0
    %vm1123 = vcmp.ne.s32.totalorder %v659, 0
    %vm1124 = vcmp.ne.s32.totalorder %v666, 0
    %vm1125 = vcmp.ne.s32.totalorder %v673, 0
    %vm1126 = vcmp.ne.s32.totalorder %v680, 0
    %vm1127 = vcmp.ne.s32.totalorder %v687, 0
    %vm1128 = vcmp.ne.s32.totalorder %v694, 0
    %vm1129 = vcmp.ne.s32.totalorder %v701, 0
    %vm1130 = vcmp.ne.s32.totalorder %v708, 0
    %vm1131 = vcmp.ne.s32.totalorder %v715, 0
    %vm1132 = vcmp.ne.s32.totalorder %v722, 0
    %vm1133 = vcmp.ne.s32.totalorder %v729, 0
    %vm1134 = vcmp.ne.s32.totalorder %v736, 0
    %vm1135 = vcmp.ne.s32.totalorder %v743, 0
    %vm1136 = vcmp.ne.s32.totalorder %v750, 0
    %vm1137 = vcmp.ne.s32.totalorder %v757, 0
    %vm1138 = vcmp.ne.s32.totalorder %v764, 0
    %vm1139 = vcmp.ne.s32.totalorder %v771, 0
    %vm1140 = vcmp.ne.s32.totalorder %v778, 0
    %vm1141 = vcmp.ne.s32.totalorder %v785, 0
    %vm1142 = vcmp.ne.s32.totalorder %v792, 0
    %vm1143 = vcmp.ne.s32.totalorder %v799, 0
    %vm1144 = vcmp.ne.s32.totalorder %v806, 0
    %vm1145 = vcmp.ne.s32.totalorder %v813, 0
    %vm1146 = vcmp.ne.s32.totalorder %v820, 0
    %vm1147 = vcmp.ne.s32.totalorder %v827, 0
    %vm1148 = vcmp.ne.s32.totalorder %v834, 0
    %vm1149 = vcmp.ne.s32.totalorder %v841, 0
    %vm1150 = vcmp.ne.s32.totalorder %v848, 0
    %vm1151 = vcmp.ne.s32.totalorder %v855, 0
    %vm1152 = vcmp.ne.s32.totalorder %v862, 0
    %vm1153 = vcmp.ne.s32.totalorder %v869, 0
    %vm1154 = vcmp.ne.s32.totalorder %v876, 0
    %vm1155 = vcmp.ne.s32.totalorder %v883, 0
    %vm1156 = vcmp.ne.s32.totalorder %v890, 0
    %vm1157 = vcmp.ne.s32.totalorder %v897, 0
    %vm1158 = vcmp.ne.s32.totalorder %v904, 0
    %vm1159 = vcmp.ne.s32.totalorder %v911, 0
    %vm1160 = vcmp.ne.s32.totalorder %v918, 0
    %vm1161 = vcmp.ne.s32.totalorder %v925, 0
    %vm1162 = vcmp.ne.s32.totalorder %v932, 0
    %vm1163 = vcmp.ne.s32.totalorder %v939, 0
    %vm1164 = vcmp.ne.s32.totalorder %v946, 0
    %vm1165 = vcmp.ne.s32.totalorder %v953, 0
    %vm1166 = vcmp.ne.s32.totalorder %v960, 0
    %vm1167 = vcmp.ne.s32.totalorder %v967, 0
    %vm1168 = vcmp.ne.s32.totalorder %v974, 0
    %vm1169 = vcmp.ne.s32.totalorder %v981, 0
    %vm1170 = vcmp.ne.s32.totalorder %v988, 0
    %vm1171 = vcmp.ne.s32.totalorder %v995, 0
    %vm1172 = vcmp.ne.s32.totalorder %v1002, 0
    %vm1173 = vcmp.ne.s32.totalorder %v1009, 0
    %vm1174 = vcmp.ne.s32.totalorder %v1016, 0
    %vm1175 = vcmp.ne.s32.totalorder %v1023, 0
    %vm1176 = vcmp.ne.s32.totalorder %v1030, 0
    %vm1177 = vcmp.ne.s32.totalorder %v1037, 0
    %vm1178 = vcmp.ne.s32.totalorder %v1044, 0
    %vm1179 = vcmp.ne.s32.totalorder %v1051, 0
    %vm1180 = vcmp.lt.s32.totalorder %v162, 0
    %vm1181 = vcmp.lt.s32.totalorder %v169, 0
    %vm1182 = vcmp.lt.s32.totalorder %v176, 0
    %vm1183 = vcmp.lt.s32.totalorder %v183, 0
    %vm1184 = vcmp.lt.s32.totalorder %v190, 0
    %vm1185 = vcmp.lt.s32.totalorder %v197, 0
    %vm1186 = vcmp.lt.s32.totalorder %v204, 0
    %vm1187 = vcmp.lt.s32.totalorder %v211, 0
    %vm1188 = vcmp.lt.s32.totalorder %v218, 0
    %vm1189 = vcmp.lt.s32.totalorder %v225, 0
    %vm1190 = vcmp.lt.s32.totalorder %v232, 0
    %vm1191 = vcmp.lt.s32.totalorder %v239, 0
    %vm1192 = vcmp.lt.s32.totalorder %v246, 0
    %vm1193 = vcmp.lt.s32.totalorder %v253, 0
    %vm1194 = vcmp.lt.s32.totalorder %v260, 0
    %vm1195 = vcmp.lt.s32.totalorder %v267, 0
    %vm1196 = vcmp.lt.s32.totalorder %v274, 0
    %vm1197 = vcmp.lt.s32.totalorder %v281, 0
    %vm1198 = vcmp.lt.s32.totalorder %v288, 0
    %vm1199 = vcmp.lt.s32.totalorder %v295, 0
    %vm1200 = vcmp.lt.s32.totalorder %v302, 0
    %vm1201 = vcmp.lt.s32.totalorder %v309, 0
    %vm1202 = vcmp.lt.s32.totalorder %v316, 0
    %vm1203 = vcmp.lt.s32.totalorder %v323, 0
    %vm1204 = vcmp.lt.s32.totalorder %v330, 0
    %vm1205 = vcmp.lt.s32.totalorder %v337, 0
    %vm1206 = vcmp.lt.s32.totalorder %v344, 0
    %vm1207 = vcmp.lt.s32.totalorder %v351, 0
    %vm1208 = vcmp.lt.s32.totalorder %v358, 0
    %vm1209 = vcmp.lt.s32.totalorder %v365, 0
    %vm1210 = vcmp.lt.s32.totalorder %v372, 0
    %vm1211 = vcmp.lt.s32.totalorder %v379, 0
    %vm1212 = vcmp.lt.s32.totalorder %v386, 0
    %vm1213 = vcmp.lt.s32.totalorder %v393, 0
    %vm1214 = vcmp.lt.s32.totalorder %v400, 0
    %vm1215 = vcmp.lt.s32.totalorder %v407, 0
    %vm1216 = vcmp.lt.s32.totalorder %v414, 0
    %vm1217 = vcmp.lt.s32.totalorder %v421, 0
    %vm1218 = vcmp.lt.s32.totalorder %v428, 0
    %vm1219 = vcmp.lt.s32.totalorder %v435, 0
    %vm1220 = vcmp.lt.s32.totalorder %v442, 0
    %vm1221 = vcmp.lt.s32.totalorder %v449, 0
    %vm1222 = vcmp.lt.s32.totalorder %v456, 0
    %vm1223 = vcmp.lt.s32.totalorder %v463, 0
    %vm1224 = vcmp.lt.s32.totalorder %v470, 0
    %vm1225 = vcmp.lt.s32.totalorder %v477, 0
    %vm1226 = vcmp.lt.s32.totalorder %v484, 0
    %vm1227 = vcmp.lt.s32.totalorder %v491, 0
    %vm1228 = vcmp.lt.s32.totalorder %v498, 0
    %vm1229 = vcmp.lt.s32.totalorder %v505, 0
    %vm1230 = vcmp.lt.s32.totalorder %v512, 0
    %vm1231 = vcmp.lt.s32.totalorder %v519, 0
    %vm1232 = vcmp.lt.s32.totalorder %v526, 0
    %vm1233 = vcmp.lt.s32.totalorder %v533, 0
    %vm1234 = vcmp.lt.s32.totalorder %v540, 0
    %vm1235 = vcmp.lt.s32.totalorder %v547, 0
    %vm1236 = vcmp.lt.s32.totalorder %v554, 0
    %vm1237 = vcmp.lt.s32.totalorder %v561, 0
    %vm1238 = vcmp.lt.s32.totalorder %v568, 0
    %vm1239 = vcmp.lt.s32.totalorder %v575, 0
    %vm1240 = vcmp.lt.s32.totalorder %v582, 0
    %vm1241 = vcmp.lt.s32.totalorder %v589, 0
    %vm1242 = vcmp.lt.s32.totalorder %v596, 0
    %vm1243 = vcmp.lt.s32.totalorder %v603, 0
    %vm1244 = vcmp.lt.s32.totalorder %v610, 0
    %vm1245 = vcmp.lt.s32.totalorder %v617, 0
    %vm1246 = vcmp.lt.s32.totalorder %v624, 0
    %vm1247 = vcmp.lt.s32.totalorder %v631, 0
    %vm1248 = vcmp.lt.s32.totalorder %v638, 0
    %vm1249 = vcmp.lt.s32.totalorder %v645, 0
    %vm1250 = vcmp.lt.s32.totalorder %v652, 0
    %vm1251 = vcmp.lt.s32.totalorder %v659, 0
    %vm1252 = vcmp.lt.s32.totalorder %v666, 0
    %vm1253 = vcmp.lt.s32.totalorder %v673, 0
    %vm1254 = vcmp.lt.s32.totalorder %v680, 0
    %vm1255 = vcmp.lt.s32.totalorder %v687, 0
    %vm1256 = vcmp.lt.s32.totalorder %v694, 0
    %vm1257 = vcmp.lt.s32.totalorder %v701, 0
    %vm1258 = vcmp.lt.s32.totalorder %v708, 0
    %vm1259 = vcmp.lt.s32.totalorder %v715, 0
    %vm1260 = vcmp.lt.s32.totalorder %v722, 0
    %vm1261 = vcmp.lt.s32.totalorder %v729, 0
    %vm1262 = vcmp.lt.s32.totalorder %v736, 0
    %vm1263 = vcmp.lt.s32.totalorder %v743, 0
    %vm1264 = vcmp.lt.s32.totalorder %v750, 0
    %vm1265 = vcmp.lt.s32.totalorder %v757, 0
    %vm1266 = vcmp.lt.s32.totalorder %v764, 0
    %vm1267 = vcmp.lt.s32.totalorder %v771, 0
    %vm1268 = vcmp.lt.s32.totalorder %v778, 0
    %vm1269 = vcmp.lt.s32.totalorder %v785, 0
    %vm1270 = vcmp.lt.s32.totalorder %v792, 0
    %vm1271 = vcmp.lt.s32.totalorder %v799, 0
    %vm1272 = vcmp.lt.s32.totalorder %v806, 0
    %vm1273 = vcmp.lt.s32.totalorder %v813, 0
    %vm1274 = vcmp.lt.s32.totalorder %v820, 0
    %vm1275 = vcmp.lt.s32.totalorder %v827, 0
    %vm1276 = vcmp.lt.s32.totalorder %v834, 0
    %vm1277 = vcmp.lt.s32.totalorder %v841, 0
    %vm1278 = vcmp.lt.s32.totalorder %v848, 0
    %vm1279 = vcmp.lt.s32.totalorder %v855, 0
    %vm1280 = vcmp.lt.s32.totalorder %v862, 0
    %vm1281 = vcmp.lt.s32.totalorder %v869, 0
    %vm1282 = vcmp.lt.s32.totalorder %v876, 0
    %vm1283 = vcmp.lt.s32.totalorder %v883, 0
    %vm1284 = vcmp.lt.s32.totalorder %v890, 0
    %vm1285 = vcmp.lt.s32.totalorder %v897, 0
    %vm1286 = vcmp.lt.s32.totalorder %v904, 0
    %vm1287 = vcmp.lt.s32.totalorder %v911, 0
    %vm1288 = vcmp.lt.s32.totalorder %v918, 0
    %vm1289 = vcmp.lt.s32.totalorder %v925, 0
    %vm1290 = vcmp.lt.s32.totalorder %v932, 0
    %vm1291 = vcmp.lt.s32.totalorder %v939, 0
    %vm1292 = vcmp.lt.s32.totalorder %v946, 0
    %vm1293 = vcmp.lt.s32.totalorder %v953, 0
    %vm1294 = vcmp.lt.s32.totalorder %v960, 0
    %vm1295 = vcmp.lt.s32.totalorder %v967, 0
    %vm1296 = vcmp.lt.s32.totalorder %v974, 0
    %vm1297 = vcmp.lt.s32.totalorder %v981, 0
    %vm1298 = vcmp.lt.s32.totalorder %v988, 0
    %vm1299 = vcmp.lt.s32.totalorder %v995, 0
    %vm1300 = vcmp.lt.s32.totalorder %v1002, 0
    %vm1301 = vcmp.lt.s32.totalorder %v1009, 0
    %vm1302 = vcmp.lt.s32.totalorder %v1016, 0
    %vm1303 = vcmp.lt.s32.totalorder %v1023, 0
    %vm1304 = vcmp.lt.s32.totalorder %v1030, 0
    %vm1305 = vcmp.lt.s32.totalorder %v1037, 0
    %vm1306 = vcmp.lt.s32.totalorder %v1044, 0
    %vm1307 = vcmp.lt.s32.totalorder %v1051, 0
    %vm1308 = vmand %vm1180, %vm1052
    %vm1309 = vmand %vm1181, %vm1053
    %vm1310 = vmand %vm1182, %vm1054
    %vm1311 = vmand %vm1183, %vm1055
    %vm1312 = vmand %vm1184, %vm1056
    %vm1313 = vmand %vm1185, %vm1057
    %vm1314 = vmand %vm1186, %vm1058
    %vm1315 = vmand %vm1187, %vm1059
    %vm1316 = vmand %vm1188, %vm1060
    %vm1317 = vmand %vm1189, %vm1061
    %vm1318 = vmand %vm1190, %vm1062
    %vm1319 = vmand %vm1191, %vm1063
    %vm1320 = vmand %vm1192, %vm1064
    %vm1321 = vmand %vm1193, %vm1065
    %vm1322 = vmand %vm1194, %vm1066
    %vm1323 = vmand %vm1195, %vm1067
    %vm1324 = vmand %vm1196, %vm1068
    %vm1325 = vmand %vm1197, %vm1069
    %vm1326 = vmand %vm1198, %vm1070
    %vm1327 = vmand %vm1199, %vm1071
    %vm1328 = vmand %vm1200, %vm1072
    %vm1329 = vmand %vm1201, %vm1073
    %vm1330 = vmand %vm1202, %vm1074
    %vm1331 = vmand %vm1203, %vm1075
    %vm1332 = vmand %vm1204, %vm1076
    %vm1333 = vmand %vm1205, %vm1077
    %vm1334 = vmand %vm1206, %vm1078
    %vm1335 = vmand %vm1207, %vm1079
    %vm1336 = vmand %vm1208, %vm1080
    %vm1337 = vmand %vm1209, %vm1081
    %vm1338 = vmand %vm1210, %vm1082
    %vm1339 = vmand %vm1211, %vm1083
    %vm1340 = vmand %vm1212, %vm1084
    %vm1341 = vmand %vm1213, %vm1085
    %vm1342 = vmand %vm1214, %vm1086
    %vm1343 = vmand %vm1215, %vm1087
    %vm1344 = vmand %vm1216, %vm1088
    %vm1345 = vmand %vm1217, %vm1089
    %vm1346 = vmand %vm1218, %vm1090
    %vm1347 = vmand %vm1219, %vm1091
    %vm1348 = vmand %vm1220, %vm1092
    %vm1349 = vmand %vm1221, %vm1093
    %vm1350 = vmand %vm1222, %vm1094
    %vm1351 = vmand %vm1223, %vm1095
    %vm1352 = vmand %vm1224, %vm1096
    %vm1353 = vmand %vm1225, %vm1097
    %vm1354 = vmand %vm1226, %vm1098
    %vm1355 = vmand %vm1227, %vm1099
    %vm1356 = vmand %vm1228, %vm1100
    %vm1357 = vmand %vm1229, %vm1101
    %vm1358 = vmand %vm1230, %vm1102
    %vm1359 = vmand %vm1231, %vm1103
    %vm1360 = vmand %vm1232, %vm1104
    %vm1361 = vmand %vm1233, %vm1105
    %vm1362 = vmand %vm1234, %vm1106
    %vm1363 = vmand %vm1235, %vm1107
    %vm1364 = vmand %vm1236, %vm1108
    %vm1365 = vmand %vm1237, %vm1109
    %vm1366 = vmand %vm1238, %vm1110
    %vm1367 = vmand %vm1239, %vm1111
    %vm1368 = vmand %vm1240, %vm1112
    %vm1369 = vmand %vm1241, %vm1113
    %vm1370 = vmand %vm1242, %vm1114
    %vm1371 = vmand %vm1243, %vm1115
    %vm1372 = vmand %vm1244, %vm1116
    %vm1373 = vmand %vm1245, %vm1117
    %vm1374 = vmand %vm1246, %vm1118
    %vm1375 = vmand %vm1247, %vm1119
    %vm1376 = vmand %vm1248, %vm1120
    %vm1377 = vmand %vm1249, %vm1121
    %vm1378 = vmand %vm1250, %vm1122
    %vm1379 = vmand %vm1251, %vm1123
    %vm1380 = vmand %vm1252, %vm1124
    %vm1381 = vmand %vm1253, %vm1125
    %vm1382 = vmand %vm1254, %vm1126
    %vm1383 = vmand %vm1255, %vm1127
    %vm1384 = vmand %vm1256, %vm1128
    %vm1385 = vmand %vm1257, %vm1129
    %vm1386 = vmand %vm1258, %vm1130
    %vm1387 = vmand %vm1259, %vm1131
    %vm1388 = vmand %vm1260, %vm1132
    %vm1389 = vmand %vm1261, %vm1133
    %vm1390 = vmand %vm1262, %vm1134
    %vm1391 = vmand %vm1263, %vm1135
    %vm1392 = vmand %vm1264, %vm1136
    %vm1393 = vmand %vm1265, %vm1137
    %vm1394 = vmand %vm1266, %vm1138
    %vm1395 = vmand %vm1267, %vm1139
    %vm1396 = vmand %vm1268, %vm1140
    %vm1397 = vmand %vm1269, %vm1141
    %vm1398 = vmand %vm1270, %vm1142
    %vm1399 = vmand %vm1271, %vm1143
    %vm1400 = vmand %vm1272, %vm1144
    %vm1401 = vmand %vm1273, %vm1145
    %vm1402 = vmand %vm1274, %vm1146
    %vm1403 = vmand %vm1275, %vm1147
    %vm1404 = vmand %vm1276, %vm1148
    %vm1405 = vmand %vm1277, %vm1149
    %vm1406 = vmand %vm1278, %vm1150
    %vm1407 = vmand %vm1279, %vm1151
    %vm1408 = vmand %vm1280, %vm1152
    %vm1409 = vmand %vm1281, %vm1153
    %vm1410 = vmand %vm1282, %vm1154
    %vm1411 = vmand %vm1283, %vm1155
    %vm1412 = vmand %vm1284, %vm1156
    %vm1413 = vmand %vm1285, %vm1157
    %vm1414 = vmand %vm1286, %vm1158
    %vm1415 = vmand %vm1287, %vm1159
    %vm1416 = vmand %vm1288, %vm1160
    %vm1417 = vmand %vm1289, %vm1161
    %vm1418 = vmand %vm1290, %vm1162
    %vm1419 = vmand %vm1291, %vm1163
    %vm1420 = vmand %vm1292, %vm1164
    %vm1421 = vmand %vm1293, %vm1165
    %vm1422 = vmand %vm1294, %vm1166
    %vm1423 = vmand %vm1295, %vm1167
    %vm1424 = vmand %vm1296, %vm1168
    %vm1425 = vmand %vm1297, %vm1169
    %vm1426 = vmand %vm1298, %vm1170
    %vm1427 = vmand %vm1299, %vm1171
    %vm1428 = vmand %vm1300, %vm1172
    %vm1429 = vmand %vm1301, %vm1173
    %vm1430 = vmand %vm1302, %vm1174
    %vm1431 = vmand %vm1303, %vm1175
    %vm1432 = vmand %vm1304, %vm1176
    %vm1433 = vmand %vm1305, %vm1177
    %vm1434 = vmand %vm1306, %vm1178
    %vm1435 = vmand %vm1307, %vm1179
    %v1436 = vadd.s32 %v162, 16
    %v1437 = vadd.s32 %v169, 16
    %v1438 = vadd.s32 %v176, 16
    %v1439 = vadd.s32 %v183, 16
    %v1440 = vadd.s32 %v190, 16
    %v1441 = vadd.s32 %v197, 16
    %v1442 = vadd.s32 %v204, 16
    %v1443 = vadd.s32 %v211, 16
    %v1444 = vadd.s32 %v218, 16
    %v1445 = vadd.s32 %v225, 16
    %v1446 = vadd.s32 %v232, 16
    %v1447 = vadd.s32 %v239, 16
    %v1448 = vadd.s32 %v246, 16
    %v1449 = vadd.s32 %v253, 16
    %v1450 = vadd.s32 %v260, 16
    %v1451 = vadd.s32 %v267, 16
    %v1452 = vadd.s32 %v274, 16
    %v1453 = vadd.s32 %v281, 16
    %v1454 = vadd.s32 %v288, 16
    %v1455 = vadd.s32 %v295, 16
    %v1456 = vadd.s32 %v302, 16
    %v1457 = vadd.s32 %v309, 16
    %v1458 = vadd.s32 %v316, 16
    %v1459 = vadd.s32 %v323, 16
    %v1460 = vadd.s32 %v330, 16
    %v1461 = vadd.s32 %v337, 16
    %v1462 = vadd.s32 %v344, 16
    %v1463 = vadd.s32 %v351, 16
    %v1464 = vadd.s32 %v358, 16
    %v1465 = vadd.s32 %v365, 16
    %v1466 = vadd.s32 %v372, 16
    %v1467 = vadd.s32 %v379, 16
    %v1468 = vadd.s32 %v386, 16
    %v1469 = vadd.s32 %v393, 16
    %v1470 = vadd.s32 %v400, 16
    %v1471 = vadd.s32 %v407, 16
    %v1472 = vadd.s32 %v414, 16
    %v1473 = vadd.s32 %v421, 16
    %v1474 = vadd.s32 %v428, 16
    %v1475 = vadd.s32 %v435, 16
    %v1476 = vadd.s32 %v442, 16
    %v1477 = vadd.s32 %v449, 16
    %v1478 = vadd.s32 %v456, 16
    %v1479 = vadd.s32 %v463, 16
    %v1480 = vadd.s32 %v470, 16
    %v1481 = vadd.s32 %v477, 16
    %v1482 = vadd.s32 %v484, 16
    %v1483 = vadd.s32 %v491, 16
    %v1484 = vadd.s32 %v498, 16
    %v1485 = vadd.s32 %v505, 16
    %v1486 = vadd.s32 %v512, 16
    %v1487 = vadd.s32 %v519, 16
    %v1488 = vadd.s32 %v526, 16
    %v1489 = vadd.s32 %v533, 16
    %v1490 = vadd.s32 %v540, 16
    %v1491 = vadd.s32 %v547, 16
    %v1492 = vadd.s32 %v554, 16
    %v1493 = vadd.s32 %v561, 16
    %v1494 = vadd.s32 %v568, 16
    %v1495 = vadd.s32 %v575, 16
    %v1496 = vadd.s32 %v582, 16
    %v1497 = vadd.s32 %v589, 16
    %v1498 = vadd.s32 %v596, 16
    %v1499 = vadd.s32 %v603, 16
    %v1500 = vadd.s32 %v610, 16
    %v1501 = vadd.s32 %v617, 16
    %v1502 = vadd.s32 %v624, 16
    %v1503 = vadd.s32 %v631, 16
    %v1504 = vadd.s32 %v638, 16
    %v1505 = vadd.s32 %v645, 16
    %v1506 = vadd.s32 %v652, 16
    %v1507 = vadd.s32 %v659, 16
    %v1508 = vadd.s32 %v666, 16
    %v1509 = vadd.s32 %v673, 16
    %v1510 = vadd.s32 %v680, 16
    %v1511 = vadd.s32 %v687, 16
    %v1512 = vadd.s32 %v694, 16
    %v1513 = vadd.s32 %v701, 16
    %v1514 = vadd.s32 %v708, 16
    %v1515 = vadd.s32 %v715, 16
    %v1516 = vadd.s32 %v722, 16
    %v1517 = vadd.s32 %v729, 16
    %v1518 = vadd.s32 %v736, 16
    %v1519 = vadd.s32 %v743, 16
    %v1520 = vadd.s32 %v750, 16
    %v1521 = vadd.s32 %v757, 16
    %v1522 = vadd.s32 %v764, 16
    %v1523 = vadd.s32 %v771, 16
    %v1524 = vadd.s32 %v778, 16
    %v1525 = vadd.s32 %v785, 16
    %v1526 = vadd.s32 %v792, 16
    %v1527 = vadd.s32 %v799, 16
    %v1528 = vadd.s32 %v806, 16
    %v1529 = vadd.s32 %v813, 16
    %v1530 = vadd.s32 %v820, 16
    %v1531 = vadd.s32 %v827, 16
    %v1532 = vadd.s32 %v834, 16
    %v1533 = vadd.s32 %v841, 16
    %v1534 = vadd.s32 %v848, 16
    %v1535 = vadd.s32 %v855, 16
    %v1536 = vadd.s32 %v862, 16
    %v1537 = vadd.s32 %v869, 16
    %v1538 = vadd.s32 %v876, 16
    %v1539 = vadd.s32 %v883, 16
    %v1540 = vadd.s32 %v890, 16
    %v1541 = vadd.s32 %v897, 16
    %v1542 = vadd.s32 %v904, 16
    %v1543 = vadd.s32 %v911, 16
    %v1544 = vadd.s32 %v918, 16
    %v1545 = vadd.s32 %v925, 16
    %v1546 = vadd.s32 %v932, 16
    %v1547 = vadd.s32 %v939, 16
    %v1548 = vadd.s32 %v946, 16
    %v1549 = vadd.s32 %v953, 16
    %v1550 = vadd.s32 %v960, 16
    %v1551 = vadd.s32 %v967, 16
    %v1552 = vadd.s32 %v974, 16
    %v1553 = vadd.s32 %v981, 16
    %v1554 = vadd.s32 %v988, 16
    %v1555 = vadd.s32 %v995, 16
    %v1556 = vadd.s32 %v1002, 16
    %v1557 = vadd.s32 %v1009, 16
    %v1558 = vadd.s32 %v1016, 16
    %v1559 = vadd.s32 %v1023, 16
    %v1560 = vadd.s32 %v1030, 16
    %v1561 = vadd.s32 %v1037, 16
    %v1562 = vadd.s32 %v1044, 16
    %v1563 = vadd.s32 %v1051, 16
    %v1564 = vsel %vm1308, %v1436, %v162
    %v1565 = vsel %vm1309, %v1437, %v169
    %v1566 = vsel %vm1310, %v1438, %v176
    %v1567 = vsel %vm1311, %v1439, %v183
    %v1568 = vsel %vm1312, %v1440, %v190
    %v1569 = vsel %vm1313, %v1441, %v197
    %v1570 = vsel %vm1314, %v1442, %v204
    %v1571 = vsel %vm1315, %v1443, %v211
    %v1572 = vsel %vm1316, %v1444, %v218
    %v1573 = vsel %vm1317, %v1445, %v225
    %v1574 = vsel %vm1318, %v1446, %v232
    %v1575 = vsel %vm1319, %v1447, %v239
    %v1576 = vsel %vm1320, %v1448, %v246
    %v1577 = vsel %vm1321, %v1449, %v253
    %v1578 = vsel %vm1322, %v1450, %v260
    %v1579 = vsel %vm1323, %v1451, %v267
    %v1580 = vsel %vm1324, %v1452, %v274
    %v1581 = vsel %vm1325, %v1453, %v281
    %v1582 = vsel %vm1326, %v1454, %v288
    %v1583 = vsel %vm1327, %v1455, %v295
    %v1584 = vsel %vm1328, %v1456, %v302
    %v1585 = vsel %vm1329, %v1457, %v309
    %v1586 = vsel %vm1330, %v1458, %v316
    %v1587 = vsel %vm1331, %v1459, %v323
    %v1588 = vsel %vm1332, %v1460, %v330
    %v1589 = vsel %vm1333, %v1461, %v337
    %v1590 = vsel %vm1334, %v1462, %v344
    %v1591 = vsel %vm1335, %v1463, %v351
    %v1592 = vsel %vm1336, %v1464, %v358
    %v1593 = vsel %vm1337, %v1465, %v365
    %v1594 = vsel %vm1338, %v1466, %v372
    %v1595 = vsel %vm1339, %v1467, %v379
    %v1596 = vsel %vm1340, %v1468, %v386
    %v1597 = vsel %vm1341, %v1469, %v393
    %v1598 = vsel %vm1342, %v1470, %v400
    %v1599 = vsel %vm1343, %v1471, %v407
    %v1600 = vsel %vm1344, %v1472, %v414
    %v1601 = vsel %vm1345, %v1473, %v421
    %v1602 = vsel %vm1346, %v1474, %v428
    %v1603 = vsel %vm1347, %v1475, %v435
    %v1604 = vsel %vm1348, %v1476, %v442
    %v1605 = vsel %vm1349, %v1477, %v449
    %v1606 = vsel %vm1350, %v1478, %v456
    %v1607 = vsel %vm1351, %v1479, %v463
    %v1608 = vsel %vm1352, %v1480, %v470
    %v1609 = vsel %vm1353, %v1481, %v477
    %v1610 = vsel %vm1354, %v1482, %v484
    %v1611 = vsel %vm1355, %v1483, %v491
    %v1612 = vsel %vm1356, %v1484, %v498
    %v1613 = vsel %vm1357, %v1485, %v505
    %v1614 = vsel %vm1358, %v1486, %v512
    %v1615 = vsel %vm1359, %v1487, %v519
    %v1616 = vsel %vm1360, %v1488, %v526
    %v1617 = vsel %vm1361, %v1489, %v533
    %v1618 = vsel %vm1362, %v1490, %v540
    %v1619 = vsel %vm1363, %v1491, %v547
    %v1620 = vsel %vm1364, %v1492, %v554
    %v1621 = vsel %vm1365, %v1493, %v561
    %v1622 = vsel %vm1366, %v1494, %v568
    %v1623 = vsel %vm1367, %v1495, %v575
    %v1624 = vsel %vm1368, %v1496, %v582
    %v1625 = vsel %vm1369, %v1497, %v589
    %v1626 = vsel %vm1370, %v1498, %v596
    %v1627 = vsel %vm1371, %v1499, %v603
    %v1628 = vsel %vm1372, %v1500, %v610
    %v1629 = vsel %vm1373, %v1501, %v617
    %v1630 = vsel %vm1374, %v1502, %v624
    %v1631 = vsel %vm1375, %v1503, %v631
    %v1632 = vsel %vm1376, %v1504, %v638
    %v1633 = vsel %vm1377, %v1505, %v645
    %v1634 = vsel %vm1378, %v1506, %v652
    %v1635 = vsel %vm1379, %v1507, %v659
    %v1636 = vsel %vm1380, %v1508, %v666
    %v1637 = vsel %vm1381, %v1509, %v673
    %v1638 = vsel %vm1382, %v1510, %v680
    %v1639 = vsel %vm1383, %v1511, %v687
    %v1640 = vsel %vm1384, %v1512, %v694
    %v1641 = vsel %vm1385, %v1513, %v701
    %v1642 = vsel %vm1386, %v1514, %v708
    %v1643 = vsel %vm1387, %v1515, %v715
    %v1644 = vsel %vm1388, %v1516, %v722
    %v1645 = vsel %vm1389, %v1517, %v729
    %v1646 = vsel %vm1390, %v1518, %v736
    %v1647 = vsel %vm1391, %v1519, %v743
    %v1648 = vsel %vm1392, %v1520, %v750
    %v1649 = vsel %vm1393, %v1521, %v757
    %v1650 = vsel %vm1394, %v1522, %v764
    %v1651 = vsel %vm1395, %v1523, %v771
    %v1652 = vsel %vm1396, %v1524, %v778
    %v1653 = vsel %vm1397, %v1525, %v785
    %v1654 = vsel %vm1398, %v1526, %v792
    %v1655 = vsel %vm1399, %v1527, %v799
    %v1656 = vsel %vm1400, %v1528, %v806
    %v1657 = vsel %vm1401, %v1529, %v813
    %v1658 = vsel %vm1402, %v1530, %v820
    %v1659 = vsel %vm1403, %v1531, %v827
    %v1660 = vsel %vm1404, %v1532, %v834
    %v1661 = vsel %vm1405, %v1533, %v841
    %v1662 = vsel %vm1406, %v1534, %v848
    %v1663 = vsel %vm1407, %v1535, %v855
    %v1664 = vsel %vm1408, %v1536, %v862
    %v1665 = vsel %vm1409, %v1537, %v869
    %v1666 = vsel %vm1410, %v1538, %v876
    %v1667 = vsel %vm1411, %v1539, %v883
    %v1668 = vsel %vm1412, %v1540, %v890
    %v1669 = vsel %vm1413, %v1541, %v897
    %v1670 = vsel %vm1414, %v1542, %v904
    %v1671 = vsel %vm1415, %v1543, %v911
    %v1672 = vsel %vm1416, %v1544, %v918
    %v1673 = vsel %vm1417, %v1545, %v925
    %v1674 = vsel %vm1418, %v1546, %v932
    %v1675 = vsel %vm1419, %v1547, %v939
    %v1676 = vsel %vm1420, %v1548, %v946
    %v1677 = vsel %vm1421, %v1549, %v953
    %v1678 = vsel %vm1422, %v1550, %v960
    %v1679 = vsel %vm1423, %v1551, %v967
    %v1680 = vsel %vm1424, %v1552, %v974
    %v1681 = vsel %vm1425, %v1553, %v981
    %v1682 = vsel %vm1426, %v1554, %v988
    %v1683 = vsel %vm1427, %v1555, %v995
    %v1684 = vsel %vm1428, %v1556, %v1002
    %v1685 = vsel %vm1429, %v1557, %v1009
    %v1686 = vsel %vm1430, %v1558, %v1016
    %v1687 = vsel %vm1431, %v1559, %v1023
    %v1688 = vsel %vm1432, %v1560, %v1030
    %v1689 = vsel %vm1433, %v1561, %v1037
    %v1690 = vsel %vm1434, %v1562, %v1044
    %v1691 = vsel %vm1435, %v1563, %v1051
    %vm1692 = vcmp.ne.s32.totalorder %v1564, 0
    %vm1693 = vcmp.ne.s32.totalorder %v1565, 0
    %vm1694 = vcmp.ne.s32.totalorder %v1566, 0
    %vm1695 = vcmp.ne.s32.totalorder %v1567, 0
    %vm1696 = vcmp.ne.s32.totalorder %v1568, 0
    %vm1697 = vcmp.ne.s32.totalorder %v1569, 0
    %vm1698 = vcmp.ne.s32.totalorder %v1570, 0
    %vm1699 = vcmp.ne.s32.totalorder %v1571, 0
    %vm1700 = vcmp.ne.s32.totalorder %v1572, 0
    %vm1701 = vcmp.ne.s32.totalorder %v1573, 0
    %vm1702 = vcmp.ne.s32.totalorder %v1574, 0
    %vm1703 = vcmp.ne.s32.totalorder %v1575, 0
    %vm1704 = vcmp.ne.s32.totalorder %v1576, 0
    %vm1705 = vcmp.ne.s32.totalorder %v1577, 0
    %vm1706 = vcmp.ne.s32.totalorder %v1578, 0
    %vm1707 = vcmp.ne.s32.totalorder %v1579, 0
    %vm1708 = vcmp.ne.s32.totalorder %v1580, 0
    %vm1709 = vcmp.ne.s32.totalorder %v1581, 0
    %vm1710 = vcmp.ne.s32.totalorder %v1582, 0
    %vm1711 = vcmp.ne.s32.totalorder %v1583, 0
    %vm1712 = vcmp.ne.s32.totalorder %v1584, 0
    %vm1713 = vcmp.ne.s32.totalorder %v1585, 0
    %vm1714 = vcmp.ne.s32.totalorder %v1586, 0
    %vm1715 = vcmp.ne.s32.totalorder %v1587, 0
    %vm1716 = vcmp.ne.s32.totalorder %v1588, 0
    %vm1717 = vcmp.ne.s32.totalorder %v1589, 0
    %vm1718 = vcmp.ne.s32.totalorder %v1590, 0
    %vm1719 = vcmp.ne.s32.totalorder %v1591, 0
    %vm1720 = vcmp.ne.s32.totalorder %v1592, 0
    %vm1721 = vcmp.ne.s32.totalorder %v1593, 0
    %vm1722 = vcmp.ne.s32.totalorder %v1594, 0
    %vm1723 = vcmp.ne.s32.totalorder %v1595, 0
    %vm1724 = vcmp.ne.s32.totalorder %v1596, 0
    %vm1725 = vcmp.ne.s32.totalorder %v1597, 0
    %vm1726 = vcmp.ne.s32.totalorder %v1598, 0
    %vm1727 = vcmp.ne.s32.totalorder %v1599, 0
    %vm1728 = vcmp.ne.s32.totalorder %v1600, 0
    %vm1729 = vcmp.ne.s32.totalorder %v1601, 0
    %vm1730 = vcmp.ne.s32.totalorder %v1602, 0
    %vm1731 = vcmp.ne.s32.totalorder %v1603, 0
    %vm1732 = vcmp.ne.s32.totalorder %v1604, 0
    %vm1733 = vcmp.ne.s32.totalorder %v1605, 0
    %vm1734 = vcmp.ne.s32.totalorder %v1606, 0
    %vm1735 = vcmp.ne.s32.totalorder %v1607, 0
    %vm1736 = vcmp.ne.s32.totalorder %v1608, 0
    %vm1737 = vcmp.ne.s32.totalorder %v1609, 0
    %vm1738 = vcmp.ne.s32.totalorder %v1610, 0
    %vm1739 = vcmp.ne.s32.totalorder %v1611, 0
    %vm1740 = vcmp.ne.s32.totalorder %v1612, 0
    %vm1741 = vcmp.ne.s32.totalorder %v1613, 0
    %vm1742 = vcmp.ne.s32.totalorder %v1614, 0
    %vm1743 = vcmp.ne.s32.totalorder %v1615, 0
    %vm1744 = vcmp.ne.s32.totalorder %v1616, 0
    %vm1745 = vcmp.ne.s32.totalorder %v1617, 0
    %vm1746 = vcmp.ne.s32.totalorder %v1618, 0
    %vm1747 = vcmp.ne.s32.totalorder %v1619, 0
    %vm1748 = vcmp.ne.s32.totalorder %v1620, 0
    %vm1749 = vcmp.ne.s32.totalorder %v1621, 0
    %vm1750 = vcmp.ne.s32.totalorder %v1622, 0
    %vm1751 = vcmp.ne.s32.totalorder %v1623, 0
    %vm1752 = vcmp.ne.s32.totalorder %v1624, 0
    %vm1753 = vcmp.ne.s32.totalorder %v1625, 0
    %vm1754 = vcmp.ne.s32.totalorder %v1626, 0
    %vm1755 = vcmp.ne.s32.totalorder %v1627, 0
    %vm1756 = vcmp.ne.s32.totalorder %v1628, 0
    %vm1757 = vcmp.ne.s32.totalorder %v1629, 0
    %vm1758 = vcmp.ne.s32.totalorder %v1630, 0
    %vm1759 = vcmp.ne.s32.totalorder %v1631, 0
    %vm1760 = vcmp.ne.s32.totalorder %v1632, 0
    %vm1761 = vcmp.ne.s32.totalorder %v1633, 0
    %vm1762 = vcmp.ne.s32.totalorder %v1634, 0
    %vm1763 = vcmp.ne.s32.totalorder %v1635, 0
    %vm1764 = vcmp.ne.s32.totalorder %v1636, 0
    %vm1765 = vcmp.ne.s32.totalorder %v1637, 0
    %vm1766 = vcmp.ne.s32.totalorder %v1638, 0
    %vm1767 = vcmp.ne.s32.totalorder %v1639, 0
    %vm1768 = vcmp.ne.s32.totalorder %v1640, 0
    %vm1769 = vcmp.ne.s32.totalorder %v1641, 0
    %vm1770 = vcmp.ne.s32.totalorder %v1642, 0
    %vm1771 = vcmp.ne.s32.totalorder %v1643, 0
    %vm1772 = vcmp.ne.s32.totalorder %v1644, 0
    %vm1773 = vcmp.ne.s32.totalorder %v1645, 0
    %vm1774 = vcmp.ne.s32.totalorder %v1646, 0
    %vm1775 = vcmp.ne.s32.totalorder %v1647, 0
    %vm1776 = vcmp.ne.s32.totalorder %v1648, 0
    %vm1777 = vcmp.ne.s32.totalorder %v1649, 0
    %vm1778 = vcmp.ne.s32.totalorder %v1650, 0
    %vm1779 = vcmp.ne.s32.totalorder %v1651, 0
    %vm1780 = vcmp.ne.s32.totalorder %v1652, 0
    %vm1781 = vcmp.ne.s32.totalorder %v1653, 0
    %vm1782 = vcmp.ne.s32.totalorder %v1654, 0
    %vm1783 = vcmp.ne.s32.totalorder %v1655, 0
    %vm1784 = vcmp.ne.s32.totalorder %v1656, 0
    %vm1785 = vcmp.ne.s32.totalorder %v1657, 0
    %vm1786 = vcmp.ne.s32.totalorder %v1658, 0
    %vm1787 = vcmp.ne.s32.totalorder %v1659, 0
    %vm1788 = vcmp.ne.s32.totalorder %v1660, 0
    %vm1789 = vcmp.ne.s32.totalorder %v1661, 0
    %vm1790 = vcmp.ne.s32.totalorder %v1662, 0
    %vm1791 = vcmp.ne.s32.totalorder %v1663, 0
    %vm1792 = vcmp.ne.s32.totalorder %v1664, 0
    %vm1793 = vcmp.ne.s32.totalorder %v1665, 0
    %vm1794 = vcmp.ne.s32.totalorder %v1666, 0
    %vm1795 = vcmp.ne.s32.totalorder %v1667, 0
    %vm1796 = vcmp.ne.s32.totalorder %v1668, 0
    %vm1797 = vcmp.ne.s32.totalorder %v1669, 0
    %vm1798 = vcmp.ne.s32.totalorder %v1670, 0
    %vm1799 = vcmp.ne.s32.totalorder %v1671, 0
    %vm1800 = vcmp.ne.s32.totalorder %v1672, 0
    %vm1801 = vcmp.ne.s32.totalorder %v1673, 0
    %vm1802 = vcmp.ne.s32.totalorder %v1674, 0
    %vm1803 = vcmp.ne.s32.totalorder %v1675, 0
    %vm1804 = vcmp.ne.s32.totalorder %v1676, 0
    %vm1805 = vcmp.ne.s32.totalorder %v1677, 0
    %vm1806 = vcmp.ne.s32.totalorder %v1678, 0
    %vm1807 = vcmp.ne.s32.totalorder %v1679, 0
    %vm1808 = vcmp.ne.s32.totalorder %v1680, 0
    %vm1809 = vcmp.ne.s32.totalorder %v1681, 0
    %vm1810 = vcmp.ne.s32.totalorder %v1682, 0
    %vm1811 = vcmp.ne.s32.totalorder %v1683, 0
    %vm1812 = vcmp.ne.s32.totalorder %v1684, 0
    %vm1813 = vcmp.ne.s32.totalorder %v1685, 0
    %vm1814 = vcmp.ne.s32.totalorder %v1686, 0
    %vm1815 = vcmp.ne.s32.totalorder %v1687, 0
    %vm1816 = vcmp.ne.s32.totalorder %v1688, 0
    %vm1817 = vcmp.ne.s32.totalorder %v1689, 0
    %vm1818 = vcmp.ne.s32.totalorder %v1690, 0
    %vm1819 = vcmp.ne.s32.totalorder %v1691, 0
    %vm1820 = vcmp.ne.s32.totalorder %v1564, 15
    %vm1821 = vcmp.ne.s32.totalorder %v1565, 15
    %vm1822 = vcmp.ne.s32.totalorder %v1566, 15
    %vm1823 = vcmp.ne.s32.totalorder %v1567, 15
    %vm1824 = vcmp.ne.s32.totalorder %v1568, 15
    %vm1825 = vcmp.ne.s32.totalorder %v1569, 15
    %vm1826 = vcmp.ne.s32.totalorder %v1570, 15
    %vm1827 = vcmp.ne.s32.totalorder %v1571, 15
    %vm1828 = vcmp.ne.s32.totalorder %v1572, 15
    %vm1829 = vcmp.ne.s32.totalorder %v1573, 15
    %vm1830 = vcmp.ne.s32.totalorder %v1574, 15
    %vm1831 = vcmp.ne.s32.totalorder %v1575, 15
    %vm1832 = vcmp.ne.s32.totalorder %v1576, 15
    %vm1833 = vcmp.ne.s32.totalorder %v1577, 15
    %vm1834 = vcmp.ne.s32.totalorder %v1578, 15
    %vm1835 = vcmp.ne.s32.totalorder %v1579, 15
    %vm1836 = vcmp.ne.s32.totalorder %v1580, 15
    %vm1837 = vcmp.ne.s32.totalorder %v1581, 15
    %vm1838 = vcmp.ne.s32.totalorder %v1582, 15
    %vm1839 = vcmp.ne.s32.totalorder %v1583, 15
    %vm1840 = vcmp.ne.s32.totalorder %v1584, 15
    %vm1841 = vcmp.ne.s32.totalorder %v1585, 15
    %vm1842 = vcmp.ne.s32.totalorder %v1586, 15
    %vm1843 = vcmp.ne.s32.totalorder %v1587, 15
    %vm1844 = vcmp.ne.s32.totalorder %v1588, 15
    %vm1845 = vcmp.ne.s32.totalorder %v1589, 15
    %vm1846 = vcmp.ne.s32.totalorder %v1590, 15
    %vm1847 = vcmp.ne.s32.totalorder %v1591, 15
    %vm1848 = vcmp.ne.s32.totalorder %v1592, 15
    %vm1849 = vcmp.ne.s32.totalorder %v1593, 15
    %vm1850 = vcmp.ne.s32.totalorder %v1594, 15
    %vm1851 = vcmp.ne.s32.totalorder %v1595, 15
    %vm1852 = vcmp.ne.s32.totalorder %v1596, 15
    %vm1853 = vcmp.ne.s32.totalorder %v1597, 15
    %vm1854 = vcmp.ne.s32.totalorder %v1598, 15
    %vm1855 = vcmp.ne.s32.totalorder %v1599, 15
    %vm1856 = vcmp.ne.s32.totalorder %v1600, 15
    %vm1857 = vcmp.ne.s32.totalorder %v1601, 15
    %vm1858 = vcmp.ne.s32.totalorder %v1602, 15
    %vm1859 = vcmp.ne.s32.totalorder %v1603, 15
    %vm1860 = vcmp.ne.s32.totalorder %v1604, 15
    %vm1861 = vcmp.ne.s32.totalorder %v1605, 15
    %vm1862 = vcmp.ne.s32.totalorder %v1606, 15
    %vm1863 = vcmp.ne.s32.totalorder %v1607, 15
    %vm1864 = vcmp.ne.s32.totalorder %v1608, 15
    %vm1865 = vcmp.ne.s32.totalorder %v1609, 15
    %vm1866 = vcmp.ne.s32.totalorder %v1610, 15
    %vm1867 = vcmp.ne.s32.totalorder %v1611, 15
    %vm1868 = vcmp.ne.s32.totalorder %v1612, 15
    %vm1869 = vcmp.ne.s32.totalorder %v1613, 15
    %vm1870 = vcmp.ne.s32.totalorder %v1614, 15
    %vm1871 = vcmp.ne.s32.totalorder %v1615, 15
    %vm1872 = vcmp.ne.s32.totalorder %v1616, 15
    %vm1873 = vcmp.ne.s32.totalorder %v1617, 15
    %vm1874 = vcmp.ne.s32.totalorder %v1618, 15
    %vm1875 = vcmp.ne.s32.totalorder %v1619, 15
    %vm1876 = vcmp.ne.s32.totalorder %v1620, 15
    %vm1877 = vcmp.ne.s32.totalorder %v1621, 15
    %vm1878 = vcmp.ne.s32.totalorder %v1622, 15
    %vm1879 = vcmp.ne.s32.totalorder %v1623, 15
    %vm1880 = vcmp.ne.s32.totalorder %v1624, 15
    %vm1881 = vcmp.ne.s32.totalorder %v1625, 15
    %vm1882 = vcmp.ne.s32.totalorder %v1626, 15
    %vm1883 = vcmp.ne.s32.totalorder %v1627, 15
    %vm1884 = vcmp.ne.s32.totalorder %v1628, 15
    %vm1885 = vcmp.ne.s32.totalorder %v1629, 15
    %vm1886 = vcmp.ne.s32.totalorder %v1630, 15
    %vm1887 = vcmp.ne.s32.totalorder %v1631, 15
    %vm1888 = vcmp.ne.s32.totalorder %v1632, 15
    %vm1889 = vcmp.ne.s32.totalorder %v1633, 15
    %vm1890 = vcmp.ne.s32.totalorder %v1634, 15
    %vm1891 = vcmp.ne.s32.totalorder %v1635, 15
    %vm1892 = vcmp.ne.s32.totalorder %v1636, 15
    %vm1893 = vcmp.ne.s32.totalorder %v1637, 15
    %vm1894 = vcmp.ne.s32.totalorder %v1638, 15
    %vm1895 = vcmp.ne.s32.totalorder %v1639, 15
    %vm1896 = vcmp.ne.s32.totalorder %v1640, 15
    %vm1897 = vcmp.ne.s32.totalorder %v1641, 15
    %vm1898 = vcmp.ne.s32.totalorder %v1642, 15
    %vm1899 = vcmp.ne.s32.totalorder %v1643, 15
    %vm1900 = vcmp.ne.s32.totalorder %v1644, 15
    %vm1901 = vcmp.ne.s32.totalorder %v1645, 15
    %vm1902 = vcmp.ne.s32.totalorder %v1646, 15
    %vm1903 = vcmp.ne.s32.totalorder %v1647, 15
    %vm1904 = vcmp.ne.s32.totalorder %v1648, 15
    %vm1905 = vcmp.ne.s32.totalorder %v1649, 15
    %vm1906 = vcmp.ne.s32.totalorder %v1650, 15
    %vm1907 = vcmp.ne.s32.totalorder %v1651, 15
    %vm1908 = vcmp.ne.s32.totalorder %v1652, 15
    %vm1909 = vcmp.ne.s32.totalorder %v1653, 15
    %vm1910 = vcmp.ne.s32.totalorder %v1654, 15
    %vm1911 = vcmp.ne.s32.totalorder %v1655, 15
    %vm1912 = vcmp.ne.s32.totalorder %v1656, 15
    %vm1913 = vcmp.ne.s32.totalorder %v1657, 15
    %vm1914 = vcmp.ne.s32.totalorder %v1658, 15
    %vm1915 = vcmp.ne.s32.totalorder %v1659, 15
    %vm1916 = vcmp.ne.s32.totalorder %v1660, 15
    %vm1917 = vcmp.ne.s32.totalorder %v1661, 15
    %vm1918 = vcmp.ne.s32.totalorder %v1662, 15
    %vm1919 = vcmp.ne.s32.totalorder %v1663, 15
    %vm1920 = vcmp.ne.s32.totalorder %v1664, 15
    %vm1921 = vcmp.ne.s32.totalorder %v1665, 15
    %vm1922 = vcmp.ne.s32.totalorder %v1666, 15
    %vm1923 = vcmp.ne.s32.totalorder %v1667, 15
    %vm1924 = vcmp.ne.s32.totalorder %v1668, 15
    %vm1925 = vcmp.ne.s32.totalorder %v1669, 15
    %vm1926 = vcmp.ne.s32.totalorder %v1670, 15
    %vm1927 = vcmp.ne.s32.totalorder %v1671, 15
    %vm1928 = vcmp.ne.s32.totalorder %v1672, 15
    %vm1929 = vcmp.ne.s32.totalorder %v1673, 15
    %vm1930 = vcmp.ne.s32.totalorder %v1674, 15
    %vm1931 = vcmp.ne.s32.totalorder %v1675, 15
    %vm1932 = vcmp.ne.s32.totalorder %v1676, 15
    %vm1933 = vcmp.ne.s32.totalorder %v1677, 15
    %vm1934 = vcmp.ne.s32.totalorder %v1678, 15
    %vm1935 = vcmp.ne.s32.totalorder %v1679, 15
    %vm1936 = vcmp.ne.s32.totalorder %v1680, 15
    %vm1937 = vcmp.ne.s32.totalorder %v1681, 15
    %vm1938 = vcmp.ne.s32.totalorder %v1682, 15
    %vm1939 = vcmp.ne.s32.totalorder %v1683, 15
    %vm1940 = vcmp.ne.s32.totalorder %v1684, 15
    %vm1941 = vcmp.ne.s32.totalorder %v1685, 15
    %vm1942 = vcmp.ne.s32.totalorder %v1686, 15
    %vm1943 = vcmp.ne.s32.totalorder %v1687, 15
    %vm1944 = vcmp.ne.s32.totalorder %v1688, 15
    %vm1945 = vcmp.ne.s32.totalorder %v1689, 15
    %vm1946 = vcmp.ne.s32.totalorder %v1690, 15
    %vm1947 = vcmp.ne.s32.totalorder %v1691, 15
    %v1948 = vsel %vm1692, 1, 0
    %v1949 = vsel %vm1693, 1, 0
    %v1950 = vsel %vm1694, 1, 0
    %v1951 = vsel %vm1695, 1, 0
    %v1952 = vsel %vm1696, 1, 0
    %v1953 = vsel %vm1697, 1, 0
    %v1954 = vsel %vm1698, 1, 0
    %v1955 = vsel %vm1699, 1, 0
    %v1956 = vsel %vm1700, 1, 0
    %v1957 = vsel %vm1701, 1, 0
    %v1958 = vsel %vm1702, 1, 0
    %v1959 = vsel %vm1703, 1, 0
    %v1960 = vsel %vm1704, 1, 0
    %v1961 = vsel %vm1705, 1, 0
    %v1962 = vsel %vm1706, 1, 0
    %v1963 = vsel %vm1707, 1, 0
    %v1964 = vsel %vm1708, 1, 0
    %v1965 = vsel %vm1709, 1, 0
    %v1966 = vsel %vm1710, 1, 0
    %v1967 = vsel %vm1711, 1, 0
    %v1968 = vsel %vm1712, 1, 0
    %v1969 = vsel %vm1713, 1, 0
    %v1970 = vsel %vm1714, 1, 0
    %v1971 = vsel %vm1715, 1, 0
    %v1972 = vsel %vm1716, 1, 0
    %v1973 = vsel %vm1717, 1, 0
    %v1974 = vsel %vm1718, 1, 0
    %v1975 = vsel %vm1719, 1, 0
    %v1976 = vsel %vm1720, 1, 0
    %v1977 = vsel %vm1721, 1, 0
    %v1978 = vsel %vm1722, 1, 0
    %v1979 = vsel %vm1723, 1, 0
    %v1980 = vsel %vm1724, 1, 0
    %v1981 = vsel %vm1725, 1, 0
    %v1982 = vsel %vm1726, 1, 0
    %v1983 = vsel %vm1727, 1, 0
    %v1984 = vsel %vm1728, 1, 0
    %v1985 = vsel %vm1729, 1, 0
    %v1986 = vsel %vm1730, 1, 0
    %v1987 = vsel %vm1731, 1, 0
    %v1988 = vsel %vm1732, 1, 0
    %v1989 = vsel %vm1733, 1, 0
    %v1990 = vsel %vm1734, 1, 0
    %v1991 = vsel %vm1735, 1, 0
    %v1992 = vsel %vm1736, 1, 0
    %v1993 = vsel %vm1737, 1, 0
    %v1994 = vsel %vm1738, 1, 0
    %v1995 = vsel %vm1739, 1, 0
    %v1996 = vsel %vm1740, 1, 0
    %v1997 = vsel %vm1741, 1, 0
    %v1998 = vsel %vm1742, 1, 0
    %v1999 = vsel %vm1743, 1, 0
    %v2000 = vsel %vm1744, 1, 0
    %v2001 = vsel %vm1745, 1, 0
    %v2002 = vsel %vm1746, 1, 0
    %v2003 = vsel %vm1747, 1, 0
    %v2004 = vsel %vm1748, 1, 0
    %v2005 = vsel %vm1749, 1, 0
    %v2006 = vsel %vm1750, 1, 0
    %v2007 = vsel %vm1751, 1, 0
    %v2008 = vsel %vm1752, 1, 0
    %v2009 = vsel %vm1753, 1, 0
    %v2010 = vsel %vm1754, 1, 0
    %v2011 = vsel %vm1755, 1, 0
    %v2012 = vsel %vm1756, 1, 0
    %v2013 = vsel %vm1757, 1, 0
    %v2014 = vsel %vm1758, 1, 0
    %v2015 = vsel %vm1759, 1, 0
    %v2016 = vsel %vm1760, 1, 0
    %v2017 = vsel %vm1761, 1, 0
    %v2018 = vsel %vm1762, 1, 0
    %v2019 = vsel %vm1763, 1, 0
    %v2020 = vsel %vm1764, 1, 0
    %v2021 = vsel %vm1765, 1, 0
    %v2022 = vsel %vm1766, 1, 0
    %v2023 = vsel %vm1767, 1, 0
    %v2024 = vsel %vm1768, 1, 0
    %v2025 = vsel %vm1769, 1, 0
    %v2026 = vsel %vm1770, 1, 0
    %v2027 = vsel %vm1771, 1, 0
    %v2028 = vsel %vm1772, 1, 0
    %v2029 = vsel %vm1773, 1, 0
    %v2030 = vsel %vm1774, 1, 0
    %v2031 = vsel %vm1775, 1, 0
    %v2032 = vsel %vm1776, 1, 0
    %v2033 = vsel %vm1777, 1, 0
    %v2034 = vsel %vm1778, 1, 0
    %v2035 = vsel %vm1779, 1, 0
    %v2036 = vsel %vm1780, 1, 0
    %v2037 = vsel %vm1781, 1, 0
    %v2038 = vsel %vm1782, 1, 0
    %v2039 = vsel %vm1783, 1, 0
    %v2040 = vsel %vm1784, 1, 0
    %v2041 = vsel %vm1785, 1, 0
    %v2042 = vsel %vm1786, 1, 0
    %v2043 = vsel %vm1787, 1, 0
    %v2044 = vsel %vm1788, 1, 0
    %v2045 = vsel %vm1789, 1, 0
    %v2046 = vsel %vm1790, 1, 0
    %v2047 = vsel %vm1791, 1, 0
    %v2048 = vsel %vm1792, 1, 0
    %v2049 = vsel %vm1793, 1, 0
    %v2050 = vsel %vm1794, 1, 0
    %v2051 = vsel %vm1795, 1, 0
    %v2052 = vsel %vm1796, 1, 0
    %v2053 = vsel %vm1797, 1, 0
    %v2054 = vsel %vm1798, 1, 0
    %v2055 = vsel %vm1799, 1, 0
    %v2056 = vsel %vm1800, 1, 0
    %v2057 = vsel %vm1801, 1, 0
    %v2058 = vsel %vm1802, 1, 0
    %v2059 = vsel %vm1803, 1, 0
    %v2060 = vsel %vm1804, 1, 0
    %v2061 = vsel %vm1805, 1, 0
    %v2062 = vsel %vm1806, 1, 0
    %v2063 = vsel %vm1807, 1, 0
    %v2064 = vsel %vm1808, 1, 0
    %v2065 = vsel %vm1809, 1, 0
    %v2066 = vsel %vm1810, 1, 0
    %v2067 = vsel %vm1811, 1, 0
    %v2068 = vsel %vm1812, 1, 0
    %v2069 = vsel %vm1813, 1, 0
    %v2070 = vsel %vm1814, 1, 0
    %v2071 = vsel %vm1815, 1, 0
    %v2072 = vsel %vm1816, 1, 0
    %v2073 = vsel %vm1817, 1, 0
    %v2074 = vsel %vm1818, 1, 0
    %v2075 = vsel %vm1819, 1, 0
    %vm2076 = vcmp.eq.s32.totalorder %v1948, 1
    %vm2077 = vcmp.eq.s32.totalorder %v1949, 1
    %vm2078 = vcmp.eq.s32.totalorder %v1950, 1
    %vm2079 = vcmp.eq.s32.totalorder %v1951, 1
    %vm2080 = vcmp.eq.s32.totalorder %v1952, 1
    %vm2081 = vcmp.eq.s32.totalorder %v1953, 1
    %vm2082 = vcmp.eq.s32.totalorder %v1954, 1
    %vm2083 = vcmp.eq.s32.totalorder %v1955, 1
    %vm2084 = vcmp.eq.s32.totalorder %v1956, 1
    %vm2085 = vcmp.eq.s32.totalorder %v1957, 1
    %vm2086 = vcmp.eq.s32.totalorder %v1958, 1
    %vm2087 = vcmp.eq.s32.totalorder %v1959, 1
    %vm2088 = vcmp.eq.s32.totalorder %v1960, 1
    %vm2089 = vcmp.eq.s32.totalorder %v1961, 1
    %vm2090 = vcmp.eq.s32.totalorder %v1962, 1
    %vm2091 = vcmp.eq.s32.totalorder %v1963, 1
    %vm2092 = vcmp.eq.s32.totalorder %v1964, 1
    %vm2093 = vcmp.eq.s32.totalorder %v1965, 1
    %vm2094 = vcmp.eq.s32.totalorder %v1966, 1
    %vm2095 = vcmp.eq.s32.totalorder %v1967, 1
    %vm2096 = vcmp.eq.s32.totalorder %v1968, 1
    %vm2097 = vcmp.eq.s32.totalorder %v1969, 1
    %vm2098 = vcmp.eq.s32.totalorder %v1970, 1
    %vm2099 = vcmp.eq.s32.totalorder %v1971, 1
    %vm2100 = vcmp.eq.s32.totalorder %v1972, 1
    %vm2101 = vcmp.eq.s32.totalorder %v1973, 1
    %vm2102 = vcmp.eq.s32.totalorder %v1974, 1
    %vm2103 = vcmp.eq.s32.totalorder %v1975, 1
    %vm2104 = vcmp.eq.s32.totalorder %v1976, 1
    %vm2105 = vcmp.eq.s32.totalorder %v1977, 1
    %vm2106 = vcmp.eq.s32.totalorder %v1978, 1
    %vm2107 = vcmp.eq.s32.totalorder %v1979, 1
    %vm2108 = vcmp.eq.s32.totalorder %v1980, 1
    %vm2109 = vcmp.eq.s32.totalorder %v1981, 1
    %vm2110 = vcmp.eq.s32.totalorder %v1982, 1
    %vm2111 = vcmp.eq.s32.totalorder %v1983, 1
    %vm2112 = vcmp.eq.s32.totalorder %v1984, 1
    %vm2113 = vcmp.eq.s32.totalorder %v1985, 1
    %vm2114 = vcmp.eq.s32.totalorder %v1986, 1
    %vm2115 = vcmp.eq.s32.totalorder %v1987, 1
    %vm2116 = vcmp.eq.s32.totalorder %v1988, 1
    %vm2117 = vcmp.eq.s32.totalorder %v1989, 1
    %vm2118 = vcmp.eq.s32.totalorder %v1990, 1
    %vm2119 = vcmp.eq.s32.totalorder %v1991, 1
    %vm2120 = vcmp.eq.s32.totalorder %v1992, 1
    %vm2121 = vcmp.eq.s32.totalorder %v1993, 1
    %vm2122 = vcmp.eq.s32.totalorder %v1994, 1
    %vm2123 = vcmp.eq.s32.totalorder %v1995, 1
    %vm2124 = vcmp.eq.s32.totalorder %v1996, 1
    %vm2125 = vcmp.eq.s32.totalorder %v1997, 1
    %vm2126 = vcmp.eq.s32.totalorder %v1998, 1
    %vm2127 = vcmp.eq.s32.totalorder %v1999, 1
    %vm2128 = vcmp.eq.s32.totalorder %v2000, 1
    %vm2129 = vcmp.eq.s32.totalorder %v2001, 1
    %vm2130 = vcmp.eq.s32.totalorder %v2002, 1
    %vm2131 = vcmp.eq.s32.totalorder %v2003, 1
    %vm2132 = vcmp.eq.s32.totalorder %v2004, 1
    %vm2133 = vcmp.eq.s32.totalorder %v2005, 1
    %vm2134 = vcmp.eq.s32.totalorder %v2006, 1
    %vm2135 = vcmp.eq.s32.totalorder %v2007, 1
    %vm2136 = vcmp.eq.s32.totalorder %v2008, 1
    %vm2137 = vcmp.eq.s32.totalorder %v2009, 1
    %vm2138 = vcmp.eq.s32.totalorder %v2010, 1
    %vm2139 = vcmp.eq.s32.totalorder %v2011, 1
    %vm2140 = vcmp.eq.s32.totalorder %v2012, 1
    %vm2141 = vcmp.eq.s32.totalorder %v2013, 1
    %vm2142 = vcmp.eq.s32.totalorder %v2014, 1
    %vm2143 = vcmp.eq.s32.totalorder %v2015, 1
    %vm2144 = vcmp.eq.s32.totalorder %v2016, 1
    %vm2145 = vcmp.eq.s32.totalorder %v2017, 1
    %vm2146 = vcmp.eq.s32.totalorder %v2018, 1
    %vm2147 = vcmp.eq.s32.totalorder %v2019, 1
    %vm2148 = vcmp.eq.s32.totalorder %v2020, 1
    %vm2149 = vcmp.eq.s32.totalorder %v2021, 1
    %vm2150 = vcmp.eq.s32.totalorder %v2022, 1
    %vm2151 = vcmp.eq.s32.totalorder %v2023, 1
    %vm2152 = vcmp.eq.s32.totalorder %v2024, 1
    %vm2153 = vcmp.eq.s32.totalorder %v2025, 1
    %vm2154 = vcmp.eq.s32.totalorder %v2026, 1
    %vm2155 = vcmp.eq.s32.totalorder %v2027, 1
    %vm2156 = vcmp.eq.s32.totalorder %v2028, 1
    %vm2157 = vcmp.eq.s32.totalorder %v2029, 1
    %vm2158 = vcmp.eq.s32.totalorder %v2030, 1
    %vm2159 = vcmp.eq.s32.totalorder %v2031, 1
    %vm2160 = vcmp.eq.s32.totalorder %v2032, 1
    %vm2161 = vcmp.eq.s32.totalorder %v2033, 1
    %vm2162 = vcmp.eq.s32.totalorder %v2034, 1
    %vm2163 = vcmp.eq.s32.totalorder %v2035, 1
    %vm2164 = vcmp.eq.s32.totalorder %v2036, 1
    %vm2165 = vcmp.eq.s32.totalorder %v2037, 1
    %vm2166 = vcmp.eq.s32.totalorder %v2038, 1
    %vm2167 = vcmp.eq.s32.totalorder %v2039, 1
    %vm2168 = vcmp.eq.s32.totalorder %v2040, 1
    %vm2169 = vcmp.eq.s32.totalorder %v2041, 1
    %vm2170 = vcmp.eq.s32.totalorder %v2042, 1
    %vm2171 = vcmp.eq.s32.totalorder %v2043, 1
    %vm2172 = vcmp.eq.s32.totalorder %v2044, 1
    %vm2173 = vcmp.eq.s32.totalorder %v2045, 1
    %vm2174 = vcmp.eq.s32.totalorder %v2046, 1
    %vm2175 = vcmp.eq.s32.totalorder %v2047, 1
    %vm2176 = vcmp.eq.s32.totalorder %v2048, 1
    %vm2177 = vcmp.eq.s32.totalorder %v2049, 1
    %vm2178 = vcmp.eq.s32.totalorder %v2050, 1
    %vm2179 = vcmp.eq.s32.totalorder %v2051, 1
    %vm2180 = vcmp.eq.s32.totalorder %v2052, 1
    %vm2181 = vcmp.eq.s32.totalorder %v2053, 1
    %vm2182 = vcmp.eq.s32.totalorder %v2054, 1
    %vm2183 = vcmp.eq.s32.totalorder %v2055, 1
    %vm2184 = vcmp.eq.s32.totalorder %v2056, 1
    %vm2185 = vcmp.eq.s32.totalorder %v2057, 1
    %vm2186 = vcmp.eq.s32.totalorder %v2058, 1
    %vm2187 = vcmp.eq.s32.totalorder %v2059, 1
    %vm2188 = vcmp.eq.s32.totalorder %v2060, 1
    %vm2189 = vcmp.eq.s32.totalorder %v2061, 1
    %vm2190 = vcmp.eq.s32.totalorder %v2062, 1
    %vm2191 = vcmp.eq.s32.totalorder %v2063, 1
    %vm2192 = vcmp.eq.s32.totalorder %v2064, 1
    %vm2193 = vcmp.eq.s32.totalorder %v2065, 1
    %vm2194 = vcmp.eq.s32.totalorder %v2066, 1
    %vm2195 = vcmp.eq.s32.totalorder %v2067, 1
    %vm2196 = vcmp.eq.s32.totalorder %v2068, 1
    %vm2197 = vcmp.eq.s32.totalorder %v2069, 1
    %vm2198 = vcmp.eq.s32.totalorder %v2070, 1
    %vm2199 = vcmp.eq.s32.totalorder %v2071, 1
    %vm2200 = vcmp.eq.s32.totalorder %v2072, 1
    %vm2201 = vcmp.eq.s32.totalorder %v2073, 1
    %vm2202 = vcmp.eq.s32.totalorder %v2074, 1
    %vm2203 = vcmp.eq.s32.totalorder %v2075, 1
    %v2204 = vsel %vm1820, 1, 0
    %v2205 = vsel %vm1821, 1, 0
    %v2206 = vsel %vm1822, 1, 0
    %v2207 = vsel %vm1823, 1, 0
    %v2208 = vsel %vm1824, 1, 0
    %v2209 = vsel %vm1825, 1, 0
    %v2210 = vsel %vm1826, 1, 0
    %v2211 = vsel %vm1827, 1, 0
    %v2212 = vsel %vm1828, 1, 0
    %v2213 = vsel %vm1829, 1, 0
    %v2214 = vsel %vm1830, 1, 0
    %v2215 = vsel %vm1831, 1, 0
    %v2216 = vsel %vm1832, 1, 0
    %v2217 = vsel %vm1833, 1, 0
    %v2218 = vsel %vm1834, 1, 0
    %v2219 = vsel %vm1835, 1, 0
    %v2220 = vsel %vm1836, 1, 0
    %v2221 = vsel %vm1837, 1, 0
    %v2222 = vsel %vm1838, 1, 0
    %v2223 = vsel %vm1839, 1, 0
    %v2224 = vsel %vm1840, 1, 0
    %v2225 = vsel %vm1841, 1, 0
    %v2226 = vsel %vm1842, 1, 0
    %v2227 = vsel %vm1843, 1, 0
    %v2228 = vsel %vm1844, 1, 0
    %v2229 = vsel %vm1845, 1, 0
    %v2230 = vsel %vm1846, 1, 0
    %v2231 = vsel %vm1847, 1, 0
    %v2232 = vsel %vm1848, 1, 0
    %v2233 = vsel %vm1849, 1, 0
    %v2234 = vsel %vm1850, 1, 0
    %v2235 = vsel %vm1851, 1, 0
    %v2236 = vsel %vm1852, 1, 0
    %v2237 = vsel %vm1853, 1, 0
    %v2238 = vsel %vm1854, 1, 0
    %v2239 = vsel %vm1855, 1, 0
    %v2240 = vsel %vm1856, 1, 0
    %v2241 = vsel %vm1857, 1, 0
    %v2242 = vsel %vm1858, 1, 0
    %v2243 = vsel %vm1859, 1, 0
    %v2244 = vsel %vm1860, 1, 0
    %v2245 = vsel %vm1861, 1, 0
    %v2246 = vsel %vm1862, 1, 0
    %v2247 = vsel %vm1863, 1, 0
    %v2248 = vsel %vm1864, 1, 0
    %v2249 = vsel %vm1865, 1, 0
    %v2250 = vsel %vm1866, 1, 0
    %v2251 = vsel %vm1867, 1, 0
    %v2252 = vsel %vm1868, 1, 0
    %v2253 = vsel %vm1869, 1, 0
    %v2254 = vsel %vm1870, 1, 0
    %v2255 = vsel %vm1871, 1, 0
    %v2256 = vsel %vm1872, 1, 0
    %v2257 = vsel %vm1873, 1, 0
    %v2258 = vsel %vm1874, 1, 0
    %v2259 = vsel %vm1875, 1, 0
    %v2260 = vsel %vm1876, 1, 0
    %v2261 = vsel %vm1877, 1, 0
    %v2262 = vsel %vm1878, 1, 0
    %v2263 = vsel %vm1879, 1, 0
    %v2264 = vsel %vm1880, 1, 0
    %v2265 = vsel %vm1881, 1, 0
    %v2266 = vsel %vm1882, 1, 0
    %v2267 = vsel %vm1883, 1, 0
    %v2268 = vsel %vm1884, 1, 0
    %v2269 = vsel %vm1885, 1, 0
    %v2270 = vsel %vm1886, 1, 0
    %v2271 = vsel %vm1887, 1, 0
    %v2272 = vsel %vm1888, 1, 0
    %v2273 = vsel %vm1889, 1, 0
    %v2274 = vsel %vm1890, 1, 0
    %v2275 = vsel %vm1891, 1, 0
    %v2276 = vsel %vm1892, 1, 0
    %v2277 = vsel %vm1893, 1, 0
    %v2278 = vsel %vm1894, 1, 0
    %v2279 = vsel %vm1895, 1, 0
    %v2280 = vsel %vm1896, 1, 0
    %v2281 = vsel %vm1897, 1, 0
    %v2282 = vsel %vm1898, 1, 0
    %v2283 = vsel %vm1899, 1, 0
    %v2284 = vsel %vm1900, 1, 0
    %v2285 = vsel %vm1901, 1, 0
    %v2286 = vsel %vm1902, 1, 0
    %v2287 = vsel %vm1903, 1, 0
    %v2288 = vsel %vm1904, 1, 0
    %v2289 = vsel %vm1905, 1, 0
    %v2290 = vsel %vm1906, 1, 0
    %v2291 = vsel %vm1907, 1, 0
    %v2292 = vsel %vm1908, 1, 0
    %v2293 = vsel %vm1909, 1, 0
    %v2294 = vsel %vm1910, 1, 0
    %v2295 = vsel %vm1911, 1, 0
    %v2296 = vsel %vm1912, 1, 0
    %v2297 = vsel %vm1913, 1, 0
    %v2298 = vsel %vm1914, 1, 0
    %v2299 = vsel %vm1915, 1, 0
    %v2300 = vsel %vm1916, 1, 0
    %v2301 = vsel %vm1917, 1, 0
    %v2302 = vsel %vm1918, 1, 0
    %v2303 = vsel %vm1919, 1, 0
    %v2304 = vsel %vm1920, 1, 0
    %v2305 = vsel %vm1921, 1, 0
    %v2306 = vsel %vm1922, 1, 0
    %v2307 = vsel %vm1923, 1, 0
    %v2308 = vsel %vm1924, 1, 0
    %v2309 = vsel %vm1925, 1, 0
    %v2310 = vsel %vm1926, 1, 0
    %v2311 = vsel %vm1927, 1, 0
    %v2312 = vsel %vm1928, 1, 0
    %v2313 = vsel %vm1929, 1, 0
    %v2314 = vsel %vm1930, 1, 0
    %v2315 = vsel %vm1931, 1, 0
    %v2316 = vsel %vm1932, 1, 0
    %v2317 = vsel %vm1933, 1, 0
    %v2318 = vsel %vm1934, 1, 0
    %v2319 = vsel %vm1935, 1, 0
    %v2320 = vsel %vm1936, 1, 0
    %v2321 = vsel %vm1937, 1, 0
    %v2322 = vsel %vm1938, 1, 0
    %v2323 = vsel %vm1939, 1, 0
    %v2324 = vsel %vm1940, 1, 0
    %v2325 = vsel %vm1941, 1, 0
    %v2326 = vsel %vm1942, 1, 0
    %v2327 = vsel %vm1943, 1, 0
    %v2328 = vsel %vm1944, 1, 0
    %v2329 = vsel %vm1945, 1, 0
    %v2330 = vsel %vm1946, 1, 0
    %v2331 = vsel %vm1947, 1, 0
    %vm2332 = vcmp.eq.s32.totalorder %v2204, 1
    %vm2333 = vcmp.eq.s32.totalorder %v2205, 1
    %vm2334 = vcmp.eq.s32.totalorder %v2206, 1
    %vm2335 = vcmp.eq.s32.totalorder %v2207, 1
    %vm2336 = vcmp.eq.s32.totalorder %v2208, 1
    %vm2337 = vcmp.eq.s32.totalorder %v2209, 1
    %vm2338 = vcmp.eq.s32.totalorder %v2210, 1
    %vm2339 = vcmp.eq.s32.totalorder %v2211, 1
    %vm2340 = vcmp.eq.s32.totalorder %v2212, 1
    %vm2341 = vcmp.eq.s32.totalorder %v2213, 1
    %vm2342 = vcmp.eq.s32.totalorder %v2214, 1
    %vm2343 = vcmp.eq.s32.totalorder %v2215, 1
    %vm2344 = vcmp.eq.s32.totalorder %v2216, 1
    %vm2345 = vcmp.eq.s32.totalorder %v2217, 1
    %vm2346 = vcmp.eq.s32.totalorder %v2218, 1
    %vm2347 = vcmp.eq.s32.totalorder %v2219, 1
    %vm2348 = vcmp.eq.s32.totalorder %v2220, 1
    %vm2349 = vcmp.eq.s32.totalorder %v2221, 1
    %vm2350 = vcmp.eq.s32.totalorder %v2222, 1
    %vm2351 = vcmp.eq.s32.totalorder %v2223, 1
    %vm2352 = vcmp.eq.s32.totalorder %v2224, 1
    %vm2353 = vcmp.eq.s32.totalorder %v2225, 1
    %vm2354 = vcmp.eq.s32.totalorder %v2226, 1
    %vm2355 = vcmp.eq.s32.totalorder %v2227, 1
    %vm2356 = vcmp.eq.s32.totalorder %v2228, 1
    %vm2357 = vcmp.eq.s32.totalorder %v2229, 1
    %vm2358 = vcmp.eq.s32.totalorder %v2230, 1
    %vm2359 = vcmp.eq.s32.totalorder %v2231, 1
    %vm2360 = vcmp.eq.s32.totalorder %v2232, 1
    %vm2361 = vcmp.eq.s32.totalorder %v2233, 1
    %vm2362 = vcmp.eq.s32.totalorder %v2234, 1
    %vm2363 = vcmp.eq.s32.totalorder %v2235, 1
    %vm2364 = vcmp.eq.s32.totalorder %v2236, 1
    %vm2365 = vcmp.eq.s32.totalorder %v2237, 1
    %vm2366 = vcmp.eq.s32.totalorder %v2238, 1
    %vm2367 = vcmp.eq.s32.totalorder %v2239, 1
    %vm2368 = vcmp.eq.s32.totalorder %v2240, 1
    %vm2369 = vcmp.eq.s32.totalorder %v2241, 1
    %vm2370 = vcmp.eq.s32.totalorder %v2242, 1
    %vm2371 = vcmp.eq.s32.totalorder %v2243, 1
    %vm2372 = vcmp.eq.s32.totalorder %v2244, 1
    %vm2373 = vcmp.eq.s32.totalorder %v2245, 1
    %vm2374 = vcmp.eq.s32.totalorder %v2246, 1
    %vm2375 = vcmp.eq.s32.totalorder %v2247, 1
    %vm2376 = vcmp.eq.s32.totalorder %v2248, 1
    %vm2377 = vcmp.eq.s32.totalorder %v2249, 1
    %vm2378 = vcmp.eq.s32.totalorder %v2250, 1
    %vm2379 = vcmp.eq.s32.totalorder %v2251, 1
    %vm2380 = vcmp.eq.s32.totalorder %v2252, 1
    %vm2381 = vcmp.eq.s32.totalorder %v2253, 1
    %vm2382 = vcmp.eq.s32.totalorder %v2254, 1
    %vm2383 = vcmp.eq.s32.totalorder %v2255, 1
    %vm2384 = vcmp.eq.s32.totalorder %v2256, 1
    %vm2385 = vcmp.eq.s32.totalorder %v2257, 1
    %vm2386 = vcmp.eq.s32.totalorder %v2258, 1
    %vm2387 = vcmp.eq.s32.totalorder %v2259, 1
    %vm2388 = vcmp.eq.s32.totalorder %v2260, 1
    %vm2389 = vcmp.eq.s32.totalorder %v2261, 1
    %vm2390 = vcmp.eq.s32.totalorder %v2262, 1
    %vm2391 = vcmp.eq.s32.totalorder %v2263, 1
    %vm2392 = vcmp.eq.s32.totalorder %v2264, 1
    %vm2393 = vcmp.eq.s32.totalorder %v2265, 1
    %vm2394 = vcmp.eq.s32.totalorder %v2266, 1
    %vm2395 = vcmp.eq.s32.totalorder %v2267, 1
    %vm2396 = vcmp.eq.s32.totalorder %v2268, 1
    %vm2397 = vcmp.eq.s32.totalorder %v2269, 1
    %vm2398 = vcmp.eq.s32.totalorder %v2270, 1
    %vm2399 = vcmp.eq.s32.totalorder %v2271, 1
    %vm2400 = vcmp.eq.s32.totalorder %v2272, 1
    %vm2401 = vcmp.eq.s32.totalorder %v2273, 1
    %vm2402 = vcmp.eq.s32.totalorder %v2274, 1
    %vm2403 = vcmp.eq.s32.totalorder %v2275, 1
    %vm2404 = vcmp.eq.s32.totalorder %v2276, 1
    %vm2405 = vcmp.eq.s32.totalorder %v2277, 1
    %vm2406 = vcmp.eq.s32.totalorder %v2278, 1
    %vm2407 = vcmp.eq.s32.totalorder %v2279, 1
    %vm2408 = vcmp.eq.s32.totalorder %v2280, 1
    %vm2409 = vcmp.eq.s32.totalorder %v2281, 1
    %vm2410 = vcmp.eq.s32.totalorder %v2282, 1
    %vm2411 = vcmp.eq.s32.totalorder %v2283, 1
    %vm2412 = vcmp.eq.s32.totalorder %v2284, 1
    %vm2413 = vcmp.eq.s32.totalorder %v2285, 1
    %vm2414 = vcmp.eq.s32.totalorder %v2286, 1
    %vm2415 = vcmp.eq.s32.totalorder %v2287, 1
    %vm2416 = vcmp.eq.s32.totalorder %v2288, 1
    %vm2417 = vcmp.eq.s32.totalorder %v2289, 1
    %vm2418 = vcmp.eq.s32.totalorder %v2290, 1
    %vm2419 = vcmp.eq.s32.totalorder %v2291, 1
    %vm2420 = vcmp.eq.s32.totalorder %v2292, 1
    %vm2421 = vcmp.eq.s32.totalorder %v2293, 1
    %vm2422 = vcmp.eq.s32.totalorder %v2294, 1
    %vm2423 = vcmp.eq.s32.totalorder %v2295, 1
    %vm2424 = vcmp.eq.s32.totalorder %v2296, 1
    %vm2425 = vcmp.eq.s32.totalorder %v2297, 1
    %vm2426 = vcmp.eq.s32.totalorder %v2298, 1
    %vm2427 = vcmp.eq.s32.totalorder %v2299, 1
    %vm2428 = vcmp.eq.s32.totalorder %v2300, 1
    %vm2429 = vcmp.eq.s32.totalorder %v2301, 1
    %vm2430 = vcmp.eq.s32.totalorder %v2302, 1
    %vm2431 = vcmp.eq.s32.totalorder %v2303, 1
    %vm2432 = vcmp.eq.s32.totalorder %v2304, 1
    %vm2433 = vcmp.eq.s32.totalorder %v2305, 1
    %vm2434 = vcmp.eq.s32.totalorder %v2306, 1
    %vm2435 = vcmp.eq.s32.totalorder %v2307, 1
    %vm2436 = vcmp.eq.s32.totalorder %v2308, 1
    %vm2437 = vcmp.eq.s32.totalorder %v2309, 1
    %vm2438 = vcmp.eq.s32.totalorder %v2310, 1
    %vm2439 = vcmp.eq.s32.totalorder %v2311, 1
    %vm2440 = vcmp.eq.s32.totalorder %v2312, 1
    %vm2441 = vcmp.eq.s32.totalorder %v2313, 1
    %vm2442 = vcmp.eq.s32.totalorder %v2314, 1
    %vm2443 = vcmp.eq.s32.totalorder %v2315, 1
    %vm2444 = vcmp.eq.s32.totalorder %v2316, 1
    %vm2445 = vcmp.eq.s32.totalorder %v2317, 1
    %vm2446 = vcmp.eq.s32.totalorder %v2318, 1
    %vm2447 = vcmp.eq.s32.totalorder %v2319, 1
    %vm2448 = vcmp.eq.s32.totalorder %v2320, 1
    %vm2449 = vcmp.eq.s32.totalorder %v2321, 1
    %vm2450 = vcmp.eq.s32.totalorder %v2322, 1
    %vm2451 = vcmp.eq.s32.totalorder %v2323, 1
    %vm2452 = vcmp.eq.s32.totalorder %v2324, 1
    %vm2453 = vcmp.eq.s32.totalorder %v2325, 1
    %vm2454 = vcmp.eq.s32.totalorder %v2326, 1
    %vm2455 = vcmp.eq.s32.totalorder %v2327, 1
    %vm2456 = vcmp.eq.s32.totalorder %v2328, 1
    %vm2457 = vcmp.eq.s32.totalorder %v2329, 1
    %vm2458 = vcmp.eq.s32.totalorder %v2330, 1
    %vm2459 = vcmp.eq.s32.totalorder %v2331, 1
    %v2460 = vld [vmem:[%s2] sm:$0xff]
    %v2461 = vld [vmem:[%s2 + $0x8] sm:$0xff]
    %v2462 = vld [vmem:[%s2 + $0x10] sm:$0xff]
    %v2463 = vld [vmem:[%s2 + $0x18] sm:$0xff]
    %v2464 = vld [vmem:[%s2 + $0x20] sm:$0xff]
    %v2465 = vld [vmem:[%s2 + $0x28] sm:$0xff]
    %v2466 = vld [vmem:[%s2 + $0x30] sm:$0xff]
    %v2467 = vld [vmem:[%s2 + $0x38] sm:$0xff]
    %v2468 = vld [vmem:[%s2 + $0x40] sm:$0xff]
    %v2469 = vld [vmem:[%s2 + $0x48] sm:$0xff]
    %v2470 = vld [vmem:[%s2 + $0x50] sm:$0xff]
    %v2471 = vld [vmem:[%s2 + $0x58] sm:$0xff]
    %s2472 = scalar_lea.vmem %s2, 96
    %v2473 = vld [vmem:[%s2472] sm:$0xff]
    %v2474 = vld [vmem:[%s2472 + $0x8] sm:$0xff]
    %v2475 = vld [vmem:[%s2472 + $0x10] sm:$0xff]
    %v2476 = vld [vmem:[%s2472 + $0x18] sm:$0xff]
    %v2477 = vld [vmem:[%s2472 + $0x20] sm:$0xff]
    %v2478 = vld [vmem:[%s2472 + $0x28] sm:$0xff]
    %v2479 = vld [vmem:[%s2472 + $0x30] sm:$0xff]
    %v2480 = vld [vmem:[%s2472 + $0x38] sm:$0xff]
    %v2481 = vld [vmem:[%s2472 + $0x40] sm:$0xff]
    %v2482 = vld [vmem:[%s2472 + $0x48] sm:$0xff]
    %v2483 = vld [vmem:[%s2472 + $0x50] sm:$0xff]
    %v2484 = vld [vmem:[%s2472 + $0x58] sm:$0xff]
    %s2485 = scalar_lea.vmem %s2, 192
    %v2486 = vld [vmem:[%s2485] sm:$0xff]
    %v2487 = vld [vmem:[%s2485 + $0x8] sm:$0xff]
    %v2488 = vld [vmem:[%s2485 + $0x10] sm:$0xff]
    %v2489 = vld [vmem:[%s2485 + $0x18] sm:$0xff]
    %v2490 = vld [vmem:[%s2485 + $0x20] sm:$0xff]
    %v2491 = vld [vmem:[%s2485 + $0x28] sm:$0xff]
    %v2492 = vld [vmem:[%s2485 + $0x30] sm:$0xff]
    %v2493 = vld [vmem:[%s2485 + $0x38] sm:$0xff]
    %v2494 = vld [vmem:[%s2485 + $0x40] sm:$0xff]
    %v2495 = vld [vmem:[%s2485 + $0x48] sm:$0xff]
    %v2496 = vld [vmem:[%s2485 + $0x50] sm:$0xff]
    %v2497 = vld [vmem:[%s2485 + $0x58] sm:$0xff]
    %v2498 = vld [vmem:[%s5] sm:$0x1f]
    %v2499 = vld [vmem:[%s0] sm:$0xff]
    %v2500 = vld [vmem:[%s0 + $0x8] sm:$0xff]
    %v2501 = vld [vmem:[%s0 + $0x10] sm:$0xff]
    %v2502 = vld [vmem:[%s0 + $0x18] sm:$0xff]
    %v2503 = vld [vmem:[%s0 + $0x20] sm:$0xff]
    %v2504 = vld [vmem:[%s0 + $0x28] sm:$0xff]
    %v2505 = vld [vmem:[%s0 + $0x30] sm:$0xff]
    %v2506 = vld [vmem:[%s0 + $0x38] sm:$0xff]
    %v2507 = vld [vmem:[%s0 + $0x40] sm:$0xff]
    %v2508 = vld [vmem:[%s0 + $0x48] sm:$0xff]
    %v2509 = vld [vmem:[%s0 + $0x50] sm:$0xff]
    %v2510 = vld [vmem:[%s0 + $0x58] sm:$0xff]
    %v2511 = vld [vmem:[%s0 + $0x60] sm:$0xff]
    %v2512 = vld [vmem:[%s0 + $0x68] sm:$0xff]
    %v2513 = vld [vmem:[%s0 + $0x70] sm:$0xff]
    %v2514 = vld [vmem:[%s0 + $0x78] sm:$0xff]
    %v2515 = vld [vmem:[%s0 + $0x80] sm:$0xff]
    %v2516 = vld [vmem:[%s0 + $0x88] sm:$0xff]
    %v2517 = vld [vmem:[%s0 + $0x90] sm:$0xff]
    %v2518 = vld [vmem:[%s0 + $0x98] sm:$0xff]
    %v2519 = vld [vmem:[%s0 + $0xa0] sm:$0xff]
    %v2520 = vld [vmem:[%s0 + $0xa8] sm:$0xff]
    %v2521 = vld [vmem:[%s0 + $0xb0] sm:$0xff]
    %v2522 = vld [vmem:[%s0 + $0xb8] sm:$0xff]
    %v2523 = vld [vmem:[%s0 + $0xc0] sm:$0xff]
    %v2524 = vld [vmem:[%s0 + $0xc8] sm:$0xff]
    %v2525 = vld [vmem:[%s0 + $0xd0] sm:$0xff]
    %v2526 = vld [vmem:[%s0 + $0xd8] sm:$0xff]
    %v2527 = vld [vmem:[%s0 + $0xe0] sm:$0xff]
    %v2528 = vld [vmem:[%s0 + $0xe8] sm:$0xff]
    %v2529 = vld [vmem:[%s0 + $0xf0] sm:$0xff]
    %v2530 = vld [vmem:[%s0 + $0xf8] sm:$0xff]
    %v2531 = vld [vmem:[%s0 + $0x100] sm:$0xff]
    %v2532 = vld [vmem:[%s0 + $0x108] sm:$0xff]
    %v2533 = vld [vmem:[%s0 + $0x110] sm:$0xff]
    %v2534 = vld [vmem:[%s0 + $0x118] sm:$0xff]
    %v2535 = vld [vmem:[%s0 + $0x120] sm:$0xff]
    %v2536 = vld [vmem:[%s0 + $0x128] sm:$0xff]
    %v2537 = vld [vmem:[%s0 + $0x130] sm:$0xff]
    %v2538 = vld [vmem:[%s0 + $0x138] sm:$0xff]
    %v2539 = vld [vmem:[%s0 + $0x140] sm:$0xff]
    %v2540 = vld [vmem:[%s0 + $0x148] sm:$0xff]
    %v2541 = vld [vmem:[%s0 + $0x150] sm:$0xff]
    %v2542 = vld [vmem:[%s0 + $0x158] sm:$0xff]
    %v2543 = vld [vmem:[%s0 + $0x160] sm:$0xff]
    %v2544 = vld [vmem:[%s0 + $0x168] sm:$0xff]
    %v2545 = vld [vmem:[%s0 + $0x170] sm:$0xff]
    %v2546 = vld [vmem:[%s0 + $0x178] sm:$0xff]
    %v2547 = vld [vmem:[%s0 + $0x180] sm:$0xff]
    %v2548 = vld [vmem:[%s0 + $0x188] sm:$0xff]
    %v2549 = vld [vmem:[%s0 + $0x190] sm:$0xff]
    %v2550 = vld [vmem:[%s0 + $0x198] sm:$0xff]
    %v2551 = vld [vmem:[%s0 + $0x1a0] sm:$0xff]
    %v2552 = vld [vmem:[%s0 + $0x1a8] sm:$0xff]
    %v2553 = vld [vmem:[%s0 + $0x1b0] sm:$0xff]
    %v2554 = vld [vmem:[%s0 + $0x1b8] sm:$0xff]
    %v2555 = vld [vmem:[%s0 + $0x1c0] sm:$0xff]
    %v2556 = vld [vmem:[%s0 + $0x1c8] sm:$0xff]
    %v2557 = vld [vmem:[%s0 + $0x1d0] sm:$0xff]
    %v2558 = vld [vmem:[%s0 + $0x1d8] sm:$0xff]
    %v2559 = vld [vmem:[%s0 + $0x1e0] sm:$0xff]
    %v2560 = vld [vmem:[%s0 + $0x1e8] sm:$0xff]
    %v2561 = vld [vmem:[%s0 + $0x1f0] sm:$0xff]
    %v2562 = vld [vmem:[%s0 + $0x1f8] sm:$0xff]
    %v2563 = vld [vmem:[%s0 + $0x200] sm:$0xff]
    %v2564 = vld [vmem:[%s0 + $0x208] sm:$0xff]
    %v2565 = vld [vmem:[%s0 + $0x210] sm:$0xff]
    %v2566 = vld [vmem:[%s0 + $0x218] sm:$0xff]
    %v2567 = vld [vmem:[%s0 + $0x220] sm:$0xff]
    %v2568 = vld [vmem:[%s0 + $0x228] sm:$0xff]
    %v2569 = vld [vmem:[%s0 + $0x230] sm:$0xff]
    %v2570 = vld [vmem:[%s0 + $0x238] sm:$0xff]
    %v2571 = vld [vmem:[%s0 + $0x240] sm:$0xff]
    %v2572 = vld [vmem:[%s0 + $0x248] sm:$0xff]
    %v2573 = vld [vmem:[%s0 + $0x250] sm:$0xff]
    %v2574 = vld [vmem:[%s0 + $0x258] sm:$0xff]
    %v2575 = vld [vmem:[%s0 + $0x260] sm:$0xff]
    %v2576 = vld [vmem:[%s0 + $0x268] sm:$0xff]
    %v2577 = vld [vmem:[%s0 + $0x270] sm:$0xff]
    %v2578 = vld [vmem:[%s0 + $0x278] sm:$0xff]
    %v2579 = vld [vmem:[%s0 + $0x280] sm:$0xff]
    %v2580 = vld [vmem:[%s0 + $0x288] sm:$0xff]
    %v2581 = vld [vmem:[%s0 + $0x290] sm:$0xff]
    %v2582 = vld [vmem:[%s0 + $0x298] sm:$0xff]
    %v2583 = vld [vmem:[%s0 + $0x2a0] sm:$0xff]
    %v2584 = vld [vmem:[%s0 + $0x2a8] sm:$0xff]
    %v2585 = vld [vmem:[%s0 + $0x2b0] sm:$0xff]
    %v2586 = vld [vmem:[%s0 + $0x2b8] sm:$0xff]
    %v2587 = vld [vmem:[%s0 + $0x2c0] sm:$0xff]
    %v2588 = vld [vmem:[%s0 + $0x2c8] sm:$0xff]
    %v2589 = vld [vmem:[%s0 + $0x2d0] sm:$0xff]
    %v2590 = vld [vmem:[%s0 + $0x2d8] sm:$0xff]
    %v2591 = vld [vmem:[%s0 + $0x2e0] sm:$0xff]
    %v2592 = vld [vmem:[%s0 + $0x2e8] sm:$0xff]
    %v2593 = vld [vmem:[%s0 + $0x2f0] sm:$0xff]
    %v2594 = vld [vmem:[%s0 + $0x2f8] sm:$0xff]
    %v2595 = vld [vmem:[%s0 + $0x300] sm:$0xff]
    %v2596 = vld [vmem:[%s0 + $0x308] sm:$0xff]
    %v2597 = vld [vmem:[%s0 + $0x310] sm:$0xff]
    %v2598 = vld [vmem:[%s0 + $0x318] sm:$0xff]
    %v2599 = vld [vmem:[%s0 + $0x320] sm:$0xff]
    %v2600 = vld [vmem:[%s0 + $0x328] sm:$0xff]
    %v2601 = vld [vmem:[%s0 + $0x330] sm:$0xff]
    %v2602 = vld [vmem:[%s0 + $0x338] sm:$0xff]
    %v2603 = vld [vmem:[%s0 + $0x340] sm:$0xff]
    %v2604 = vld [vmem:[%s0 + $0x348] sm:$0xff]
    %v2605 = vld [vmem:[%s0 + $0x350] sm:$0xff]
    %v2606 = vld [vmem:[%s0 + $0x358] sm:$0xff]
    %v2607 = vld [vmem:[%s0 + $0x360] sm:$0xff]
    %v2608 = vld [vmem:[%s0 + $0x368] sm:$0xff]
    %v2609 = vld [vmem:[%s0 + $0x370] sm:$0xff]
    %v2610 = vld [vmem:[%s0 + $0x378] sm:$0xff]
    %v2611 = vld [vmem:[%s0 + $0x380] sm:$0xff]
    %v2612 = vld [vmem:[%s0 + $0x388] sm:$0xff]
    %v2613 = vld [vmem:[%s0 + $0x390] sm:$0xff]
    %v2614 = vld [vmem:[%s0 + $0x398] sm:$0xff]
    %v2615 = vld [vmem:[%s0 + $0x3a0] sm:$0xff]
    %v2616 = vld [vmem:[%s0 + $0x3a8] sm:$0xff]
    %v2617 = vld [vmem:[%s0 + $0x3b0] sm:$0xff]
    %v2618 = vld [vmem:[%s0 + $0x3b8] sm:$0xff]
    %v2619 = vld [vmem:[%s0 + $0x3c0] sm:$0xff]
    %v2620 = vld [vmem:[%s0 + $0x3c8] sm:$0xff]
    %v2621 = vld [vmem:[%s0 + $0x3d0] sm:$0xff]
    %v2622 = vld [vmem:[%s0 + $0x3d8] sm:$0xff]
    %v2623 = vld [vmem:[%s0 + $0x3e0] sm:$0xff]
    %v2624 = vld [vmem:[%s0 + $0x3e8] sm:$0xff]
    %v2625 = vld [vmem:[%s0 + $0x3f0] sm:$0xff]
    %v2626 = vld [vmem:[%s0 + $0x3f8] sm:$0xff]
    %v2627 = vld [vmem:[%s1] sm:$0xff]
    %v2628 = vld [vmem:[%s1 + $0x8] sm:$0xff]
    %v2629 = vld [vmem:[%s1 + $0x10] sm:$0xff]
    %v2630 = vld [vmem:[%s1 + $0x18] sm:$0xff]
    %v2631 = vld [vmem:[%s1 + $0x20] sm:$0xff]
    %v2632 = vld [vmem:[%s1 + $0x28] sm:$0xff]
    %v2633 = vld [vmem:[%s1 + $0x30] sm:$0xff]
    %v2634 = vld [vmem:[%s1 + $0x38] sm:$0xff]
    %v2635 = vld [vmem:[%s1 + $0x40] sm:$0xff]
    %v2636 = vld [vmem:[%s1 + $0x48] sm:$0xff]
    %v2637 = vld [vmem:[%s1 + $0x50] sm:$0xff]
    %v2638 = vld [vmem:[%s1 + $0x58] sm:$0xff]
    %v2639 = vrot.slane %v2499, 7
    %v2640 = vrot.slane %v2500, 7
    %v2641 = vrot.slane %v2501, 7
    %v2642 = vrot.slane %v2502, 7
    %v2643 = vrot.slane %v2503, 7
    %v2644 = vrot.slane %v2504, 7
    %v2645 = vrot.slane %v2505, 7
    %v2646 = vrot.slane %v2506, 7
    %v2647 = vrot.slane %v2507, 7
    %v2648 = vrot.slane %v2508, 7
    %v2649 = vrot.slane %v2509, 7
    %v2650 = vrot.slane %v2510, 7
    %v2651 = vrot.slane %v2511, 7
    %v2652 = vrot.slane %v2512, 7
    %v2653 = vrot.slane %v2513, 7
    %v2654 = vrot.slane %v2514, 7
    %v2655 = vrot.slane %v2515, 7
    %v2656 = vrot.slane %v2516, 7
    %v2657 = vrot.slane %v2517, 7
    %v2658 = vrot.slane %v2518, 7
    %v2659 = vrot.slane %v2519, 7
    %v2660 = vrot.slane %v2520, 7
    %v2661 = vrot.slane %v2521, 7
    %v2662 = vrot.slane %v2522, 7
    %v2663 = vrot.slane %v2523, 7
    %v2664 = vrot.slane %v2524, 7
    %v2665 = vrot.slane %v2525, 7
    %v2666 = vrot.slane %v2526, 7
    %v2667 = vrot.slane %v2527, 7
    %v2668 = vrot.slane %v2528, 7
    %v2669 = vrot.slane %v2529, 7
    %v2670 = vrot.slane %v2530, 7
    %v2671 = vrot.slane %v2531, 7
    %v2672 = vrot.slane %v2532, 7
    %v2673 = vrot.slane %v2533, 7
    %v2674 = vrot.slane %v2534, 7
    %v2675 = vrot.slane %v2535, 7
    %v2676 = vrot.slane %v2536, 7
    %v2677 = vrot.slane %v2537, 7
    %v2678 = vrot.slane %v2538, 7
    %v2679 = vrot.slane %v2539, 7
    %v2680 = vrot.slane %v2540, 7
    %v2681 = vrot.slane %v2541, 7
    %v2682 = vrot.slane %v2542, 7
    %v2683 = vrot.slane %v2543, 7
    %v2684 = vrot.slane %v2544, 7
    %v2685 = vrot.slane %v2545, 7
    %v2686 = vrot.slane %v2546, 7
    %v2687 = vrot.slane %v2547, 7
    %v2688 = vrot.slane %v2548, 7
    %v2689 = vrot.slane %v2549, 7
    %v2690 = vrot.slane %v2550, 7
    %v2691 = vrot.slane %v2551, 7
    %v2692 = vrot.slane %v2552, 7
    %v2693 = vrot.slane %v2553, 7
    %v2694 = vrot.slane %v2554, 7
    %v2695 = vrot.slane %v2555, 7
    %v2696 = vrot.slane %v2556, 7
    %v2697 = vrot.slane %v2557, 7
    %v2698 = vrot.slane %v2558, 7
    %v2699 = vrot.slane %v2559, 7
    %v2700 = vrot.slane %v2560, 7
    %v2701 = vrot.slane %v2561, 7
    %v2702 = vrot.slane %v2562, 7
    %v2703 = vrot.slane %v2563, 7
    %v2704 = vrot.slane %v2564, 7
    %v2705 = vrot.slane %v2565, 7
    %v2706 = vrot.slane %v2566, 7
    %v2707 = vrot.slane %v2567, 7
    %v2708 = vrot.slane %v2568, 7
    %v2709 = vrot.slane %v2569, 7
    %v2710 = vrot.slane %v2570, 7
    %v2711 = vrot.slane %v2571, 7
    %v2712 = vrot.slane %v2572, 7
    %v2713 = vrot.slane %v2573, 7
    %v2714 = vrot.slane %v2574, 7
    %v2715 = vrot.slane %v2575, 7
    %v2716 = vrot.slane %v2576, 7
    %v2717 = vrot.slane %v2577, 7
    %v2718 = vrot.slane %v2578, 7
    %v2719 = vrot.slane %v2579, 7
    %v2720 = vrot.slane %v2580, 7
    %v2721 = vrot.slane %v2581, 7
    %v2722 = vrot.slane %v2582, 7
    %v2723 = vrot.slane %v2583, 7
    %v2724 = vrot.slane %v2584, 7
    %v2725 = vrot.slane %v2585, 7
    %v2726 = vrot.slane %v2586, 7
    %v2727 = vrot.slane %v2587, 7
    %v2728 = vrot.slane %v2588, 7
    %v2729 = vrot.slane %v2589, 7
    %v2730 = vrot.slane %v2590, 7
    %v2731 = vrot.slane %v2591, 7
    %v2732 = vrot.slane %v2592, 7
    %v2733 = vrot.slane %v2593, 7
    %v2734 = vrot.slane %v2594, 7
    %v2735 = vrot.slane %v2595, 7
    %v2736 = vrot.slane %v2596, 7
    %v2737 = vrot.slane %v2597, 7
    %v2738 = vrot.slane %v2598, 7
    %v2739 = vrot.slane %v2599, 7
    %v2740 = vrot.slane %v2600, 7
    %v2741 = vrot.slane %v2601, 7
    %v2742 = vrot.slane %v2602, 7
    %v2743 = vrot.slane %v2603, 7
    %v2744 = vrot.slane %v2604, 7
    %v2745 = vrot.slane %v2605, 7
    %v2746 = vrot.slane %v2606, 7
    %v2747 = vrot.slane %v2607, 7
    %v2748 = vrot.slane %v2608, 7
    %v2749 = vrot.slane %v2609, 7
    %v2750 = vrot.slane %v2610, 7
    %v2751 = vrot.slane %v2611, 7
    %v2752 = vrot.slane %v2612, 7
    %v2753 = vrot.slane %v2613, 7
    %v2754 = vrot.slane %v2614, 7
    %v2755 = vrot.slane %v2615, 7
    %v2756 = vrot.slane %v2616, 7
    %v2757 = vrot.slane %v2617, 7
    %v2758 = vrot.slane %v2618, 7
    %v2759 = vrot.slane %v2619, 7
    %v2760 = vrot.slane %v2620, 7
    %v2761 = vrot.slane %v2621, 7
    %v2762 = vrot.slane %v2622, 7
    %v2763 = vrot.slane %v2623, 7
    %v2764 = vrot.slane %v2624, 7
    %v2765 = vrot.slane %v2625, 7
    %v2766 = vrot.slane %v2626, 7
    %vm2767 = vcmp.lt.s32.totalorder %v28, 1
    %v2768 = vsel %vm2767, %v2765, %v2766
    %v2769 = vsel %vm2767, %v2764, %v2765
    %v2770 = vsel %vm2767, %v2763, %v2764
    %v2771 = vsel %vm2767, %v2762, %v2763
    %v2772 = vsel %vm2767, %v2761, %v2762
    %v2773 = vsel %vm2767, %v2760, %v2761
    %v2774 = vsel %vm2767, %v2759, %v2760
    %v2775 = vsel %vm2767, %v2758, %v2759
    %v2776 = vsel %vm2767, %v2757, %v2758
    %v2777 = vsel %vm2767, %v2756, %v2757
    %v2778 = vsel %vm2767, %v2755, %v2756
    %v2779 = vsel %vm2767, %v2754, %v2755
    %v2780 = vsel %vm2767, %v2753, %v2754
    %v2781 = vsel %vm2767, %v2752, %v2753
    %v2782 = vsel %vm2767, %v2751, %v2752
    %v2783 = vsel %vm2767, %v2750, %v2751
    %v2784 = vsel %vm2767, %v2749, %v2750
    %v2785 = vsel %vm2767, %v2748, %v2749
    %v2786 = vsel %vm2767, %v2747, %v2748
    %v2787 = vsel %vm2767, %v2746, %v2747
    %v2788 = vsel %vm2767, %v2745, %v2746
    %v2789 = vsel %vm2767, %v2744, %v2745
    %v2790 = vsel %vm2767, %v2743, %v2744
    %v2791 = vsel %vm2767, %v2742, %v2743
    %v2792 = vsel %vm2767, %v2741, %v2742
    %v2793 = vsel %vm2767, %v2740, %v2741
    %v2794 = vsel %vm2767, %v2739, %v2740
    %v2795 = vsel %vm2767, %v2738, %v2739
    %v2796 = vsel %vm2767, %v2737, %v2738
    %v2797 = vsel %vm2767, %v2736, %v2737
    %v2798 = vsel %vm2767, %v2735, %v2736
    %v2799 = vsel %vm2767, %v2734, %v2735
    %v2800 = vsel %vm2767, %v2733, %v2734
    %v2801 = vsel %vm2767, %v2732, %v2733
    %v2802 = vsel %vm2767, %v2731, %v2732
    %v2803 = vsel %vm2767, %v2730, %v2731
    %v2804 = vsel %vm2767, %v2729, %v2730
    %v2805 = vsel %vm2767, %v2728, %v2729
    %v2806 = vsel %vm2767, %v2727, %v2728
    %v2807 = vsel %vm2767, %v2726, %v2727
    %v2808 = vsel %vm2767, %v2725, %v2726
    %v2809 = vsel %vm2767, %v2724, %v2725
    %v2810 = vsel %vm2767, %v2723, %v2724
    %v2811 = vsel %vm2767, %v2722, %v2723
    %v2812 = vsel %vm2767, %v2721, %v2722
    %v2813 = vsel %vm2767, %v2720, %v2721
    %v2814 = vsel %vm2767, %v2719, %v2720
    %v2815 = vsel %vm2767, %v2718, %v2719
    %v2816 = vsel %vm2767, %v2717, %v2718
    %v2817 = vsel %vm2767, %v2716, %v2717
    %v2818 = vsel %vm2767, %v2715, %v2716
    %v2819 = vsel %vm2767, %v2714, %v2715
    %v2820 = vsel %vm2767, %v2713, %v2714
    %v2821 = vsel %vm2767, %v2712, %v2713
    %v2822 = vsel %vm2767, %v2711, %v2712
    %v2823 = vsel %vm2767, %v2710, %v2711
    %v2824 = vsel %vm2767, %v2709, %v2710
    %v2825 = vsel %vm2767, %v2708, %v2709
    %v2826 = vsel %vm2767, %v2707, %v2708
    %v2827 = vsel %vm2767, %v2706, %v2707
    %v2828 = vsel %vm2767, %v2705, %v2706
    %v2829 = vsel %vm2767, %v2704, %v2705
    %v2830 = vsel %vm2767, %v2703, %v2704
    %v2831 = vsel %vm2767, %v2702, %v2703
    %v2832 = vsel %vm2767, %v2701, %v2702
    %v2833 = vsel %vm2767, %v2700, %v2701
    %v2834 = vsel %vm2767, %v2699, %v2700
    %v2835 = vsel %vm2767, %v2698, %v2699
    %v2836 = vsel %vm2767, %v2697, %v2698
    %v2837 = vsel %vm2767, %v2696, %v2697
    %v2838 = vsel %vm2767, %v2695, %v2696
    %v2839 = vsel %vm2767, %v2694, %v2695
    %v2840 = vsel %vm2767, %v2693, %v2694
    %v2841 = vsel %vm2767, %v2692, %v2693
    %v2842 = vsel %vm2767, %v2691, %v2692
    %v2843 = vsel %vm2767, %v2690, %v2691
    %v2844 = vsel %vm2767, %v2689, %v2690
    %v2845 = vsel %vm2767, %v2688, %v2689
    %v2846 = vsel %vm2767, %v2687, %v2688
    %v2847 = vsel %vm2767, %v2686, %v2687
    %v2848 = vsel %vm2767, %v2685, %v2686
    %v2849 = vsel %vm2767, %v2684, %v2685
    %v2850 = vsel %vm2767, %v2683, %v2684
    %v2851 = vsel %vm2767, %v2682, %v2683
    %v2852 = vsel %vm2767, %v2681, %v2682
    %v2853 = vsel %vm2767, %v2680, %v2681
    %v2854 = vsel %vm2767, %v2679, %v2680
    %v2855 = vsel %vm2767, %v2678, %v2679
    %v2856 = vsel %vm2767, %v2677, %v2678
    %v2857 = vsel %vm2767, %v2676, %v2677
    %v2858 = vsel %vm2767, %v2675, %v2676
    %v2859 = vsel %vm2767, %v2674, %v2675
    %v2860 = vsel %vm2767, %v2673, %v2674
    %v2861 = vsel %vm2767, %v2672, %v2673
    %v2862 = vsel %vm2767, %v2671, %v2672
    %v2863 = vsel %vm2767, %v2670, %v2671
    %v2864 = vsel %vm2767, %v2669, %v2670
    %v2865 = vsel %vm2767, %v2668, %v2669
    %v2866 = vsel %vm2767, %v2667, %v2668
    %v2867 = vsel %vm2767, %v2666, %v2667
    %v2868 = vsel %vm2767, %v2665, %v2666
    %v2869 = vsel %vm2767, %v2664, %v2665
    %v2870 = vsel %vm2767, %v2663, %v2664
    %v2871 = vsel %vm2767, %v2662, %v2663
    %v2872 = vsel %vm2767, %v2661, %v2662
    %v2873 = vsel %vm2767, %v2660, %v2661
    %v2874 = vsel %vm2767, %v2659, %v2660
    %v2875 = vsel %vm2767, %v2658, %v2659
    %v2876 = vsel %vm2767, %v2657, %v2658
    %v2877 = vsel %vm2767, %v2656, %v2657
    %v2878 = vsel %vm2767, %v2655, %v2656
    %v2879 = vsel %vm2767, %v2654, %v2655
    %v2880 = vsel %vm2767, %v2653, %v2654
    %v2881 = vsel %vm2767, %v2652, %v2653
    %v2882 = vsel %vm2767, %v2651, %v2652
    %v2883 = vsel %vm2767, %v2650, %v2651
    %v2884 = vsel %vm2767, %v2649, %v2650
    %v2885 = vsel %vm2767, %v2648, %v2649
    %v2886 = vsel %vm2767, %v2647, %v2648
    %v2887 = vsel %vm2767, %v2646, %v2647
    %v2888 = vsel %vm2767, %v2645, %v2646
    %v2889 = vsel %vm2767, %v2644, %v2645
    %v2890 = vsel %vm2767, %v2643, %v2644
    %v2891 = vsel %vm2767, %v2642, %v2643
    %v2892 = vsel %vm2767, %v2641, %v2642
    %v2893 = vsel %vm2767, %v2640, %v2641
    %v2894 = vsel %vm2767, %v2639, %v2640
    %v2895 = vsel %vm2767, %v2766, %v2639
    %v2896 = vsel %vm2076, %v2895, 0.0
    %v2897 = vsel %vm2077, %v2894, 0.0
    %v2898 = vsel %vm2078, %v2893, 0.0
    %v2899 = vsel %vm2079, %v2892, 0.0
    %v2900 = vsel %vm2080, %v2891, 0.0
    %v2901 = vsel %vm2081, %v2890, 0.0
    %v2902 = vsel %vm2082, %v2889, 0.0
    %v2903 = vsel %vm2083, %v2888, 0.0
    %v2904 = vsel %vm2084, %v2887, 0.0
    %v2905 = vsel %vm2085, %v2886, 0.0
    %v2906 = vsel %vm2086, %v2885, 0.0
    %v2907 = vsel %vm2087, %v2884, 0.0
    %v2908 = vsel %vm2088, %v2883, 0.0
    %v2909 = vsel %vm2089, %v2882, 0.0
    %v2910 = vsel %vm2090, %v2881, 0.0
    %v2911 = vsel %vm2091, %v2880, 0.0
    %v2912 = vsel %vm2092, %v2879, 0.0
    %v2913 = vsel %vm2093, %v2878, 0.0
    %v2914 = vsel %vm2094, %v2877, 0.0
    %v2915 = vsel %vm2095, %v2876, 0.0
    %v2916 = vsel %vm2096, %v2875, 0.0
    %v2917 = vsel %vm2097, %v2874, 0.0
    %v2918 = vsel %vm2098, %v2873, 0.0
    %v2919 = vsel %vm2099, %v2872, 0.0
    %v2920 = vsel %vm2100, %v2871, 0.0
    %v2921 = vsel %vm2101, %v2870, 0.0
    %v2922 = vsel %vm2102, %v2869, 0.0
    %v2923 = vsel %vm2103, %v2868, 0.0
    %v2924 = vsel %vm2104, %v2867, 0.0
    %v2925 = vsel %vm2105, %v2866, 0.0
    %v2926 = vsel %vm2106, %v2865, 0.0
    %v2927 = vsel %vm2107, %v2864, 0.0
    %v2928 = vsel %vm2108, %v2863, 0.0
    %v2929 = vsel %vm2109, %v2862, 0.0
    %v2930 = vsel %vm2110, %v2861, 0.0
    %v2931 = vsel %vm2111, %v2860, 0.0
    %v2932 = vsel %vm2112, %v2859, 0.0
    %v2933 = vsel %vm2113, %v2858, 0.0
    %v2934 = vsel %vm2114, %v2857, 0.0
    %v2935 = vsel %vm2115, %v2856, 0.0
    %v2936 = vsel %vm2116, %v2855, 0.0
    %v2937 = vsel %vm2117, %v2854, 0.0
    %v2938 = vsel %vm2118, %v2853, 0.0
    %v2939 = vsel %vm2119, %v2852, 0.0
    %v2940 = vsel %vm2120, %v2851, 0.0
    %v2941 = vsel %vm2121, %v2850, 0.0
    %v2942 = vsel %vm2122, %v2849, 0.0
    %v2943 = vsel %vm2123, %v2848, 0.0
    %v2944 = vsel %vm2124, %v2847, 0.0
    %v2945 = vsel %vm2125, %v2846, 0.0
    %v2946 = vsel %vm2126, %v2845, 0.0
    %v2947 = vsel %vm2127, %v2844, 0.0
    %v2948 = vsel %vm2128, %v2843, 0.0
    %v2949 = vsel %vm2129, %v2842, 0.0
    %v2950 = vsel %vm2130, %v2841, 0.0
    %v2951 = vsel %vm2131, %v2840, 0.0
    %v2952 = vsel %vm2132, %v2839, 0.0
    %v2953 = vsel %vm2133, %v2838, 0.0
    %v2954 = vsel %vm2134, %v2837, 0.0
    %v2955 = vsel %vm2135, %v2836, 0.0
    %v2956 = vsel %vm2136, %v2835, 0.0
    %v2957 = vsel %vm2137, %v2834, 0.0
    %v2958 = vsel %vm2138, %v2833, 0.0
    %v2959 = vsel %vm2139, %v2832, 0.0
    %v2960 = vsel %vm2140, %v2831, 0.0
    %v2961 = vsel %vm2141, %v2830, 0.0
    %v2962 = vsel %vm2142, %v2829, 0.0
    %v2963 = vsel %vm2143, %v2828, 0.0
    %v2964 = vsel %vm2144, %v2827, 0.0
    %v2965 = vsel %vm2145, %v2826, 0.0
    %v2966 = vsel %vm2146, %v2825, 0.0
    %v2967 = vsel %vm2147, %v2824, 0.0
    %v2968 = vsel %vm2148, %v2823, 0.0
    %v2969 = vsel %vm2149, %v2822, 0.0
    %v2970 = vsel %vm2150, %v2821, 0.0
    %v2971 = vsel %vm2151, %v2820, 0.0
    %v2972 = vsel %vm2152, %v2819, 0.0
    %v2973 = vsel %vm2153, %v2818, 0.0
    %v2974 = vsel %vm2154, %v2817, 0.0
    %v2975 = vsel %vm2155, %v2816, 0.0
    %v2976 = vsel %vm2156, %v2815, 0.0
    %v2977 = vsel %vm2157, %v2814, 0.0
    %v2978 = vsel %vm2158, %v2813, 0.0
    %v2979 = vsel %vm2159, %v2812, 0.0
    %v2980 = vsel %vm2160, %v2811, 0.0
    %v2981 = vsel %vm2161, %v2810, 0.0
    %v2982 = vsel %vm2162, %v2809, 0.0
    %v2983 = vsel %vm2163, %v2808, 0.0
    %v2984 = vsel %vm2164, %v2807, 0.0
    %v2985 = vsel %vm2165, %v2806, 0.0
    %v2986 = vsel %vm2166, %v2805, 0.0
    %v2987 = vsel %vm2167, %v2804, 0.0
    %v2988 = vsel %vm2168, %v2803, 0.0
    %v2989 = vsel %vm2169, %v2802, 0.0
    %v2990 = vsel %vm2170, %v2801, 0.0
    %v2991 = vsel %vm2171, %v2800, 0.0
    %v2992 = vsel %vm2172, %v2799, 0.0
    %v2993 = vsel %vm2173, %v2798, 0.0
    %v2994 = vsel %vm2174, %v2797, 0.0
    %v2995 = vsel %vm2175, %v2796, 0.0
    %v2996 = vsel %vm2176, %v2795, 0.0
    %v2997 = vsel %vm2177, %v2794, 0.0
    %v2998 = vsel %vm2178, %v2793, 0.0
    %v2999 = vsel %vm2179, %v2792, 0.0
    %v3000 = vsel %vm2180, %v2791, 0.0
    %v3001 = vsel %vm2181, %v2790, 0.0
    %v3002 = vsel %vm2182, %v2789, 0.0
    %v3003 = vsel %vm2183, %v2788, 0.0
    %v3004 = vsel %vm2184, %v2787, 0.0
    %v3005 = vsel %vm2185, %v2786, 0.0
    %v3006 = vsel %vm2186, %v2785, 0.0
    %v3007 = vsel %vm2187, %v2784, 0.0
    %v3008 = vsel %vm2188, %v2783, 0.0
    %v3009 = vsel %vm2189, %v2782, 0.0
    %v3010 = vsel %vm2190, %v2781, 0.0
    %v3011 = vsel %vm2191, %v2780, 0.0
    %v3012 = vsel %vm2192, %v2779, 0.0
    %v3013 = vsel %vm2193, %v2778, 0.0
    %v3014 = vsel %vm2194, %v2777, 0.0
    %v3015 = vsel %vm2195, %v2776, 0.0
    %v3016 = vsel %vm2196, %v2775, 0.0
    %v3017 = vsel %vm2197, %v2774, 0.0
    %v3018 = vsel %vm2198, %v2773, 0.0
    %v3019 = vsel %vm2199, %v2772, 0.0
    %v3020 = vsel %vm2200, %v2771, 0.0
    %v3021 = vsel %vm2201, %v2770, 0.0
    %v3022 = vsel %vm2202, %v2769, 0.0
    %v3023 = vsel %vm2203, %v2768, 0.0
    %v3024 = vrot.slane %v2499, 1
    %v3025 = vrot.slane %v2500, 1
    %v3026 = vrot.slane %v2501, 1
    %v3027 = vrot.slane %v2502, 1
    %v3028 = vrot.slane %v2503, 1
    %v3029 = vrot.slane %v2504, 1
    %v3030 = vrot.slane %v2505, 1
    %v3031 = vrot.slane %v2506, 1
    %v3032 = vrot.slane %v2507, 1
    %v3033 = vrot.slane %v2508, 1
    %v3034 = vrot.slane %v2509, 1
    %v3035 = vrot.slane %v2510, 1
    %v3036 = vrot.slane %v2511, 1
    %v3037 = vrot.slane %v2512, 1
    %v3038 = vrot.slane %v2513, 1
    %v3039 = vrot.slane %v2514, 1
    %v3040 = vrot.slane %v2515, 1
    %v3041 = vrot.slane %v2516, 1
    %v3042 = vrot.slane %v2517, 1
    %v3043 = vrot.slane %v2518, 1
    %v3044 = vrot.slane %v2519, 1
    %v3045 = vrot.slane %v2520, 1
    %v3046 = vrot.slane %v2521, 1
    %v3047 = vrot.slane %v2522, 1
    %v3048 = vrot.slane %v2523, 1
    %v3049 = vrot.slane %v2524, 1
    %v3050 = vrot.slane %v2525, 1
    %v3051 = vrot.slane %v2526, 1
    %v3052 = vrot.slane %v2527, 1
    %v3053 = vrot.slane %v2528, 1
    %v3054 = vrot.slane %v2529, 1
    %v3055 = vrot.slane %v2530, 1
    %v3056 = vrot.slane %v2531, 1
    %v3057 = vrot.slane %v2532, 1
    %v3058 = vrot.slane %v2533, 1
    %v3059 = vrot.slane %v2534, 1
    %v3060 = vrot.slane %v2535, 1
    %v3061 = vrot.slane %v2536, 1
    %v3062 = vrot.slane %v2537, 1
    %v3063 = vrot.slane %v2538, 1
    %v3064 = vrot.slane %v2539, 1
    %v3065 = vrot.slane %v2540, 1
    %v3066 = vrot.slane %v2541, 1
    %v3067 = vrot.slane %v2542, 1
    %v3068 = vrot.slane %v2543, 1
    %v3069 = vrot.slane %v2544, 1
    %v3070 = vrot.slane %v2545, 1
    %v3071 = vrot.slane %v2546, 1
    %v3072 = vrot.slane %v2547, 1
    %v3073 = vrot.slane %v2548, 1
    %v3074 = vrot.slane %v2549, 1
    %v3075 = vrot.slane %v2550, 1
    %v3076 = vrot.slane %v2551, 1
    %v3077 = vrot.slane %v2552, 1
    %v3078 = vrot.slane %v2553, 1
    %v3079 = vrot.slane %v2554, 1
    %v3080 = vrot.slane %v2555, 1
    %v3081 = vrot.slane %v2556, 1
    %v3082 = vrot.slane %v2557, 1
    %v3083 = vrot.slane %v2558, 1
    %v3084 = vrot.slane %v2559, 1
    %v3085 = vrot.slane %v2560, 1
    %v3086 = vrot.slane %v2561, 1
    %v3087 = vrot.slane %v2562, 1
    %v3088 = vrot.slane %v2563, 1
    %v3089 = vrot.slane %v2564, 1
    %v3090 = vrot.slane %v2565, 1
    %v3091 = vrot.slane %v2566, 1
    %v3092 = vrot.slane %v2567, 1
    %v3093 = vrot.slane %v2568, 1
    %v3094 = vrot.slane %v2569, 1
    %v3095 = vrot.slane %v2570, 1
    %v3096 = vrot.slane %v2571, 1
    %v3097 = vrot.slane %v2572, 1
    %v3098 = vrot.slane %v2573, 1
    %v3099 = vrot.slane %v2574, 1
    %v3100 = vrot.slane %v2575, 1
    %v3101 = vrot.slane %v2576, 1
    %v3102 = vrot.slane %v2577, 1
    %v3103 = vrot.slane %v2578, 1
    %v3104 = vrot.slane %v2579, 1
    %v3105 = vrot.slane %v2580, 1
    %v3106 = vrot.slane %v2581, 1
    %v3107 = vrot.slane %v2582, 1
    %v3108 = vrot.slane %v2583, 1
    %v3109 = vrot.slane %v2584, 1
    %v3110 = vrot.slane %v2585, 1
    %v3111 = vrot.slane %v2586, 1
    %v3112 = vrot.slane %v2587, 1
    %v3113 = vrot.slane %v2588, 1
    %v3114 = vrot.slane %v2589, 1
    %v3115 = vrot.slane %v2590, 1
    %v3116 = vrot.slane %v2591, 1
    %v3117 = vrot.slane %v2592, 1
    %v3118 = vrot.slane %v2593, 1
    %v3119 = vrot.slane %v2594, 1
    %v3120 = vrot.slane %v2595, 1
    %v3121 = vrot.slane %v2596, 1
    %v3122 = vrot.slane %v2597, 1
    %v3123 = vrot.slane %v2598, 1
    %v3124 = vrot.slane %v2599, 1
    %v3125 = vrot.slane %v2600, 1
    %v3126 = vrot.slane %v2601, 1
    %v3127 = vrot.slane %v2602, 1
    %v3128 = vrot.slane %v2603, 1
    %v3129 = vrot.slane %v2604, 1
    %v3130 = vrot.slane %v2605, 1
    %v3131 = vrot.slane %v2606, 1
    %v3132 = vrot.slane %v2607, 1
    %v3133 = vrot.slane %v2608, 1
    %v3134 = vrot.slane %v2609, 1
    %v3135 = vrot.slane %v2610, 1
    %v3136 = vrot.slane %v2611, 1
    %v3137 = vrot.slane %v2612, 1
    %v3138 = vrot.slane %v2613, 1
    %v3139 = vrot.slane %v2614, 1
    %v3140 = vrot.slane %v2615, 1
    %v3141 = vrot.slane %v2616, 1
    %v3142 = vrot.slane %v2617, 1
    %v3143 = vrot.slane %v2618, 1
    %v3144 = vrot.slane %v2619, 1
    %v3145 = vrot.slane %v2620, 1
    %v3146 = vrot.slane %v2621, 1
    %v3147 = vrot.slane %v2622, 1
    %v3148 = vrot.slane %v2623, 1
    %v3149 = vrot.slane %v2624, 1
    %v3150 = vrot.slane %v2625, 1
    %v3151 = vrot.slane %v2626, 1
    %vm3152 = vcmp.lt.s32.totalorder %v28, 7
    %v3153 = vsel %vm3152, %v3150, %v3151
    %v3154 = vsel %vm3152, %v3149, %v3150
    %v3155 = vsel %vm3152, %v3148, %v3149
    %v3156 = vsel %vm3152, %v3147, %v3148
    %v3157 = vsel %vm3152, %v3146, %v3147
    %v3158 = vsel %vm3152, %v3145, %v3146
    %v3159 = vsel %vm3152, %v3144, %v3145
    %v3160 = vsel %vm3152, %v3143, %v3144
    %v3161 = vsel %vm3152, %v3142, %v3143
    %v3162 = vsel %vm3152, %v3141, %v3142
    %v3163 = vsel %vm3152, %v3140, %v3141
    %v3164 = vsel %vm3152, %v3139, %v3140
    %v3165 = vsel %vm3152, %v3138, %v3139
    %v3166 = vsel %vm3152, %v3137, %v3138
    %v3167 = vsel %vm3152, %v3136, %v3137
    %v3168 = vsel %vm3152, %v3135, %v3136
    %v3169 = vsel %vm3152, %v3134, %v3135
    %v3170 = vsel %vm3152, %v3133, %v3134
    %v3171 = vsel %vm3152, %v3132, %v3133
    %v3172 = vsel %vm3152, %v3131, %v3132
    %v3173 = vsel %vm3152, %v3130, %v3131
    %v3174 = vsel %vm3152, %v3129, %v3130
    %v3175 = vsel %vm3152, %v3128, %v3129
    %v3176 = vsel %vm3152, %v3127, %v3128
    %v3177 = vsel %vm3152, %v3126, %v3127
    %v3178 = vsel %vm3152, %v3125, %v3126
    %v3179 = vsel %vm3152, %v3124, %v3125
    %v3180 = vsel %vm3152, %v3123, %v3124
    %v3181 = vsel %vm3152, %v3122, %v3123
    %v3182 = vsel %vm3152, %v3121, %v3122
    %v3183 = vsel %vm3152, %v3120, %v3121
    %v3184 = vsel %vm3152, %v3119, %v3120
    %v3185 = vsel %vm3152, %v3118, %v3119
    %v3186 = vsel %vm3152, %v3117, %v3118
    %v3187 = vsel %vm3152, %v3116, %v3117
    %v3188 = vsel %vm3152, %v3115, %v3116
    %v3189 = vsel %vm3152, %v3114, %v3115
    %v3190 = vsel %vm3152, %v3113, %v3114
    %v3191 = vsel %vm3152, %v3112, %v3113
    %v3192 = vsel %vm3152, %v3111, %v3112
    %v3193 = vsel %vm3152, %v3110, %v3111
    %v3194 = vsel %vm3152, %v3109, %v3110
    %v3195 = vsel %vm3152, %v3108, %v3109
    %v3196 = vsel %vm3152, %v3107, %v3108
    %v3197 = vsel %vm3152, %v3106, %v3107
    %v3198 = vsel %vm3152, %v3105, %v3106
    %v3199 = vsel %vm3152, %v3104, %v3105
    %v3200 = vsel %vm3152, %v3103, %v3104
    %v3201 = vsel %vm3152, %v3102, %v3103
    %v3202 = vsel %vm3152, %v3101, %v3102
    %v3203 = vsel %vm3152, %v3100, %v3101
    %v3204 = vsel %vm3152, %v3099, %v3100
    %v3205 = vsel %vm3152, %v3098, %v3099
    %v3206 = vsel %vm3152, %v3097, %v3098
    %v3207 = vsel %vm3152, %v3096, %v3097
    %v3208 = vsel %vm3152, %v3095, %v3096
    %v3209 = vsel %vm3152, %v3094, %v3095
    %v3210 = vsel %vm3152, %v3093, %v3094
    %v3211 = vsel %vm3152, %v3092, %v3093
    %v3212 = vsel %vm3152, %v3091, %v3092
    %v3213 = vsel %vm3152, %v3090, %v3091
    %v3214 = vsel %vm3152, %v3089, %v3090
    %v3215 = vsel %vm3152, %v3088, %v3089
    %v3216 = vsel %vm3152, %v3087, %v3088
    %v3217 = vsel %vm3152, %v3086, %v3087
    %v3218 = vsel %vm3152, %v3085, %v3086
    %v3219 = vsel %vm3152, %v3084, %v3085
    %v3220 = vsel %vm3152, %v3083, %v3084
    %v3221 = vsel %vm3152, %v3082, %v3083
    %v3222 = vsel %vm3152, %v3081, %v3082
    %v3223 = vsel %vm3152, %v3080, %v3081
    %v3224 = vsel %vm3152, %v3079, %v3080
    %v3225 = vsel %vm3152, %v3078, %v3079
    %v3226 = vsel %vm3152, %v3077, %v3078
    %v3227 = vsel %vm3152, %v3076, %v3077
    %v3228 = vsel %vm3152, %v3075, %v3076
    %v3229 = vsel %vm3152, %v3074, %v3075
    %v3230 = vsel %vm3152, %v3073, %v3074
    %v3231 = vsel %vm3152, %v3072, %v3073
    %v3232 = vsel %vm3152, %v3071, %v3072
    %v3233 = vsel %vm3152, %v3070, %v3071
    %v3234 = vsel %vm3152, %v3069, %v3070
    %v3235 = vsel %vm3152, %v3068, %v3069
    %v3236 = vsel %vm3152, %v3067, %v3068
    %v3237 = vsel %vm3152, %v3066, %v3067
    %v3238 = vsel %vm3152, %v3065, %v3066
    %v3239 = vsel %vm3152, %v3064, %v3065
    %v3240 = vsel %vm3152, %v3063, %v3064
    %v3241 = vsel %vm3152, %v3062, %v3063
    %v3242 = vsel %vm3152, %v3061, %v3062
    %v3243 = vsel %vm3152, %v3060, %v3061
    %v3244 = vsel %vm3152, %v3059, %v3060
    %v3245 = vsel %vm3152, %v3058, %v3059
    %v3246 = vsel %vm3152, %v3057, %v3058
    %v3247 = vsel %vm3152, %v3056, %v3057
    %v3248 = vsel %vm3152, %v3055, %v3056
    %v3249 = vsel %vm3152, %v3054, %v3055
    %v3250 = vsel %vm3152, %v3053, %v3054
    %v3251 = vsel %vm3152, %v3052, %v3053
    %v3252 = vsel %vm3152, %v3051, %v3052
    %v3253 = vsel %vm3152, %v3050, %v3051
    %v3254 = vsel %vm3152, %v3049, %v3050
    %v3255 = vsel %vm3152, %v3048, %v3049
    %v3256 = vsel %vm3152, %v3047, %v3048
    %v3257 = vsel %vm3152, %v3046, %v3047
    %v3258 = vsel %vm3152, %v3045, %v3046
    %v3259 = vsel %vm3152, %v3044, %v3045
    %v3260 = vsel %vm3152, %v3043, %v3044
    %v3261 = vsel %vm3152, %v3042, %v3043
    %v3262 = vsel %vm3152, %v3041, %v3042
    %v3263 = vsel %vm3152, %v3040, %v3041
    %v3264 = vsel %vm3152, %v3039, %v3040
    %v3265 = vsel %vm3152, %v3038, %v3039
    %v3266 = vsel %vm3152, %v3037, %v3038
    %v3267 = vsel %vm3152, %v3036, %v3037
    %v3268 = vsel %vm3152, %v3035, %v3036
    %v3269 = vsel %vm3152, %v3034, %v3035
    %v3270 = vsel %vm3152, %v3033, %v3034
    %v3271 = vsel %vm3152, %v3032, %v3033
    %v3272 = vsel %vm3152, %v3031, %v3032
    %v3273 = vsel %vm3152, %v3030, %v3031
    %v3274 = vsel %vm3152, %v3029, %v3030
    %v3275 = vsel %vm3152, %v3028, %v3029
    %v3276 = vsel %vm3152, %v3027, %v3028
    %v3277 = vsel %vm3152, %v3026, %v3027
    %v3278 = vsel %vm3152, %v3025, %v3026
    %v3279 = vsel %vm3152, %v3024, %v3025
    %v3280 = vsel %vm3152, %v3151, %v3024
    %v3281 = vsel %vm2332, %v3279, 0.0
    %v3282 = vsel %vm2333, %v3278, 0.0
    %v3283 = vsel %vm2334, %v3277, 0.0
    %v3284 = vsel %vm2335, %v3276, 0.0
    %v3285 = vsel %vm2336, %v3275, 0.0
    %v3286 = vsel %vm2337, %v3274, 0.0
    %v3287 = vsel %vm2338, %v3273, 0.0
    %v3288 = vsel %vm2339, %v3272, 0.0
    %v3289 = vsel %vm2340, %v3271, 0.0
    %v3290 = vsel %vm2341, %v3270, 0.0
    %v3291 = vsel %vm2342, %v3269, 0.0
    %v3292 = vsel %vm2343, %v3268, 0.0
    %v3293 = vsel %vm2344, %v3267, 0.0
    %v3294 = vsel %vm2345, %v3266, 0.0
    %v3295 = vsel %vm2346, %v3265, 0.0
    %v3296 = vsel %vm2347, %v3264, 0.0
    %v3297 = vsel %vm2348, %v3263, 0.0
    %v3298 = vsel %vm2349, %v3262, 0.0
    %v3299 = vsel %vm2350, %v3261, 0.0
    %v3300 = vsel %vm2351, %v3260, 0.0
    %v3301 = vsel %vm2352, %v3259, 0.0
    %v3302 = vsel %vm2353, %v3258, 0.0
    %v3303 = vsel %vm2354, %v3257, 0.0
    %v3304 = vsel %vm2355, %v3256, 0.0
    %v3305 = vsel %vm2356, %v3255, 0.0
    %v3306 = vsel %vm2357, %v3254, 0.0
    %v3307 = vsel %vm2358, %v3253, 0.0
    %v3308 = vsel %vm2359, %v3252, 0.0
    %v3309 = vsel %vm2360, %v3251, 0.0
    %v3310 = vsel %vm2361, %v3250, 0.0
    %v3311 = vsel %vm2362, %v3249, 0.0
    %v3312 = vsel %vm2363, %v3248, 0.0
    %v3313 = vsel %vm2364, %v3247, 0.0
    %v3314 = vsel %vm2365, %v3246, 0.0
    %v3315 = vsel %vm2366, %v3245, 0.0
    %v3316 = vsel %vm2367, %v3244, 0.0
    %v3317 = vsel %vm2368, %v3243, 0.0
    %v3318 = vsel %vm2369, %v3242, 0.0
    %v3319 = vsel %vm2370, %v3241, 0.0
    %v3320 = vsel %vm2371, %v3240, 0.0
    %v3321 = vsel %vm2372, %v3239, 0.0
    %v3322 = vsel %vm2373, %v3238, 0.0
    %v3323 = vsel %vm2374, %v3237, 0.0
    %v3324 = vsel %vm2375, %v3236, 0.0
    %v3325 = vsel %vm2376, %v3235, 0.0
    %v3326 = vsel %vm2377, %v3234, 0.0
    %v3327 = vsel %vm2378, %v3233, 0.0
    %v3328 = vsel %vm2379, %v3232, 0.0
    %v3329 = vsel %vm2380, %v3231, 0.0
    %v3330 = vsel %vm2381, %v3230, 0.0
    %v3331 = vsel %vm2382, %v3229, 0.0
    %v3332 = vsel %vm2383, %v3228, 0.0
    %v3333 = vsel %vm2384, %v3227, 0.0
    %v3334 = vsel %vm2385, %v3226, 0.0
    %v3335 = vsel %vm2386, %v3225, 0.0
    %v3336 = vsel %vm2387, %v3224, 0.0
    %v3337 = vsel %vm2388, %v3223, 0.0
    %v3338 = vsel %vm2389, %v3222, 0.0
    %v3339 = vsel %vm2390, %v3221, 0.0
    %v3340 = vsel %vm2391, %v3220, 0.0
    %v3341 = vsel %vm2392, %v3219, 0.0
    %v3342 = vsel %vm2393, %v3218, 0.0
    %v3343 = vsel %vm2394, %v3217, 0.0
    %v3344 = vsel %vm2395, %v3216, 0.0
    %v3345 = vsel %vm2396, %v3215, 0.0
    %v3346 = vsel %vm2397, %v3214, 0.0
    %v3347 = vsel %vm2398, %v3213, 0.0
    %v3348 = vsel %vm2399, %v3212, 0.0
    %v3349 = vsel %vm2400, %v3211, 0.0
    %v3350 = vsel %vm2401, %v3210, 0.0
    %v3351 = vsel %vm2402, %v3209, 0.0
    %v3352 = vsel %vm2403, %v3208, 0.0
    %v3353 = vsel %vm2404, %v3207, 0.0
    %v3354 = vsel %vm2405, %v3206, 0.0
    %v3355 = vsel %vm2406, %v3205, 0.0
    %v3356 = vsel %vm2407, %v3204, 0.0
    %v3357 = vsel %vm2408, %v3203, 0.0
    %v3358 = vsel %vm2409, %v3202, 0.0
    %v3359 = vsel %vm2410, %v3201, 0.0
    %v3360 = vsel %vm2411, %v3200, 0.0
    %v3361 = vsel %vm2412, %v3199, 0.0
    %v3362 = vsel %vm2413, %v3198, 0.0
    %v3363 = vsel %vm2414, %v3197, 0.0
    %v3364 = vsel %vm2415, %v3196, 0.0
    %v3365 = vsel %vm2416, %v3195, 0.0
    %v3366 = vsel %vm2417, %v3194, 0.0
    %v3367 = vsel %vm2418, %v3193, 0.0
    %v3368 = vsel %vm2419, %v3192, 0.0
    %v3369 = vsel %vm2420, %v3191, 0.0
    %v3370 = vsel %vm2421, %v3190, 0.0
    %v3371 = vsel %vm2422, %v3189, 0.0
    %v3372 = vsel %vm2423, %v3188, 0.0
    %v3373 = vsel %vm2424, %v3187, 0.0
    %v3374 = vsel %vm2425, %v3186, 0.0
    %v3375 = vsel %vm2426, %v3185, 0.0
    %v3376 = vsel %vm2427, %v3184, 0.0
    %v3377 = vsel %vm2428, %v3183, 0.0
    %v3378 = vsel %vm2429, %v3182, 0.0
    %v3379 = vsel %vm2430, %v3181, 0.0
    %v3380 = vsel %vm2431, %v3180, 0.0
    %v3381 = vsel %vm2432, %v3179, 0.0
    %v3382 = vsel %vm2433, %v3178, 0.0
    %v3383 = vsel %vm2434, %v3177, 0.0
    %v3384 = vsel %vm2435, %v3176, 0.0
    %v3385 = vsel %vm2436, %v3175, 0.0
    %v3386 = vsel %vm2437, %v3174, 0.0
    %v3387 = vsel %vm2438, %v3173, 0.0
    %v3388 = vsel %vm2439, %v3172, 0.0
    %v3389 = vsel %vm2440, %v3171, 0.0
    %v3390 = vsel %vm2441, %v3170, 0.0
    %v3391 = vsel %vm2442, %v3169, 0.0
    %v3392 = vsel %vm2443, %v3168, 0.0
    %v3393 = vsel %vm2444, %v3167, 0.0
    %v3394 = vsel %vm2445, %v3166, 0.0
    %v3395 = vsel %vm2446, %v3165, 0.0
    %v3396 = vsel %vm2447, %v3164, 0.0
    %v3397 = vsel %vm2448, %v3163, 0.0
    %v3398 = vsel %vm2449, %v3162, 0.0
    %v3399 = vsel %vm2450, %v3161, 0.0
    %v3400 = vsel %vm2451, %v3160, 0.0
    %v3401 = vsel %vm2452, %v3159, 0.0
    %v3402 = vsel %vm2453, %v3158, 0.0
    %v3403 = vsel %vm2454, %v3157, 0.0
    %v3404 = vsel %vm2455, %v3156, 0.0
    %v3405 = vsel %vm2456, %v3155, 0.0
    %v3406 = vsel %vm2457, %v3154, 0.0
    %v3407 = vsel %vm2458, %v3153, 0.0
    %v3408 = vsel %vm2459, %v3280, 0.0
    %3537 = vrot.lane.b32.xlu0 %v2499, 32
    %v3538 = vpop.permute.xlu0 %3537
    %3539 = vrot.lane.b32.xlu0 %v2500, 32
    %v3540 = vpop.permute.xlu0 %3539
    %3541 = vrot.lane.b32.xlu0 %v2501, 32
    %v3542 = vpop.permute.xlu0 %3541
    %3543 = vrot.lane.b32.xlu0 %v2502, 32
    %v3544 = vpop.permute.xlu0 %3543
    %3545 = vrot.lane.b32.xlu0 %v2503, 32
    %v3546 = vpop.permute.xlu0 %3545
    %3547 = vrot.lane.b32.xlu0 %v2504, 32
    %v3548 = vpop.permute.xlu0 %3547
    %3549 = vrot.lane.b32.xlu0 %v2505, 32
    %v3550 = vpop.permute.xlu0 %3549
    %3551 = vrot.lane.b32.xlu0 %v2506, 32
    %v3552 = vpop.permute.xlu0 %3551
    %3553 = vrot.lane.b32.xlu0 %v2507, 32
    %v3554 = vpop.permute.xlu0 %3553
    %3555 = vrot.lane.b32.xlu0 %v2508, 32
    %v3556 = vpop.permute.xlu0 %3555
    %3557 = vrot.lane.b32.xlu0 %v2509, 32
    %v3558 = vpop.permute.xlu0 %3557
    %3559 = vrot.lane.b32.xlu0 %v2510, 32
    %v3560 = vpop.permute.xlu0 %3559
    %3561 = vrot.lane.b32.xlu0 %v2511, 32
    %v3562 = vpop.permute.xlu0 %3561
    %3563 = vrot.lane.b32.xlu0 %v2512, 32
    %v3564 = vpop.permute.xlu0 %3563
    %3565 = vrot.lane.b32.xlu0 %v2513, 32
    %v3566 = vpop.permute.xlu0 %3565
    %3567 = vrot.lane.b32.xlu0 %v2514, 32
    %v3568 = vpop.permute.xlu0 %3567
    %3569 = vrot.lane.b32.xlu0 %v2515, 32
    %v3570 = vpop.permute.xlu0 %3569
    %3571 = vrot.lane.b32.xlu0 %v2516, 32
    %v3572 = vpop.permute.xlu0 %3571
    %3573 = vrot.lane.b32.xlu0 %v2517, 32
    %v3574 = vpop.permute.xlu0 %3573
    %3575 = vrot.lane.b32.xlu0 %v2518, 32
    %v3576 = vpop.permute.xlu0 %3575
    %3577 = vrot.lane.b32.xlu0 %v2519, 32
    %v3578 = vpop.permute.xlu0 %3577
    %3579 = vrot.lane.b32.xlu0 %v2520, 32
    %v3580 = vpop.permute.xlu0 %3579
    %3581 = vrot.lane.b32.xlu0 %v2521, 32
    %v3582 = vpop.permute.xlu0 %3581
    %3583 = vrot.lane.b32.xlu0 %v2522, 32
    %v3584 = vpop.permute.xlu0 %3583
    %3585 = vrot.lane.b32.xlu0 %v2523, 32
    %v3586 = vpop.permute.xlu0 %3585
    %3587 = vrot.lane.b32.xlu0 %v2524, 32
    %v3588 = vpop.permute.xlu0 %3587
    %3589 = vrot.lane.b32.xlu0 %v2525, 32
    %v3590 = vpop.permute.xlu0 %3589
    %3591 = vrot.lane.b32.xlu0 %v2526, 32
    %v3592 = vpop.permute.xlu0 %3591
    %3593 = vrot.lane.b32.xlu0 %v2527, 32
    %v3594 = vpop.permute.xlu0 %3593
    %3595 = vrot.lane.b32.xlu0 %v2528, 32
    %v3596 = vpop.permute.xlu0 %3595
    %3597 = vrot.lane.b32.xlu0 %v2529, 32
    %v3598 = vpop.permute.xlu0 %3597
    %3599 = vrot.lane.b32.xlu0 %v2530, 32
    %v3600 = vpop.permute.xlu0 %3599
    %3601 = vrot.lane.b32.xlu0 %v2531, 32
    %v3602 = vpop.permute.xlu0 %3601
    %3603 = vrot.lane.b32.xlu0 %v2532, 32
    %v3604 = vpop.permute.xlu0 %3603
    %3605 = vrot.lane.b32.xlu0 %v2533, 32
    %v3606 = vpop.permute.xlu0 %3605
    %3607 = vrot.lane.b32.xlu0 %v2534, 32
    %v3608 = vpop.permute.xlu0 %3607
    %3609 = vrot.lane.b32.xlu0 %v2535, 32
    %v3610 = vpop.permute.xlu0 %3609
    %3611 = vrot.lane.b32.xlu0 %v2536, 32
    %v3612 = vpop.permute.xlu0 %3611
    %3613 = vrot.lane.b32.xlu0 %v2537, 32
    %v3614 = vpop.permute.xlu0 %3613
    %3615 = vrot.lane.b32.xlu0 %v2538, 32
    %v3616 = vpop.permute.xlu0 %3615
    %3617 = vrot.lane.b32.xlu0 %v2539, 32
    %v3618 = vpop.permute.xlu0 %3617
    %3619 = vrot.lane.b32.xlu0 %v2540, 32
    %v3620 = vpop.permute.xlu0 %3619
    %3621 = vrot.lane.b32.xlu0 %v2541, 32
    %v3622 = vpop.permute.xlu0 %3621
    %3623 = vrot.lane.b32.xlu0 %v2542, 32
    %v3624 = vpop.permute.xlu0 %3623
    %3625 = vrot.lane.b32.xlu0 %v2543, 32
    %v3626 = vpop.permute.xlu0 %3625
    %3627 = vrot.lane.b32.xlu0 %v2544, 32
    %v3628 = vpop.permute.xlu0 %3627
    %3629 = vrot.lane.b32.xlu0 %v2545, 32
    %v3630 = vpop.permute.xlu0 %3629
    %3631 = vrot.lane.b32.xlu0 %v2546, 32
    %v3632 = vpop.permute.xlu0 %3631
    %3633 = vrot.lane.b32.xlu0 %v2547, 32
    %v3634 = vpop.permute.xlu0 %3633
    %3635 = vrot.lane.b32.xlu0 %v2548, 32
    %v3636 = vpop.permute.xlu0 %3635
    %3637 = vrot.lane.b32.xlu0 %v2549, 32
    %v3638 = vpop.permute.xlu0 %3637
    %3639 = vrot.lane.b32.xlu0 %v2550, 32
    %v3640 = vpop.permute.xlu0 %3639
    %3641 = vrot.lane.b32.xlu0 %v2551, 32
    %v3642 = vpop.permute.xlu0 %3641
    %3643 = vrot.lane.b32.xlu0 %v2552, 32
    %v3644 = vpop.permute.xlu0 %3643
    %3645 = vrot.lane.b32.xlu0 %v2553, 32
    %v3646 = vpop.permute.xlu0 %3645
    %3647 = vrot.lane.b32.xlu0 %v2554, 32
    %v3648 = vpop.permute.xlu0 %3647
    %3649 = vrot.lane.b32.xlu0 %v2555, 32
    %v3650 = vpop.permute.xlu0 %3649
    %3651 = vrot.lane.b32.xlu0 %v2556, 32
    %v3652 = vpop.permute.xlu0 %3651
    %3653 = vrot.lane.b32.xlu0 %v2557, 32
    %v3654 = vpop.permute.xlu0 %3653
    %3655 = vrot.lane.b32.xlu0 %v2558, 32
    %v3656 = vpop.permute.xlu0 %3655
    %3657 = vrot.lane.b32.xlu0 %v2559, 32
    %v3658 = vpop.permute.xlu0 %3657
    %3659 = vrot.lane.b32.xlu0 %v2560, 32
    %v3660 = vpop.permute.xlu0 %3659
    %3661 = vrot.lane.b32.xlu0 %v2561, 32
    %v3662 = vpop.permute.xlu0 %3661
    %3663 = vrot.lane.b32.xlu0 %v2562, 32
    %v3664 = vpop.permute.xlu0 %3663
    %3665 = vrot.lane.b32.xlu0 %v2563, 32
    %v3666 = vpop.permute.xlu0 %3665
    %3667 = vrot.lane.b32.xlu0 %v2564, 32
    %v3668 = vpop.permute.xlu0 %3667
    %3669 = vrot.lane.b32.xlu0 %v2565, 32
    %v3670 = vpop.permute.xlu0 %3669
    %3671 = vrot.lane.b32.xlu0 %v2566, 32
    %v3672 = vpop.permute.xlu0 %3671
    %3673 = vrot.lane.b32.xlu0 %v2567, 32
    %v3674 = vpop.permute.xlu0 %3673
    %3675 = vrot.lane.b32.xlu0 %v2568, 32
    %v3676 = vpop.permute.xlu0 %3675
    %3677 = vrot.lane.b32.xlu0 %v2569, 32
    %v3678 = vpop.permute.xlu0 %3677
    %3679 = vrot.lane.b32.xlu0 %v2570, 32
    %v3680 = vpop.permute.xlu0 %3679
    %3681 = vrot.lane.b32.xlu0 %v2571, 32
    %v3682 = vpop.permute.xlu0 %3681
    %3683 = vrot.lane.b32.xlu0 %v2572, 32
    %v3684 = vpop.permute.xlu0 %3683
    %3685 = vrot.lane.b32.xlu0 %v2573, 32
    %v3686 = vpop.permute.xlu0 %3685
    %3687 = vrot.lane.b32.xlu0 %v2574, 32
    %v3688 = vpop.permute.xlu0 %3687
    %3689 = vrot.lane.b32.xlu0 %v2575, 32
    %v3690 = vpop.permute.xlu0 %3689
    %3691 = vrot.lane.b32.xlu0 %v2576, 32
    %v3692 = vpop.permute.xlu0 %3691
    %3693 = vrot.lane.b32.xlu0 %v2577, 32
    %v3694 = vpop.permute.xlu0 %3693
    %3695 = vrot.lane.b32.xlu0 %v2578, 32
    %v3696 = vpop.permute.xlu0 %3695
    %3697 = vrot.lane.b32.xlu0 %v2579, 32
    %v3698 = vpop.permute.xlu0 %3697
    %3699 = vrot.lane.b32.xlu0 %v2580, 32
    %v3700 = vpop.permute.xlu0 %3699
    %3701 = vrot.lane.b32.xlu0 %v2581, 32
    %v3702 = vpop.permute.xlu0 %3701
    %3703 = vrot.lane.b32.xlu0 %v2582, 32
    %v3704 = vpop.permute.xlu0 %3703
    %3705 = vrot.lane.b32.xlu0 %v2583, 32
    %v3706 = vpop.permute.xlu0 %3705
    %3707 = vrot.lane.b32.xlu0 %v2584, 32
    %v3708 = vpop.permute.xlu0 %3707
    %3709 = vrot.lane.b32.xlu0 %v2585, 32
    %v3710 = vpop.permute.xlu0 %3709
    %3711 = vrot.lane.b32.xlu0 %v2586, 32
    %v3712 = vpop.permute.xlu0 %3711
    %3713 = vrot.lane.b32.xlu0 %v2587, 32
    %v3714 = vpop.permute.xlu0 %3713
    %3715 = vrot.lane.b32.xlu0 %v2588, 32
    %v3716 = vpop.permute.xlu0 %3715
    %3717 = vrot.lane.b32.xlu0 %v2589, 32
    %v3718 = vpop.permute.xlu0 %3717
    %3719 = vrot.lane.b32.xlu0 %v2590, 32
    %v3720 = vpop.permute.xlu0 %3719
    %3721 = vrot.lane.b32.xlu0 %v2591, 32
    %v3722 = vpop.permute.xlu0 %3721
    %3723 = vrot.lane.b32.xlu0 %v2592, 32
    %v3724 = vpop.permute.xlu0 %3723
    %3725 = vrot.lane.b32.xlu0 %v2593, 32
    %v3726 = vpop.permute.xlu0 %3725
    %3727 = vrot.lane.b32.xlu0 %v2594, 32
    %v3728 = vpop.permute.xlu0 %3727
    %3729 = vrot.lane.b32.xlu0 %v2595, 32
    %v3730 = vpop.permute.xlu0 %3729
    %3731 = vrot.lane.b32.xlu0 %v2596, 32
    %v3732 = vpop.permute.xlu0 %3731
    %3733 = vrot.lane.b32.xlu0 %v2597, 32
    %v3734 = vpop.permute.xlu0 %3733
    %3735 = vrot.lane.b32.xlu0 %v2598, 32
    %v3736 = vpop.permute.xlu0 %3735
    %3737 = vrot.lane.b32.xlu0 %v2599, 32
    %v3738 = vpop.permute.xlu0 %3737
    %3739 = vrot.lane.b32.xlu0 %v2600, 32
    %v3740 = vpop.permute.xlu0 %3739
    %3741 = vrot.lane.b32.xlu0 %v2601, 32
    %v3742 = vpop.permute.xlu0 %3741
    %3743 = vrot.lane.b32.xlu0 %v2602, 32
    %v3744 = vpop.permute.xlu0 %3743
    %3745 = vrot.lane.b32.xlu0 %v2603, 32
    %v3746 = vpop.permute.xlu0 %3745
    %3747 = vrot.lane.b32.xlu0 %v2604, 32
    %v3748 = vpop.permute.xlu0 %3747
    %3749 = vrot.lane.b32.xlu0 %v2605, 32
    %v3750 = vpop.permute.xlu0 %3749
    %3751 = vrot.lane.b32.xlu0 %v2606, 32
    %v3752 = vpop.permute.xlu0 %3751
    %3753 = vrot.lane.b32.xlu0 %v2607, 32
    %v3754 = vpop.permute.xlu0 %3753
    %3755 = vrot.lane.b32.xlu0 %v2608, 32
    %v3756 = vpop.permute.xlu0 %3755
    %3757 = vrot.lane.b32.xlu0 %v2609, 32
    %v3758 = vpop.permute.xlu0 %3757
    %3759 = vrot.lane.b32.xlu0 %v2610, 32
    %v3760 = vpop.permute.xlu0 %3759
    %3761 = vrot.lane.b32.xlu0 %v2611, 32
    %v3762 = vpop.permute.xlu0 %3761
    %3763 = vrot.lane.b32.xlu0 %v2612, 32
    %v3764 = vpop.permute.xlu0 %3763
    %3765 = vrot.lane.b32.xlu0 %v2613, 32
    %v3766 = vpop.permute.xlu0 %3765
    %3767 = vrot.lane.b32.xlu0 %v2614, 32
    %v3768 = vpop.permute.xlu0 %3767
    %3769 = vrot.lane.b32.xlu0 %v2615, 32
    %v3770 = vpop.permute.xlu0 %3769
    %3771 = vrot.lane.b32.xlu0 %v2616, 32
    %v3772 = vpop.permute.xlu0 %3771
    %3773 = vrot.lane.b32.xlu0 %v2617, 32
    %v3774 = vpop.permute.xlu0 %3773
    %3775 = vrot.lane.b32.xlu0 %v2618, 32
    %v3776 = vpop.permute.xlu0 %3775
    %3777 = vrot.lane.b32.xlu0 %v2619, 32
    %v3778 = vpop.permute.xlu0 %3777
    %3779 = vrot.lane.b32.xlu0 %v2620, 32
    %v3780 = vpop.permute.xlu0 %3779
    %3781 = vrot.lane.b32.xlu0 %v2621, 32
    %v3782 = vpop.permute.xlu0 %3781
    %3783 = vrot.lane.b32.xlu0 %v2622, 32
    %v3784 = vpop.permute.xlu0 %3783
    %3785 = vrot.lane.b32.xlu0 %v2623, 32
    %v3786 = vpop.permute.xlu0 %3785
    %3787 = vrot.lane.b32.xlu0 %v2624, 32
    %v3788 = vpop.permute.xlu0 %3787
    %3789 = vrot.lane.b32.xlu0 %v2625, 32
    %v3790 = vpop.permute.xlu0 %3789
    %3791 = vrot.lane.b32.xlu0 %v2626, 32
    %v3792 = vpop.permute.xlu0 %3791
    %4049 = vrot.lane.b32.xlu0 %v3281, 64
    %v4050 = vpop.permute.xlu0 %4049
    %4051 = vrot.lane.b32.xlu0 %v3282, 64
    %v4052 = vpop.permute.xlu0 %4051
    %4053 = vrot.lane.b32.xlu0 %v3283, 64
    %v4054 = vpop.permute.xlu0 %4053
    %4055 = vrot.lane.b32.xlu0 %v3284, 64
    %v4056 = vpop.permute.xlu0 %4055
    %4057 = vrot.lane.b32.xlu0 %v3285, 64
    %v4058 = vpop.permute.xlu0 %4057
    %4059 = vrot.lane.b32.xlu0 %v3286, 64
    %v4060 = vpop.permute.xlu0 %4059
    %4061 = vrot.lane.b32.xlu0 %v3287, 64
    %v4062 = vpop.permute.xlu0 %4061
    %4063 = vrot.lane.b32.xlu0 %v3288, 64
    %v4064 = vpop.permute.xlu0 %4063
    %4065 = vrot.lane.b32.xlu0 %v3289, 64
    %v4066 = vpop.permute.xlu0 %4065
    %4067 = vrot.lane.b32.xlu0 %v3290, 64
    %v4068 = vpop.permute.xlu0 %4067
    %4069 = vrot.lane.b32.xlu0 %v3291, 64
    %v4070 = vpop.permute.xlu0 %4069
    %4071 = vrot.lane.b32.xlu0 %v3292, 64
    %v4072 = vpop.permute.xlu0 %4071
    %4073 = vrot.lane.b32.xlu0 %v3293, 64
    %v4074 = vpop.permute.xlu0 %4073
    %4075 = vrot.lane.b32.xlu0 %v3294, 64
    %v4076 = vpop.permute.xlu0 %4075
    %4077 = vrot.lane.b32.xlu0 %v3295, 64
    %v4078 = vpop.permute.xlu0 %4077
    %4079 = vrot.lane.b32.xlu0 %v3296, 64
    %v4080 = vpop.permute.xlu0 %4079
    %4081 = vrot.lane.b32.xlu0 %v3297, 64
    %v4082 = vpop.permute.xlu0 %4081
    %4083 = vrot.lane.b32.xlu0 %v3298, 64
    %v4084 = vpop.permute.xlu0 %4083
    %4085 = vrot.lane.b32.xlu0 %v3299, 64
    %v4086 = vpop.permute.xlu0 %4085
    %4087 = vrot.lane.b32.xlu0 %v3300, 64
    %v4088 = vpop.permute.xlu0 %4087
    %4089 = vrot.lane.b32.xlu0 %v3301, 64
    %v4090 = vpop.permute.xlu0 %4089
    %4091 = vrot.lane.b32.xlu0 %v3302, 64
    %v4092 = vpop.permute.xlu0 %4091
    %4093 = vrot.lane.b32.xlu0 %v3303, 64
    %v4094 = vpop.permute.xlu0 %4093
    %4095 = vrot.lane.b32.xlu0 %v3304, 64
    %v4096 = vpop.permute.xlu0 %4095
    %4097 = vrot.lane.b32.xlu0 %v3305, 64
    %v4098 = vpop.permute.xlu0 %4097
    %4099 = vrot.lane.b32.xlu0 %v3306, 64
    %v4100 = vpop.permute.xlu0 %4099
    %4101 = vrot.lane.b32.xlu0 %v3307, 64
    %v4102 = vpop.permute.xlu0 %4101
    %4103 = vrot.lane.b32.xlu0 %v3308, 64
    %v4104 = vpop.permute.xlu0 %4103
    %4105 = vrot.lane.b32.xlu0 %v3309, 64
    %v4106 = vpop.permute.xlu0 %4105
    %4107 = vrot.lane.b32.xlu0 %v3310, 64
    %v4108 = vpop.permute.xlu0 %4107
    %4109 = vrot.lane.b32.xlu0 %v3311, 64
    %v4110 = vpop.permute.xlu0 %4109
    %4111 = vrot.lane.b32.xlu0 %v3312, 64
    %v4112 = vpop.permute.xlu0 %4111
    %4113 = vrot.lane.b32.xlu0 %v3313, 64
    %v4114 = vpop.permute.xlu0 %4113
    %4115 = vrot.lane.b32.xlu0 %v3314, 64
    %v4116 = vpop.permute.xlu0 %4115
    %4117 = vrot.lane.b32.xlu0 %v3315, 64
    %v4118 = vpop.permute.xlu0 %4117
    %4119 = vrot.lane.b32.xlu0 %v3316, 64
    %v4120 = vpop.permute.xlu0 %4119
    %4121 = vrot.lane.b32.xlu0 %v3317, 64
    %v4122 = vpop.permute.xlu0 %4121
    %4123 = vrot.lane.b32.xlu0 %v3318, 64
    %v4124 = vpop.permute.xlu0 %4123
    %4125 = vrot.lane.b32.xlu0 %v3319, 64
    %v4126 = vpop.permute.xlu0 %4125
    %4127 = vrot.lane.b32.xlu0 %v3320, 64
    %v4128 = vpop.permute.xlu0 %4127
    %4129 = vrot.lane.b32.xlu0 %v3321, 64
    %v4130 = vpop.permute.xlu0 %4129
    %4131 = vrot.lane.b32.xlu0 %v3322, 64
    %v4132 = vpop.permute.xlu0 %4131
    %4133 = vrot.lane.b32.xlu0 %v3323, 64
    %v4134 = vpop.permute.xlu0 %4133
    %4135 = vrot.lane.b32.xlu0 %v3324, 64
    %v4136 = vpop.permute.xlu0 %4135
    %4137 = vrot.lane.b32.xlu0 %v3325, 64
    %v4138 = vpop.permute.xlu0 %4137
    %4139 = vrot.lane.b32.xlu0 %v3326, 64
    %v4140 = vpop.permute.xlu0 %4139
    %4141 = vrot.lane.b32.xlu0 %v3327, 64
    %v4142 = vpop.permute.xlu0 %4141
    %4143 = vrot.lane.b32.xlu0 %v3328, 64
    %v4144 = vpop.permute.xlu0 %4143
    %4145 = vrot.lane.b32.xlu0 %v3329, 64
    %v4146 = vpop.permute.xlu0 %4145
    %4147 = vrot.lane.b32.xlu0 %v3330, 64
    %v4148 = vpop.permute.xlu0 %4147
    %4149 = vrot.lane.b32.xlu0 %v3331, 64
    %v4150 = vpop.permute.xlu0 %4149
    %4151 = vrot.lane.b32.xlu0 %v3332, 64
    %v4152 = vpop.permute.xlu0 %4151
    %4153 = vrot.lane.b32.xlu0 %v3333, 64
    %v4154 = vpop.permute.xlu0 %4153
    %4155 = vrot.lane.b32.xlu0 %v3334, 64
    %v4156 = vpop.permute.xlu0 %4155
    %4157 = vrot.lane.b32.xlu0 %v3335, 64
    %v4158 = vpop.permute.xlu0 %4157
    %4159 = vrot.lane.b32.xlu0 %v3336, 64
    %v4160 = vpop.permute.xlu0 %4159
    %4161 = vrot.lane.b32.xlu0 %v3337, 64
    %v4162 = vpop.permute.xlu0 %4161
    %4163 = vrot.lane.b32.xlu0 %v3338, 64
    %v4164 = vpop.permute.xlu0 %4163
    %4165 = vrot.lane.b32.xlu0 %v3339, 64
    %v4166 = vpop.permute.xlu0 %4165
    %4167 = vrot.lane.b32.xlu0 %v3340, 64
    %v4168 = vpop.permute.xlu0 %4167
    %4169 = vrot.lane.b32.xlu0 %v3341, 64
    %v4170 = vpop.permute.xlu0 %4169
    %4171 = vrot.lane.b32.xlu0 %v3342, 64
    %v4172 = vpop.permute.xlu0 %4171
    %4173 = vrot.lane.b32.xlu0 %v3343, 64
    %v4174 = vpop.permute.xlu0 %4173
    %4175 = vrot.lane.b32.xlu0 %v3344, 64
    %v4176 = vpop.permute.xlu0 %4175
    %4177 = vrot.lane.b32.xlu0 %v3345, 64
    %v4178 = vpop.permute.xlu0 %4177
    %4179 = vrot.lane.b32.xlu0 %v3346, 64
    %v4180 = vpop.permute.xlu0 %4179
    %4181 = vrot.lane.b32.xlu0 %v3347, 64
    %v4182 = vpop.permute.xlu0 %4181
    %4183 = vrot.lane.b32.xlu0 %v3348, 64
    %v4184 = vpop.permute.xlu0 %4183
    %4185 = vrot.lane.b32.xlu0 %v3349, 64
    %v4186 = vpop.permute.xlu0 %4185
    %4187 = vrot.lane.b32.xlu0 %v3350, 64
    %v4188 = vpop.permute.xlu0 %4187
    %4189 = vrot.lane.b32.xlu0 %v3351, 64
    %v4190 = vpop.permute.xlu0 %4189
    %4191 = vrot.lane.b32.xlu0 %v3352, 64
    %v4192 = vpop.permute.xlu0 %4191
    %4193 = vrot.lane.b32.xlu0 %v3353, 64
    %v4194 = vpop.permute.xlu0 %4193
    %4195 = vrot.lane.b32.xlu0 %v3354, 64
    %v4196 = vpop.permute.xlu0 %4195
    %4197 = vrot.lane.b32.xlu0 %v3355, 64
    %v4198 = vpop.permute.xlu0 %4197
    %4199 = vrot.lane.b32.xlu0 %v3356, 64
    %v4200 = vpop.permute.xlu0 %4199
    %4201 = vrot.lane.b32.xlu0 %v3357, 64
    %v4202 = vpop.permute.xlu0 %4201
    %4203 = vrot.lane.b32.xlu0 %v3358, 64
    %v4204 = vpop.permute.xlu0 %4203
    %4205 = vrot.lane.b32.xlu0 %v3359, 64
    %v4206 = vpop.permute.xlu0 %4205
    %4207 = vrot.lane.b32.xlu0 %v3360, 64
    %v4208 = vpop.permute.xlu0 %4207
    %4209 = vrot.lane.b32.xlu0 %v3361, 64
    %v4210 = vpop.permute.xlu0 %4209
    %4211 = vrot.lane.b32.xlu0 %v3362, 64
    %v4212 = vpop.permute.xlu0 %4211
    %4213 = vrot.lane.b32.xlu0 %v3363, 64
    %v4214 = vpop.permute.xlu0 %4213
    %4215 = vrot.lane.b32.xlu0 %v3364, 64
    %v4216 = vpop.permute.xlu0 %4215
    %4217 = vrot.lane.b32.xlu0 %v3365, 64
    %v4218 = vpop.permute.xlu0 %4217
    %4219 = vrot.lane.b32.xlu0 %v3366, 64
    %v4220 = vpop.permute.xlu0 %4219
    %4221 = vrot.lane.b32.xlu0 %v3367, 64
    %v4222 = vpop.permute.xlu0 %4221
    %4223 = vrot.lane.b32.xlu0 %v3368, 64
    %v4224 = vpop.permute.xlu0 %4223
    %4225 = vrot.lane.b32.xlu0 %v3369, 64
    %v4226 = vpop.permute.xlu0 %4225
    %4227 = vrot.lane.b32.xlu0 %v3370, 64
    %v4228 = vpop.permute.xlu0 %4227
    %4229 = vrot.lane.b32.xlu0 %v3371, 64
    %v4230 = vpop.permute.xlu0 %4229
    %4231 = vrot.lane.b32.xlu0 %v3372, 64
    %v4232 = vpop.permute.xlu0 %4231
    %4233 = vrot.lane.b32.xlu0 %v3373, 64
    %v4234 = vpop.permute.xlu0 %4233
    %4235 = vrot.lane.b32.xlu0 %v3374, 64
    %v4236 = vpop.permute.xlu0 %4235
    %4237 = vrot.lane.b32.xlu0 %v3375, 64
    %v4238 = vpop.permute.xlu0 %4237
    %4239 = vrot.lane.b32.xlu0 %v3376, 64
    %v4240 = vpop.permute.xlu0 %4239
    %4241 = vrot.lane.b32.xlu0 %v3377, 64
    %v4242 = vpop.permute.xlu0 %4241
    %4243 = vrot.lane.b32.xlu0 %v3378, 64
    %v4244 = vpop.permute.xlu0 %4243
    %4245 = vrot.lane.b32.xlu0 %v3379, 64
    %v4246 = vpop.permute.xlu0 %4245
    %4247 = vrot.lane.b32.xlu0 %v3380, 64
    %v4248 = vpop.permute.xlu0 %4247
    %4249 = vrot.lane.b32.xlu0 %v3381, 64
    %v4250 = vpop.permute.xlu0 %4249
    %4251 = vrot.lane.b32.xlu0 %v3382, 64
    %v4252 = vpop.permute.xlu0 %4251
    %4253 = vrot.lane.b32.xlu0 %v3383, 64
    %v4254 = vpop.permute.xlu0 %4253
    %4255 = vrot.lane.b32.xlu0 %v3384, 64
    %v4256 = vpop.permute.xlu0 %4255
    %4257 = vrot.lane.b32.xlu0 %v3385, 64
    %v4258 = vpop.permute.xlu0 %4257
    %4259 = vrot.lane.b32.xlu0 %v3386, 64
    %v4260 = vpop.permute.xlu0 %4259
    %4261 = vrot.lane.b32.xlu0 %v3387, 64
    %v4262 = vpop.permute.xlu0 %4261
    %4263 = vrot.lane.b32.xlu0 %v3388, 64
    %v4264 = vpop.permute.xlu0 %4263
    %4265 = vrot.lane.b32.xlu0 %v3389, 64
    %v4266 = vpop.permute.xlu0 %4265
    %4267 = vrot.lane.b32.xlu0 %v3390, 64
    %v4268 = vpop.permute.xlu0 %4267
    %4269 = vrot.lane.b32.xlu0 %v3391, 64
    %v4270 = vpop.permute.xlu0 %4269
    %4271 = vrot.lane.b32.xlu0 %v3392, 64
    %v4272 = vpop.permute.xlu0 %4271
    %4273 = vrot.lane.b32.xlu0 %v3393, 64
    %v4274 = vpop.permute.xlu0 %4273
    %4275 = vrot.lane.b32.xlu0 %v3394, 64
    %v4276 = vpop.permute.xlu0 %4275
    %4277 = vrot.lane.b32.xlu0 %v3395, 64
    %v4278 = vpop.permute.xlu0 %4277
    %4279 = vrot.lane.b32.xlu0 %v3396, 64
    %v4280 = vpop.permute.xlu0 %4279
    %4281 = vrot.lane.b32.xlu0 %v3397, 64
    %v4282 = vpop.permute.xlu0 %4281
    %4283 = vrot.lane.b32.xlu0 %v3398, 64
    %v4284 = vpop.permute.xlu0 %4283
    %4285 = vrot.lane.b32.xlu0 %v3399, 64
    %v4286 = vpop.permute.xlu0 %4285
    %4287 = vrot.lane.b32.xlu0 %v3400, 64
    %v4288 = vpop.permute.xlu0 %4287
    %4289 = vrot.lane.b32.xlu0 %v3401, 64
    %v4290 = vpop.permute.xlu0 %4289
    %4291 = vrot.lane.b32.xlu0 %v3402, 64
    %v4292 = vpop.permute.xlu0 %4291
    %4293 = vrot.lane.b32.xlu0 %v3403, 64
    %v4294 = vpop.permute.xlu0 %4293
    %4295 = vrot.lane.b32.xlu0 %v3404, 64
    %v4296 = vpop.permute.xlu0 %4295
    %4297 = vrot.lane.b32.xlu0 %v3405, 64
    %v4298 = vpop.permute.xlu0 %4297
    %4299 = vrot.lane.b32.xlu0 %v3406, 64
    %v4300 = vpop.permute.xlu0 %4299
    %4301 = vrot.lane.b32.xlu0 %v3407, 64
    %v4302 = vpop.permute.xlu0 %4301
    %4303 = vrot.lane.b32.xlu0 %v3408, 64
    %v4304 = vpop.permute.xlu0 %4303
    %vm4433 = vcmask 261120
    %v4434 = vsel %vm4433, %v2896, %v3538
    %v4435 = vsel %vm4433, %v2897, %v3540
    %v4436 = vsel %vm4433, %v2898, %v3542
    %v4437 = vsel %vm4433, %v2899, %v3544
    %v4438 = vsel %vm4433, %v2900, %v3546
    %v4439 = vsel %vm4433, %v2901, %v3548
    %v4440 = vsel %vm4433, %v2902, %v3550
    %v4441 = vsel %vm4433, %v2903, %v3552
    %v4442 = vsel %vm4433, %v2904, %v3554
    %v4443 = vsel %vm4433, %v2905, %v3556
    %v4444 = vsel %vm4433, %v2906, %v3558
    %v4445 = vsel %vm4433, %v2907, %v3560
    %v4446 = vsel %vm4433, %v2908, %v3562
    %v4447 = vsel %vm4433, %v2909, %v3564
    %v4448 = vsel %vm4433, %v2910, %v3566
    %v4449 = vsel %vm4433, %v2911, %v3568
    %v4450 = vsel %vm4433, %v2912, %v3570
    %v4451 = vsel %vm4433, %v2913, %v3572
    %v4452 = vsel %vm4433, %v2914, %v3574
    %v4453 = vsel %vm4433, %v2915, %v3576
    %v4454 = vsel %vm4433, %v2916, %v3578
    %v4455 = vsel %vm4433, %v2917, %v3580
    %v4456 = vsel %vm4433, %v2918, %v3582
    %v4457 = vsel %vm4433, %v2919, %v3584
    %v4458 = vsel %vm4433, %v2920, %v3586
    %v4459 = vsel %vm4433, %v2921, %v3588
    %v4460 = vsel %vm4433, %v2922, %v3590
    %v4461 = vsel %vm4433, %v2923, %v3592
    %v4462 = vsel %vm4433, %v2924, %v3594
    %v4463 = vsel %vm4433, %v2925, %v3596
    %v4464 = vsel %vm4433, %v2926, %v3598
    %v4465 = vsel %vm4433, %v2927, %v3600
    %v4466 = vsel %vm4433, %v2928, %v3602
    %v4467 = vsel %vm4433, %v2929, %v3604
    %v4468 = vsel %vm4433, %v2930, %v3606
    %v4469 = vsel %vm4433, %v2931, %v3608
    %v4470 = vsel %vm4433, %v2932, %v3610
    %v4471 = vsel %vm4433, %v2933, %v3612
    %v4472 = vsel %vm4433, %v2934, %v3614
    %v4473 = vsel %vm4433, %v2935, %v3616
    %v4474 = vsel %vm4433, %v2936, %v3618
    %v4475 = vsel %vm4433, %v2937, %v3620
    %v4476 = vsel %vm4433, %v2938, %v3622
    %v4477 = vsel %vm4433, %v2939, %v3624
    %v4478 = vsel %vm4433, %v2940, %v3626
    %v4479 = vsel %vm4433, %v2941, %v3628
    %v4480 = vsel %vm4433, %v2942, %v3630
    %v4481 = vsel %vm4433, %v2943, %v3632
    %v4482 = vsel %vm4433, %v2944, %v3634
    %v4483 = vsel %vm4433, %v2945, %v3636
    %v4484 = vsel %vm4433, %v2946, %v3638
    %v4485 = vsel %vm4433, %v2947, %v3640
    %v4486 = vsel %vm4433, %v2948, %v3642
    %v4487 = vsel %vm4433, %v2949, %v3644
    %v4488 = vsel %vm4433, %v2950, %v3646
    %v4489 = vsel %vm4433, %v2951, %v3648
    %v4490 = vsel %vm4433, %v2952, %v3650
    %v4491 = vsel %vm4433, %v2953, %v3652
    %v4492 = vsel %vm4433, %v2954, %v3654
    %v4493 = vsel %vm4433, %v2955, %v3656
    %v4494 = vsel %vm4433, %v2956, %v3658
    %v4495 = vsel %vm4433, %v2957, %v3660
    %v4496 = vsel %vm4433, %v2958, %v3662
    %v4497 = vsel %vm4433, %v2959, %v3664
    %v4498 = vsel %vm4433, %v2960, %v3666
    %v4499 = vsel %vm4433, %v2961, %v3668
    %v4500 = vsel %vm4433, %v2962, %v3670
    %v4501 = vsel %vm4433, %v2963, %v3672
    %v4502 = vsel %vm4433, %v2964, %v3674
    %v4503 = vsel %vm4433, %v2965, %v3676
    %v4504 = vsel %vm4433, %v2966, %v3678
    %v4505 = vsel %vm4433, %v2967, %v3680
    %v4506 = vsel %vm4433, %v2968, %v3682
    %v4507 = vsel %vm4433, %v2969, %v3684
    %v4508 = vsel %vm4433, %v2970, %v3686
    %v4509 = vsel %vm4433, %v2971, %v3688
    %v4510 = vsel %vm4433, %v2972, %v3690
    %v4511 = vsel %vm4433, %v2973, %v3692
    %v4512 = vsel %vm4433, %v2974, %v3694
    %v4513 = vsel %vm4433, %v2975, %v3696
    %v4514 = vsel %vm4433, %v2976, %v3698
    %v4515 = vsel %vm4433, %v2977, %v3700
    %v4516 = vsel %vm4433, %v2978, %v3702
    %v4517 = vsel %vm4433, %v2979, %v3704
    %v4518 = vsel %vm4433, %v2980, %v3706
    %v4519 = vsel %vm4433, %v2981, %v3708
    %v4520 = vsel %vm4433, %v2982, %v3710
    %v4521 = vsel %vm4433, %v2983, %v3712
    %v4522 = vsel %vm4433, %v2984, %v3714
    %v4523 = vsel %vm4433, %v2985, %v3716
    %v4524 = vsel %vm4433, %v2986, %v3718
    %v4525 = vsel %vm4433, %v2987, %v3720
    %v4526 = vsel %vm4433, %v2988, %v3722
    %v4527 = vsel %vm4433, %v2989, %v3724
    %v4528 = vsel %vm4433, %v2990, %v3726
    %v4529 = vsel %vm4433, %v2991, %v3728
    %v4530 = vsel %vm4433, %v2992, %v3730
    %v4531 = vsel %vm4433, %v2993, %v3732
    %v4532 = vsel %vm4433, %v2994, %v3734
    %v4533 = vsel %vm4433, %v2995, %v3736
    %v4534 = vsel %vm4433, %v2996, %v3738
    %v4535 = vsel %vm4433, %v2997, %v3740
    %v4536 = vsel %vm4433, %v2998, %v3742
    %v4537 = vsel %vm4433, %v2999, %v3744
    %v4538 = vsel %vm4433, %v3000, %v3746
    %v4539 = vsel %vm4433, %v3001, %v3748
    %v4540 = vsel %vm4433, %v3002, %v3750
    %v4541 = vsel %vm4433, %v3003, %v3752
    %v4542 = vsel %vm4433, %v3004, %v3754
    %v4543 = vsel %vm4433, %v3005, %v3756
    %v4544 = vsel %vm4433, %v3006, %v3758
    %v4545 = vsel %vm4433, %v3007, %v3760
    %v4546 = vsel %vm4433, %v3008, %v3762
    %v4547 = vsel %vm4433, %v3009, %v3764
    %v4548 = vsel %vm4433, %v3010, %v3766
    %v4549 = vsel %vm4433, %v3011, %v3768
    %v4550 = vsel %vm4433, %v3012, %v3770
    %v4551 = vsel %vm4433, %v3013, %v3772
    %v4552 = vsel %vm4433, %v3014, %v3774
    %v4553 = vsel %vm4433, %v3015, %v3776
    %v4554 = vsel %vm4433, %v3016, %v3778
    %v4555 = vsel %vm4433, %v3017, %v3780
    %v4556 = vsel %vm4433, %v3018, %v3782
    %v4557 = vsel %vm4433, %v3019, %v3784
    %v4558 = vsel %vm4433, %v3020, %v3786
    %v4559 = vsel %vm4433, %v3021, %v3788
    %v4560 = vsel %vm4433, %v3022, %v3790
    %v4561 = vsel %vm4433, %v3023, %v3792
    %vm4562 = vcmask 523264
    %v4563 = vsel %vm4562, %v4434, %v4050
    %v4564 = vsel %vm4562, %v4435, %v4052
    %v4565 = vsel %vm4562, %v4436, %v4054
    %v4566 = vsel %vm4562, %v4437, %v4056
    %v4567 = vsel %vm4562, %v4438, %v4058
    %v4568 = vsel %vm4562, %v4439, %v4060
    %v4569 = vsel %vm4562, %v4440, %v4062
    %v4570 = vsel %vm4562, %v4441, %v4064
    %v4571 = vsel %vm4562, %v4442, %v4066
    %v4572 = vsel %vm4562, %v4443, %v4068
    %v4573 = vsel %vm4562, %v4444, %v4070
    %v4574 = vsel %vm4562, %v4445, %v4072
    %v4575 = vsel %vm4562, %v4446, %v4074
    %v4576 = vsel %vm4562, %v4447, %v4076
    %v4577 = vsel %vm4562, %v4448, %v4078
    %v4578 = vsel %vm4562, %v4449, %v4080
    %v4579 = vsel %vm4562, %v4450, %v4082
    %v4580 = vsel %vm4562, %v4451, %v4084
    %v4581 = vsel %vm4562, %v4452, %v4086
    %v4582 = vsel %vm4562, %v4453, %v4088
    %v4583 = vsel %vm4562, %v4454, %v4090
    %v4584 = vsel %vm4562, %v4455, %v4092
    %v4585 = vsel %vm4562, %v4456, %v4094
    %v4586 = vsel %vm4562, %v4457, %v4096
    %v4587 = vsel %vm4562, %v4458, %v4098
    %v4588 = vsel %vm4562, %v4459, %v4100
    %v4589 = vsel %vm4562, %v4460, %v4102
    %v4590 = vsel %vm4562, %v4461, %v4104
    %v4591 = vsel %vm4562, %v4462, %v4106
    %v4592 = vsel %vm4562, %v4463, %v4108
    %v4593 = vsel %vm4562, %v4464, %v4110
    %v4594 = vsel %vm4562, %v4465, %v4112
    %v4595 = vsel %vm4562, %v4466, %v4114
    %v4596 = vsel %vm4562, %v4467, %v4116
    %v4597 = vsel %vm4562, %v4468, %v4118
    %v4598 = vsel %vm4562, %v4469, %v4120
    %v4599 = vsel %vm4562, %v4470, %v4122
    %v4600 = vsel %vm4562, %v4471, %v4124
    %v4601 = vsel %vm4562, %v4472, %v4126
    %v4602 = vsel %vm4562, %v4473, %v4128
    %v4603 = vsel %vm4562, %v4474, %v4130
    %v4604 = vsel %vm4562, %v4475, %v4132
    %v4605 = vsel %vm4562, %v4476, %v4134
    %v4606 = vsel %vm4562, %v4477, %v4136
    %v4607 = vsel %vm4562, %v4478, %v4138
    %v4608 = vsel %vm4562, %v4479, %v4140
    %v4609 = vsel %vm4562, %v4480, %v4142
    %v4610 = vsel %vm4562, %v4481, %v4144
    %v4611 = vsel %vm4562, %v4482, %v4146
    %v4612 = vsel %vm4562, %v4483, %v4148
    %v4613 = vsel %vm4562, %v4484, %v4150
    %v4614 = vsel %vm4562, %v4485, %v4152
    %v4615 = vsel %vm4562, %v4486, %v4154
    %v4616 = vsel %vm4562, %v4487, %v4156
    %v4617 = vsel %vm4562, %v4488, %v4158
    %v4618 = vsel %vm4562, %v4489, %v4160
    %v4619 = vsel %vm4562, %v4490, %v4162
    %v4620 = vsel %vm4562, %v4491, %v4164
    %v4621 = vsel %vm4562, %v4492, %v4166
    %v4622 = vsel %vm4562, %v4493, %v4168
    %v4623 = vsel %vm4562, %v4494, %v4170
    %v4624 = vsel %vm4562, %v4495, %v4172
    %v4625 = vsel %vm4562, %v4496, %v4174
    %v4626 = vsel %vm4562, %v4497, %v4176
    %v4627 = vsel %vm4562, %v4498, %v4178
    %v4628 = vsel %vm4562, %v4499, %v4180
    %v4629 = vsel %vm4562, %v4500, %v4182
    %v4630 = vsel %vm4562, %v4501, %v4184
    %v4631 = vsel %vm4562, %v4502, %v4186
    %v4632 = vsel %vm4562, %v4503, %v4188
    %v4633 = vsel %vm4562, %v4504, %v4190
    %v4634 = vsel %vm4562, %v4505, %v4192
    %v4635 = vsel %vm4562, %v4506, %v4194
    %v4636 = vsel %vm4562, %v4507, %v4196
    %v4637 = vsel %vm4562, %v4508, %v4198
    %v4638 = vsel %vm4562, %v4509, %v4200
    %v4639 = vsel %vm4562, %v4510, %v4202
    %v4640 = vsel %vm4562, %v4511, %v4204
    %v4641 = vsel %vm4562, %v4512, %v4206
    %v4642 = vsel %vm4562, %v4513, %v4208
    %v4643 = vsel %vm4562, %v4514, %v4210
    %v4644 = vsel %vm4562, %v4515, %v4212
    %v4645 = vsel %vm4562, %v4516, %v4214
    %v4646 = vsel %vm4562, %v4517, %v4216
    %v4647 = vsel %vm4562, %v4518, %v4218
    %v4648 = vsel %vm4562, %v4519, %v4220
    %v4649 = vsel %vm4562, %v4520, %v4222
    %v4650 = vsel %vm4562, %v4521, %v4224
    %v4651 = vsel %vm4562, %v4522, %v4226
    %v4652 = vsel %vm4562, %v4523, %v4228
    %v4653 = vsel %vm4562, %v4524, %v4230
    %v4654 = vsel %vm4562, %v4525, %v4232
    %v4655 = vsel %vm4562, %v4526, %v4234
    %v4656 = vsel %vm4562, %v4527, %v4236
    %v4657 = vsel %vm4562, %v4528, %v4238
    %v4658 = vsel %vm4562, %v4529, %v4240
    %v4659 = vsel %vm4562, %v4530, %v4242
    %v4660 = vsel %vm4562, %v4531, %v4244
    %v4661 = vsel %vm4562, %v4532, %v4246
    %v4662 = vsel %vm4562, %v4533, %v4248
    %v4663 = vsel %vm4562, %v4534, %v4250
    %v4664 = vsel %vm4562, %v4535, %v4252
    %v4665 = vsel %vm4562, %v4536, %v4254
    %v4666 = vsel %vm4562, %v4537, %v4256
    %v4667 = vsel %vm4562, %v4538, %v4258
    %v4668 = vsel %vm4562, %v4539, %v4260
    %v4669 = vsel %vm4562, %v4540, %v4262
    %v4670 = vsel %vm4562, %v4541, %v4264
    %v4671 = vsel %vm4562, %v4542, %v4266
    %v4672 = vsel %vm4562, %v4543, %v4268
    %v4673 = vsel %vm4562, %v4544, %v4270
    %v4674 = vsel %vm4562, %v4545, %v4272
    %v4675 = vsel %vm4562, %v4546, %v4274
    %v4676 = vsel %vm4562, %v4547, %v4276
    %v4677 = vsel %vm4562, %v4548, %v4278
    %v4678 = vsel %vm4562, %v4549, %v4280
    %v4679 = vsel %vm4562, %v4550, %v4282
    %v4680 = vsel %vm4562, %v4551, %v4284
    %v4681 = vsel %vm4562, %v4552, %v4286
    %v4682 = vsel %vm4562, %v4553, %v4288
    %v4683 = vsel %vm4562, %v4554, %v4290
    %v4684 = vsel %vm4562, %v4555, %v4292
    %v4685 = vsel %vm4562, %v4556, %v4294
    %v4686 = vsel %vm4562, %v4557, %v4296
    %v4687 = vsel %vm4562, %v4558, %v4298
    %v4688 = vsel %vm4562, %v4559, %v4300
    %v4689 = vsel %vm4562, %v4560, %v4302
    %v4690 = vsel %vm4562, %v4561, %v4304
    %v4691 = vlaneseq
    %v4692 = vshrl.u32 %v4691, 7
    %v4693 = vsub.s32 0, %v4692
    %v4694 = vrot.slane %v2498, %v4693
    %vm4695 = vcmask 785408
    %v4697 = vsel %vm4695, %v4563, 0
    %v4700 = vsel %vm4695, %v4564, 0
    %v4703 = vsel %vm4695, %v4565, 0
    %v4706 = vsel %vm4695, %v4566, 0
    %v4709 = vsel %vm4695, %v4567, 0
    %v4712 = vsel %vm4695, %v4568, 0
    %v4715 = vsel %vm4695, %v4569, 0
    %v4718 = vsel %vm4695, %v4570, 0
    %v4721 = vsel %vm4695, %v4571, 0
    %v4724 = vsel %vm4695, %v4572, 0
    %v4727 = vsel %vm4695, %v4573, 0
    %v4730 = vsel %vm4695, %v4574, 0
    %v4733 = vsel %vm4695, %v4575, 0
    %v4736 = vsel %vm4695, %v4576, 0
    %v4739 = vsel %vm4695, %v4577, 0
    %v4742 = vsel %vm4695, %v4578, 0
    %v4745 = vsel %vm4695, %v4579, 0
    %v4748 = vsel %vm4695, %v4580, 0
    %v4751 = vsel %vm4695, %v4581, 0
    %v4754 = vsel %vm4695, %v4582, 0
    %v4757 = vsel %vm4695, %v4583, 0
    %v4760 = vsel %vm4695, %v4584, 0
    %v4763 = vsel %vm4695, %v4585, 0
    %v4766 = vsel %vm4695, %v4586, 0
    %v4769 = vsel %vm4695, %v4587, 0
    %v4772 = vsel %vm4695, %v4588, 0
    %v4775 = vsel %vm4695, %v4589, 0
    %v4778 = vsel %vm4695, %v4590, 0
    %v4781 = vsel %vm4695, %v4591, 0
    %v4784 = vsel %vm4695, %v4592, 0
    %v4787 = vsel %vm4695, %v4593, 0
    %v4790 = vsel %vm4695, %v4594, 0
    %v4793 = vsel %vm4695, %v4595, 0
    %v4796 = vsel %vm4695, %v4596, 0
    %v4799 = vsel %vm4695, %v4597, 0
    %v4802 = vsel %vm4695, %v4598, 0
    %v4805 = vsel %vm4695, %v4599, 0
    %v4808 = vsel %vm4695, %v4600, 0
    %v4811 = vsel %vm4695, %v4601, 0
    %v4814 = vsel %vm4695, %v4602, 0
    %v4817 = vsel %vm4695, %v4603, 0
    %v4820 = vsel %vm4695, %v4604, 0
    %v4823 = vsel %vm4695, %v4605, 0
    %v4826 = vsel %vm4695, %v4606, 0
    %v4829 = vsel %vm4695, %v4607, 0
    %v4832 = vsel %vm4695, %v4608, 0
    %v4835 = vsel %vm4695, %v4609, 0
    %v4838 = vsel %vm4695, %v4610, 0
    %v4841 = vsel %vm4695, %v4611, 0
    %v4844 = vsel %vm4695, %v4612, 0
    %v4847 = vsel %vm4695, %v4613, 0
    %v4850 = vsel %vm4695, %v4614, 0
    %v4853 = vsel %vm4695, %v4615, 0
    %v4856 = vsel %vm4695, %v4616, 0
    %v4859 = vsel %vm4695, %v4617, 0
    %v4862 = vsel %vm4695, %v4618, 0
    %v4865 = vsel %vm4695, %v4619, 0
    %v4868 = vsel %vm4695, %v4620, 0
    %v4871 = vsel %vm4695, %v4621, 0
    %v4874 = vsel %vm4695, %v4622, 0
    %v4877 = vsel %vm4695, %v4623, 0
    %v4880 = vsel %vm4695, %v4624, 0
    %v4883 = vsel %vm4695, %v4625, 0
    %v4886 = vsel %vm4695, %v4626, 0
    %v4889 = vsel %vm4695, %v4627, 0
    %v4892 = vsel %vm4695, %v4628, 0
    %v4895 = vsel %vm4695, %v4629, 0
    %v4898 = vsel %vm4695, %v4630, 0
    %v4901 = vsel %vm4695, %v4631, 0
    %v4904 = vsel %vm4695, %v4632, 0
    %v4907 = vsel %vm4695, %v4633, 0
    %v4910 = vsel %vm4695, %v4634, 0
    %v4913 = vsel %vm4695, %v4635, 0
    %v4916 = vsel %vm4695, %v4636, 0
    %v4919 = vsel %vm4695, %v4637, 0
    %v4922 = vsel %vm4695, %v4638, 0
    %v4925 = vsel %vm4695, %v4639, 0
    %v4928 = vsel %vm4695, %v4640, 0
    %v4931 = vsel %vm4695, %v4641, 0
    %v4934 = vsel %vm4695, %v4642, 0
    %v4937 = vsel %vm4695, %v4643, 0
    %v4940 = vsel %vm4695, %v4644, 0
    %v4943 = vsel %vm4695, %v4645, 0
    %v4946 = vsel %vm4695, %v4646, 0
    %v4949 = vsel %vm4695, %v4647, 0
    %v4952 = vsel %vm4695, %v4648, 0
    %v4955 = vsel %vm4695, %v4649, 0
    %v4958 = vsel %vm4695, %v4650, 0
    %v4961 = vsel %vm4695, %v4651, 0
    %v4964 = vsel %vm4695, %v4652, 0
    %v4967 = vsel %vm4695, %v4653, 0
    %v4970 = vsel %vm4695, %v4654, 0
    %v4973 = vsel %vm4695, %v4655, 0
    %v4976 = vsel %vm4695, %v4656, 0
    %v4979 = vsel %vm4695, %v4657, 0
    %v4982 = vsel %vm4695, %v4658, 0
    %v4985 = vsel %vm4695, %v4659, 0
    %v4988 = vsel %vm4695, %v4660, 0
    %v4991 = vsel %vm4695, %v4661, 0
    %v4994 = vsel %vm4695, %v4662, 0
    %v4997 = vsel %vm4695, %v4663, 0
    %v5000 = vsel %vm4695, %v4664, 0
    %v5003 = vsel %vm4695, %v4665, 0
    %v5006 = vsel %vm4695, %v4666, 0
    %v5009 = vsel %vm4695, %v4667, 0
    %v5012 = vsel %vm4695, %v4668, 0
    %v5015 = vsel %vm4695, %v4669, 0
    %v5018 = vsel %vm4695, %v4670, 0
    %v5021 = vsel %vm4695, %v4671, 0
    %v5024 = vsel %vm4695, %v4672, 0
    %v5027 = vsel %vm4695, %v4673, 0
    %v5030 = vsel %vm4695, %v4674, 0
    %v5033 = vsel %vm4695, %v4675, 0
    %v5036 = vsel %vm4695, %v4676, 0
    %v5039 = vsel %vm4695, %v4677, 0
    %v5042 = vsel %vm4695, %v4678, 0
    %v5045 = vsel %vm4695, %v4679, 0
    %v5048 = vsel %vm4695, %v4680, 0
    %v5051 = vsel %vm4695, %v4681, 0
    %v5054 = vsel %vm4695, %v4682, 0
    %v5057 = vsel %vm4695, %v4683, 0
    %v5060 = vsel %vm4695, %v4684, 0
    %v5063 = vsel %vm4695, %v4685, 0
    %v5066 = vsel %vm4695, %v4686, 0
    %v5069 = vsel %vm4695, %v4687, 0
    %v5072 = vsel %vm4695, %v4688, 0
    %v5075 = vsel %vm4695, %v4689, 0
    %v5078 = vsel %vm4695, %v4690, 0
    %5080 = vmatprep.subr.mxu0 0.0
    %5081 = vmatpush1.msra.mxu0 0.0
    %5082 = vmatprep.subr.mxu0 0.0
    %5083 = vmatpush1.msra.mxu0 0.0
    %5084 = vmatprep.subr.mxu0 0.0
    %5085 = vmatpush1.msra.mxu0 0.0
    %5086 = vmatprep.subr.mxu0 0.0
    %5087 = vmatpush1.msra.mxu0 0.0
    %5088 = vmatprep.subr.mxu0 0.0
    %5089 = vmatpush1.msra.mxu0 %v2638
    %5090 = vmatprep.subr.mxu0 0.0
    %5091 = vmatpush1.msra.mxu0 %v2637
    %5092 = vmatprep.subr.mxu0 0.0
    %5093 = vmatpush1.msra.mxu0 %v2636
    %5094 = vmatprep.subr.mxu0 0.0
    %5095 = vmatpush1.msra.mxu0 %v2635
    %5096 = vmatprep.subr.mxu0 0.0
    %5097 = vmatpush1.msra.mxu0 %v2634
    %5098 = vmatprep.subr.mxu0 0.0
    %5099 = vmatpush1.msra.mxu0 %v2633
    %5100 = vmatprep.subr.mxu0 0.0
    %5101 = vmatpush1.msra.mxu0 %v2632
    %5102 = vmatprep.subr.mxu0 0.0
    %5103 = vmatpush1.msra.mxu0 %v2631
    %5104 = vmatprep.subr.mxu0 0.0
    %5105 = vmatpush1.msra.mxu0 %v2630
    %5106 = vmatprep.subr.mxu0 0.0
    %5107 = vmatpush1.msra.mxu0 %v2629
    %5108 = vmatprep.subr.mxu0 0.0
    %5109 = vmatpush1.msra.mxu0 %v2628
    %5110 = vmatprep.subr.mxu0 0.0
    %5111 = vmatpush1.msra.mxu0 %v2627
    %5112 = vmatprep.subr.mxu0 0.0
    %5113 = vmatpush2.msra.mxu0 0.0
    %5114 = vmatprep.subr.mxu0 0.0
    %5115 = vmatpush2.msra.mxu0 0.0
    %5116 = vmatprep.subr.mxu0 0.0
    %5117 = vmatpush2.msra.mxu0 0.0
    %5118 = vmatprep.subr.mxu0 0.0
    %5119 = vmatpush2.msra.mxu0 0.0
    %5120 = vmatprep.subr.mxu0 0.0
    %5121 = vmatpush2.msra.mxu0 0.0
    %5122 = vmatprep.subr.mxu0 0.0
    %5123 = vmatpush2.msra.mxu0 0.0
    %5124 = vmatprep.subr.mxu0 0.0
    %5125 = vmatpush2.msra.mxu0 0.0
    %5126 = vmatprep.subr.mxu0 0.0
    %5127 = vmatpush2.msra.mxu0 0.0
    %5128 = vmatprep.subr.mxu0 0.0
    %5129 = vmatpush2.msra.mxu0 0.0
    %5130 = vmatprep.subr.mxu0 0.0
    %5131 = vmatpush2.msra.mxu0 0.0
    %5132 = vmatprep.subr.mxu0 0.0
    %5133 = vmatpush2.msra.mxu0 0.0
    %5134 = vmatprep.subr.mxu0 0.0
    %5135 = vmatpush2.msra.mxu0 0.0
    %5136 = vmatprep.subr.mxu0 0.0
    %5137 = vmatpush2.msra.mxu0 0.0
    %5138 = vmatprep.subr.mxu0 0.0
    %5139 = vmatpush2.msra.mxu0 0.0
    %5140 = vmatprep.subr.mxu0 0.0
    %5141 = vmatpush2.msra.mxu0 0.0
    %5142 = vmatprep.subr.mxu0 0.0
    %5143 = vmatpush2.msra.mxu0 0.0
    %5144 = vmatprep.mubr.f32.mxu0 0.0
    %5145 = vmatmul.mubr.f32.gmra.mxu0 %v4697
    %v5146 = vpop.f32.mrf.mxu0
    %v5147 = vadd.f32 %v4694, %v5146
    %v5148 = vpop.f32.mrf.mxu0
    %5149 = vmatprep.mubr.f32.mxu0 0.0
    %5150 = vmatmul.mubr.f32.gmra.mxu0 %v4700
    %v5151 = vpop.f32.mrf.mxu0
    %v5152 = vadd.f32 %v4694, %v5151
    %v5153 = vpop.f32.mrf.mxu0
    %5154 = vmatprep.mubr.f32.mxu0 0.0
    %5155 = vmatmul.mubr.f32.gmra.mxu0 %v4703
    %v5156 = vpop.f32.mrf.mxu0
    %v5157 = vadd.f32 %v4694, %v5156
    %v5158 = vpop.f32.mrf.mxu0
    %5159 = vmatprep.mubr.f32.mxu0 0.0
    %5160 = vmatmul.mubr.f32.gmra.mxu0 %v4706
    %v5161 = vpop.f32.mrf.mxu0
    %v5162 = vadd.f32 %v4694, %v5161
    %v5163 = vpop.f32.mrf.mxu0
    %5164 = vmatprep.mubr.f32.mxu0 0.0
    %5165 = vmatmul.mubr.f32.gmra.mxu0 %v4709
    %v5166 = vpop.f32.mrf.mxu0
    %v5167 = vadd.f32 %v4694, %v5166
    %v5168 = vpop.f32.mrf.mxu0
    %5169 = vmatprep.mubr.f32.mxu0 0.0
    %5170 = vmatmul.mubr.f32.gmra.mxu0 %v4712
    %v5171 = vpop.f32.mrf.mxu0
    %v5172 = vadd.f32 %v4694, %v5171
    %v5173 = vpop.f32.mrf.mxu0
    %5174 = vmatprep.mubr.f32.mxu0 0.0
    %5175 = vmatmul.mubr.f32.gmra.mxu0 %v4715
    %v5176 = vpop.f32.mrf.mxu0
    %v5177 = vadd.f32 %v4694, %v5176
    %v5178 = vpop.f32.mrf.mxu0
    %5179 = vmatprep.mubr.f32.mxu0 0.0
    %5180 = vmatmul.mubr.f32.gmra.mxu0 %v4718
    %v5181 = vpop.f32.mrf.mxu0
    %v5182 = vadd.f32 %v4694, %v5181
    %v5183 = vpop.f32.mrf.mxu0
    %5184 = vmatprep.mubr.f32.mxu0 0.0
    %5185 = vmatmul.mubr.f32.gmra.mxu0 %v4721
    %v5186 = vpop.f32.mrf.mxu0
    %v5187 = vadd.f32 %v4694, %v5186
    %v5188 = vpop.f32.mrf.mxu0
    %5189 = vmatprep.mubr.f32.mxu0 0.0
    %5190 = vmatmul.mubr.f32.gmra.mxu0 %v4724
    %v5191 = vpop.f32.mrf.mxu0
    %v5192 = vadd.f32 %v4694, %v5191
    %v5193 = vpop.f32.mrf.mxu0
    %5194 = vmatprep.mubr.f32.mxu0 0.0
    %5195 = vmatmul.mubr.f32.gmra.mxu0 %v4727
    %v5196 = vpop.f32.mrf.mxu0
    %v5197 = vadd.f32 %v4694, %v5196
    %v5198 = vpop.f32.mrf.mxu0
    %5199 = vmatprep.mubr.f32.mxu0 0.0
    %5200 = vmatmul.mubr.f32.gmra.mxu0 %v4730
    %v5201 = vpop.f32.mrf.mxu0
    %v5202 = vadd.f32 %v4694, %v5201
    %v5203 = vpop.f32.mrf.mxu0
    %5204 = vmatprep.mubr.f32.mxu0 0.0
    %5205 = vmatmul.mubr.f32.gmra.mxu0 %v4733
    %v5206 = vpop.f32.mrf.mxu0
    %v5207 = vadd.f32 %v4694, %v5206
    %v5208 = vpop.f32.mrf.mxu0
    %5209 = vmatprep.mubr.f32.mxu0 0.0
    %5210 = vmatmul.mubr.f32.gmra.mxu0 %v4736
    %v5211 = vpop.f32.mrf.mxu0
    %v5212 = vadd.f32 %v4694, %v5211
    %v5213 = vpop.f32.mrf.mxu0
    %5214 = vmatprep.mubr.f32.mxu0 0.0
    %5215 = vmatmul.mubr.f32.gmra.mxu0 %v4739
    %v5216 = vpop.f32.mrf.mxu0
    %v5217 = vadd.f32 %v4694, %v5216
    %v5218 = vpop.f32.mrf.mxu0
    %5219 = vmatprep.mubr.f32.mxu0 0.0
    %5220 = vmatmul.mubr.f32.gmra.mxu0 %v4742
    %v5221 = vpop.f32.mrf.mxu0
    %v5222 = vadd.f32 %v4694, %v5221
    %v5223 = vpop.f32.mrf.mxu0
    %5224 = vmatprep.mubr.f32.mxu0 0.0
    %5225 = vmatmul.mubr.f32.gmra.mxu0 %v4745
    %v5226 = vpop.f32.mrf.mxu0
    %v5227 = vadd.f32 %v4694, %v5226
    %v5228 = vpop.f32.mrf.mxu0
    %5229 = vmatprep.mubr.f32.mxu0 0.0
    %5230 = vmatmul.mubr.f32.gmra.mxu0 %v4748
    %v5231 = vpop.f32.mrf.mxu0
    %v5232 = vadd.f32 %v4694, %v5231
    %v5233 = vpop.f32.mrf.mxu0
    %5234 = vmatprep.mubr.f32.mxu0 0.0
    %5235 = vmatmul.mubr.f32.gmra.mxu0 %v4751
    %v5236 = vpop.f32.mrf.mxu0
    %v5237 = vadd.f32 %v4694, %v5236
    %v5238 = vpop.f32.mrf.mxu0
    %5239 = vmatprep.mubr.f32.mxu0 0.0
    %5240 = vmatmul.mubr.f32.gmra.mxu0 %v4754
    %v5241 = vpop.f32.mrf.mxu0
    %v5242 = vadd.f32 %v4694, %v5241
    %v5243 = vpop.f32.mrf.mxu0
    %5244 = vmatprep.mubr.f32.mxu0 0.0
    %5245 = vmatmul.mubr.f32.gmra.mxu0 %v4757
    %v5246 = vpop.f32.mrf.mxu0
    %v5247 = vadd.f32 %v4694, %v5246
    %v5248 = vpop.f32.mrf.mxu0
    %5249 = vmatprep.mubr.f32.mxu0 0.0
    %5250 = vmatmul.mubr.f32.gmra.mxu0 %v4760
    %v5251 = vpop.f32.mrf.mxu0
    %v5252 = vadd.f32 %v4694, %v5251
    %v5253 = vpop.f32.mrf.mxu0
    %5254 = vmatprep.mubr.f32.mxu0 0.0
    %5255 = vmatmul.mubr.f32.gmra.mxu0 %v4763
    %v5256 = vpop.f32.mrf.mxu0
    %v5257 = vadd.f32 %v4694, %v5256
    %v5258 = vpop.f32.mrf.mxu0
    %5259 = vmatprep.mubr.f32.mxu0 0.0
    %5260 = vmatmul.mubr.f32.gmra.mxu0 %v4766
    %v5261 = vpop.f32.mrf.mxu0
    %v5262 = vadd.f32 %v4694, %v5261
    %v5263 = vpop.f32.mrf.mxu0
    %5264 = vmatprep.mubr.f32.mxu0 0.0
    %5265 = vmatmul.mubr.f32.gmra.mxu0 %v4769
    %v5266 = vpop.f32.mrf.mxu0
    %v5267 = vadd.f32 %v4694, %v5266
    %v5268 = vpop.f32.mrf.mxu0
    %5269 = vmatprep.mubr.f32.mxu0 0.0
    %5270 = vmatmul.mubr.f32.gmra.mxu0 %v4772
    %v5271 = vpop.f32.mrf.mxu0
    %v5272 = vadd.f32 %v4694, %v5271
    %v5273 = vpop.f32.mrf.mxu0
    %5274 = vmatprep.mubr.f32.mxu0 0.0
    %5275 = vmatmul.mubr.f32.gmra.mxu0 %v4775
    %v5276 = vpop.f32.mrf.mxu0
    %v5277 = vadd.f32 %v4694, %v5276
    %v5278 = vpop.f32.mrf.mxu0
    %5279 = vmatprep.mubr.f32.mxu0 0.0
    %5280 = vmatmul.mubr.f32.gmra.mxu0 %v4778
    %v5281 = vpop.f32.mrf.mxu0
    %v5282 = vadd.f32 %v4694, %v5281
    %v5283 = vpop.f32.mrf.mxu0
    %5284 = vmatprep.mubr.f32.mxu0 0.0
    %5285 = vmatmul.mubr.f32.gmra.mxu0 %v4781
    %v5286 = vpop.f32.mrf.mxu0
    %v5287 = vadd.f32 %v4694, %v5286
    %v5288 = vpop.f32.mrf.mxu0
    %5289 = vmatprep.mubr.f32.mxu0 0.0
    %5290 = vmatmul.mubr.f32.gmra.mxu0 %v4784
    %v5291 = vpop.f32.mrf.mxu0
    %v5292 = vadd.f32 %v4694, %v5291
    %v5293 = vpop.f32.mrf.mxu0
    %5294 = vmatprep.mubr.f32.mxu0 0.0
    %5295 = vmatmul.mubr.f32.gmra.mxu0 %v4787
    %v5296 = vpop.f32.mrf.mxu0
    %v5297 = vadd.f32 %v4694, %v5296
    %v5298 = vpop.f32.mrf.mxu0
    %5299 = vmatprep.mubr.f32.mxu0 0.0
    %5300 = vmatmul.mubr.f32.gmra.mxu0 %v4790
    %v5301 = vpop.f32.mrf.mxu0
    %v5302 = vadd.f32 %v4694, %v5301
    %v5303 = vpop.f32.mrf.mxu0
    %5304 = vmatprep.mubr.f32.mxu0 0.0
    %5305 = vmatmul.mubr.f32.gmra.mxu0 %v4793
    %v5306 = vpop.f32.mrf.mxu0
    %v5307 = vadd.f32 %v4694, %v5306
    %v5308 = vpop.f32.mrf.mxu0
    %5309 = vmatprep.mubr.f32.mxu0 0.0
    %5310 = vmatmul.mubr.f32.gmra.mxu0 %v4796
    %v5311 = vpop.f32.mrf.mxu0
    %v5312 = vadd.f32 %v4694, %v5311
    %v5313 = vpop.f32.mrf.mxu0
    %5314 = vmatprep.mubr.f32.mxu0 0.0
    %5315 = vmatmul.mubr.f32.gmra.mxu0 %v4799
    %v5316 = vpop.f32.mrf.mxu0
    %v5317 = vadd.f32 %v4694, %v5316
    %v5318 = vpop.f32.mrf.mxu0
    %5319 = vmatprep.mubr.f32.mxu0 0.0
    %5320 = vmatmul.mubr.f32.gmra.mxu0 %v4802
    %v5321 = vpop.f32.mrf.mxu0
    %v5322 = vadd.f32 %v4694, %v5321
    %v5323 = vpop.f32.mrf.mxu0
    %5324 = vmatprep.mubr.f32.mxu0 0.0
    %5325 = vmatmul.mubr.f32.gmra.mxu0 %v4805
    %v5326 = vpop.f32.mrf.mxu0
    %v5327 = vadd.f32 %v4694, %v5326
    %v5328 = vpop.f32.mrf.mxu0
    %5329 = vmatprep.mubr.f32.mxu0 0.0
    %5330 = vmatmul.mubr.f32.gmra.mxu0 %v4808
    %v5331 = vpop.f32.mrf.mxu0
    %v5332 = vadd.f32 %v4694, %v5331
    %v5333 = vpop.f32.mrf.mxu0
    %5334 = vmatprep.mubr.f32.mxu0 0.0
    %5335 = vmatmul.mubr.f32.gmra.mxu0 %v4811
    %v5336 = vpop.f32.mrf.mxu0
    %v5337 = vadd.f32 %v4694, %v5336
    %v5338 = vpop.f32.mrf.mxu0
    %5339 = vmatprep.mubr.f32.mxu0 0.0
    %5340 = vmatmul.mubr.f32.gmra.mxu0 %v4814
    %v5341 = vpop.f32.mrf.mxu0
    %v5342 = vadd.f32 %v4694, %v5341
    %v5343 = vpop.f32.mrf.mxu0
    %5344 = vmatprep.mubr.f32.mxu0 0.0
    %5345 = vmatmul.mubr.f32.gmra.mxu0 %v4817
    %v5346 = vpop.f32.mrf.mxu0
    %v5347 = vadd.f32 %v4694, %v5346
    %v5348 = vpop.f32.mrf.mxu0
    %5349 = vmatprep.mubr.f32.mxu0 0.0
    %5350 = vmatmul.mubr.f32.gmra.mxu0 %v4820
    %v5351 = vpop.f32.mrf.mxu0
    %v5352 = vadd.f32 %v4694, %v5351
    %v5353 = vpop.f32.mrf.mxu0
    %5354 = vmatprep.mubr.f32.mxu0 0.0
    %5355 = vmatmul.mubr.f32.gmra.mxu0 %v4823
    %v5356 = vpop.f32.mrf.mxu0
    %v5357 = vadd.f32 %v4694, %v5356
    %v5358 = vpop.f32.mrf.mxu0
    %5359 = vmatprep.mubr.f32.mxu0 0.0
    %5360 = vmatmul.mubr.f32.gmra.mxu0 %v4826
    %v5361 = vpop.f32.mrf.mxu0
    %v5362 = vadd.f32 %v4694, %v5361
    %v5363 = vpop.f32.mrf.mxu0
    %5364 = vmatprep.mubr.f32.mxu0 0.0
    %5365 = vmatmul.mubr.f32.gmra.mxu0 %v4829
    %v5366 = vpop.f32.mrf.mxu0
    %v5367 = vadd.f32 %v4694, %v5366
    %v5368 = vpop.f32.mrf.mxu0
    %5369 = vmatprep.mubr.f32.mxu0 0.0
    %5370 = vmatmul.mubr.f32.gmra.mxu0 %v4832
    %v5371 = vpop.f32.mrf.mxu0
    %v5372 = vadd.f32 %v4694, %v5371
    %v5373 = vpop.f32.mrf.mxu0
    %5374 = vmatprep.mubr.f32.mxu0 0.0
    %5375 = vmatmul.mubr.f32.gmra.mxu0 %v4835
    %v5376 = vpop.f32.mrf.mxu0
    %v5377 = vadd.f32 %v4694, %v5376
    %v5378 = vpop.f32.mrf.mxu0
    %5379 = vmatprep.mubr.f32.mxu0 0.0
    %5380 = vmatmul.mubr.f32.gmra.mxu0 %v4838
    %v5381 = vpop.f32.mrf.mxu0
    %v5382 = vadd.f32 %v4694, %v5381
    %v5383 = vpop.f32.mrf.mxu0
    %5384 = vmatprep.mubr.f32.mxu0 0.0
    %5385 = vmatmul.mubr.f32.gmra.mxu0 %v4841
    %v5386 = vpop.f32.mrf.mxu0
    %v5387 = vadd.f32 %v4694, %v5386
    %v5388 = vpop.f32.mrf.mxu0
    %5389 = vmatprep.mubr.f32.mxu0 0.0
    %5390 = vmatmul.mubr.f32.gmra.mxu0 %v4844
    %v5391 = vpop.f32.mrf.mxu0
    %v5392 = vadd.f32 %v4694, %v5391
    %v5393 = vpop.f32.mrf.mxu0
    %5394 = vmatprep.mubr.f32.mxu0 0.0
    %5395 = vmatmul.mubr.f32.gmra.mxu0 %v4847
    %v5396 = vpop.f32.mrf.mxu0
    %v5397 = vadd.f32 %v4694, %v5396
    %v5398 = vpop.f32.mrf.mxu0
    %5399 = vmatprep.mubr.f32.mxu0 0.0
    %5400 = vmatmul.mubr.f32.gmra.mxu0 %v4850
    %v5401 = vpop.f32.mrf.mxu0
    %v5402 = vadd.f32 %v4694, %v5401
    %v5403 = vpop.f32.mrf.mxu0
    %5404 = vmatprep.mubr.f32.mxu0 0.0
    %5405 = vmatmul.mubr.f32.gmra.mxu0 %v4853
    %v5406 = vpop.f32.mrf.mxu0
    %v5407 = vadd.f32 %v4694, %v5406
    %v5408 = vpop.f32.mrf.mxu0
    %5409 = vmatprep.mubr.f32.mxu0 0.0
    %5410 = vmatmul.mubr.f32.gmra.mxu0 %v4856
    %v5411 = vpop.f32.mrf.mxu0
    %v5412 = vadd.f32 %v4694, %v5411
    %v5413 = vpop.f32.mrf.mxu0
    %5414 = vmatprep.mubr.f32.mxu0 0.0
    %5415 = vmatmul.mubr.f32.gmra.mxu0 %v4859
    %v5416 = vpop.f32.mrf.mxu0
    %v5417 = vadd.f32 %v4694, %v5416
    %v5418 = vpop.f32.mrf.mxu0
    %5419 = vmatprep.mubr.f32.mxu0 0.0
    %5420 = vmatmul.mubr.f32.gmra.mxu0 %v4862
    %v5421 = vpop.f32.mrf.mxu0
    %v5422 = vadd.f32 %v4694, %v5421
    %v5423 = vpop.f32.mrf.mxu0
    %5424 = vmatprep.mubr.f32.mxu0 0.0
    %5425 = vmatmul.mubr.f32.gmra.mxu0 %v4865
    %v5426 = vpop.f32.mrf.mxu0
    %v5427 = vadd.f32 %v4694, %v5426
    %v5428 = vpop.f32.mrf.mxu0
    %5429 = vmatprep.mubr.f32.mxu0 0.0
    %5430 = vmatmul.mubr.f32.gmra.mxu0 %v4868
    %v5431 = vpop.f32.mrf.mxu0
    %v5432 = vadd.f32 %v4694, %v5431
    %v5433 = vpop.f32.mrf.mxu0
    %5434 = vmatprep.mubr.f32.mxu0 0.0
    %5435 = vmatmul.mubr.f32.gmra.mxu0 %v4871
    %v5436 = vpop.f32.mrf.mxu0
    %v5437 = vadd.f32 %v4694, %v5436
    %v5438 = vpop.f32.mrf.mxu0
    %5439 = vmatprep.mubr.f32.mxu0 0.0
    %5440 = vmatmul.mubr.f32.gmra.mxu0 %v4874
    %v5441 = vpop.f32.mrf.mxu0
    %v5442 = vadd.f32 %v4694, %v5441
    %v5443 = vpop.f32.mrf.mxu0
    %5444 = vmatprep.mubr.f32.mxu0 0.0
    %5445 = vmatmul.mubr.f32.gmra.mxu0 %v4877
    %v5446 = vpop.f32.mrf.mxu0
    %v5447 = vadd.f32 %v4694, %v5446
    %v5448 = vpop.f32.mrf.mxu0
    %5449 = vmatprep.mubr.f32.mxu0 0.0
    %5450 = vmatmul.mubr.f32.gmra.mxu0 %v4880
    %v5451 = vpop.f32.mrf.mxu0
    %v5452 = vadd.f32 %v4694, %v5451
    %v5453 = vpop.f32.mrf.mxu0
    %5454 = vmatprep.mubr.f32.mxu0 0.0
    %5455 = vmatmul.mubr.f32.gmra.mxu0 %v4883
    %v5456 = vpop.f32.mrf.mxu0
    %v5457 = vadd.f32 %v4694, %v5456
    %v5458 = vpop.f32.mrf.mxu0
    %5459 = vmatprep.mubr.f32.mxu0 0.0
    %5460 = vmatmul.mubr.f32.gmra.mxu0 %v4886
    %v5461 = vpop.f32.mrf.mxu0
    %v5462 = vadd.f32 %v4694, %v5461
    %v5463 = vpop.f32.mrf.mxu0
    %5464 = vmatprep.mubr.f32.mxu0 0.0
    %5465 = vmatmul.mubr.f32.gmra.mxu0 %v4889
    %v5466 = vpop.f32.mrf.mxu0
    %v5467 = vadd.f32 %v4694, %v5466
    %v5468 = vpop.f32.mrf.mxu0
    %5469 = vmatprep.mubr.f32.mxu0 0.0
    %5470 = vmatmul.mubr.f32.gmra.mxu0 %v4892
    %v5471 = vpop.f32.mrf.mxu0
    %v5472 = vadd.f32 %v4694, %v5471
    %v5473 = vpop.f32.mrf.mxu0
    %5474 = vmatprep.mubr.f32.mxu0 0.0
    %5475 = vmatmul.mubr.f32.gmra.mxu0 %v4895
    %v5476 = vpop.f32.mrf.mxu0
    %v5477 = vadd.f32 %v4694, %v5476
    %v5478 = vpop.f32.mrf.mxu0
    %5479 = vmatprep.mubr.f32.mxu0 0.0
    %5480 = vmatmul.mubr.f32.gmra.mxu0 %v4898
    %v5481 = vpop.f32.mrf.mxu0
    %v5482 = vadd.f32 %v4694, %v5481
    %v5483 = vpop.f32.mrf.mxu0
    %5484 = vmatprep.mubr.f32.mxu0 0.0
    %5485 = vmatmul.mubr.f32.gmra.mxu0 %v4901
    %v5486 = vpop.f32.mrf.mxu0
    %v5487 = vadd.f32 %v4694, %v5486
    %v5488 = vpop.f32.mrf.mxu0
    %5489 = vmatprep.mubr.f32.mxu0 0.0
    %5490 = vmatmul.mubr.f32.gmra.mxu0 %v4904
    %v5491 = vpop.f32.mrf.mxu0
    %v5492 = vadd.f32 %v4694, %v5491
    %v5493 = vpop.f32.mrf.mxu0
    %5494 = vmatprep.mubr.f32.mxu0 0.0
    %5495 = vmatmul.mubr.f32.gmra.mxu0 %v4907
    %v5496 = vpop.f32.mrf.mxu0
    %v5497 = vadd.f32 %v4694, %v5496
    %v5498 = vpop.f32.mrf.mxu0
    %5499 = vmatprep.mubr.f32.mxu0 0.0
    %5500 = vmatmul.mubr.f32.gmra.mxu0 %v4910
    %v5501 = vpop.f32.mrf.mxu0
    %v5502 = vadd.f32 %v4694, %v5501
    %v5503 = vpop.f32.mrf.mxu0
    %5504 = vmatprep.mubr.f32.mxu0 0.0
    %5505 = vmatmul.mubr.f32.gmra.mxu0 %v4913
    %v5506 = vpop.f32.mrf.mxu0
    %v5507 = vadd.f32 %v4694, %v5506
    %v5508 = vpop.f32.mrf.mxu0
    %5509 = vmatprep.mubr.f32.mxu0 0.0
    %5510 = vmatmul.mubr.f32.gmra.mxu0 %v4916
    %v5511 = vpop.f32.mrf.mxu0
    %v5512 = vadd.f32 %v4694, %v5511
    %v5513 = vpop.f32.mrf.mxu0
    %5514 = vmatprep.mubr.f32.mxu0 0.0
    %5515 = vmatmul.mubr.f32.gmra.mxu0 %v4919
    %v5516 = vpop.f32.mrf.mxu0
    %v5517 = vadd.f32 %v4694, %v5516
    %v5518 = vpop.f32.mrf.mxu0
    %5519 = vmatprep.mubr.f32.mxu0 0.0
    %5520 = vmatmul.mubr.f32.gmra.mxu0 %v4922
    %v5521 = vpop.f32.mrf.mxu0
    %v5522 = vadd.f32 %v4694, %v5521
    %v5523 = vpop.f32.mrf.mxu0
    %5524 = vmatprep.mubr.f32.mxu0 0.0
    %5525 = vmatmul.mubr.f32.gmra.mxu0 %v4925
    %v5526 = vpop.f32.mrf.mxu0
    %v5527 = vadd.f32 %v4694, %v5526
    %v5528 = vpop.f32.mrf.mxu0
    %5529 = vmatprep.mubr.f32.mxu0 0.0
    %5530 = vmatmul.mubr.f32.gmra.mxu0 %v4928
    %v5531 = vpop.f32.mrf.mxu0
    %v5532 = vadd.f32 %v4694, %v5531
    %v5533 = vpop.f32.mrf.mxu0
    %5534 = vmatprep.mubr.f32.mxu0 0.0
    %5535 = vmatmul.mubr.f32.gmra.mxu0 %v4931
    %v5536 = vpop.f32.mrf.mxu0
    %v5537 = vadd.f32 %v4694, %v5536
    %v5538 = vpop.f32.mrf.mxu0
    %5539 = vmatprep.mubr.f32.mxu0 0.0
    %5540 = vmatmul.mubr.f32.gmra.mxu0 %v4934
    %v5541 = vpop.f32.mrf.mxu0
    %v5542 = vadd.f32 %v4694, %v5541
    %v5543 = vpop.f32.mrf.mxu0
    %5544 = vmatprep.mubr.f32.mxu0 0.0
    %5545 = vmatmul.mubr.f32.gmra.mxu0 %v4937
    %v5546 = vpop.f32.mrf.mxu0
    %v5547 = vadd.f32 %v4694, %v5546
    %v5548 = vpop.f32.mrf.mxu0
    %5549 = vmatprep.mubr.f32.mxu0 0.0
    %5550 = vmatmul.mubr.f32.gmra.mxu0 %v4940
    %v5551 = vpop.f32.mrf.mxu0
    %v5552 = vadd.f32 %v4694, %v5551
    %v5553 = vpop.f32.mrf.mxu0
    %5554 = vmatprep.mubr.f32.mxu0 0.0
    %5555 = vmatmul.mubr.f32.gmra.mxu0 %v4943
    %v5556 = vpop.f32.mrf.mxu0
    %v5557 = vadd.f32 %v4694, %v5556
    %v5558 = vpop.f32.mrf.mxu0
    %5559 = vmatprep.mubr.f32.mxu0 0.0
    %5560 = vmatmul.mubr.f32.gmra.mxu0 %v4946
    %v5561 = vpop.f32.mrf.mxu0
    %v5562 = vadd.f32 %v4694, %v5561
    %v5563 = vpop.f32.mrf.mxu0
    %5564 = vmatprep.mubr.f32.mxu0 0.0
    %5565 = vmatmul.mubr.f32.gmra.mxu0 %v4949
    %v5566 = vpop.f32.mrf.mxu0
    %v5567 = vadd.f32 %v4694, %v5566
    %v5568 = vpop.f32.mrf.mxu0
    %5569 = vmatprep.mubr.f32.mxu0 0.0
    %5570 = vmatmul.mubr.f32.gmra.mxu0 %v4952
    %v5571 = vpop.f32.mrf.mxu0
    %v5572 = vadd.f32 %v4694, %v5571
    %v5573 = vpop.f32.mrf.mxu0
    %5574 = vmatprep.mubr.f32.mxu0 0.0
    %5575 = vmatmul.mubr.f32.gmra.mxu0 %v4955
    %v5576 = vpop.f32.mrf.mxu0
    %v5577 = vadd.f32 %v4694, %v5576
    %v5578 = vpop.f32.mrf.mxu0
    %5579 = vmatprep.mubr.f32.mxu0 0.0
    %5580 = vmatmul.mubr.f32.gmra.mxu0 %v4958
    %v5581 = vpop.f32.mrf.mxu0
    %v5582 = vadd.f32 %v4694, %v5581
    %v5583 = vpop.f32.mrf.mxu0
    %5584 = vmatprep.mubr.f32.mxu0 0.0
    %5585 = vmatmul.mubr.f32.gmra.mxu0 %v4961
    %v5586 = vpop.f32.mrf.mxu0
    %v5587 = vadd.f32 %v4694, %v5586
    %v5588 = vpop.f32.mrf.mxu0
    %5589 = vmatprep.mubr.f32.mxu0 0.0
    %5590 = vmatmul.mubr.f32.gmra.mxu0 %v4964
    %v5591 = vpop.f32.mrf.mxu0
    %v5592 = vadd.f32 %v4694, %v5591
    %v5593 = vpop.f32.mrf.mxu0
    %5594 = vmatprep.mubr.f32.mxu0 0.0
    %5595 = vmatmul.mubr.f32.gmra.mxu0 %v4967
    %v5596 = vpop.f32.mrf.mxu0
    %v5597 = vadd.f32 %v4694, %v5596
    %v5598 = vpop.f32.mrf.mxu0
    %5599 = vmatprep.mubr.f32.mxu0 0.0
    %5600 = vmatmul.mubr.f32.gmra.mxu0 %v4970
    %v5601 = vpop.f32.mrf.mxu0
    %v5602 = vadd.f32 %v4694, %v5601
    %v5603 = vpop.f32.mrf.mxu0
    %5604 = vmatprep.mubr.f32.mxu0 0.0
    %5605 = vmatmul.mubr.f32.gmra.mxu0 %v4973
    %v5606 = vpop.f32.mrf.mxu0
    %v5607 = vadd.f32 %v4694, %v5606
    %v5608 = vpop.f32.mrf.mxu0
    %5609 = vmatprep.mubr.f32.mxu0 0.0
    %5610 = vmatmul.mubr.f32.gmra.mxu0 %v4976
    %v5611 = vpop.f32.mrf.mxu0
    %v5612 = vadd.f32 %v4694, %v5611
    %v5613 = vpop.f32.mrf.mxu0
    %5614 = vmatprep.mubr.f32.mxu0 0.0
    %5615 = vmatmul.mubr.f32.gmra.mxu0 %v4979
    %v5616 = vpop.f32.mrf.mxu0
    %v5617 = vadd.f32 %v4694, %v5616
    %v5618 = vpop.f32.mrf.mxu0
    %5619 = vmatprep.mubr.f32.mxu0 0.0
    %5620 = vmatmul.mubr.f32.gmra.mxu0 %v4982
    %v5621 = vpop.f32.mrf.mxu0
    %v5622 = vadd.f32 %v4694, %v5621
    %v5623 = vpop.f32.mrf.mxu0
    %5624 = vmatprep.mubr.f32.mxu0 0.0
    %5625 = vmatmul.mubr.f32.gmra.mxu0 %v4985
    %v5626 = vpop.f32.mrf.mxu0
    %v5627 = vadd.f32 %v4694, %v5626
    %v5628 = vpop.f32.mrf.mxu0
    %5629 = vmatprep.mubr.f32.mxu0 0.0
    %5630 = vmatmul.mubr.f32.gmra.mxu0 %v4988
    %v5631 = vpop.f32.mrf.mxu0
    %v5632 = vadd.f32 %v4694, %v5631
    %v5633 = vpop.f32.mrf.mxu0
    %5634 = vmatprep.mubr.f32.mxu0 0.0
    %5635 = vmatmul.mubr.f32.gmra.mxu0 %v4991
    %v5636 = vpop.f32.mrf.mxu0
    %v5637 = vadd.f32 %v4694, %v5636
    %v5638 = vpop.f32.mrf.mxu0
    %5639 = vmatprep.mubr.f32.mxu0 0.0
    %5640 = vmatmul.mubr.f32.gmra.mxu0 %v4994
    %v5641 = vpop.f32.mrf.mxu0
    %v5642 = vadd.f32 %v4694, %v5641
    %v5643 = vpop.f32.mrf.mxu0
    %5644 = vmatprep.mubr.f32.mxu0 0.0
    %5645 = vmatmul.mubr.f32.gmra.mxu0 %v4997
    %v5646 = vpop.f32.mrf.mxu0
    %v5647 = vadd.f32 %v4694, %v5646
    %v5648 = vpop.f32.mrf.mxu0
    %5649 = vmatprep.mubr.f32.mxu0 0.0
    %5650 = vmatmul.mubr.f32.gmra.mxu0 %v5000
    %v5651 = vpop.f32.mrf.mxu0
    %v5652 = vadd.f32 %v4694, %v5651
    %v5653 = vpop.f32.mrf.mxu0
    %5654 = vmatprep.mubr.f32.mxu0 0.0
    %5655 = vmatmul.mubr.f32.gmra.mxu0 %v5003
    %v5656 = vpop.f32.mrf.mxu0
    %v5657 = vadd.f32 %v4694, %v5656
    %v5658 = vpop.f32.mrf.mxu0
    %5659 = vmatprep.mubr.f32.mxu0 0.0
    %5660 = vmatmul.mubr.f32.gmra.mxu0 %v5006
    %v5661 = vpop.f32.mrf.mxu0
    %v5662 = vadd.f32 %v4694, %v5661
    %v5663 = vpop.f32.mrf.mxu0
    %5664 = vmatprep.mubr.f32.mxu0 0.0
    %5665 = vmatmul.mubr.f32.gmra.mxu0 %v5009
    %v5666 = vpop.f32.mrf.mxu0
    %v5667 = vadd.f32 %v4694, %v5666
    %v5668 = vpop.f32.mrf.mxu0
    %5669 = vmatprep.mubr.f32.mxu0 0.0
    %5670 = vmatmul.mubr.f32.gmra.mxu0 %v5012
    %v5671 = vpop.f32.mrf.mxu0
    %v5672 = vadd.f32 %v4694, %v5671
    %v5673 = vpop.f32.mrf.mxu0
    %5674 = vmatprep.mubr.f32.mxu0 0.0
    %5675 = vmatmul.mubr.f32.gmra.mxu0 %v5015
    %v5676 = vpop.f32.mrf.mxu0
    %v5677 = vadd.f32 %v4694, %v5676
    %v5678 = vpop.f32.mrf.mxu0
    %5679 = vmatprep.mubr.f32.mxu0 0.0
    %5680 = vmatmul.mubr.f32.gmra.mxu0 %v5018
    %v5681 = vpop.f32.mrf.mxu0
    %v5682 = vadd.f32 %v4694, %v5681
    %v5683 = vpop.f32.mrf.mxu0
    %5684 = vmatprep.mubr.f32.mxu0 0.0
    %5685 = vmatmul.mubr.f32.gmra.mxu0 %v5021
    %v5686 = vpop.f32.mrf.mxu0
    %v5687 = vadd.f32 %v4694, %v5686
    %v5688 = vpop.f32.mrf.mxu0
    %5689 = vmatprep.mubr.f32.mxu0 0.0
    %5690 = vmatmul.mubr.f32.gmra.mxu0 %v5024
    %v5691 = vpop.f32.mrf.mxu0
    %v5692 = vadd.f32 %v4694, %v5691
    %v5693 = vpop.f32.mrf.mxu0
    %5694 = vmatprep.mubr.f32.mxu0 0.0
    %5695 = vmatmul.mubr.f32.gmra.mxu0 %v5027
    %v5696 = vpop.f32.mrf.mxu0
    %v5697 = vadd.f32 %v4694, %v5696
    %v5698 = vpop.f32.mrf.mxu0
    %5699 = vmatprep.mubr.f32.mxu0 0.0
    %5700 = vmatmul.mubr.f32.gmra.mxu0 %v5030
    %v5701 = vpop.f32.mrf.mxu0
    %v5702 = vadd.f32 %v4694, %v5701
    %v5703 = vpop.f32.mrf.mxu0
    %5704 = vmatprep.mubr.f32.mxu0 0.0
    %5705 = vmatmul.mubr.f32.gmra.mxu0 %v5033
    %v5706 = vpop.f32.mrf.mxu0
    %v5707 = vadd.f32 %v4694, %v5706
    %v5708 = vpop.f32.mrf.mxu0
    %5709 = vmatprep.mubr.f32.mxu0 0.0
    %5710 = vmatmul.mubr.f32.gmra.mxu0 %v5036
    %v5711 = vpop.f32.mrf.mxu0
    %v5712 = vadd.f32 %v4694, %v5711
    %v5713 = vpop.f32.mrf.mxu0
    %5714 = vmatprep.mubr.f32.mxu0 0.0
    %5715 = vmatmul.mubr.f32.gmra.mxu0 %v5039
    %v5716 = vpop.f32.mrf.mxu0
    %v5717 = vadd.f32 %v4694, %v5716
    %v5718 = vpop.f32.mrf.mxu0
    %5719 = vmatprep.mubr.f32.mxu0 0.0
    %5720 = vmatmul.mubr.f32.gmra.mxu0 %v5042
    %v5721 = vpop.f32.mrf.mxu0
    %v5722 = vadd.f32 %v4694, %v5721
    %v5723 = vpop.f32.mrf.mxu0
    %5724 = vmatprep.mubr.f32.mxu0 0.0
    %5725 = vmatmul.mubr.f32.gmra.mxu0 %v5045
    %v5726 = vpop.f32.mrf.mxu0
    %v5727 = vadd.f32 %v4694, %v5726
    %v5728 = vpop.f32.mrf.mxu0
    %5729 = vmatprep.mubr.f32.mxu0 0.0
    %5730 = vmatmul.mubr.f32.gmra.mxu0 %v5048
    %v5731 = vpop.f32.mrf.mxu0
    %v5732 = vadd.f32 %v4694, %v5731
    %v5733 = vpop.f32.mrf.mxu0
    %5734 = vmatprep.mubr.f32.mxu0 0.0
    %5735 = vmatmul.mubr.f32.gmra.mxu0 %v5051
    %v5736 = vpop.f32.mrf.mxu0
    %v5737 = vadd.f32 %v4694, %v5736
    %v5738 = vpop.f32.mrf.mxu0
    %5739 = vmatprep.mubr.f32.mxu0 0.0
    %5740 = vmatmul.mubr.f32.gmra.mxu0 %v5054
    %v5741 = vpop.f32.mrf.mxu0
    %v5742 = vadd.f32 %v4694, %v5741
    %v5743 = vpop.f32.mrf.mxu0
    %5744 = vmatprep.mubr.f32.mxu0 0.0
    %5745 = vmatmul.mubr.f32.gmra.mxu0 %v5057
    %v5746 = vpop.f32.mrf.mxu0
    %v5747 = vadd.f32 %v4694, %v5746
    %v5748 = vpop.f32.mrf.mxu0
    %5749 = vmatprep.mubr.f32.mxu0 0.0
    %5750 = vmatmul.mubr.f32.gmra.mxu0 %v5060
    %v5751 = vpop.f32.mrf.mxu0
    %v5752 = vadd.f32 %v4694, %v5751
    %v5753 = vpop.f32.mrf.mxu0
    %5754 = vmatprep.mubr.f32.mxu0 0.0
    %5755 = vmatmul.mubr.f32.gmra.mxu0 %v5063
    %v5756 = vpop.f32.mrf.mxu0
    %v5757 = vadd.f32 %v4694, %v5756
    %v5758 = vpop.f32.mrf.mxu0
    %5759 = vmatprep.mubr.f32.mxu0 0.0
    %5760 = vmatmul.mubr.f32.gmra.mxu0 %v5066
    %v5761 = vpop.f32.mrf.mxu0
    %v5762 = vadd.f32 %v4694, %v5761
    %v5763 = vpop.f32.mrf.mxu0
    %5764 = vmatprep.mubr.f32.mxu0 0.0
    %5765 = vmatmul.mubr.f32.gmra.mxu0 %v5069
    %v5766 = vpop.f32.mrf.mxu0
    %v5767 = vadd.f32 %v4694, %v5766
    %v5768 = vpop.f32.mrf.mxu0
    %5769 = vmatprep.mubr.f32.mxu0 0.0
    %5770 = vmatmul.mubr.f32.gmra.mxu0 %v5072
    %v5771 = vpop.f32.mrf.mxu0
    %v5772 = vadd.f32 %v4694, %v5771
    %v5773 = vpop.f32.mrf.mxu0
    %5774 = vmatprep.mubr.f32.mxu0 0.0
    %5775 = vmatmul.mubr.f32.gmra.mxu0 %v5075
    %v5776 = vpop.f32.mrf.mxu0
    %v5777 = vadd.f32 %v4694, %v5776
    %v5778 = vpop.f32.mrf.mxu0
    %5779 = vmatprep.mubr.f32.mxu0 0.0
    %5780 = vmatmul.mubr.f32.gmra.mxu0 %v5078
    %v5781 = vpop.f32.mrf.mxu0
    %v5782 = vadd.f32 %v4694, %v5781
    %v5783 = vpop.f32.mrf.mxu0
    %5784 = vdwg.mxu0
    %v5785 = vmax.f32 %v5147, 0.0
    %v5786 = vmax.f32 %v5152, 0.0
    %v5787 = vmax.f32 %v5157, 0.0
    %v5788 = vmax.f32 %v5162, 0.0
    %v5789 = vmax.f32 %v5167, 0.0
    %v5790 = vmax.f32 %v5172, 0.0
    %v5791 = vmax.f32 %v5177, 0.0
    %v5792 = vmax.f32 %v5182, 0.0
    %v5793 = vmax.f32 %v5187, 0.0
    %v5794 = vmax.f32 %v5192, 0.0
    %v5795 = vmax.f32 %v5197, 0.0
    %v5796 = vmax.f32 %v5202, 0.0
    %v5797 = vmax.f32 %v5207, 0.0
    %v5798 = vmax.f32 %v5212, 0.0
    %v5799 = vmax.f32 %v5217, 0.0
    %v5800 = vmax.f32 %v5222, 0.0
    %v5801 = vmax.f32 %v5227, 0.0
    %v5802 = vmax.f32 %v5232, 0.0
    %v5803 = vmax.f32 %v5237, 0.0
    %v5804 = vmax.f32 %v5242, 0.0
    %v5805 = vmax.f32 %v5247, 0.0
    %v5806 = vmax.f32 %v5252, 0.0
    %v5807 = vmax.f32 %v5257, 0.0
    %v5808 = vmax.f32 %v5262, 0.0
    %v5809 = vmax.f32 %v5267, 0.0
    %v5810 = vmax.f32 %v5272, 0.0
    %v5811 = vmax.f32 %v5277, 0.0
    %v5812 = vmax.f32 %v5282, 0.0
    %v5813 = vmax.f32 %v5287, 0.0
    %v5814 = vmax.f32 %v5292, 0.0
    %v5815 = vmax.f32 %v5297, 0.0
    %v5816 = vmax.f32 %v5302, 0.0
    %v5817 = vmax.f32 %v5307, 0.0
    %v5818 = vmax.f32 %v5312, 0.0
    %v5819 = vmax.f32 %v5317, 0.0
    %v5820 = vmax.f32 %v5322, 0.0
    %v5821 = vmax.f32 %v5327, 0.0
    %v5822 = vmax.f32 %v5332, 0.0
    %v5823 = vmax.f32 %v5337, 0.0
    %v5824 = vmax.f32 %v5342, 0.0
    %v5825 = vmax.f32 %v5347, 0.0
    %v5826 = vmax.f32 %v5352, 0.0
    %v5827 = vmax.f32 %v5357, 0.0
    %v5828 = vmax.f32 %v5362, 0.0
    %v5829 = vmax.f32 %v5367, 0.0
    %v5830 = vmax.f32 %v5372, 0.0
    %v5831 = vmax.f32 %v5377, 0.0
    %v5832 = vmax.f32 %v5382, 0.0
    %v5833 = vmax.f32 %v5387, 0.0
    %v5834 = vmax.f32 %v5392, 0.0
    %v5835 = vmax.f32 %v5397, 0.0
    %v5836 = vmax.f32 %v5402, 0.0
    %v5837 = vmax.f32 %v5407, 0.0
    %v5838 = vmax.f32 %v5412, 0.0
    %v5839 = vmax.f32 %v5417, 0.0
    %v5840 = vmax.f32 %v5422, 0.0
    %v5841 = vmax.f32 %v5427, 0.0
    %v5842 = vmax.f32 %v5432, 0.0
    %v5843 = vmax.f32 %v5437, 0.0
    %v5844 = vmax.f32 %v5442, 0.0
    %v5845 = vmax.f32 %v5447, 0.0
    %v5846 = vmax.f32 %v5452, 0.0
    %v5847 = vmax.f32 %v5457, 0.0
    %v5848 = vmax.f32 %v5462, 0.0
    %v5849 = vmax.f32 %v5467, 0.0
    %v5850 = vmax.f32 %v5472, 0.0
    %v5851 = vmax.f32 %v5477, 0.0
    %v5852 = vmax.f32 %v5482, 0.0
    %v5853 = vmax.f32 %v5487, 0.0
    %v5854 = vmax.f32 %v5492, 0.0
    %v5855 = vmax.f32 %v5497, 0.0
    %v5856 = vmax.f32 %v5502, 0.0
    %v5857 = vmax.f32 %v5507, 0.0
    %v5858 = vmax.f32 %v5512, 0.0
    %v5859 = vmax.f32 %v5517, 0.0
    %v5860 = vmax.f32 %v5522, 0.0
    %v5861 = vmax.f32 %v5527, 0.0
    %v5862 = vmax.f32 %v5532, 0.0
    %v5863 = vmax.f32 %v5537, 0.0
    %v5864 = vmax.f32 %v5542, 0.0
    %v5865 = vmax.f32 %v5547, 0.0
    %v5866 = vmax.f32 %v5552, 0.0
    %v5867 = vmax.f32 %v5557, 0.0
    %v5868 = vmax.f32 %v5562, 0.0
    %v5869 = vmax.f32 %v5567, 0.0
    %v5870 = vmax.f32 %v5572, 0.0
    %v5871 = vmax.f32 %v5577, 0.0
    %v5872 = vmax.f32 %v5582, 0.0
    %v5873 = vmax.f32 %v5587, 0.0
    %v5874 = vmax.f32 %v5592, 0.0
    %v5875 = vmax.f32 %v5597, 0.0
    %v5876 = vmax.f32 %v5602, 0.0
    %v5877 = vmax.f32 %v5607, 0.0
    %v5878 = vmax.f32 %v5612, 0.0
    %v5879 = vmax.f32 %v5617, 0.0
    %v5880 = vmax.f32 %v5622, 0.0
    %v5881 = vmax.f32 %v5627, 0.0
    %v5882 = vmax.f32 %v5632, 0.0
    %v5883 = vmax.f32 %v5637, 0.0
    %v5884 = vmax.f32 %v5642, 0.0
    %v5885 = vmax.f32 %v5647, 0.0
    %v5886 = vmax.f32 %v5652, 0.0
    %v5887 = vmax.f32 %v5657, 0.0
    %v5888 = vmax.f32 %v5662, 0.0
    %v5889 = vmax.f32 %v5667, 0.0
    %v5890 = vmax.f32 %v5672, 0.0
    %v5891 = vmax.f32 %v5677, 0.0
    %v5892 = vmax.f32 %v5682, 0.0
    %v5893 = vmax.f32 %v5687, 0.0
    %v5894 = vmax.f32 %v5692, 0.0
    %v5895 = vmax.f32 %v5697, 0.0
    %v5896 = vmax.f32 %v5702, 0.0
    %v5897 = vmax.f32 %v5707, 0.0
    %v5898 = vmax.f32 %v5712, 0.0
    %v5899 = vmax.f32 %v5717, 0.0
    %v5900 = vmax.f32 %v5722, 0.0
    %v5901 = vmax.f32 %v5727, 0.0
    %v5902 = vmax.f32 %v5732, 0.0
    %v5903 = vmax.f32 %v5737, 0.0
    %v5904 = vmax.f32 %v5742, 0.0
    %v5905 = vmax.f32 %v5747, 0.0
    %v5906 = vmax.f32 %v5752, 0.0
    %v5907 = vmax.f32 %v5757, 0.0
    %v5908 = vmax.f32 %v5762, 0.0
    %v5909 = vmax.f32 %v5767, 0.0
    %v5910 = vmax.f32 %v5772, 0.0
    %v5911 = vmax.f32 %v5777, 0.0
    %v5912 = vmax.f32 %v5782, 0.0
    %v5913 = vrot.slane %v5785, 7
    %v5914 = vrot.slane %v5786, 7
    %v5915 = vrot.slane %v5787, 7
    %v5916 = vrot.slane %v5788, 7
    %v5917 = vrot.slane %v5789, 7
    %v5918 = vrot.slane %v5790, 7
    %v5919 = vrot.slane %v5791, 7
    %v5920 = vrot.slane %v5792, 7
    %v5921 = vrot.slane %v5793, 7
    %v5922 = vrot.slane %v5794, 7
    %v5923 = vrot.slane %v5795, 7
    %v5924 = vrot.slane %v5796, 7
    %v5925 = vrot.slane %v5797, 7
    %v5926 = vrot.slane %v5798, 7
    %v5927 = vrot.slane %v5799, 7
    %v5928 = vrot.slane %v5800, 7
    %v5929 = vrot.slane %v5801, 7
    %v5930 = vrot.slane %v5802, 7
    %v5931 = vrot.slane %v5803, 7
    %v5932 = vrot.slane %v5804, 7
    %v5933 = vrot.slane %v5805, 7
    %v5934 = vrot.slane %v5806, 7
    %v5935 = vrot.slane %v5807, 7
    %v5936 = vrot.slane %v5808, 7
    %v5937 = vrot.slane %v5809, 7
    %v5938 = vrot.slane %v5810, 7
    %v5939 = vrot.slane %v5811, 7
    %v5940 = vrot.slane %v5812, 7
    %v5941 = vrot.slane %v5813, 7
    %v5942 = vrot.slane %v5814, 7
    %v5943 = vrot.slane %v5815, 7
    %v5944 = vrot.slane %v5816, 7
    %v5945 = vrot.slane %v5817, 7
    %v5946 = vrot.slane %v5818, 7
    %v5947 = vrot.slane %v5819, 7
    %v5948 = vrot.slane %v5820, 7
    %v5949 = vrot.slane %v5821, 7
    %v5950 = vrot.slane %v5822, 7
    %v5951 = vrot.slane %v5823, 7
    %v5952 = vrot.slane %v5824, 7
    %v5953 = vrot.slane %v5825, 7
    %v5954 = vrot.slane %v5826, 7
    %v5955 = vrot.slane %v5827, 7
    %v5956 = vrot.slane %v5828, 7
    %v5957 = vrot.slane %v5829, 7
    %v5958 = vrot.slane %v5830, 7
    %v5959 = vrot.slane %v5831, 7
    %v5960 = vrot.slane %v5832, 7
    %v5961 = vrot.slane %v5833, 7
    %v5962 = vrot.slane %v5834, 7
    %v5963 = vrot.slane %v5835, 7
    %v5964 = vrot.slane %v5836, 7
    %v5965 = vrot.slane %v5837, 7
    %v5966 = vrot.slane %v5838, 7
    %v5967 = vrot.slane %v5839, 7
    %v5968 = vrot.slane %v5840, 7
    %v5969 = vrot.slane %v5841, 7
    %v5970 = vrot.slane %v5842, 7
    %v5971 = vrot.slane %v5843, 7
    %v5972 = vrot.slane %v5844, 7
    %v5973 = vrot.slane %v5845, 7
    %v5974 = vrot.slane %v5846, 7
    %v5975 = vrot.slane %v5847, 7
    %v5976 = vrot.slane %v5848, 7
    %v5977 = vrot.slane %v5849, 7
    %v5978 = vrot.slane %v5850, 7
    %v5979 = vrot.slane %v5851, 7
    %v5980 = vrot.slane %v5852, 7
    %v5981 = vrot.slane %v5853, 7
    %v5982 = vrot.slane %v5854, 7
    %v5983 = vrot.slane %v5855, 7
    %v5984 = vrot.slane %v5856, 7
    %v5985 = vrot.slane %v5857, 7
    %v5986 = vrot.slane %v5858, 7
    %v5987 = vrot.slane %v5859, 7
    %v5988 = vrot.slane %v5860, 7
    %v5989 = vrot.slane %v5861, 7
    %v5990 = vrot.slane %v5862, 7
    %v5991 = vrot.slane %v5863, 7
    %v5992 = vrot.slane %v5864, 7
    %v5993 = vrot.slane %v5865, 7
    %v5994 = vrot.slane %v5866, 7
    %v5995 = vrot.slane %v5867, 7
    %v5996 = vrot.slane %v5868, 7
    %v5997 = vrot.slane %v5869, 7
    %v5998 = vrot.slane %v5870, 7
    %v5999 = vrot.slane %v5871, 7
    %v6000 = vrot.slane %v5872, 7
    %v6001 = vrot.slane %v5873, 7
    %v6002 = vrot.slane %v5874, 7
    %v6003 = vrot.slane %v5875, 7
    %v6004 = vrot.slane %v5876, 7
    %v6005 = vrot.slane %v5877, 7
    %v6006 = vrot.slane %v5878, 7
    %v6007 = vrot.slane %v5879, 7
    %v6008 = vrot.slane %v5880, 7
    %v6009 = vrot.slane %v5881, 7
    %v6010 = vrot.slane %v5882, 7
    %v6011 = vrot.slane %v5883, 7
    %v6012 = vrot.slane %v5884, 7
    %v6013 = vrot.slane %v5885, 7
    %v6014 = vrot.slane %v5886, 7
    %v6015 = vrot.slane %v5887, 7
    %v6016 = vrot.slane %v5888, 7
    %v6017 = vrot.slane %v5889, 7
    %v6018 = vrot.slane %v5890, 7
    %v6019 = vrot.slane %v5891, 7
    %v6020 = vrot.slane %v5892, 7
    %v6021 = vrot.slane %v5893, 7
    %v6022 = vrot.slane %v5894, 7
    %v6023 = vrot.slane %v5895, 7
    %v6024 = vrot.slane %v5896, 7
    %v6025 = vrot.slane %v5897, 7
    %v6026 = vrot.slane %v5898, 7
    %v6027 = vrot.slane %v5899, 7
    %v6028 = vrot.slane %v5900, 7
    %v6029 = vrot.slane %v5901, 7
    %v6030 = vrot.slane %v5902, 7
    %v6031 = vrot.slane %v5903, 7
    %v6032 = vrot.slane %v5904, 7
    %v6033 = vrot.slane %v5905, 7
    %v6034 = vrot.slane %v5906, 7
    %v6035 = vrot.slane %v5907, 7
    %v6036 = vrot.slane %v5908, 7
    %v6037 = vrot.slane %v5909, 7
    %v6038 = vrot.slane %v5910, 7
    %v6039 = vrot.slane %v5911, 7
    %v6040 = vrot.slane %v5912, 7
    %v6041 = vsel %vm2767, %v6039, %v6040
    %v6042 = vsel %vm2767, %v6038, %v6039
    %v6043 = vsel %vm2767, %v6037, %v6038
    %v6044 = vsel %vm2767, %v6036, %v6037
    %v6045 = vsel %vm2767, %v6035, %v6036
    %v6046 = vsel %vm2767, %v6034, %v6035
    %v6047 = vsel %vm2767, %v6033, %v6034
    %v6048 = vsel %vm2767, %v6032, %v6033
    %v6049 = vsel %vm2767, %v6031, %v6032
    %v6050 = vsel %vm2767, %v6030, %v6031
    %v6051 = vsel %vm2767, %v6029, %v6030
    %v6052 = vsel %vm2767, %v6028, %v6029
    %v6053 = vsel %vm2767, %v6027, %v6028
    %v6054 = vsel %vm2767, %v6026, %v6027
    %v6055 = vsel %vm2767, %v6025, %v6026
    %v6056 = vsel %vm2767, %v6024, %v6025
    %v6057 = vsel %vm2767, %v6023, %v6024
    %v6058 = vsel %vm2767, %v6022, %v6023
    %v6059 = vsel %vm2767, %v6021, %v6022
    %v6060 = vsel %vm2767, %v6020, %v6021
    %v6061 = vsel %vm2767, %v6019, %v6020
    %v6062 = vsel %vm2767, %v6018, %v6019
    %v6063 = vsel %vm2767, %v6017, %v6018
    %v6064 = vsel %vm2767, %v6016, %v6017
    %v6065 = vsel %vm2767, %v6015, %v6016
    %v6066 = vsel %vm2767, %v6014, %v6015
    %v6067 = vsel %vm2767, %v6013, %v6014
    %v6068 = vsel %vm2767, %v6012, %v6013
    %v6069 = vsel %vm2767, %v6011, %v6012
    %v6070 = vsel %vm2767, %v6010, %v6011
    %v6071 = vsel %vm2767, %v6009, %v6010
    %v6072 = vsel %vm2767, %v6008, %v6009
    %v6073 = vsel %vm2767, %v6007, %v6008
    %v6074 = vsel %vm2767, %v6006, %v6007
    %v6075 = vsel %vm2767, %v6005, %v6006
    %v6076 = vsel %vm2767, %v6004, %v6005
    %v6077 = vsel %vm2767, %v6003, %v6004
    %v6078 = vsel %vm2767, %v6002, %v6003
    %v6079 = vsel %vm2767, %v6001, %v6002
    %v6080 = vsel %vm2767, %v6000, %v6001
    %v6081 = vsel %vm2767, %v5999, %v6000
    %v6082 = vsel %vm2767, %v5998, %v5999
    %v6083 = vsel %vm2767, %v5997, %v5998
    %v6084 = vsel %vm2767, %v5996, %v5997
    %v6085 = vsel %vm2767, %v5995, %v5996
    %v6086 = vsel %vm2767, %v5994, %v5995
    %v6087 = vsel %vm2767, %v5993, %v5994
    %v6088 = vsel %vm2767, %v5992, %v5993
    %v6089 = vsel %vm2767, %v5991, %v5992
    %v6090 = vsel %vm2767, %v5990, %v5991
    %v6091 = vsel %vm2767, %v5989, %v5990
    %v6092 = vsel %vm2767, %v5988, %v5989
    %v6093 = vsel %vm2767, %v5987, %v5988
    %v6094 = vsel %vm2767, %v5986, %v5987
    %v6095 = vsel %vm2767, %v5985, %v5986
    %v6096 = vsel %vm2767, %v5984, %v5985
    %v6097 = vsel %vm2767, %v5983, %v5984
    %v6098 = vsel %vm2767, %v5982, %v5983
    %v6099 = vsel %vm2767, %v5981, %v5982
    %v6100 = vsel %vm2767, %v5980, %v5981
    %v6101 = vsel %vm2767, %v5979, %v5980
    %v6102 = vsel %vm2767, %v5978, %v5979
    %v6103 = vsel %vm2767, %v5977, %v5978
    %v6104 = vsel %vm2767, %v5976, %v5977
    %v6105 = vsel %vm2767, %v5975, %v5976
    %v6106 = vsel %vm2767, %v5974, %v5975
    %v6107 = vsel %vm2767, %v5973, %v5974
    %v6108 = vsel %vm2767, %v5972, %v5973
    %v6109 = vsel %vm2767, %v5971, %v5972
    %v6110 = vsel %vm2767, %v5970, %v5971
    %v6111 = vsel %vm2767, %v5969, %v5970
    %v6112 = vsel %vm2767, %v5968, %v5969
    %v6113 = vsel %vm2767, %v5967, %v5968
    %v6114 = vsel %vm2767, %v5966, %v5967
    %v6115 = vsel %vm2767, %v5965, %v5966
    %v6116 = vsel %vm2767, %v5964, %v5965
    %v6117 = vsel %vm2767, %v5963, %v5964
    %v6118 = vsel %vm2767, %v5962, %v5963
    %v6119 = vsel %vm2767, %v5961, %v5962
    %v6120 = vsel %vm2767, %v5960, %v5961
    %v6121 = vsel %vm2767, %v5959, %v5960
    %v6122 = vsel %vm2767, %v5958, %v5959
    %v6123 = vsel %vm2767, %v5957, %v5958
    %v6124 = vsel %vm2767, %v5956, %v5957
    %v6125 = vsel %vm2767, %v5955, %v5956
    %v6126 = vsel %vm2767, %v5954, %v5955
    %v6127 = vsel %vm2767, %v5953, %v5954
    %v6128 = vsel %vm2767, %v5952, %v5953
    %v6129 = vsel %vm2767, %v5951, %v5952
    %v6130 = vsel %vm2767, %v5950, %v5951
    %v6131 = vsel %vm2767, %v5949, %v5950
    %v6132 = vsel %vm2767, %v5948, %v5949
    %v6133 = vsel %vm2767, %v5947, %v5948
    %v6134 = vsel %vm2767, %v5946, %v5947
    %v6135 = vsel %vm2767, %v5945, %v5946
    %v6136 = vsel %vm2767, %v5944, %v5945
    %v6137 = vsel %vm2767, %v5943, %v5944
    %v6138 = vsel %vm2767, %v5942, %v5943
    %v6139 = vsel %vm2767, %v5941, %v5942
    %v6140 = vsel %vm2767, %v5940, %v5941
    %v6141 = vsel %vm2767, %v5939, %v5940
    %v6142 = vsel %vm2767, %v5938, %v5939
    %v6143 = vsel %vm2767, %v5937, %v5938
    %v6144 = vsel %vm2767, %v5936, %v5937
    %v6145 = vsel %vm2767, %v5935, %v5936
    %v6146 = vsel %vm2767, %v5934, %v5935
    %v6147 = vsel %vm2767, %v5933, %v5934
    %v6148 = vsel %vm2767, %v5932, %v5933
    %v6149 = vsel %vm2767, %v5931, %v5932
    %v6150 = vsel %vm2767, %v5930, %v5931
    %v6151 = vsel %vm2767, %v5929, %v5930
    %v6152 = vsel %vm2767, %v5928, %v5929
    %v6153 = vsel %vm2767, %v5927, %v5928
    %v6154 = vsel %vm2767, %v5926, %v5927
    %v6155 = vsel %vm2767, %v5925, %v5926
    %v6156 = vsel %vm2767, %v5924, %v5925
    %v6157 = vsel %vm2767, %v5923, %v5924
    %v6158 = vsel %vm2767, %v5922, %v5923
    %v6159 = vsel %vm2767, %v5921, %v5922
    %v6160 = vsel %vm2767, %v5920, %v5921
    %v6161 = vsel %vm2767, %v5919, %v5920
    %v6162 = vsel %vm2767, %v5918, %v5919
    %v6163 = vsel %vm2767, %v5917, %v5918
    %v6164 = vsel %vm2767, %v5916, %v5917
    %v6165 = vsel %vm2767, %v5915, %v5916
    %v6166 = vsel %vm2767, %v5914, %v5915
    %v6167 = vsel %vm2767, %v5913, %v5914
    %v6168 = vsel %vm2767, %v6040, %v5913
    %v6169 = vsel %vm2076, %v6168, 0.0
    %v6170 = vsel %vm2077, %v6167, 0.0
    %v6171 = vsel %vm2078, %v6166, 0.0
    %v6172 = vsel %vm2079, %v6165, 0.0
    %v6173 = vsel %vm2080, %v6164, 0.0
    %v6174 = vsel %vm2081, %v6163, 0.0
    %v6175 = vsel %vm2082, %v6162, 0.0
    %v6176 = vsel %vm2083, %v6161, 0.0
    %v6177 = vsel %vm2084, %v6160, 0.0
    %v6178 = vsel %vm2085, %v6159, 0.0
    %v6179 = vsel %vm2086, %v6158, 0.0
    %v6180 = vsel %vm2087, %v6157, 0.0
    %v6181 = vsel %vm2088, %v6156, 0.0
    %v6182 = vsel %vm2089, %v6155, 0.0
    %v6183 = vsel %vm2090, %v6154, 0.0
    %v6184 = vsel %vm2091, %v6153, 0.0
    %v6185 = vsel %vm2092, %v6152, 0.0
    %v6186 = vsel %vm2093, %v6151, 0.0
    %v6187 = vsel %vm2094, %v6150, 0.0
    %v6188 = vsel %vm2095, %v6149, 0.0
    %v6189 = vsel %vm2096, %v6148, 0.0
    %v6190 = vsel %vm2097, %v6147, 0.0
    %v6191 = vsel %vm2098, %v6146, 0.0
    %v6192 = vsel %vm2099, %v6145, 0.0
    %v6193 = vsel %vm2100, %v6144, 0.0
    %v6194 = vsel %vm2101, %v6143, 0.0
    %v6195 = vsel %vm2102, %v6142, 0.0
    %v6196 = vsel %vm2103, %v6141, 0.0
    %v6197 = vsel %vm2104, %v6140, 0.0
    %v6198 = vsel %vm2105, %v6139, 0.0
    %v6199 = vsel %vm2106, %v6138, 0.0
    %v6200 = vsel %vm2107, %v6137, 0.0
    %v6201 = vsel %vm2108, %v6136, 0.0
    %v6202 = vsel %vm2109, %v6135, 0.0
    %v6203 = vsel %vm2110, %v6134, 0.0
    %v6204 = vsel %vm2111, %v6133, 0.0
    %v6205 = vsel %vm2112, %v6132, 0.0
    %v6206 = vsel %vm2113, %v6131, 0.0
    %v6207 = vsel %vm2114, %v6130, 0.0
    %v6208 = vsel %vm2115, %v6129, 0.0
    %v6209 = vsel %vm2116, %v6128, 0.0
    %v6210 = vsel %vm2117, %v6127, 0.0
    %v6211 = vsel %vm2118, %v6126, 0.0
    %v6212 = vsel %vm2119, %v6125, 0.0
    %v6213 = vsel %vm2120, %v6124, 0.0
    %v6214 = vsel %vm2121, %v6123, 0.0
    %v6215 = vsel %vm2122, %v6122, 0.0
    %v6216 = vsel %vm2123, %v6121, 0.0
    %v6217 = vsel %vm2124, %v6120, 0.0
    %v6218 = vsel %vm2125, %v6119, 0.0
    %v6219 = vsel %vm2126, %v6118, 0.0
    %v6220 = vsel %vm2127, %v6117, 0.0
    %v6221 = vsel %vm2128, %v6116, 0.0
    %v6222 = vsel %vm2129, %v6115, 0.0
    %v6223 = vsel %vm2130, %v6114, 0.0
    %v6224 = vsel %vm2131, %v6113, 0.0
    %v6225 = vsel %vm2132, %v6112, 0.0
    %v6226 = vsel %vm2133, %v6111, 0.0
    %v6227 = vsel %vm2134, %v6110, 0.0
    %v6228 = vsel %vm2135, %v6109, 0.0
    %v6229 = vsel %vm2136, %v6108, 0.0
    %v6230 = vsel %vm2137, %v6107, 0.0
    %v6231 = vsel %vm2138, %v6106, 0.0
    %v6232 = vsel %vm2139, %v6105, 0.0
    %v6233 = vsel %vm2140, %v6104, 0.0
    %v6234 = vsel %vm2141, %v6103, 0.0
    %v6235 = vsel %vm2142, %v6102, 0.0
    %v6236 = vsel %vm2143, %v6101, 0.0
    %v6237 = vsel %vm2144, %v6100, 0.0
    %v6238 = vsel %vm2145, %v6099, 0.0
    %v6239 = vsel %vm2146, %v6098, 0.0
    %v6240 = vsel %vm2147, %v6097, 0.0
    %v6241 = vsel %vm2148, %v6096, 0.0
    %v6242 = vsel %vm2149, %v6095, 0.0
    %v6243 = vsel %vm2150, %v6094, 0.0
    %v6244 = vsel %vm2151, %v6093, 0.0
    %v6245 = vsel %vm2152, %v6092, 0.0
    %v6246 = vsel %vm2153, %v6091, 0.0
    %v6247 = vsel %vm2154, %v6090, 0.0
    %v6248 = vsel %vm2155, %v6089, 0.0
    %v6249 = vsel %vm2156, %v6088, 0.0
    %v6250 = vsel %vm2157, %v6087, 0.0
    %v6251 = vsel %vm2158, %v6086, 0.0
    %v6252 = vsel %vm2159, %v6085, 0.0
    %v6253 = vsel %vm2160, %v6084, 0.0
    %v6254 = vsel %vm2161, %v6083, 0.0
    %v6255 = vsel %vm2162, %v6082, 0.0
    %v6256 = vsel %vm2163, %v6081, 0.0
    %v6257 = vsel %vm2164, %v6080, 0.0
    %v6258 = vsel %vm2165, %v6079, 0.0
    %v6259 = vsel %vm2166, %v6078, 0.0
    %v6260 = vsel %vm2167, %v6077, 0.0
    %v6261 = vsel %vm2168, %v6076, 0.0
    %v6262 = vsel %vm2169, %v6075, 0.0
    %v6263 = vsel %vm2170, %v6074, 0.0
    %v6264 = vsel %vm2171, %v6073, 0.0
    %v6265 = vsel %vm2172, %v6072, 0.0
    %v6266 = vsel %vm2173, %v6071, 0.0
    %v6267 = vsel %vm2174, %v6070, 0.0
    %v6268 = vsel %vm2175, %v6069, 0.0
    %v6269 = vsel %vm2176, %v6068, 0.0
    %v6270 = vsel %vm2177, %v6067, 0.0
    %v6271 = vsel %vm2178, %v6066, 0.0
    %v6272 = vsel %vm2179, %v6065, 0.0
    %v6273 = vsel %vm2180, %v6064, 0.0
    %v6274 = vsel %vm2181, %v6063, 0.0
    %v6275 = vsel %vm2182, %v6062, 0.0
    %v6276 = vsel %vm2183, %v6061, 0.0
    %v6277 = vsel %vm2184, %v6060, 0.0
    %v6278 = vsel %vm2185, %v6059, 0.0
    %v6279 = vsel %vm2186, %v6058, 0.0
    %v6280 = vsel %vm2187, %v6057, 0.0
    %v6281 = vsel %vm2188, %v6056, 0.0
    %v6282 = vsel %vm2189, %v6055, 0.0
    %v6283 = vsel %vm2190, %v6054, 0.0
    %v6284 = vsel %vm2191, %v6053, 0.0
    %v6285 = vsel %vm2192, %v6052, 0.0
    %v6286 = vsel %vm2193, %v6051, 0.0
    %v6287 = vsel %vm2194, %v6050, 0.0
    %v6288 = vsel %vm2195, %v6049, 0.0
    %v6289 = vsel %vm2196, %v6048, 0.0
    %v6290 = vsel %vm2197, %v6047, 0.0
    %v6291 = vsel %vm2198, %v6046, 0.0
    %v6292 = vsel %vm2199, %v6045, 0.0
    %v6293 = vsel %vm2200, %v6044, 0.0
    %v6294 = vsel %vm2201, %v6043, 0.0
    %v6295 = vsel %vm2202, %v6042, 0.0
    %v6296 = vsel %vm2203, %v6041, 0.0
    %v6297 = vrot.slane %v5785, 1
    %v6298 = vrot.slane %v5786, 1
    %v6299 = vrot.slane %v5787, 1
    %v6300 = vrot.slane %v5788, 1
    %v6301 = vrot.slane %v5789, 1
    %v6302 = vrot.slane %v5790, 1
    %v6303 = vrot.slane %v5791, 1
    %v6304 = vrot.slane %v5792, 1
    %v6305 = vrot.slane %v5793, 1
    %v6306 = vrot.slane %v5794, 1
    %v6307 = vrot.slane %v5795, 1
    %v6308 = vrot.slane %v5796, 1
    %v6309 = vrot.slane %v5797, 1
    %v6310 = vrot.slane %v5798, 1
    %v6311 = vrot.slane %v5799, 1
    %v6312 = vrot.slane %v5800, 1
    %v6313 = vrot.slane %v5801, 1
    %v6314 = vrot.slane %v5802, 1
    %v6315 = vrot.slane %v5803, 1
    %v6316 = vrot.slane %v5804, 1
    %v6317 = vrot.slane %v5805, 1
    %v6318 = vrot.slane %v5806, 1
    %v6319 = vrot.slane %v5807, 1
    %v6320 = vrot.slane %v5808, 1
    %v6321 = vrot.slane %v5809, 1
    %v6322 = vrot.slane %v5810, 1
    %v6323 = vrot.slane %v5811, 1
    %v6324 = vrot.slane %v5812, 1
    %v6325 = vrot.slane %v5813, 1
    %v6326 = vrot.slane %v5814, 1
    %v6327 = vrot.slane %v5815, 1
    %v6328 = vrot.slane %v5816, 1
    %v6329 = vrot.slane %v5817, 1
    %v6330 = vrot.slane %v5818, 1
    %v6331 = vrot.slane %v5819, 1
    %v6332 = vrot.slane %v5820, 1
    %v6333 = vrot.slane %v5821, 1
    %v6334 = vrot.slane %v5822, 1
    %v6335 = vrot.slane %v5823, 1
    %v6336 = vrot.slane %v5824, 1
    %v6337 = vrot.slane %v5825, 1
    %v6338 = vrot.slane %v5826, 1
    %v6339 = vrot.slane %v5827, 1
    %v6340 = vrot.slane %v5828, 1
    %v6341 = vrot.slane %v5829, 1
    %v6342 = vrot.slane %v5830, 1
    %v6343 = vrot.slane %v5831, 1
    %v6344 = vrot.slane %v5832, 1
    %v6345 = vrot.slane %v5833, 1
    %v6346 = vrot.slane %v5834, 1
    %v6347 = vrot.slane %v5835, 1
    %v6348 = vrot.slane %v5836, 1
    %v6349 = vrot.slane %v5837, 1
    %v6350 = vrot.slane %v5838, 1
    %v6351 = vrot.slane %v5839, 1
    %v6352 = vrot.slane %v5840, 1
    %v6353 = vrot.slane %v5841, 1
    %v6354 = vrot.slane %v5842, 1
    %v6355 = vrot.slane %v5843, 1
    %v6356 = vrot.slane %v5844, 1
    %v6357 = vrot.slane %v5845, 1
    %v6358 = vrot.slane %v5846, 1
    %v6359 = vrot.slane %v5847, 1
    %v6360 = vrot.slane %v5848, 1
    %v6361 = vrot.slane %v5849, 1
    %v6362 = vrot.slane %v5850, 1
    %v6363 = vrot.slane %v5851, 1
    %v6364 = vrot.slane %v5852, 1
    %v6365 = vrot.slane %v5853, 1
    %v6366 = vrot.slane %v5854, 1
    %v6367 = vrot.slane %v5855, 1
    %v6368 = vrot.slane %v5856, 1
    %v6369 = vrot.slane %v5857, 1
    %v6370 = vrot.slane %v5858, 1
    %v6371 = vrot.slane %v5859, 1
    %v6372 = vrot.slane %v5860, 1
    %v6373 = vrot.slane %v5861, 1
    %v6374 = vrot.slane %v5862, 1
    %v6375 = vrot.slane %v5863, 1
    %v6376 = vrot.slane %v5864, 1
    %v6377 = vrot.slane %v5865, 1
    %v6378 = vrot.slane %v5866, 1
    %v6379 = vrot.slane %v5867, 1
    %v6380 = vrot.slane %v5868, 1
    %v6381 = vrot.slane %v5869, 1
    %v6382 = vrot.slane %v5870, 1
    %v6383 = vrot.slane %v5871, 1
    %v6384 = vrot.slane %v5872, 1
    %v6385 = vrot.slane %v5873, 1
    %v6386 = vrot.slane %v5874, 1
    %v6387 = vrot.slane %v5875, 1
    %v6388 = vrot.slane %v5876, 1
    %v6389 = vrot.slane %v5877, 1
    %v6390 = vrot.slane %v5878, 1
    %v6391 = vrot.slane %v5879, 1
    %v6392 = vrot.slane %v5880, 1
    %v6393 = vrot.slane %v5881, 1
    %v6394 = vrot.slane %v5882, 1
    %v6395 = vrot.slane %v5883, 1
    %v6396 = vrot.slane %v5884, 1
    %v6397 = vrot.slane %v5885, 1
    %v6398 = vrot.slane %v5886, 1
    %v6399 = vrot.slane %v5887, 1
    %v6400 = vrot.slane %v5888, 1
    %v6401 = vrot.slane %v5889, 1
    %v6402 = vrot.slane %v5890, 1
    %v6403 = vrot.slane %v5891, 1
    %v6404 = vrot.slane %v5892, 1
    %v6405 = vrot.slane %v5893, 1
    %v6406 = vrot.slane %v5894, 1
    %v6407 = vrot.slane %v5895, 1
    %v6408 = vrot.slane %v5896, 1
    %v6409 = vrot.slane %v5897, 1
    %v6410 = vrot.slane %v5898, 1
    %v6411 = vrot.slane %v5899, 1
    %v6412 = vrot.slane %v5900, 1
    %v6413 = vrot.slane %v5901, 1
    %v6414 = vrot.slane %v5902, 1
    %v6415 = vrot.slane %v5903, 1
    %v6416 = vrot.slane %v5904, 1
    %v6417 = vrot.slane %v5905, 1
    %v6418 = vrot.slane %v5906, 1
    %v6419 = vrot.slane %v5907, 1
    %v6420 = vrot.slane %v5908, 1
    %v6421 = vrot.slane %v5909, 1
    %v6422 = vrot.slane %v5910, 1
    %v6423 = vrot.slane %v5911, 1
    %v6424 = vrot.slane %v5912, 1
    %v6425 = vsel %vm3152, %v6423, %v6424
    %v6426 = vsel %vm3152, %v6422, %v6423
    %v6427 = vsel %vm3152, %v6421, %v6422
    %v6428 = vsel %vm3152, %v6420, %v6421
    %v6429 = vsel %vm3152, %v6419, %v6420
    %v6430 = vsel %vm3152, %v6418, %v6419
    %v6431 = vsel %vm3152, %v6417, %v6418
    %v6432 = vsel %vm3152, %v6416, %v6417
    %v6433 = vsel %vm3152, %v6415, %v6416
    %v6434 = vsel %vm3152, %v6414, %v6415
    %v6435 = vsel %vm3152, %v6413, %v6414
    %v6436 = vsel %vm3152, %v6412, %v6413
    %v6437 = vsel %vm3152, %v6411, %v6412
    %v6438 = vsel %vm3152, %v6410, %v6411
    %v6439 = vsel %vm3152, %v6409, %v6410
    %v6440 = vsel %vm3152, %v6408, %v6409
    %v6441 = vsel %vm3152, %v6407, %v6408
    %v6442 = vsel %vm3152, %v6406, %v6407
    %v6443 = vsel %vm3152, %v6405, %v6406
    %v6444 = vsel %vm3152, %v6404, %v6405
    %v6445 = vsel %vm3152, %v6403, %v6404
    %v6446 = vsel %vm3152, %v6402, %v6403
    %v6447 = vsel %vm3152, %v6401, %v6402
    %v6448 = vsel %vm3152, %v6400, %v6401
    %v6449 = vsel %vm3152, %v6399, %v6400
    %v6450 = vsel %vm3152, %v6398, %v6399
    %v6451 = vsel %vm3152, %v6397, %v6398
    %v6452 = vsel %vm3152, %v6396, %v6397
    %v6453 = vsel %vm3152, %v6395, %v6396
    %v6454 = vsel %vm3152, %v6394, %v6395
    %v6455 = vsel %vm3152, %v6393, %v6394
    %v6456 = vsel %vm3152, %v6392, %v6393
    %v6457 = vsel %vm3152, %v6391, %v6392
    %v6458 = vsel %vm3152, %v6390, %v6391
    %v6459 = vsel %vm3152, %v6389, %v6390
    %v6460 = vsel %vm3152, %v6388, %v6389
    %v6461 = vsel %vm3152, %v6387, %v6388
    %v6462 = vsel %vm3152, %v6386, %v6387
    %v6463 = vsel %vm3152, %v6385, %v6386
    %v6464 = vsel %vm3152, %v6384, %v6385
    %v6465 = vsel %vm3152, %v6383, %v6384
    %v6466 = vsel %vm3152, %v6382, %v6383
    %v6467 = vsel %vm3152, %v6381, %v6382
    %v6468 = vsel %vm3152, %v6380, %v6381
    %v6469 = vsel %vm3152, %v6379, %v6380
    %v6470 = vsel %vm3152, %v6378, %v6379
    %v6471 = vsel %vm3152, %v6377, %v6378
    %v6472 = vsel %vm3152, %v6376, %v6377
    %v6473 = vsel %vm3152, %v6375, %v6376
    %v6474 = vsel %vm3152, %v6374, %v6375
    %v6475 = vsel %vm3152, %v6373, %v6374
    %v6476 = vsel %vm3152, %v6372, %v6373
    %v6477 = vsel %vm3152, %v6371, %v6372
    %v6478 = vsel %vm3152, %v6370, %v6371
    %v6479 = vsel %vm3152, %v6369, %v6370
    %v6480 = vsel %vm3152, %v6368, %v6369
    %v6481 = vsel %vm3152, %v6367, %v6368
    %v6482 = vsel %vm3152, %v6366, %v6367
    %v6483 = vsel %vm3152, %v6365, %v6366
    %v6484 = vsel %vm3152, %v6364, %v6365
    %v6485 = vsel %vm3152, %v6363, %v6364
    %v6486 = vsel %vm3152, %v6362, %v6363
    %v6487 = vsel %vm3152, %v6361, %v6362
    %v6488 = vsel %vm3152, %v6360, %v6361
    %v6489 = vsel %vm3152, %v6359, %v6360
    %v6490 = vsel %vm3152, %v6358, %v6359
    %v6491 = vsel %vm3152, %v6357, %v6358
    %v6492 = vsel %vm3152, %v6356, %v6357
    %v6493 = vsel %vm3152, %v6355, %v6356
    %v6494 = vsel %vm3152, %v6354, %v6355
    %v6495 = vsel %vm3152, %v6353, %v6354
    %v6496 = vsel %vm3152, %v6352, %v6353
    %v6497 = vsel %vm3152, %v6351, %v6352
    %v6498 = vsel %vm3152, %v6350, %v6351
    %v6499 = vsel %vm3152, %v6349, %v6350
    %v6500 = vsel %vm3152, %v6348, %v6349
    %v6501 = vsel %vm3152, %v6347, %v6348
    %v6502 = vsel %vm3152, %v6346, %v6347
    %v6503 = vsel %vm3152, %v6345, %v6346
    %v6504 = vsel %vm3152, %v6344, %v6345
    %v6505 = vsel %vm3152, %v6343, %v6344
    %v6506 = vsel %vm3152, %v6342, %v6343
    %v6507 = vsel %vm3152, %v6341, %v6342
    %v6508 = vsel %vm3152, %v6340, %v6341
    %v6509 = vsel %vm3152, %v6339, %v6340
    %v6510 = vsel %vm3152, %v6338, %v6339
    %v6511 = vsel %vm3152, %v6337, %v6338
    %v6512 = vsel %vm3152, %v6336, %v6337
    %v6513 = vsel %vm3152, %v6335, %v6336
    %v6514 = vsel %vm3152, %v6334, %v6335
    %v6515 = vsel %vm3152, %v6333, %v6334
    %v6516 = vsel %vm3152, %v6332, %v6333
    %v6517 = vsel %vm3152, %v6331, %v6332
    %v6518 = vsel %vm3152, %v6330, %v6331
    %v6519 = vsel %vm3152, %v6329, %v6330
    %v6520 = vsel %vm3152, %v6328, %v6329
    %v6521 = vsel %vm3152, %v6327, %v6328
    %v6522 = vsel %vm3152, %v6326, %v6327
    %v6523 = vsel %vm3152, %v6325, %v6326
    %v6524 = vsel %vm3152, %v6324, %v6325
    %v6525 = vsel %vm3152, %v6323, %v6324
    %v6526 = vsel %vm3152, %v6322, %v6323
    %v6527 = vsel %vm3152, %v6321, %v6322
    %v6528 = vsel %vm3152, %v6320, %v6321
    %v6529 = vsel %vm3152, %v6319, %v6320
    %v6530 = vsel %vm3152, %v6318, %v6319
    %v6531 = vsel %vm3152, %v6317, %v6318
    %v6532 = vsel %vm3152, %v6316, %v6317
    %v6533 = vsel %vm3152, %v6315, %v6316
    %v6534 = vsel %vm3152, %v6314, %v6315
    %v6535 = vsel %vm3152, %v6313, %v6314
    %v6536 = vsel %vm3152, %v6312, %v6313
    %v6537 = vsel %vm3152, %v6311, %v6312
    %v6538 = vsel %vm3152, %v6310, %v6311
    %v6539 = vsel %vm3152, %v6309, %v6310
    %v6540 = vsel %vm3152, %v6308, %v6309
    %v6541 = vsel %vm3152, %v6307, %v6308
    %v6542 = vsel %vm3152, %v6306, %v6307
    %v6543 = vsel %vm3152, %v6305, %v6306
    %v6544 = vsel %vm3152, %v6304, %v6305
    %v6545 = vsel %vm3152, %v6303, %v6304
    %v6546 = vsel %vm3152, %v6302, %v6303
    %v6547 = vsel %vm3152, %v6301, %v6302
    %v6548 = vsel %vm3152, %v6300, %v6301
    %v6549 = vsel %vm3152, %v6299, %v6300
    %v6550 = vsel %vm3152, %v6298, %v6299
    %v6551 = vsel %vm3152, %v6297, %v6298
    %v6552 = vsel %vm3152, %v6424, %v6297
    %v6553 = vsel %vm2332, %v6551, 0.0
    %v6554 = vsel %vm2333, %v6550, 0.0
    %v6555 = vsel %vm2334, %v6549, 0.0
    %v6556 = vsel %vm2335, %v6548, 0.0
    %v6557 = vsel %vm2336, %v6547, 0.0
    %v6558 = vsel %vm2337, %v6546, 0.0
    %v6559 = vsel %vm2338, %v6545, 0.0
    %v6560 = vsel %vm2339, %v6544, 0.0
    %v6561 = vsel %vm2340, %v6543, 0.0
    %v6562 = vsel %vm2341, %v6542, 0.0
    %v6563 = vsel %vm2342, %v6541, 0.0
    %v6564 = vsel %vm2343, %v6540, 0.0
    %v6565 = vsel %vm2344, %v6539, 0.0
    %v6566 = vsel %vm2345, %v6538, 0.0
    %v6567 = vsel %vm2346, %v6537, 0.0
    %v6568 = vsel %vm2347, %v6536, 0.0
    %v6569 = vsel %vm2348, %v6535, 0.0
    %v6570 = vsel %vm2349, %v6534, 0.0
    %v6571 = vsel %vm2350, %v6533, 0.0
    %v6572 = vsel %vm2351, %v6532, 0.0
    %v6573 = vsel %vm2352, %v6531, 0.0
    %v6574 = vsel %vm2353, %v6530, 0.0
    %v6575 = vsel %vm2354, %v6529, 0.0
    %v6576 = vsel %vm2355, %v6528, 0.0
    %v6577 = vsel %vm2356, %v6527, 0.0
    %v6578 = vsel %vm2357, %v6526, 0.0
    %v6579 = vsel %vm2358, %v6525, 0.0
    %v6580 = vsel %vm2359, %v6524, 0.0
    %v6581 = vsel %vm2360, %v6523, 0.0
    %v6582 = vsel %vm2361, %v6522, 0.0
    %v6583 = vsel %vm2362, %v6521, 0.0
    %v6584 = vsel %vm2363, %v6520, 0.0
    %v6585 = vsel %vm2364, %v6519, 0.0
    %v6586 = vsel %vm2365, %v6518, 0.0
    %v6587 = vsel %vm2366, %v6517, 0.0
    %v6588 = vsel %vm2367, %v6516, 0.0
    %v6589 = vsel %vm2368, %v6515, 0.0
    %v6590 = vsel %vm2369, %v6514, 0.0
    %v6591 = vsel %vm2370, %v6513, 0.0
    %v6592 = vsel %vm2371, %v6512, 0.0
    %v6593 = vsel %vm2372, %v6511, 0.0
    %v6594 = vsel %vm2373, %v6510, 0.0
    %v6595 = vsel %vm2374, %v6509, 0.0
    %v6596 = vsel %vm2375, %v6508, 0.0
    %v6597 = vsel %vm2376, %v6507, 0.0
    %v6598 = vsel %vm2377, %v6506, 0.0
    %v6599 = vsel %vm2378, %v6505, 0.0
    %v6600 = vsel %vm2379, %v6504, 0.0
    %v6601 = vsel %vm2380, %v6503, 0.0
    %v6602 = vsel %vm2381, %v6502, 0.0
    %v6603 = vsel %vm2382, %v6501, 0.0
    %v6604 = vsel %vm2383, %v6500, 0.0
    %v6605 = vsel %vm2384, %v6499, 0.0
    %v6606 = vsel %vm2385, %v6498, 0.0
    %v6607 = vsel %vm2386, %v6497, 0.0
    %v6608 = vsel %vm2387, %v6496, 0.0
    %v6609 = vsel %vm2388, %v6495, 0.0
    %v6610 = vsel %vm2389, %v6494, 0.0
    %v6611 = vsel %vm2390, %v6493, 0.0
    %v6612 = vsel %vm2391, %v6492, 0.0
    %v6613 = vsel %vm2392, %v6491, 0.0
    %v6614 = vsel %vm2393, %v6490, 0.0
    %v6615 = vsel %vm2394, %v6489, 0.0
    %v6616 = vsel %vm2395, %v6488, 0.0
    %v6617 = vsel %vm2396, %v6487, 0.0
    %v6618 = vsel %vm2397, %v6486, 0.0
    %v6619 = vsel %vm2398, %v6485, 0.0
    %v6620 = vsel %vm2399, %v6484, 0.0
    %v6621 = vsel %vm2400, %v6483, 0.0
    %v6622 = vsel %vm2401, %v6482, 0.0
    %v6623 = vsel %vm2402, %v6481, 0.0
    %v6624 = vsel %vm2403, %v6480, 0.0
    %v6625 = vsel %vm2404, %v6479, 0.0
    %v6626 = vsel %vm2405, %v6478, 0.0
    %v6627 = vsel %vm2406, %v6477, 0.0
    %v6628 = vsel %vm2407, %v6476, 0.0
    %v6629 = vsel %vm2408, %v6475, 0.0
    %v6630 = vsel %vm2409, %v6474, 0.0
    %v6631 = vsel %vm2410, %v6473, 0.0
    %v6632 = vsel %vm2411, %v6472, 0.0
    %v6633 = vsel %vm2412, %v6471, 0.0
    %v6634 = vsel %vm2413, %v6470, 0.0
    %v6635 = vsel %vm2414, %v6469, 0.0
    %v6636 = vsel %vm2415, %v6468, 0.0
    %v6637 = vsel %vm2416, %v6467, 0.0
    %v6638 = vsel %vm2417, %v6466, 0.0
    %v6639 = vsel %vm2418, %v6465, 0.0
    %v6640 = vsel %vm2419, %v6464, 0.0
    %v6641 = vsel %vm2420, %v6463, 0.0
    %v6642 = vsel %vm2421, %v6462, 0.0
    %v6643 = vsel %vm2422, %v6461, 0.0
    %v6644 = vsel %vm2423, %v6460, 0.0
    %v6645 = vsel %vm2424, %v6459, 0.0
    %v6646 = vsel %vm2425, %v6458, 0.0
    %v6647 = vsel %vm2426, %v6457, 0.0
    %v6648 = vsel %vm2427, %v6456, 0.0
    %v6649 = vsel %vm2428, %v6455, 0.0
    %v6650 = vsel %vm2429, %v6454, 0.0
    %v6651 = vsel %vm2430, %v6453, 0.0
    %v6652 = vsel %vm2431, %v6452, 0.0
    %v6653 = vsel %vm2432, %v6451, 0.0
    %v6654 = vsel %vm2433, %v6450, 0.0
    %v6655 = vsel %vm2434, %v6449, 0.0
    %v6656 = vsel %vm2435, %v6448, 0.0
    %v6657 = vsel %vm2436, %v6447, 0.0
    %v6658 = vsel %vm2437, %v6446, 0.0
    %v6659 = vsel %vm2438, %v6445, 0.0
    %v6660 = vsel %vm2439, %v6444, 0.0
    %v6661 = vsel %vm2440, %v6443, 0.0
    %v6662 = vsel %vm2441, %v6442, 0.0
    %v6663 = vsel %vm2442, %v6441, 0.0
    %v6664 = vsel %vm2443, %v6440, 0.0
    %v6665 = vsel %vm2444, %v6439, 0.0
    %v6666 = vsel %vm2445, %v6438, 0.0
    %v6667 = vsel %vm2446, %v6437, 0.0
    %v6668 = vsel %vm2447, %v6436, 0.0
    %v6669 = vsel %vm2448, %v6435, 0.0
    %v6670 = vsel %vm2449, %v6434, 0.0
    %v6671 = vsel %vm2450, %v6433, 0.0
    %v6672 = vsel %vm2451, %v6432, 0.0
    %v6673 = vsel %vm2452, %v6431, 0.0
    %v6674 = vsel %vm2453, %v6430, 0.0
    %v6675 = vsel %vm2454, %v6429, 0.0
    %v6676 = vsel %vm2455, %v6428, 0.0
    %v6677 = vsel %vm2456, %v6427, 0.0
    %v6678 = vsel %vm2457, %v6426, 0.0
    %v6679 = vsel %vm2458, %v6425, 0.0
    %v6680 = vsel %vm2459, %v6552, 0.0
    %6809 = vrot.lane.b32.xlu0 %v5785, 32
    %v6810 = vpop.permute.xlu0 %6809
    %6811 = vrot.lane.b32.xlu0 %v5786, 32
    %v6812 = vpop.permute.xlu0 %6811
    %6813 = vrot.lane.b32.xlu0 %v5787, 32
    %v6814 = vpop.permute.xlu0 %6813
    %6815 = vrot.lane.b32.xlu0 %v5788, 32
    %v6816 = vpop.permute.xlu0 %6815
    %6817 = vrot.lane.b32.xlu0 %v5789, 32
    %v6818 = vpop.permute.xlu0 %6817
    %6819 = vrot.lane.b32.xlu0 %v5790, 32
    %v6820 = vpop.permute.xlu0 %6819
    %6821 = vrot.lane.b32.xlu0 %v5791, 32
    %v6822 = vpop.permute.xlu0 %6821
    %6823 = vrot.lane.b32.xlu0 %v5792, 32
    %v6824 = vpop.permute.xlu0 %6823
    %6825 = vrot.lane.b32.xlu0 %v5793, 32
    %v6826 = vpop.permute.xlu0 %6825
    %6827 = vrot.lane.b32.xlu0 %v5794, 32
    %v6828 = vpop.permute.xlu0 %6827
    %6829 = vrot.lane.b32.xlu0 %v5795, 32
    %v6830 = vpop.permute.xlu0 %6829
    %6831 = vrot.lane.b32.xlu0 %v5796, 32
    %v6832 = vpop.permute.xlu0 %6831
    %6833 = vrot.lane.b32.xlu0 %v5797, 32
    %v6834 = vpop.permute.xlu0 %6833
    %6835 = vrot.lane.b32.xlu0 %v5798, 32
    %v6836 = vpop.permute.xlu0 %6835
    %6837 = vrot.lane.b32.xlu0 %v5799, 32
    %v6838 = vpop.permute.xlu0 %6837
    %6839 = vrot.lane.b32.xlu0 %v5800, 32
    %v6840 = vpop.permute.xlu0 %6839
    %6841 = vrot.lane.b32.xlu0 %v5801, 32
    %v6842 = vpop.permute.xlu0 %6841
    %6843 = vrot.lane.b32.xlu0 %v5802, 32
    %v6844 = vpop.permute.xlu0 %6843
    %6845 = vrot.lane.b32.xlu0 %v5803, 32
    %v6846 = vpop.permute.xlu0 %6845
    %6847 = vrot.lane.b32.xlu0 %v5804, 32
    %v6848 = vpop.permute.xlu0 %6847
    %6849 = vrot.lane.b32.xlu0 %v5805, 32
    %v6850 = vpop.permute.xlu0 %6849
    %6851 = vrot.lane.b32.xlu0 %v5806, 32
    %v6852 = vpop.permute.xlu0 %6851
    %6853 = vrot.lane.b32.xlu0 %v5807, 32
    %v6854 = vpop.permute.xlu0 %6853
    %6855 = vrot.lane.b32.xlu0 %v5808, 32
    %v6856 = vpop.permute.xlu0 %6855
    %6857 = vrot.lane.b32.xlu0 %v5809, 32
    %v6858 = vpop.permute.xlu0 %6857
    %6859 = vrot.lane.b32.xlu0 %v5810, 32
    %v6860 = vpop.permute.xlu0 %6859
    %6861 = vrot.lane.b32.xlu0 %v5811, 32
    %v6862 = vpop.permute.xlu0 %6861
    %6863 = vrot.lane.b32.xlu0 %v5812, 32
    %v6864 = vpop.permute.xlu0 %6863
    %6865 = vrot.lane.b32.xlu0 %v5813, 32
    %v6866 = vpop.permute.xlu0 %6865
    %6867 = vrot.lane.b32.xlu0 %v5814, 32
    %v6868 = vpop.permute.xlu0 %6867
    %6869 = vrot.lane.b32.xlu0 %v5815, 32
    %v6870 = vpop.permute.xlu0 %6869
    %6871 = vrot.lane.b32.xlu0 %v5816, 32
    %v6872 = vpop.permute.xlu0 %6871
    %6873 = vrot.lane.b32.xlu0 %v5817, 32
    %v6874 = vpop.permute.xlu0 %6873
    %6875 = vrot.lane.b32.xlu0 %v5818, 32
    %v6876 = vpop.permute.xlu0 %6875
    %6877 = vrot.lane.b32.xlu0 %v5819, 32
    %v6878 = vpop.permute.xlu0 %6877
    %6879 = vrot.lane.b32.xlu0 %v5820, 32
    %v6880 = vpop.permute.xlu0 %6879
    %6881 = vrot.lane.b32.xlu0 %v5821, 32
    %v6882 = vpop.permute.xlu0 %6881
    %6883 = vrot.lane.b32.xlu0 %v5822, 32
    %v6884 = vpop.permute.xlu0 %6883
    %6885 = vrot.lane.b32.xlu0 %v5823, 32
    %v6886 = vpop.permute.xlu0 %6885
    %6887 = vrot.lane.b32.xlu0 %v5824, 32
    %v6888 = vpop.permute.xlu0 %6887
    %6889 = vrot.lane.b32.xlu0 %v5825, 32
    %v6890 = vpop.permute.xlu0 %6889
    %6891 = vrot.lane.b32.xlu0 %v5826, 32
    %v6892 = vpop.permute.xlu0 %6891
    %6893 = vrot.lane.b32.xlu0 %v5827, 32
    %v6894 = vpop.permute.xlu0 %6893
    %6895 = vrot.lane.b32.xlu0 %v5828, 32
    %v6896 = vpop.permute.xlu0 %6895
    %6897 = vrot.lane.b32.xlu0 %v5829, 32
    %v6898 = vpop.permute.xlu0 %6897
    %6899 = vrot.lane.b32.xlu0 %v5830, 32
    %v6900 = vpop.permute.xlu0 %6899
    %6901 = vrot.lane.b32.xlu0 %v5831, 32
    %v6902 = vpop.permute.xlu0 %6901
    %6903 = vrot.lane.b32.xlu0 %v5832, 32
    %v6904 = vpop.permute.xlu0 %6903
    %6905 = vrot.lane.b32.xlu0 %v5833, 32
    %v6906 = vpop.permute.xlu0 %6905
    %6907 = vrot.lane.b32.xlu0 %v5834, 32
    %v6908 = vpop.permute.xlu0 %6907
    %6909 = vrot.lane.b32.xlu0 %v5835, 32
    %v6910 = vpop.permute.xlu0 %6909
    %6911 = vrot.lane.b32.xlu0 %v5836, 32
    %v6912 = vpop.permute.xlu0 %6911
    %6913 = vrot.lane.b32.xlu0 %v5837, 32
    %v6914 = vpop.permute.xlu0 %6913
    %6915 = vrot.lane.b32.xlu0 %v5838, 32
    %v6916 = vpop.permute.xlu0 %6915
    %6917 = vrot.lane.b32.xlu0 %v5839, 32
    %v6918 = vpop.permute.xlu0 %6917
    %6919 = vrot.lane.b32.xlu0 %v5840, 32
    %v6920 = vpop.permute.xlu0 %6919
    %6921 = vrot.lane.b32.xlu0 %v5841, 32
    %v6922 = vpop.permute.xlu0 %6921
    %6923 = vrot.lane.b32.xlu0 %v5842, 32
    %v6924 = vpop.permute.xlu0 %6923
    %6925 = vrot.lane.b32.xlu0 %v5843, 32
    %v6926 = vpop.permute.xlu0 %6925
    %6927 = vrot.lane.b32.xlu0 %v5844, 32
    %v6928 = vpop.permute.xlu0 %6927
    %6929 = vrot.lane.b32.xlu0 %v5845, 32
    %v6930 = vpop.permute.xlu0 %6929
    %6931 = vrot.lane.b32.xlu0 %v5846, 32
    %v6932 = vpop.permute.xlu0 %6931
    %6933 = vrot.lane.b32.xlu0 %v5847, 32
    %v6934 = vpop.permute.xlu0 %6933
    %6935 = vrot.lane.b32.xlu0 %v5848, 32
    %v6936 = vpop.permute.xlu0 %6935
    %6937 = vrot.lane.b32.xlu0 %v5849, 32
    %v6938 = vpop.permute.xlu0 %6937
    %6939 = vrot.lane.b32.xlu0 %v5850, 32
    %v6940 = vpop.permute.xlu0 %6939
    %6941 = vrot.lane.b32.xlu0 %v5851, 32
    %v6942 = vpop.permute.xlu0 %6941
    %6943 = vrot.lane.b32.xlu0 %v5852, 32
    %v6944 = vpop.permute.xlu0 %6943
    %6945 = vrot.lane.b32.xlu0 %v5853, 32
    %v6946 = vpop.permute.xlu0 %6945
    %6947 = vrot.lane.b32.xlu0 %v5854, 32
    %v6948 = vpop.permute.xlu0 %6947
    %6949 = vrot.lane.b32.xlu0 %v5855, 32
    %v6950 = vpop.permute.xlu0 %6949
    %6951 = vrot.lane.b32.xlu0 %v5856, 32
    %v6952 = vpop.permute.xlu0 %6951
    %6953 = vrot.lane.b32.xlu0 %v5857, 32
    %v6954 = vpop.permute.xlu0 %6953
    %6955 = vrot.lane.b32.xlu0 %v5858, 32
    %v6956 = vpop.permute.xlu0 %6955
    %6957 = vrot.lane.b32.xlu0 %v5859, 32
    %v6958 = vpop.permute.xlu0 %6957
    %6959 = vrot.lane.b32.xlu0 %v5860, 32
    %v6960 = vpop.permute.xlu0 %6959
    %6961 = vrot.lane.b32.xlu0 %v5861, 32
    %v6962 = vpop.permute.xlu0 %6961
    %6963 = vrot.lane.b32.xlu0 %v5862, 32
    %v6964 = vpop.permute.xlu0 %6963
    %6965 = vrot.lane.b32.xlu0 %v5863, 32
    %v6966 = vpop.permute.xlu0 %6965
    %6967 = vrot.lane.b32.xlu0 %v5864, 32
    %v6968 = vpop.permute.xlu0 %6967
    %6969 = vrot.lane.b32.xlu0 %v5865, 32
    %v6970 = vpop.permute.xlu0 %6969
    %6971 = vrot.lane.b32.xlu0 %v5866, 32
    %v6972 = vpop.permute.xlu0 %6971
    %6973 = vrot.lane.b32.xlu0 %v5867, 32
    %v6974 = vpop.permute.xlu0 %6973
    %6975 = vrot.lane.b32.xlu0 %v5868, 32
    %v6976 = vpop.permute.xlu0 %6975
    %6977 = vrot.lane.b32.xlu0 %v5869, 32
    %v6978 = vpop.permute.xlu0 %6977
    %6979 = vrot.lane.b32.xlu0 %v5870, 32
    %v6980 = vpop.permute.xlu0 %6979
    %6981 = vrot.lane.b32.xlu0 %v5871, 32
    %v6982 = vpop.permute.xlu0 %6981
    %6983 = vrot.lane.b32.xlu0 %v5872, 32
    %v6984 = vpop.permute.xlu0 %6983
    %6985 = vrot.lane.b32.xlu0 %v5873, 32
    %v6986 = vpop.permute.xlu0 %6985
    %6987 = vrot.lane.b32.xlu0 %v5874, 32
    %v6988 = vpop.permute.xlu0 %6987
    %6989 = vrot.lane.b32.xlu0 %v5875, 32
    %v6990 = vpop.permute.xlu0 %6989
    %6991 = vrot.lane.b32.xlu0 %v5876, 32
    %v6992 = vpop.permute.xlu0 %6991
    %6993 = vrot.lane.b32.xlu0 %v5877, 32
    %v6994 = vpop.permute.xlu0 %6993
    %6995 = vrot.lane.b32.xlu0 %v5878, 32
    %v6996 = vpop.permute.xlu0 %6995
    %6997 = vrot.lane.b32.xlu0 %v5879, 32
    %v6998 = vpop.permute.xlu0 %6997
    %6999 = vrot.lane.b32.xlu0 %v5880, 32
    %v7000 = vpop.permute.xlu0 %6999
    %7001 = vrot.lane.b32.xlu0 %v5881, 32
    %v7002 = vpop.permute.xlu0 %7001
    %7003 = vrot.lane.b32.xlu0 %v5882, 32
    %v7004 = vpop.permute.xlu0 %7003
    %7005 = vrot.lane.b32.xlu0 %v5883, 32
    %v7006 = vpop.permute.xlu0 %7005
    %7007 = vrot.lane.b32.xlu0 %v5884, 32
    %v7008 = vpop.permute.xlu0 %7007
    %7009 = vrot.lane.b32.xlu0 %v5885, 32
    %v7010 = vpop.permute.xlu0 %7009
    %7011 = vrot.lane.b32.xlu0 %v5886, 32
    %v7012 = vpop.permute.xlu0 %7011
    %7013 = vrot.lane.b32.xlu0 %v5887, 32
    %v7014 = vpop.permute.xlu0 %7013
    %7015 = vrot.lane.b32.xlu0 %v5888, 32
    %v7016 = vpop.permute.xlu0 %7015
    %7017 = vrot.lane.b32.xlu0 %v5889, 32
    %v7018 = vpop.permute.xlu0 %7017
    %7019 = vrot.lane.b32.xlu0 %v5890, 32
    %v7020 = vpop.permute.xlu0 %7019
    %7021 = vrot.lane.b32.xlu0 %v5891, 32
    %v7022 = vpop.permute.xlu0 %7021
    %7023 = vrot.lane.b32.xlu0 %v5892, 32
    %v7024 = vpop.permute.xlu0 %7023
    %7025 = vrot.lane.b32.xlu0 %v5893, 32
    %v7026 = vpop.permute.xlu0 %7025
    %7027 = vrot.lane.b32.xlu0 %v5894, 32
    %v7028 = vpop.permute.xlu0 %7027
    %7029 = vrot.lane.b32.xlu0 %v5895, 32
    %v7030 = vpop.permute.xlu0 %7029
    %7031 = vrot.lane.b32.xlu0 %v5896, 32
    %v7032 = vpop.permute.xlu0 %7031
    %7033 = vrot.lane.b32.xlu0 %v5897, 32
    %v7034 = vpop.permute.xlu0 %7033
    %7035 = vrot.lane.b32.xlu0 %v5898, 32
    %v7036 = vpop.permute.xlu0 %7035
    %7037 = vrot.lane.b32.xlu0 %v5899, 32
    %v7038 = vpop.permute.xlu0 %7037
    %7039 = vrot.lane.b32.xlu0 %v5900, 32
    %v7040 = vpop.permute.xlu0 %7039
    %7041 = vrot.lane.b32.xlu0 %v5901, 32
    %v7042 = vpop.permute.xlu0 %7041
    %7043 = vrot.lane.b32.xlu0 %v5902, 32
    %v7044 = vpop.permute.xlu0 %7043
    %7045 = vrot.lane.b32.xlu0 %v5903, 32
    %v7046 = vpop.permute.xlu0 %7045
    %7047 = vrot.lane.b32.xlu0 %v5904, 32
    %v7048 = vpop.permute.xlu0 %7047
    %7049 = vrot.lane.b32.xlu0 %v5905, 32
    %v7050 = vpop.permute.xlu0 %7049
    %7051 = vrot.lane.b32.xlu0 %v5906, 32
    %v7052 = vpop.permute.xlu0 %7051
    %7053 = vrot.lane.b32.xlu0 %v5907, 32
    %v7054 = vpop.permute.xlu0 %7053
    %7055 = vrot.lane.b32.xlu0 %v5908, 32
    %v7056 = vpop.permute.xlu0 %7055
    %7057 = vrot.lane.b32.xlu0 %v5909, 32
    %v7058 = vpop.permute.xlu0 %7057
    %7059 = vrot.lane.b32.xlu0 %v5910, 32
    %v7060 = vpop.permute.xlu0 %7059
    %7061 = vrot.lane.b32.xlu0 %v5911, 32
    %v7062 = vpop.permute.xlu0 %7061
    %7063 = vrot.lane.b32.xlu0 %v5912, 32
    %v7064 = vpop.permute.xlu0 %7063
    %7321 = vrot.lane.b32.xlu0 %v6553, 64
    %v7322 = vpop.permute.xlu0 %7321
    %7323 = vrot.lane.b32.xlu0 %v6554, 64
    %v7324 = vpop.permute.xlu0 %7323
    %7325 = vrot.lane.b32.xlu0 %v6555, 64
    %v7326 = vpop.permute.xlu0 %7325
    %7327 = vrot.lane.b32.xlu0 %v6556, 64
    %v7328 = vpop.permute.xlu0 %7327
    %7329 = vrot.lane.b32.xlu0 %v6557, 64
    %v7330 = vpop.permute.xlu0 %7329
    %7331 = vrot.lane.b32.xlu0 %v6558, 64
    %v7332 = vpop.permute.xlu0 %7331
    %7333 = vrot.lane.b32.xlu0 %v6559, 64
    %v7334 = vpop.permute.xlu0 %7333
    %7335 = vrot.lane.b32.xlu0 %v6560, 64
    %v7336 = vpop.permute.xlu0 %7335
    %7337 = vrot.lane.b32.xlu0 %v6561, 64
    %v7338 = vpop.permute.xlu0 %7337
    %7339 = vrot.lane.b32.xlu0 %v6562, 64
    %v7340 = vpop.permute.xlu0 %7339
    %7341 = vrot.lane.b32.xlu0 %v6563, 64
    %v7342 = vpop.permute.xlu0 %7341
    %7343 = vrot.lane.b32.xlu0 %v6564, 64
    %v7344 = vpop.permute.xlu0 %7343
    %7345 = vrot.lane.b32.xlu0 %v6565, 64
    %v7346 = vpop.permute.xlu0 %7345
    %7347 = vrot.lane.b32.xlu0 %v6566, 64
    %v7348 = vpop.permute.xlu0 %7347
    %7349 = vrot.lane.b32.xlu0 %v6567, 64
    %v7350 = vpop.permute.xlu0 %7349
    %7351 = vrot.lane.b32.xlu0 %v6568, 64
    %v7352 = vpop.permute.xlu0 %7351
    %7353 = vrot.lane.b32.xlu0 %v6569, 64
    %v7354 = vpop.permute.xlu0 %7353
    %7355 = vrot.lane.b32.xlu0 %v6570, 64
    %v7356 = vpop.permute.xlu0 %7355
    %7357 = vrot.lane.b32.xlu0 %v6571, 64
    %v7358 = vpop.permute.xlu0 %7357
    %7359 = vrot.lane.b32.xlu0 %v6572, 64
    %v7360 = vpop.permute.xlu0 %7359
    %7361 = vrot.lane.b32.xlu0 %v6573, 64
    %v7362 = vpop.permute.xlu0 %7361
    %7363 = vrot.lane.b32.xlu0 %v6574, 64
    %v7364 = vpop.permute.xlu0 %7363
    %7365 = vrot.lane.b32.xlu0 %v6575, 64
    %v7366 = vpop.permute.xlu0 %7365
    %7367 = vrot.lane.b32.xlu0 %v6576, 64
    %v7368 = vpop.permute.xlu0 %7367
    %7369 = vrot.lane.b32.xlu0 %v6577, 64
    %v7370 = vpop.permute.xlu0 %7369
    %7371 = vrot.lane.b32.xlu0 %v6578, 64
    %v7372 = vpop.permute.xlu0 %7371
    %7373 = vrot.lane.b32.xlu0 %v6579, 64
    %v7374 = vpop.permute.xlu0 %7373
    %7375 = vrot.lane.b32.xlu0 %v6580, 64
    %v7376 = vpop.permute.xlu0 %7375
    %7377 = vrot.lane.b32.xlu0 %v6581, 64
    %v7378 = vpop.permute.xlu0 %7377
    %7379 = vrot.lane.b32.xlu0 %v6582, 64
    %v7380 = vpop.permute.xlu0 %7379
    %7381 = vrot.lane.b32.xlu0 %v6583, 64
    %v7382 = vpop.permute.xlu0 %7381
    %7383 = vrot.lane.b32.xlu0 %v6584, 64
    %v7384 = vpop.permute.xlu0 %7383
    %7385 = vrot.lane.b32.xlu0 %v6585, 64
    %v7386 = vpop.permute.xlu0 %7385
    %7387 = vrot.lane.b32.xlu0 %v6586, 64
    %v7388 = vpop.permute.xlu0 %7387
    %7389 = vrot.lane.b32.xlu0 %v6587, 64
    %v7390 = vpop.permute.xlu0 %7389
    %7391 = vrot.lane.b32.xlu0 %v6588, 64
    %v7392 = vpop.permute.xlu0 %7391
    %7393 = vrot.lane.b32.xlu0 %v6589, 64
    %v7394 = vpop.permute.xlu0 %7393
    %7395 = vrot.lane.b32.xlu0 %v6590, 64
    %v7396 = vpop.permute.xlu0 %7395
    %7397 = vrot.lane.b32.xlu0 %v6591, 64
    %v7398 = vpop.permute.xlu0 %7397
    %7399 = vrot.lane.b32.xlu0 %v6592, 64
    %v7400 = vpop.permute.xlu0 %7399
    %7401 = vrot.lane.b32.xlu0 %v6593, 64
    %v7402 = vpop.permute.xlu0 %7401
    %7403 = vrot.lane.b32.xlu0 %v6594, 64
    %v7404 = vpop.permute.xlu0 %7403
    %7405 = vrot.lane.b32.xlu0 %v6595, 64
    %v7406 = vpop.permute.xlu0 %7405
    %7407 = vrot.lane.b32.xlu0 %v6596, 64
    %v7408 = vpop.permute.xlu0 %7407
    %7409 = vrot.lane.b32.xlu0 %v6597, 64
    %v7410 = vpop.permute.xlu0 %7409
    %7411 = vrot.lane.b32.xlu0 %v6598, 64
    %v7412 = vpop.permute.xlu0 %7411
    %7413 = vrot.lane.b32.xlu0 %v6599, 64
    %v7414 = vpop.permute.xlu0 %7413
    %7415 = vrot.lane.b32.xlu0 %v6600, 64
    %v7416 = vpop.permute.xlu0 %7415
    %7417 = vrot.lane.b32.xlu0 %v6601, 64
    %v7418 = vpop.permute.xlu0 %7417
    %7419 = vrot.lane.b32.xlu0 %v6602, 64
    %v7420 = vpop.permute.xlu0 %7419
    %7421 = vrot.lane.b32.xlu0 %v6603, 64
    %v7422 = vpop.permute.xlu0 %7421
    %7423 = vrot.lane.b32.xlu0 %v6604, 64
    %v7424 = vpop.permute.xlu0 %7423
    %7425 = vrot.lane.b32.xlu0 %v6605, 64
    %v7426 = vpop.permute.xlu0 %7425
    %7427 = vrot.lane.b32.xlu0 %v6606, 64
    %v7428 = vpop.permute.xlu0 %7427
    %7429 = vrot.lane.b32.xlu0 %v6607, 64
    %v7430 = vpop.permute.xlu0 %7429
    %7431 = vrot.lane.b32.xlu0 %v6608, 64
    %v7432 = vpop.permute.xlu0 %7431
    %7433 = vrot.lane.b32.xlu0 %v6609, 64
    %v7434 = vpop.permute.xlu0 %7433
    %7435 = vrot.lane.b32.xlu0 %v6610, 64
    %v7436 = vpop.permute.xlu0 %7435
    %7437 = vrot.lane.b32.xlu0 %v6611, 64
    %v7438 = vpop.permute.xlu0 %7437
    %7439 = vrot.lane.b32.xlu0 %v6612, 64
    %v7440 = vpop.permute.xlu0 %7439
    %7441 = vrot.lane.b32.xlu0 %v6613, 64
    %v7442 = vpop.permute.xlu0 %7441
    %7443 = vrot.lane.b32.xlu0 %v6614, 64
    %v7444 = vpop.permute.xlu0 %7443
    %7445 = vrot.lane.b32.xlu0 %v6615, 64
    %v7446 = vpop.permute.xlu0 %7445
    %7447 = vrot.lane.b32.xlu0 %v6616, 64
    %v7448 = vpop.permute.xlu0 %7447
    %7449 = vrot.lane.b32.xlu0 %v6617, 64
    %v7450 = vpop.permute.xlu0 %7449
    %7451 = vrot.lane.b32.xlu0 %v6618, 64
    %v7452 = vpop.permute.xlu0 %7451
    %7453 = vrot.lane.b32.xlu0 %v6619, 64
    %v7454 = vpop.permute.xlu0 %7453
    %7455 = vrot.lane.b32.xlu0 %v6620, 64
    %v7456 = vpop.permute.xlu0 %7455
    %7457 = vrot.lane.b32.xlu0 %v6621, 64
    %v7458 = vpop.permute.xlu0 %7457
    %7459 = vrot.lane.b32.xlu0 %v6622, 64
    %v7460 = vpop.permute.xlu0 %7459
    %7461 = vrot.lane.b32.xlu0 %v6623, 64
    %v7462 = vpop.permute.xlu0 %7461
    %7463 = vrot.lane.b32.xlu0 %v6624, 64
    %v7464 = vpop.permute.xlu0 %7463
    %7465 = vrot.lane.b32.xlu0 %v6625, 64
    %v7466 = vpop.permute.xlu0 %7465
    %7467 = vrot.lane.b32.xlu0 %v6626, 64
    %v7468 = vpop.permute.xlu0 %7467
    %7469 = vrot.lane.b32.xlu0 %v6627, 64
    %v7470 = vpop.permute.xlu0 %7469
    %7471 = vrot.lane.b32.xlu0 %v6628, 64
    %v7472 = vpop.permute.xlu0 %7471
    %7473 = vrot.lane.b32.xlu0 %v6629, 64
    %v7474 = vpop.permute.xlu0 %7473
    %7475 = vrot.lane.b32.xlu0 %v6630, 64
    %v7476 = vpop.permute.xlu0 %7475
    %7477 = vrot.lane.b32.xlu0 %v6631, 64
    %v7478 = vpop.permute.xlu0 %7477
    %7479 = vrot.lane.b32.xlu0 %v6632, 64
    %v7480 = vpop.permute.xlu0 %7479
    %7481 = vrot.lane.b32.xlu0 %v6633, 64
    %v7482 = vpop.permute.xlu0 %7481
    %7483 = vrot.lane.b32.xlu0 %v6634, 64
    %v7484 = vpop.permute.xlu0 %7483
    %7485 = vrot.lane.b32.xlu0 %v6635, 64
    %v7486 = vpop.permute.xlu0 %7485
    %7487 = vrot.lane.b32.xlu0 %v6636, 64
    %v7488 = vpop.permute.xlu0 %7487
    %7489 = vrot.lane.b32.xlu0 %v6637, 64
    %v7490 = vpop.permute.xlu0 %7489
    %7491 = vrot.lane.b32.xlu0 %v6638, 64
    %v7492 = vpop.permute.xlu0 %7491
    %7493 = vrot.lane.b32.xlu0 %v6639, 64
    %v7494 = vpop.permute.xlu0 %7493
    %7495 = vrot.lane.b32.xlu0 %v6640, 64
    %v7496 = vpop.permute.xlu0 %7495
    %7497 = vrot.lane.b32.xlu0 %v6641, 64
    %v7498 = vpop.permute.xlu0 %7497
    %7499 = vrot.lane.b32.xlu0 %v6642, 64
    %v7500 = vpop.permute.xlu0 %7499
    %7501 = vrot.lane.b32.xlu0 %v6643, 64
    %v7502 = vpop.permute.xlu0 %7501
    %7503 = vrot.lane.b32.xlu0 %v6644, 64
    %v7504 = vpop.permute.xlu0 %7503
    %7505 = vrot.lane.b32.xlu0 %v6645, 64
    %v7506 = vpop.permute.xlu0 %7505
    %7507 = vrot.lane.b32.xlu0 %v6646, 64
    %v7508 = vpop.permute.xlu0 %7507
    %7509 = vrot.lane.b32.xlu0 %v6647, 64
    %v7510 = vpop.permute.xlu0 %7509
    %7511 = vrot.lane.b32.xlu0 %v6648, 64
    %v7512 = vpop.permute.xlu0 %7511
    %7513 = vrot.lane.b32.xlu0 %v6649, 64
    %v7514 = vpop.permute.xlu0 %7513
    %7515 = vrot.lane.b32.xlu0 %v6650, 64
    %v7516 = vpop.permute.xlu0 %7515
    %7517 = vrot.lane.b32.xlu0 %v6651, 64
    %v7518 = vpop.permute.xlu0 %7517
    %7519 = vrot.lane.b32.xlu0 %v6652, 64
    %v7520 = vpop.permute.xlu0 %7519
    %7521 = vrot.lane.b32.xlu0 %v6653, 64
    %v7522 = vpop.permute.xlu0 %7521
    %7523 = vrot.lane.b32.xlu0 %v6654, 64
    %v7524 = vpop.permute.xlu0 %7523
    %7525 = vrot.lane.b32.xlu0 %v6655, 64
    %v7526 = vpop.permute.xlu0 %7525
    %7527 = vrot.lane.b32.xlu0 %v6656, 64
    %v7528 = vpop.permute.xlu0 %7527
    %7529 = vrot.lane.b32.xlu0 %v6657, 64
    %v7530 = vpop.permute.xlu0 %7529
    %7531 = vrot.lane.b32.xlu0 %v6658, 64
    %v7532 = vpop.permute.xlu0 %7531
    %7533 = vrot.lane.b32.xlu0 %v6659, 64
    %v7534 = vpop.permute.xlu0 %7533
    %7535 = vrot.lane.b32.xlu0 %v6660, 64
    %v7536 = vpop.permute.xlu0 %7535
    %7537 = vrot.lane.b32.xlu0 %v6661, 64
    %v7538 = vpop.permute.xlu0 %7537
    %7539 = vrot.lane.b32.xlu0 %v6662, 64
    %v7540 = vpop.permute.xlu0 %7539
    %7541 = vrot.lane.b32.xlu0 %v6663, 64
    %v7542 = vpop.permute.xlu0 %7541
    %7543 = vrot.lane.b32.xlu0 %v6664, 64
    %v7544 = vpop.permute.xlu0 %7543
    %7545 = vrot.lane.b32.xlu0 %v6665, 64
    %v7546 = vpop.permute.xlu0 %7545
    %7547 = vrot.lane.b32.xlu0 %v6666, 64
    %v7548 = vpop.permute.xlu0 %7547
    %7549 = vrot.lane.b32.xlu0 %v6667, 64
    %v7550 = vpop.permute.xlu0 %7549
    %7551 = vrot.lane.b32.xlu0 %v6668, 64
    %v7552 = vpop.permute.xlu0 %7551
    %7553 = vrot.lane.b32.xlu0 %v6669, 64
    %v7554 = vpop.permute.xlu0 %7553
    %7555 = vrot.lane.b32.xlu0 %v6670, 64
    %v7556 = vpop.permute.xlu0 %7555
    %7557 = vrot.lane.b32.xlu0 %v6671, 64
    %v7558 = vpop.permute.xlu0 %7557
    %7559 = vrot.lane.b32.xlu0 %v6672, 64
    %v7560 = vpop.permute.xlu0 %7559
    %7561 = vrot.lane.b32.xlu0 %v6673, 64
    %v7562 = vpop.permute.xlu0 %7561
    %7563 = vrot.lane.b32.xlu0 %v6674, 64
    %v7564 = vpop.permute.xlu0 %7563
    %7565 = vrot.lane.b32.xlu0 %v6675, 64
    %v7566 = vpop.permute.xlu0 %7565
    %7567 = vrot.lane.b32.xlu0 %v6676, 64
    %v7568 = vpop.permute.xlu0 %7567
    %7569 = vrot.lane.b32.xlu0 %v6677, 64
    %v7570 = vpop.permute.xlu0 %7569
    %7571 = vrot.lane.b32.xlu0 %v6678, 64
    %v7572 = vpop.permute.xlu0 %7571
    %7573 = vrot.lane.b32.xlu0 %v6679, 64
    %v7574 = vpop.permute.xlu0 %7573
    %7575 = vrot.lane.b32.xlu0 %v6680, 64
    %v7576 = vpop.permute.xlu0 %7575
    %v7705 = vsel %vm4433, %v6169, %v6810
    %v7706 = vsel %vm4433, %v6170, %v6812
    %v7707 = vsel %vm4433, %v6171, %v6814
    %v7708 = vsel %vm4433, %v6172, %v6816
    %v7709 = vsel %vm4433, %v6173, %v6818
    %v7710 = vsel %vm4433, %v6174, %v6820
    %v7711 = vsel %vm4433, %v6175, %v6822
    %v7712 = vsel %vm4433, %v6176, %v6824
    %v7713 = vsel %vm4433, %v6177, %v6826
    %v7714 = vsel %vm4433, %v6178, %v6828
    %v7715 = vsel %vm4433, %v6179, %v6830
    %v7716 = vsel %vm4433, %v6180, %v6832
    %v7717 = vsel %vm4433, %v6181, %v6834
    %v7718 = vsel %vm4433, %v6182, %v6836
    %v7719 = vsel %vm4433, %v6183, %v6838
    %v7720 = vsel %vm4433, %v6184, %v6840
    %v7721 = vsel %vm4433, %v6185, %v6842
    %v7722 = vsel %vm4433, %v6186, %v6844
    %v7723 = vsel %vm4433, %v6187, %v6846
    %v7724 = vsel %vm4433, %v6188, %v6848
    %v7725 = vsel %vm4433, %v6189, %v6850
    %v7726 = vsel %vm4433, %v6190, %v6852
    %v7727 = vsel %vm4433, %v6191, %v6854
    %v7728 = vsel %vm4433, %v6192, %v6856
    %v7729 = vsel %vm4433, %v6193, %v6858
    %v7730 = vsel %vm4433, %v6194, %v6860
    %v7731 = vsel %vm4433, %v6195, %v6862
    %v7732 = vsel %vm4433, %v6196, %v6864
    %v7733 = vsel %vm4433, %v6197, %v6866
    %v7734 = vsel %vm4433, %v6198, %v6868
    %v7735 = vsel %vm4433, %v6199, %v6870
    %v7736 = vsel %vm4433, %v6200, %v6872
    %v7737 = vsel %vm4433, %v6201, %v6874
    %v7738 = vsel %vm4433, %v6202, %v6876
    %v7739 = vsel %vm4433, %v6203, %v6878
    %v7740 = vsel %vm4433, %v6204, %v6880
    %v7741 = vsel %vm4433, %v6205, %v6882
    %v7742 = vsel %vm4433, %v6206, %v6884
    %v7743 = vsel %vm4433, %v6207, %v6886
    %v7744 = vsel %vm4433, %v6208, %v6888
    %v7745 = vsel %vm4433, %v6209, %v6890
    %v7746 = vsel %vm4433, %v6210, %v6892
    %v7747 = vsel %vm4433, %v6211, %v6894
    %v7748 = vsel %vm4433, %v6212, %v6896
    %v7749 = vsel %vm4433, %v6213, %v6898
    %v7750 = vsel %vm4433, %v6214, %v6900
    %v7751 = vsel %vm4433, %v6215, %v6902
    %v7752 = vsel %vm4433, %v6216, %v6904
    %v7753 = vsel %vm4433, %v6217, %v6906
    %v7754 = vsel %vm4433, %v6218, %v6908
    %v7755 = vsel %vm4433, %v6219, %v6910
    %v7756 = vsel %vm4433, %v6220, %v6912
    %v7757 = vsel %vm4433, %v6221, %v6914
    %v7758 = vsel %vm4433, %v6222, %v6916
    %v7759 = vsel %vm4433, %v6223, %v6918
    %v7760 = vsel %vm4433, %v6224, %v6920
    %v7761 = vsel %vm4433, %v6225, %v6922
    %v7762 = vsel %vm4433, %v6226, %v6924
    %v7763 = vsel %vm4433, %v6227, %v6926
    %v7764 = vsel %vm4433, %v6228, %v6928
    %v7765 = vsel %vm4433, %v6229, %v6930
    %v7766 = vsel %vm4433, %v6230, %v6932
    %v7767 = vsel %vm4433, %v6231, %v6934
    %v7768 = vsel %vm4433, %v6232, %v6936
    %v7769 = vsel %vm4433, %v6233, %v6938
    %v7770 = vsel %vm4433, %v6234, %v6940
    %v7771 = vsel %vm4433, %v6235, %v6942
    %v7772 = vsel %vm4433, %v6236, %v6944
    %v7773 = vsel %vm4433, %v6237, %v6946
    %v7774 = vsel %vm4433, %v6238, %v6948
    %v7775 = vsel %vm4433, %v6239, %v6950
    %v7776 = vsel %vm4433, %v6240, %v6952
    %v7777 = vsel %vm4433, %v6241, %v6954
    %v7778 = vsel %vm4433, %v6242, %v6956
    %v7779 = vsel %vm4433, %v6243, %v6958
    %v7780 = vsel %vm4433, %v6244, %v6960
    %v7781 = vsel %vm4433, %v6245, %v6962
    %v7782 = vsel %vm4433, %v6246, %v6964
    %v7783 = vsel %vm4433, %v6247, %v6966
    %v7784 = vsel %vm4433, %v6248, %v6968
    %v7785 = vsel %vm4433, %v6249, %v6970
    %v7786 = vsel %vm4433, %v6250, %v6972
    %v7787 = vsel %vm4433, %v6251, %v6974
    %v7788 = vsel %vm4433, %v6252, %v6976
    %v7789 = vsel %vm4433, %v6253, %v6978
    %v7790 = vsel %vm4433, %v6254, %v6980
    %v7791 = vsel %vm4433, %v6255, %v6982
    %v7792 = vsel %vm4433, %v6256, %v6984
    %v7793 = vsel %vm4433, %v6257, %v6986
    %v7794 = vsel %vm4433, %v6258, %v6988
    %v7795 = vsel %vm4433, %v6259, %v6990
    %v7796 = vsel %vm4433, %v6260, %v6992
    %v7797 = vsel %vm4433, %v6261, %v6994
    %v7798 = vsel %vm4433, %v6262, %v6996
    %v7799 = vsel %vm4433, %v6263, %v6998
    %v7800 = vsel %vm4433, %v6264, %v7000
    %v7801 = vsel %vm4433, %v6265, %v7002
    %v7802 = vsel %vm4433, %v6266, %v7004
    %v7803 = vsel %vm4433, %v6267, %v7006
    %v7804 = vsel %vm4433, %v6268, %v7008
    %v7805 = vsel %vm4433, %v6269, %v7010
    %v7806 = vsel %vm4433, %v6270, %v7012
    %v7807 = vsel %vm4433, %v6271, %v7014
    %v7808 = vsel %vm4433, %v6272, %v7016
    %v7809 = vsel %vm4433, %v6273, %v7018
    %v7810 = vsel %vm4433, %v6274, %v7020
    %v7811 = vsel %vm4433, %v6275, %v7022
    %v7812 = vsel %vm4433, %v6276, %v7024
    %v7813 = vsel %vm4433, %v6277, %v7026
    %v7814 = vsel %vm4433, %v6278, %v7028
    %v7815 = vsel %vm4433, %v6279, %v7030
    %v7816 = vsel %vm4433, %v6280, %v7032
    %v7817 = vsel %vm4433, %v6281, %v7034
    %v7818 = vsel %vm4433, %v6282, %v7036
    %v7819 = vsel %vm4433, %v6283, %v7038
    %v7820 = vsel %vm4433, %v6284, %v7040
    %v7821 = vsel %vm4433, %v6285, %v7042
    %v7822 = vsel %vm4433, %v6286, %v7044
    %v7823 = vsel %vm4433, %v6287, %v7046
    %v7824 = vsel %vm4433, %v6288, %v7048
    %v7825 = vsel %vm4433, %v6289, %v7050
    %v7826 = vsel %vm4433, %v6290, %v7052
    %v7827 = vsel %vm4433, %v6291, %v7054
    %v7828 = vsel %vm4433, %v6292, %v7056
    %v7829 = vsel %vm4433, %v6293, %v7058
    %v7830 = vsel %vm4433, %v6294, %v7060
    %v7831 = vsel %vm4433, %v6295, %v7062
    %v7832 = vsel %vm4433, %v6296, %v7064
    %v7833 = vsel %vm4562, %v7705, %v7322
    %v7834 = vsel %vm4562, %v7706, %v7324
    %v7835 = vsel %vm4562, %v7707, %v7326
    %v7836 = vsel %vm4562, %v7708, %v7328
    %v7837 = vsel %vm4562, %v7709, %v7330
    %v7838 = vsel %vm4562, %v7710, %v7332
    %v7839 = vsel %vm4562, %v7711, %v7334
    %v7840 = vsel %vm4562, %v7712, %v7336
    %v7841 = vsel %vm4562, %v7713, %v7338
    %v7842 = vsel %vm4562, %v7714, %v7340
    %v7843 = vsel %vm4562, %v7715, %v7342
    %v7844 = vsel %vm4562, %v7716, %v7344
    %v7845 = vsel %vm4562, %v7717, %v7346
    %v7846 = vsel %vm4562, %v7718, %v7348
    %v7847 = vsel %vm4562, %v7719, %v7350
    %v7848 = vsel %vm4562, %v7720, %v7352
    %v7849 = vsel %vm4562, %v7721, %v7354
    %v7850 = vsel %vm4562, %v7722, %v7356
    %v7851 = vsel %vm4562, %v7723, %v7358
    %v7852 = vsel %vm4562, %v7724, %v7360
    %v7853 = vsel %vm4562, %v7725, %v7362
    %v7854 = vsel %vm4562, %v7726, %v7364
    %v7855 = vsel %vm4562, %v7727, %v7366
    %v7856 = vsel %vm4562, %v7728, %v7368
    %v7857 = vsel %vm4562, %v7729, %v7370
    %v7858 = vsel %vm4562, %v7730, %v7372
    %v7859 = vsel %vm4562, %v7731, %v7374
    %v7860 = vsel %vm4562, %v7732, %v7376
    %v7861 = vsel %vm4562, %v7733, %v7378
    %v7862 = vsel %vm4562, %v7734, %v7380
    %v7863 = vsel %vm4562, %v7735, %v7382
    %v7864 = vsel %vm4562, %v7736, %v7384
    %v7865 = vsel %vm4562, %v7737, %v7386
    %v7866 = vsel %vm4562, %v7738, %v7388
    %v7867 = vsel %vm4562, %v7739, %v7390
    %v7868 = vsel %vm4562, %v7740, %v7392
    %v7869 = vsel %vm4562, %v7741, %v7394
    %v7870 = vsel %vm4562, %v7742, %v7396
    %v7871 = vsel %vm4562, %v7743, %v7398
    %v7872 = vsel %vm4562, %v7744, %v7400
    %v7873 = vsel %vm4562, %v7745, %v7402
    %v7874 = vsel %vm4562, %v7746, %v7404
    %v7875 = vsel %vm4562, %v7747, %v7406
    %v7876 = vsel %vm4562, %v7748, %v7408
    %v7877 = vsel %vm4562, %v7749, %v7410
    %v7878 = vsel %vm4562, %v7750, %v7412
    %v7879 = vsel %vm4562, %v7751, %v7414
    %v7880 = vsel %vm4562, %v7752, %v7416
    %v7881 = vsel %vm4562, %v7753, %v7418
    %v7882 = vsel %vm4562, %v7754, %v7420
    %v7883 = vsel %vm4562, %v7755, %v7422
    %v7884 = vsel %vm4562, %v7756, %v7424
    %v7885 = vsel %vm4562, %v7757, %v7426
    %v7886 = vsel %vm4562, %v7758, %v7428
    %v7887 = vsel %vm4562, %v7759, %v7430
    %v7888 = vsel %vm4562, %v7760, %v7432
    %v7889 = vsel %vm4562, %v7761, %v7434
    %v7890 = vsel %vm4562, %v7762, %v7436
    %v7891 = vsel %vm4562, %v7763, %v7438
    %v7892 = vsel %vm4562, %v7764, %v7440
    %v7893 = vsel %vm4562, %v7765, %v7442
    %v7894 = vsel %vm4562, %v7766, %v7444
    %v7895 = vsel %vm4562, %v7767, %v7446
    %v7896 = vsel %vm4562, %v7768, %v7448
    %v7897 = vsel %vm4562, %v7769, %v7450
    %v7898 = vsel %vm4562, %v7770, %v7452
    %v7899 = vsel %vm4562, %v7771, %v7454
    %v7900 = vsel %vm4562, %v7772, %v7456
    %v7901 = vsel %vm4562, %v7773, %v7458
    %v7902 = vsel %vm4562, %v7774, %v7460
    %v7903 = vsel %vm4562, %v7775, %v7462
    %v7904 = vsel %vm4562, %v7776, %v7464
    %v7905 = vsel %vm4562, %v7777, %v7466
    %v7906 = vsel %vm4562, %v7778, %v7468
    %v7907 = vsel %vm4562, %v7779, %v7470
    %v7908 = vsel %vm4562, %v7780, %v7472
    %v7909 = vsel %vm4562, %v7781, %v7474
    %v7910 = vsel %vm4562, %v7782, %v7476
    %v7911 = vsel %vm4562, %v7783, %v7478
    %v7912 = vsel %vm4562, %v7784, %v7480
    %v7913 = vsel %vm4562, %v7785, %v7482
    %v7914 = vsel %vm4562, %v7786, %v7484
    %v7915 = vsel %vm4562, %v7787, %v7486
    %v7916 = vsel %vm4562, %v7788, %v7488
    %v7917 = vsel %vm4562, %v7789, %v7490
    %v7918 = vsel %vm4562, %v7790, %v7492
    %v7919 = vsel %vm4562, %v7791, %v7494
    %v7920 = vsel %vm4562, %v7792, %v7496
    %v7921 = vsel %vm4562, %v7793, %v7498
    %v7922 = vsel %vm4562, %v7794, %v7500
    %v7923 = vsel %vm4562, %v7795, %v7502
    %v7924 = vsel %vm4562, %v7796, %v7504
    %v7925 = vsel %vm4562, %v7797, %v7506
    %v7926 = vsel %vm4562, %v7798, %v7508
    %v7927 = vsel %vm4562, %v7799, %v7510
    %v7928 = vsel %vm4562, %v7800, %v7512
    %v7929 = vsel %vm4562, %v7801, %v7514
    %v7930 = vsel %vm4562, %v7802, %v7516
    %v7931 = vsel %vm4562, %v7803, %v7518
    %v7932 = vsel %vm4562, %v7804, %v7520
    %v7933 = vsel %vm4562, %v7805, %v7522
    %v7934 = vsel %vm4562, %v7806, %v7524
    %v7935 = vsel %vm4562, %v7807, %v7526
    %v7936 = vsel %vm4562, %v7808, %v7528
    %v7937 = vsel %vm4562, %v7809, %v7530
    %v7938 = vsel %vm4562, %v7810, %v7532
    %v7939 = vsel %vm4562, %v7811, %v7534
    %v7940 = vsel %vm4562, %v7812, %v7536
    %v7941 = vsel %vm4562, %v7813, %v7538
    %v7942 = vsel %vm4562, %v7814, %v7540
    %v7943 = vsel %vm4562, %v7815, %v7542
    %v7944 = vsel %vm4562, %v7816, %v7544
    %v7945 = vsel %vm4562, %v7817, %v7546
    %v7946 = vsel %vm4562, %v7818, %v7548
    %v7947 = vsel %vm4562, %v7819, %v7550
    %v7948 = vsel %vm4562, %v7820, %v7552
    %v7949 = vsel %vm4562, %v7821, %v7554
    %v7950 = vsel %vm4562, %v7822, %v7556
    %v7951 = vsel %vm4562, %v7823, %v7558
    %v7952 = vsel %vm4562, %v7824, %v7560
    %v7953 = vsel %vm4562, %v7825, %v7562
    %v7954 = vsel %vm4562, %v7826, %v7564
    %v7955 = vsel %vm4562, %v7827, %v7566
    %v7956 = vsel %vm4562, %v7828, %v7568
    %v7957 = vsel %vm4562, %v7829, %v7570
    %v7958 = vsel %vm4562, %v7830, %v7572
    %v7959 = vsel %vm4562, %v7831, %v7574
    %v7960 = vsel %vm4562, %v7832, %v7576
    %v7961 = vlaneseq
    %v7962 = vshrl.u32 %v7961, 7
    %v7963 = vsub.s32 1, %v7962
    %v7964 = vrot.slane %v2498, %v7963
    %v7966 = vsel %vm4695, %v7833, 0
    %v7969 = vsel %vm4695, %v7834, 0
    %v7972 = vsel %vm4695, %v7835, 0
    %v7975 = vsel %vm4695, %v7836, 0
    %v7978 = vsel %vm4695, %v7837, 0
    %v7981 = vsel %vm4695, %v7838, 0
    %v7984 = vsel %vm4695, %v7839, 0
    %v7987 = vsel %vm4695, %v7840, 0
    %v7990 = vsel %vm4695, %v7841, 0
    %v7993 = vsel %vm4695, %v7842, 0
    %v7996 = vsel %vm4695, %v7843, 0
    %v7999 = vsel %vm4695, %v7844, 0
    %v8002 = vsel %vm4695, %v7845, 0
    %v8005 = vsel %vm4695, %v7846, 0
    %v8008 = vsel %vm4695, %v7847, 0
    %v8011 = vsel %vm4695, %v7848, 0
    %v8014 = vsel %vm4695, %v7849, 0
    %v8017 = vsel %vm4695, %v7850, 0
    %v8020 = vsel %vm4695, %v7851, 0
    %v8023 = vsel %vm4695, %v7852, 0
    %v8026 = vsel %vm4695, %v7853, 0
    %v8029 = vsel %vm4695, %v7854, 0
    %v8032 = vsel %vm4695, %v7855, 0
    %v8035 = vsel %vm4695, %v7856, 0
    %v8038 = vsel %vm4695, %v7857, 0
    %v8041 = vsel %vm4695, %v7858, 0
    %v8044 = vsel %vm4695, %v7859, 0
    %v8047 = vsel %vm4695, %v7860, 0
    %v8050 = vsel %vm4695, %v7861, 0
    %v8053 = vsel %vm4695, %v7862, 0
    %v8056 = vsel %vm4695, %v7863, 0
    %v8059 = vsel %vm4695, %v7864, 0
    %v8062 = vsel %vm4695, %v7865, 0
    %v8065 = vsel %vm4695, %v7866, 0
    %v8068 = vsel %vm4695, %v7867, 0
    %v8071 = vsel %vm4695, %v7868, 0
    %v8074 = vsel %vm4695, %v7869, 0
    %v8077 = vsel %vm4695, %v7870, 0
    %v8080 = vsel %vm4695, %v7871, 0
    %v8083 = vsel %vm4695, %v7872, 0
    %v8086 = vsel %vm4695, %v7873, 0
    %v8089 = vsel %vm4695, %v7874, 0
    %v8092 = vsel %vm4695, %v7875, 0
    %v8095 = vsel %vm4695, %v7876, 0
    %v8098 = vsel %vm4695, %v7877, 0
    %v8101 = vsel %vm4695, %v7878, 0
    %v8104 = vsel %vm4695, %v7879, 0
    %v8107 = vsel %vm4695, %v7880, 0
    %v8110 = vsel %vm4695, %v7881, 0
    %v8113 = vsel %vm4695, %v7882, 0
    %v8116 = vsel %vm4695, %v7883, 0
    %v8119 = vsel %vm4695, %v7884, 0
    %v8122 = vsel %vm4695, %v7885, 0
    %v8125 = vsel %vm4695, %v7886, 0
    %v8128 = vsel %vm4695, %v7887, 0
    %v8131 = vsel %vm4695, %v7888, 0
    %v8134 = vsel %vm4695, %v7889, 0
    %v8137 = vsel %vm4695, %v7890, 0
    %v8140 = vsel %vm4695, %v7891, 0
    %v8143 = vsel %vm4695, %v7892, 0
    %v8146 = vsel %vm4695, %v7893, 0
    %v8149 = vsel %vm4695, %v7894, 0
    %v8152 = vsel %vm4695, %v7895, 0
    %v8155 = vsel %vm4695, %v7896, 0
    %v8158 = vsel %vm4695, %v7897, 0
    %v8161 = vsel %vm4695, %v7898, 0
    %v8164 = vsel %vm4695, %v7899, 0
    %v8167 = vsel %vm4695, %v7900, 0
    %v8170 = vsel %vm4695, %v7901, 0
    %v8173 = vsel %vm4695, %v7902, 0
    %v8176 = vsel %vm4695, %v7903, 0
    %v8179 = vsel %vm4695, %v7904, 0
    %v8182 = vsel %vm4695, %v7905, 0
    %v8185 = vsel %vm4695, %v7906, 0
    %v8188 = vsel %vm4695, %v7907, 0
    %v8191 = vsel %vm4695, %v7908, 0
    %v8194 = vsel %vm4695, %v7909, 0
    %v8197 = vsel %vm4695, %v7910, 0
    %v8200 = vsel %vm4695, %v7911, 0
    %v8203 = vsel %vm4695, %v7912, 0
    %v8206 = vsel %vm4695, %v7913, 0
    %v8209 = vsel %vm4695, %v7914, 0
    %v8212 = vsel %vm4695, %v7915, 0
    %v8215 = vsel %vm4695, %v7916, 0
    %v8218 = vsel %vm4695, %v7917, 0
    %v8221 = vsel %vm4695, %v7918, 0
    %v8224 = vsel %vm4695, %v7919, 0
    %v8227 = vsel %vm4695, %v7920, 0
    %v8230 = vsel %vm4695, %v7921, 0
    %v8233 = vsel %vm4695, %v7922, 0
    %v8236 = vsel %vm4695, %v7923, 0
    %v8239 = vsel %vm4695, %v7924, 0
    %v8242 = vsel %vm4695, %v7925, 0
    %v8245 = vsel %vm4695, %v7926, 0
    %v8248 = vsel %vm4695, %v7927, 0
    %v8251 = vsel %vm4695, %v7928, 0
    %v8254 = vsel %vm4695, %v7929, 0
    %v8257 = vsel %vm4695, %v7930, 0
    %v8260 = vsel %vm4695, %v7931, 0
    %v8263 = vsel %vm4695, %v7932, 0
    %v8266 = vsel %vm4695, %v7933, 0
    %v8269 = vsel %vm4695, %v7934, 0
    %v8272 = vsel %vm4695, %v7935, 0
    %v8275 = vsel %vm4695, %v7936, 0
    %v8278 = vsel %vm4695, %v7937, 0
    %v8281 = vsel %vm4695, %v7938, 0
    %v8284 = vsel %vm4695, %v7939, 0
    %v8287 = vsel %vm4695, %v7940, 0
    %v8290 = vsel %vm4695, %v7941, 0
    %v8293 = vsel %vm4695, %v7942, 0
    %v8296 = vsel %vm4695, %v7943, 0
    %v8299 = vsel %vm4695, %v7944, 0
    %v8302 = vsel %vm4695, %v7945, 0
    %v8305 = vsel %vm4695, %v7946, 0
    %v8308 = vsel %vm4695, %v7947, 0
    %v8311 = vsel %vm4695, %v7948, 0
    %v8314 = vsel %vm4695, %v7949, 0
    %v8317 = vsel %vm4695, %v7950, 0
    %v8320 = vsel %vm4695, %v7951, 0
    %v8323 = vsel %vm4695, %v7952, 0
    %v8326 = vsel %vm4695, %v7953, 0
    %v8329 = vsel %vm4695, %v7954, 0
    %v8332 = vsel %vm4695, %v7955, 0
    %v8335 = vsel %vm4695, %v7956, 0
    %v8338 = vsel %vm4695, %v7957, 0
    %v8341 = vsel %vm4695, %v7958, 0
    %v8344 = vsel %vm4695, %v7959, 0
    %v8347 = vsel %vm4695, %v7960, 0
    %8349 = vmatprep.subr.mxu0 0.0
    %8350 = vmatpush1.msra.mxu0 0.0
    %8351 = vmatprep.subr.mxu0 0.0
    %8352 = vmatpush1.msra.mxu0 0.0
    %8353 = vmatprep.subr.mxu0 0.0
    %8354 = vmatpush1.msra.mxu0 0.0
    %8355 = vmatprep.subr.mxu0 0.0
    %8356 = vmatpush1.msra.mxu0 0.0
    %8357 = vmatprep.subr.mxu0 0.0
    %8358 = vmatpush1.msra.mxu0 %v2471
    %8359 = vmatprep.subr.mxu0 0.0
    %8360 = vmatpush1.msra.mxu0 %v2470
    %8361 = vmatprep.subr.mxu0 0.0
    %8362 = vmatpush1.msra.mxu0 %v2469
    %8363 = vmatprep.subr.mxu0 0.0
    %8364 = vmatpush1.msra.mxu0 %v2468
    %8365 = vmatprep.subr.mxu0 0.0
    %8366 = vmatpush1.msra.mxu0 %v2467
    %8367 = vmatprep.subr.mxu0 0.0
    %8368 = vmatpush1.msra.mxu0 %v2466
    %8369 = vmatprep.subr.mxu0 0.0
    %8370 = vmatpush1.msra.mxu0 %v2465
    %8371 = vmatprep.subr.mxu0 0.0
    %8372 = vmatpush1.msra.mxu0 %v2464
    %8373 = vmatprep.subr.mxu0 0.0
    %8374 = vmatpush1.msra.mxu0 %v2463
    %8375 = vmatprep.subr.mxu0 0.0
    %8376 = vmatpush1.msra.mxu0 %v2462
    %8377 = vmatprep.subr.mxu0 0.0
    %8378 = vmatpush1.msra.mxu0 %v2461
    %8379 = vmatprep.subr.mxu0 0.0
    %8380 = vmatpush1.msra.mxu0 %v2460
    %8381 = vmatprep.subr.mxu0 0.0
    %8382 = vmatpush2.msra.mxu0 0.0
    %8383 = vmatprep.subr.mxu0 0.0
    %8384 = vmatpush2.msra.mxu0 0.0
    %8385 = vmatprep.subr.mxu0 0.0
    %8386 = vmatpush2.msra.mxu0 0.0
    %8387 = vmatprep.subr.mxu0 0.0
    %8388 = vmatpush2.msra.mxu0 0.0
    %8389 = vmatprep.subr.mxu0 0.0
    %8390 = vmatpush2.msra.mxu0 0.0
    %8391 = vmatprep.subr.mxu0 0.0
    %8392 = vmatpush2.msra.mxu0 0.0
    %8393 = vmatprep.subr.mxu0 0.0
    %8394 = vmatpush2.msra.mxu0 0.0
    %8395 = vmatprep.subr.mxu0 0.0
    %8396 = vmatpush2.msra.mxu0 0.0
    %8397 = vmatprep.subr.mxu0 0.0
    %8398 = vmatpush2.msra.mxu0 0.0
    %8399 = vmatprep.subr.mxu0 0.0
    %8400 = vmatpush2.msra.mxu0 0.0
    %8401 = vmatprep.subr.mxu0 0.0
    %8402 = vmatpush2.msra.mxu0 0.0
    %8403 = vmatprep.subr.mxu0 0.0
    %8404 = vmatpush2.msra.mxu0 0.0
    %8405 = vmatprep.subr.mxu0 0.0
    %8406 = vmatpush2.msra.mxu0 0.0
    %8407 = vmatprep.subr.mxu0 0.0
    %8408 = vmatpush2.msra.mxu0 0.0
    %8409 = vmatprep.subr.mxu0 0.0
    %8410 = vmatpush2.msra.mxu0 0.0
    %8411 = vmatprep.subr.mxu0 0.0
    %8412 = vmatpush2.msra.mxu0 0.0
    %8413 = vmatprep.mubr.f32.mxu0 0.0
    %8414 = vmatmul.mubr.f32.gmra.mxu0 %v7966
    %v8415 = vpop.f32.mrf.mxu0
    %v8416 = vadd.f32 %v7964, %v8415
    %v8417 = vpop.f32.mrf.mxu0
    %8418 = vmatprep.mubr.f32.mxu0 0.0
    %8419 = vmatmul.mubr.f32.gmra.mxu0 %v7969
    %v8420 = vpop.f32.mrf.mxu0
    %v8421 = vadd.f32 %v7964, %v8420
    %v8422 = vpop.f32.mrf.mxu0
    %8423 = vmatprep.mubr.f32.mxu0 0.0
    %8424 = vmatmul.mubr.f32.gmra.mxu0 %v7972
    %v8425 = vpop.f32.mrf.mxu0
    %v8426 = vadd.f32 %v7964, %v8425
    %v8427 = vpop.f32.mrf.mxu0
    %8428 = vmatprep.mubr.f32.mxu0 0.0
    %8429 = vmatmul.mubr.f32.gmra.mxu0 %v7975
    %v8430 = vpop.f32.mrf.mxu0
    %v8431 = vadd.f32 %v7964, %v8430
    %v8432 = vpop.f32.mrf.mxu0
    %8433 = vmatprep.mubr.f32.mxu0 0.0
    %8434 = vmatmul.mubr.f32.gmra.mxu0 %v7978
    %v8435 = vpop.f32.mrf.mxu0
    %v8436 = vadd.f32 %v7964, %v8435
    %v8437 = vpop.f32.mrf.mxu0
    %8438 = vmatprep.mubr.f32.mxu0 0.0
    %8439 = vmatmul.mubr.f32.gmra.mxu0 %v7981
    %v8440 = vpop.f32.mrf.mxu0
    %v8441 = vadd.f32 %v7964, %v8440
    %v8442 = vpop.f32.mrf.mxu0
    %8443 = vmatprep.mubr.f32.mxu0 0.0
    %8444 = vmatmul.mubr.f32.gmra.mxu0 %v7984
    %v8445 = vpop.f32.mrf.mxu0
    %v8446 = vadd.f32 %v7964, %v8445
    %v8447 = vpop.f32.mrf.mxu0
    %8448 = vmatprep.mubr.f32.mxu0 0.0
    %8449 = vmatmul.mubr.f32.gmra.mxu0 %v7987
    %v8450 = vpop.f32.mrf.mxu0
    %v8451 = vadd.f32 %v7964, %v8450
    %v8452 = vpop.f32.mrf.mxu0
    %8453 = vmatprep.mubr.f32.mxu0 0.0
    %8454 = vmatmul.mubr.f32.gmra.mxu0 %v7990
    %v8455 = vpop.f32.mrf.mxu0
    %v8456 = vadd.f32 %v7964, %v8455
    %v8457 = vpop.f32.mrf.mxu0
    %8458 = vmatprep.mubr.f32.mxu0 0.0
    %8459 = vmatmul.mubr.f32.gmra.mxu0 %v7993
    %v8460 = vpop.f32.mrf.mxu0
    %v8461 = vadd.f32 %v7964, %v8460
    %v8462 = vpop.f32.mrf.mxu0
    %8463 = vmatprep.mubr.f32.mxu0 0.0
    %8464 = vmatmul.mubr.f32.gmra.mxu0 %v7996
    %v8465 = vpop.f32.mrf.mxu0
    %v8466 = vadd.f32 %v7964, %v8465
    %v8467 = vpop.f32.mrf.mxu0
    %8468 = vmatprep.mubr.f32.mxu0 0.0
    %8469 = vmatmul.mubr.f32.gmra.mxu0 %v7999
    %v8470 = vpop.f32.mrf.mxu0
    %v8471 = vadd.f32 %v7964, %v8470
    %v8472 = vpop.f32.mrf.mxu0
    %8473 = vmatprep.mubr.f32.mxu0 0.0
    %8474 = vmatmul.mubr.f32.gmra.mxu0 %v8002
    %v8475 = vpop.f32.mrf.mxu0
    %v8476 = vadd.f32 %v7964, %v8475
    %v8477 = vpop.f32.mrf.mxu0
    %8478 = vmatprep.mubr.f32.mxu0 0.0
    %8479 = vmatmul.mubr.f32.gmra.mxu0 %v8005
    %v8480 = vpop.f32.mrf.mxu0
    %v8481 = vadd.f32 %v7964, %v8480
    %v8482 = vpop.f32.mrf.mxu0
    %8483 = vmatprep.mubr.f32.mxu0 0.0
    %8484 = vmatmul.mubr.f32.gmra.mxu0 %v8008
    %v8485 = vpop.f32.mrf.mxu0
    %v8486 = vadd.f32 %v7964, %v8485
    %v8487 = vpop.f32.mrf.mxu0
    %8488 = vmatprep.mubr.f32.mxu0 0.0
    %8489 = vmatmul.mubr.f32.gmra.mxu0 %v8011
    %v8490 = vpop.f32.mrf.mxu0
    %v8491 = vadd.f32 %v7964, %v8490
    %v8492 = vpop.f32.mrf.mxu0
    %8493 = vmatprep.mubr.f32.mxu0 0.0
    %8494 = vmatmul.mubr.f32.gmra.mxu0 %v8014
    %v8495 = vpop.f32.mrf.mxu0
    %v8496 = vadd.f32 %v7964, %v8495
    %v8497 = vpop.f32.mrf.mxu0
    %8498 = vmatprep.mubr.f32.mxu0 0.0
    %8499 = vmatmul.mubr.f32.gmra.mxu0 %v8017
    %v8500 = vpop.f32.mrf.mxu0
    %v8501 = vadd.f32 %v7964, %v8500
    %v8502 = vpop.f32.mrf.mxu0
    %8503 = vmatprep.mubr.f32.mxu0 0.0
    %8504 = vmatmul.mubr.f32.gmra.mxu0 %v8020
    %v8505 = vpop.f32.mrf.mxu0
    %v8506 = vadd.f32 %v7964, %v8505
    %v8507 = vpop.f32.mrf.mxu0
    %8508 = vmatprep.mubr.f32.mxu0 0.0
    %8509 = vmatmul.mubr.f32.gmra.mxu0 %v8023
    %v8510 = vpop.f32.mrf.mxu0
    %v8511 = vadd.f32 %v7964, %v8510
    %v8512 = vpop.f32.mrf.mxu0
    %8513 = vmatprep.mubr.f32.mxu0 0.0
    %8514 = vmatmul.mubr.f32.gmra.mxu0 %v8026
    %v8515 = vpop.f32.mrf.mxu0
    %v8516 = vadd.f32 %v7964, %v8515
    %v8517 = vpop.f32.mrf.mxu0
    %8518 = vmatprep.mubr.f32.mxu0 0.0
    %8519 = vmatmul.mubr.f32.gmra.mxu0 %v8029
    %v8520 = vpop.f32.mrf.mxu0
    %v8521 = vadd.f32 %v7964, %v8520
    %v8522 = vpop.f32.mrf.mxu0
    %8523 = vmatprep.mubr.f32.mxu0 0.0
    %8524 = vmatmul.mubr.f32.gmra.mxu0 %v8032
    %v8525 = vpop.f32.mrf.mxu0
    %v8526 = vadd.f32 %v7964, %v8525
    %v8527 = vpop.f32.mrf.mxu0
    %8528 = vmatprep.mubr.f32.mxu0 0.0
    %8529 = vmatmul.mubr.f32.gmra.mxu0 %v8035
    %v8530 = vpop.f32.mrf.mxu0
    %v8531 = vadd.f32 %v7964, %v8530
    %v8532 = vpop.f32.mrf.mxu0
    %8533 = vmatprep.mubr.f32.mxu0 0.0
    %8534 = vmatmul.mubr.f32.gmra.mxu0 %v8038
    %v8535 = vpop.f32.mrf.mxu0
    %v8536 = vadd.f32 %v7964, %v8535
    %v8537 = vpop.f32.mrf.mxu0
    %8538 = vmatprep.mubr.f32.mxu0 0.0
    %8539 = vmatmul.mubr.f32.gmra.mxu0 %v8041
    %v8540 = vpop.f32.mrf.mxu0
    %v8541 = vadd.f32 %v7964, %v8540
    %v8542 = vpop.f32.mrf.mxu0
    %8543 = vmatprep.mubr.f32.mxu0 0.0
    %8544 = vmatmul.mubr.f32.gmra.mxu0 %v8044
    %v8545 = vpop.f32.mrf.mxu0
    %v8546 = vadd.f32 %v7964, %v8545
    %v8547 = vpop.f32.mrf.mxu0
    %8548 = vmatprep.mubr.f32.mxu0 0.0
    %8549 = vmatmul.mubr.f32.gmra.mxu0 %v8047
    %v8550 = vpop.f32.mrf.mxu0
    %v8551 = vadd.f32 %v7964, %v8550
    %v8552 = vpop.f32.mrf.mxu0
    %8553 = vmatprep.mubr.f32.mxu0 0.0
    %8554 = vmatmul.mubr.f32.gmra.mxu0 %v8050
    %v8555 = vpop.f32.mrf.mxu0
    %v8556 = vadd.f32 %v7964, %v8555
    %v8557 = vpop.f32.mrf.mxu0
    %8558 = vmatprep.mubr.f32.mxu0 0.0
    %8559 = vmatmul.mubr.f32.gmra.mxu0 %v8053
    %v8560 = vpop.f32.mrf.mxu0
    %v8561 = vadd.f32 %v7964, %v8560
    %v8562 = vpop.f32.mrf.mxu0
    %8563 = vmatprep.mubr.f32.mxu0 0.0
    %8564 = vmatmul.mubr.f32.gmra.mxu0 %v8056
    %v8565 = vpop.f32.mrf.mxu0
    %v8566 = vadd.f32 %v7964, %v8565
    %v8567 = vpop.f32.mrf.mxu0
    %8568 = vmatprep.mubr.f32.mxu0 0.0
    %8569 = vmatmul.mubr.f32.gmra.mxu0 %v8059
    %v8570 = vpop.f32.mrf.mxu0
    %v8571 = vadd.f32 %v7964, %v8570
    %v8572 = vpop.f32.mrf.mxu0
    %8573 = vmatprep.mubr.f32.mxu0 0.0
    %8574 = vmatmul.mubr.f32.gmra.mxu0 %v8062
    %v8575 = vpop.f32.mrf.mxu0
    %v8576 = vadd.f32 %v7964, %v8575
    %v8577 = vpop.f32.mrf.mxu0
    %8578 = vmatprep.mubr.f32.mxu0 0.0
    %8579 = vmatmul.mubr.f32.gmra.mxu0 %v8065
    %v8580 = vpop.f32.mrf.mxu0
    %v8581 = vadd.f32 %v7964, %v8580
    %v8582 = vpop.f32.mrf.mxu0
    %8583 = vmatprep.mubr.f32.mxu0 0.0
    %8584 = vmatmul.mubr.f32.gmra.mxu0 %v8068
    %v8585 = vpop.f32.mrf.mxu0
    %v8586 = vadd.f32 %v7964, %v8585
    %v8587 = vpop.f32.mrf.mxu0
    %8588 = vmatprep.mubr.f32.mxu0 0.0
    %8589 = vmatmul.mubr.f32.gmra.mxu0 %v8071
    %v8590 = vpop.f32.mrf.mxu0
    %v8591 = vadd.f32 %v7964, %v8590
    %v8592 = vpop.f32.mrf.mxu0
    %8593 = vmatprep.mubr.f32.mxu0 0.0
    %8594 = vmatmul.mubr.f32.gmra.mxu0 %v8074
    %v8595 = vpop.f32.mrf.mxu0
    %v8596 = vadd.f32 %v7964, %v8595
    %v8597 = vpop.f32.mrf.mxu0
    %8598 = vmatprep.mubr.f32.mxu0 0.0
    %8599 = vmatmul.mubr.f32.gmra.mxu0 %v8077
    %v8600 = vpop.f32.mrf.mxu0
    %v8601 = vadd.f32 %v7964, %v8600
    %v8602 = vpop.f32.mrf.mxu0
    %8603 = vmatprep.mubr.f32.mxu0 0.0
    %8604 = vmatmul.mubr.f32.gmra.mxu0 %v8080
    %v8605 = vpop.f32.mrf.mxu0
    %v8606 = vadd.f32 %v7964, %v8605
    %v8607 = vpop.f32.mrf.mxu0
    %8608 = vmatprep.mubr.f32.mxu0 0.0
    %8609 = vmatmul.mubr.f32.gmra.mxu0 %v8083
    %v8610 = vpop.f32.mrf.mxu0
    %v8611 = vadd.f32 %v7964, %v8610
    %v8612 = vpop.f32.mrf.mxu0
    %8613 = vmatprep.mubr.f32.mxu0 0.0
    %8614 = vmatmul.mubr.f32.gmra.mxu0 %v8086
    %v8615 = vpop.f32.mrf.mxu0
    %v8616 = vadd.f32 %v7964, %v8615
    %v8617 = vpop.f32.mrf.mxu0
    %8618 = vmatprep.mubr.f32.mxu0 0.0
    %8619 = vmatmul.mubr.f32.gmra.mxu0 %v8089
    %v8620 = vpop.f32.mrf.mxu0
    %v8621 = vadd.f32 %v7964, %v8620
    %v8622 = vpop.f32.mrf.mxu0
    %8623 = vmatprep.mubr.f32.mxu0 0.0
    %8624 = vmatmul.mubr.f32.gmra.mxu0 %v8092
    %v8625 = vpop.f32.mrf.mxu0
    %v8626 = vadd.f32 %v7964, %v8625
    %v8627 = vpop.f32.mrf.mxu0
    %8628 = vmatprep.mubr.f32.mxu0 0.0
    %8629 = vmatmul.mubr.f32.gmra.mxu0 %v8095
    %v8630 = vpop.f32.mrf.mxu0
    %v8631 = vadd.f32 %v7964, %v8630
    %v8632 = vpop.f32.mrf.mxu0
    %8633 = vmatprep.mubr.f32.mxu0 0.0
    %8634 = vmatmul.mubr.f32.gmra.mxu0 %v8098
    %v8635 = vpop.f32.mrf.mxu0
    %v8636 = vadd.f32 %v7964, %v8635
    %v8637 = vpop.f32.mrf.mxu0
    %8638 = vmatprep.mubr.f32.mxu0 0.0
    %8639 = vmatmul.mubr.f32.gmra.mxu0 %v8101
    %v8640 = vpop.f32.mrf.mxu0
    %v8641 = vadd.f32 %v7964, %v8640
    %v8642 = vpop.f32.mrf.mxu0
    %8643 = vmatprep.mubr.f32.mxu0 0.0
    %8644 = vmatmul.mubr.f32.gmra.mxu0 %v8104
    %v8645 = vpop.f32.mrf.mxu0
    %v8646 = vadd.f32 %v7964, %v8645
    %v8647 = vpop.f32.mrf.mxu0
    %8648 = vmatprep.mubr.f32.mxu0 0.0
    %8649 = vmatmul.mubr.f32.gmra.mxu0 %v8107
    %v8650 = vpop.f32.mrf.mxu0
    %v8651 = vadd.f32 %v7964, %v8650
    %v8652 = vpop.f32.mrf.mxu0
    %8653 = vmatprep.mubr.f32.mxu0 0.0
    %8654 = vmatmul.mubr.f32.gmra.mxu0 %v8110
    %v8655 = vpop.f32.mrf.mxu0
    %v8656 = vadd.f32 %v7964, %v8655
    %v8657 = vpop.f32.mrf.mxu0
    %8658 = vmatprep.mubr.f32.mxu0 0.0
    %8659 = vmatmul.mubr.f32.gmra.mxu0 %v8113
    %v8660 = vpop.f32.mrf.mxu0
    %v8661 = vadd.f32 %v7964, %v8660
    %v8662 = vpop.f32.mrf.mxu0
    %8663 = vmatprep.mubr.f32.mxu0 0.0
    %8664 = vmatmul.mubr.f32.gmra.mxu0 %v8116
    %v8665 = vpop.f32.mrf.mxu0
    %v8666 = vadd.f32 %v7964, %v8665
    %v8667 = vpop.f32.mrf.mxu0
    %8668 = vmatprep.mubr.f32.mxu0 0.0
    %8669 = vmatmul.mubr.f32.gmra.mxu0 %v8119
    %v8670 = vpop.f32.mrf.mxu0
    %v8671 = vadd.f32 %v7964, %v8670
    %v8672 = vpop.f32.mrf.mxu0
    %8673 = vmatprep.mubr.f32.mxu0 0.0
    %8674 = vmatmul.mubr.f32.gmra.mxu0 %v8122
    %v8675 = vpop.f32.mrf.mxu0
    %v8676 = vadd.f32 %v7964, %v8675
    %v8677 = vpop.f32.mrf.mxu0
    %8678 = vmatprep.mubr.f32.mxu0 0.0
    %8679 = vmatmul.mubr.f32.gmra.mxu0 %v8125
    %v8680 = vpop.f32.mrf.mxu0
    %v8681 = vadd.f32 %v7964, %v8680
    %v8682 = vpop.f32.mrf.mxu0
    %8683 = vmatprep.mubr.f32.mxu0 0.0
    %8684 = vmatmul.mubr.f32.gmra.mxu0 %v8128
    %v8685 = vpop.f32.mrf.mxu0
    %v8686 = vadd.f32 %v7964, %v8685
    %v8687 = vpop.f32.mrf.mxu0
    %8688 = vmatprep.mubr.f32.mxu0 0.0
    %8689 = vmatmul.mubr.f32.gmra.mxu0 %v8131
    %v8690 = vpop.f32.mrf.mxu0
    %v8691 = vadd.f32 %v7964, %v8690
    %v8692 = vpop.f32.mrf.mxu0
    %8693 = vmatprep.mubr.f32.mxu0 0.0
    %8694 = vmatmul.mubr.f32.gmra.mxu0 %v8134
    %v8695 = vpop.f32.mrf.mxu0
    %v8696 = vadd.f32 %v7964, %v8695
    %v8697 = vpop.f32.mrf.mxu0
    %8698 = vmatprep.mubr.f32.mxu0 0.0
    %8699 = vmatmul.mubr.f32.gmra.mxu0 %v8137
    %v8700 = vpop.f32.mrf.mxu0
    %v8701 = vadd.f32 %v7964, %v8700
    %v8702 = vpop.f32.mrf.mxu0
    %8703 = vmatprep.mubr.f32.mxu0 0.0
    %8704 = vmatmul.mubr.f32.gmra.mxu0 %v8140
    %v8705 = vpop.f32.mrf.mxu0
    %v8706 = vadd.f32 %v7964, %v8705
    %v8707 = vpop.f32.mrf.mxu0
    %8708 = vmatprep.mubr.f32.mxu0 0.0
    %8709 = vmatmul.mubr.f32.gmra.mxu0 %v8143
    %v8710 = vpop.f32.mrf.mxu0
    %v8711 = vadd.f32 %v7964, %v8710
    %v8712 = vpop.f32.mrf.mxu0
    %8713 = vmatprep.mubr.f32.mxu0 0.0
    %8714 = vmatmul.mubr.f32.gmra.mxu0 %v8146
    %v8715 = vpop.f32.mrf.mxu0
    %v8716 = vadd.f32 %v7964, %v8715
    %v8717 = vpop.f32.mrf.mxu0
    %8718 = vmatprep.mubr.f32.mxu0 0.0
    %8719 = vmatmul.mubr.f32.gmra.mxu0 %v8149
    %v8720 = vpop.f32.mrf.mxu0
    %v8721 = vadd.f32 %v7964, %v8720
    %v8722 = vpop.f32.mrf.mxu0
    %8723 = vmatprep.mubr.f32.mxu0 0.0
    %8724 = vmatmul.mubr.f32.gmra.mxu0 %v8152
    %v8725 = vpop.f32.mrf.mxu0
    %v8726 = vadd.f32 %v7964, %v8725
    %v8727 = vpop.f32.mrf.mxu0
    %8728 = vmatprep.mubr.f32.mxu0 0.0
    %8729 = vmatmul.mubr.f32.gmra.mxu0 %v8155
    %v8730 = vpop.f32.mrf.mxu0
    %v8731 = vadd.f32 %v7964, %v8730
    %v8732 = vpop.f32.mrf.mxu0
    %8733 = vmatprep.mubr.f32.mxu0 0.0
    %8734 = vmatmul.mubr.f32.gmra.mxu0 %v8158
    %v8735 = vpop.f32.mrf.mxu0
    %v8736 = vadd.f32 %v7964, %v8735
    %v8737 = vpop.f32.mrf.mxu0
    %8738 = vmatprep.mubr.f32.mxu0 0.0
    %8739 = vmatmul.mubr.f32.gmra.mxu0 %v8161
    %v8740 = vpop.f32.mrf.mxu0
    %v8741 = vadd.f32 %v7964, %v8740
    %v8742 = vpop.f32.mrf.mxu0
    %8743 = vmatprep.mubr.f32.mxu0 0.0
    %8744 = vmatmul.mubr.f32.gmra.mxu0 %v8164
    %v8745 = vpop.f32.mrf.mxu0
    %v8746 = vadd.f32 %v7964, %v8745
    %v8747 = vpop.f32.mrf.mxu0
    %8748 = vmatprep.mubr.f32.mxu0 0.0
    %8749 = vmatmul.mubr.f32.gmra.mxu0 %v8167
    %v8750 = vpop.f32.mrf.mxu0
    %v8751 = vadd.f32 %v7964, %v8750
    %v8752 = vpop.f32.mrf.mxu0
    %8753 = vmatprep.mubr.f32.mxu0 0.0
    %8754 = vmatmul.mubr.f32.gmra.mxu0 %v8170
    %v8755 = vpop.f32.mrf.mxu0
    %v8756 = vadd.f32 %v7964, %v8755
    %v8757 = vpop.f32.mrf.mxu0
    %8758 = vmatprep.mubr.f32.mxu0 0.0
    %8759 = vmatmul.mubr.f32.gmra.mxu0 %v8173
    %v8760 = vpop.f32.mrf.mxu0
    %v8761 = vadd.f32 %v7964, %v8760
    %v8762 = vpop.f32.mrf.mxu0
    %8763 = vmatprep.mubr.f32.mxu0 0.0
    %8764 = vmatmul.mubr.f32.gmra.mxu0 %v8176
    %v8765 = vpop.f32.mrf.mxu0
    %v8766 = vadd.f32 %v7964, %v8765
    %v8767 = vpop.f32.mrf.mxu0
    %8768 = vmatprep.mubr.f32.mxu0 0.0
    %8769 = vmatmul.mubr.f32.gmra.mxu0 %v8179
    %v8770 = vpop.f32.mrf.mxu0
    %v8771 = vadd.f32 %v7964, %v8770
    %v8772 = vpop.f32.mrf.mxu0
    %8773 = vmatprep.mubr.f32.mxu0 0.0
    %8774 = vmatmul.mubr.f32.gmra.mxu0 %v8182
    %v8775 = vpop.f32.mrf.mxu0
    %v8776 = vadd.f32 %v7964, %v8775
    %v8777 = vpop.f32.mrf.mxu0
    %8778 = vmatprep.mubr.f32.mxu0 0.0
    %8779 = vmatmul.mubr.f32.gmra.mxu0 %v8185
    %v8780 = vpop.f32.mrf.mxu0
    %v8781 = vadd.f32 %v7964, %v8780
    %v8782 = vpop.f32.mrf.mxu0
    %8783 = vmatprep.mubr.f32.mxu0 0.0
    %8784 = vmatmul.mubr.f32.gmra.mxu0 %v8188
    %v8785 = vpop.f32.mrf.mxu0
    %v8786 = vadd.f32 %v7964, %v8785
    %v8787 = vpop.f32.mrf.mxu0
    %8788 = vmatprep.mubr.f32.mxu0 0.0
    %8789 = vmatmul.mubr.f32.gmra.mxu0 %v8191
    %v8790 = vpop.f32.mrf.mxu0
    %v8791 = vadd.f32 %v7964, %v8790
    %v8792 = vpop.f32.mrf.mxu0
    %8793 = vmatprep.mubr.f32.mxu0 0.0
    %8794 = vmatmul.mubr.f32.gmra.mxu0 %v8194
    %v8795 = vpop.f32.mrf.mxu0
    %v8796 = vadd.f32 %v7964, %v8795
    %v8797 = vpop.f32.mrf.mxu0
    %8798 = vmatprep.mubr.f32.mxu0 0.0
    %8799 = vmatmul.mubr.f32.gmra.mxu0 %v8197
    %v8800 = vpop.f32.mrf.mxu0
    %v8801 = vadd.f32 %v7964, %v8800
    %v8802 = vpop.f32.mrf.mxu0
    %8803 = vmatprep.mubr.f32.mxu0 0.0
    %8804 = vmatmul.mubr.f32.gmra.mxu0 %v8200
    %v8805 = vpop.f32.mrf.mxu0
    %v8806 = vadd.f32 %v7964, %v8805
    %v8807 = vpop.f32.mrf.mxu0
    %8808 = vmatprep.mubr.f32.mxu0 0.0
    %8809 = vmatmul.mubr.f32.gmra.mxu0 %v8203
    %v8810 = vpop.f32.mrf.mxu0
    %v8811 = vadd.f32 %v7964, %v8810
    %v8812 = vpop.f32.mrf.mxu0
    %8813 = vmatprep.mubr.f32.mxu0 0.0
    %8814 = vmatmul.mubr.f32.gmra.mxu0 %v8206
    %v8815 = vpop.f32.mrf.mxu0
    %v8816 = vadd.f32 %v7964, %v8815
    %v8817 = vpop.f32.mrf.mxu0
    %8818 = vmatprep.mubr.f32.mxu0 0.0
    %8819 = vmatmul.mubr.f32.gmra.mxu0 %v8209
    %v8820 = vpop.f32.mrf.mxu0
    %v8821 = vadd.f32 %v7964, %v8820
    %v8822 = vpop.f32.mrf.mxu0
    %8823 = vmatprep.mubr.f32.mxu0 0.0
    %8824 = vmatmul.mubr.f32.gmra.mxu0 %v8212
    %v8825 = vpop.f32.mrf.mxu0
    %v8826 = vadd.f32 %v7964, %v8825
    %v8827 = vpop.f32.mrf.mxu0
    %8828 = vmatprep.mubr.f32.mxu0 0.0
    %8829 = vmatmul.mubr.f32.gmra.mxu0 %v8215
    %v8830 = vpop.f32.mrf.mxu0
    %v8831 = vadd.f32 %v7964, %v8830
    %v8832 = vpop.f32.mrf.mxu0
    %8833 = vmatprep.mubr.f32.mxu0 0.0
    %8834 = vmatmul.mubr.f32.gmra.mxu0 %v8218
    %v8835 = vpop.f32.mrf.mxu0
    %v8836 = vadd.f32 %v7964, %v8835
    %v8837 = vpop.f32.mrf.mxu0
    %8838 = vmatprep.mubr.f32.mxu0 0.0
    %8839 = vmatmul.mubr.f32.gmra.mxu0 %v8221
    %v8840 = vpop.f32.mrf.mxu0
    %v8841 = vadd.f32 %v7964, %v8840
    %v8842 = vpop.f32.mrf.mxu0
    %8843 = vmatprep.mubr.f32.mxu0 0.0
    %8844 = vmatmul.mubr.f32.gmra.mxu0 %v8224
    %v8845 = vpop.f32.mrf.mxu0
    %v8846 = vadd.f32 %v7964, %v8845
    %v8847 = vpop.f32.mrf.mxu0
    %8848 = vmatprep.mubr.f32.mxu0 0.0
    %8849 = vmatmul.mubr.f32.gmra.mxu0 %v8227
    %v8850 = vpop.f32.mrf.mxu0
    %v8851 = vadd.f32 %v7964, %v8850
    %v8852 = vpop.f32.mrf.mxu0
    %8853 = vmatprep.mubr.f32.mxu0 0.0
    %8854 = vmatmul.mubr.f32.gmra.mxu0 %v8230
    %v8855 = vpop.f32.mrf.mxu0
    %v8856 = vadd.f32 %v7964, %v8855
    %v8857 = vpop.f32.mrf.mxu0
    %8858 = vmatprep.mubr.f32.mxu0 0.0
    %8859 = vmatmul.mubr.f32.gmra.mxu0 %v8233
    %v8860 = vpop.f32.mrf.mxu0
    %v8861 = vadd.f32 %v7964, %v8860
    %v8862 = vpop.f32.mrf.mxu0
    %8863 = vmatprep.mubr.f32.mxu0 0.0
    %8864 = vmatmul.mubr.f32.gmra.mxu0 %v8236
    %v8865 = vpop.f32.mrf.mxu0
    %v8866 = vadd.f32 %v7964, %v8865
    %v8867 = vpop.f32.mrf.mxu0
    %8868 = vmatprep.mubr.f32.mxu0 0.0
    %8869 = vmatmul.mubr.f32.gmra.mxu0 %v8239
    %v8870 = vpop.f32.mrf.mxu0
    %v8871 = vadd.f32 %v7964, %v8870
    %v8872 = vpop.f32.mrf.mxu0
    %8873 = vmatprep.mubr.f32.mxu0 0.0
    %8874 = vmatmul.mubr.f32.gmra.mxu0 %v8242
    %v8875 = vpop.f32.mrf.mxu0
    %v8876 = vadd.f32 %v7964, %v8875
    %v8877 = vpop.f32.mrf.mxu0
    %8878 = vmatprep.mubr.f32.mxu0 0.0
    %8879 = vmatmul.mubr.f32.gmra.mxu0 %v8245
    %v8880 = vpop.f32.mrf.mxu0
    %v8881 = vadd.f32 %v7964, %v8880
    %v8882 = vpop.f32.mrf.mxu0
    %8883 = vmatprep.mubr.f32.mxu0 0.0
    %8884 = vmatmul.mubr.f32.gmra.mxu0 %v8248
    %v8885 = vpop.f32.mrf.mxu0
    %v8886 = vadd.f32 %v7964, %v8885
    %v8887 = vpop.f32.mrf.mxu0
    %8888 = vmatprep.mubr.f32.mxu0 0.0
    %8889 = vmatmul.mubr.f32.gmra.mxu0 %v8251
    %v8890 = vpop.f32.mrf.mxu0
    %v8891 = vadd.f32 %v7964, %v8890
    %v8892 = vpop.f32.mrf.mxu0
    %8893 = vmatprep.mubr.f32.mxu0 0.0
    %8894 = vmatmul.mubr.f32.gmra.mxu0 %v8254
    %v8895 = vpop.f32.mrf.mxu0
    %v8896 = vadd.f32 %v7964, %v8895
    %v8897 = vpop.f32.mrf.mxu0
    %8898 = vmatprep.mubr.f32.mxu0 0.0
    %8899 = vmatmul.mubr.f32.gmra.mxu0 %v8257
    %v8900 = vpop.f32.mrf.mxu0
    %v8901 = vadd.f32 %v7964, %v8900
    %v8902 = vpop.f32.mrf.mxu0
    %8903 = vmatprep.mubr.f32.mxu0 0.0
    %8904 = vmatmul.mubr.f32.gmra.mxu0 %v8260
    %v8905 = vpop.f32.mrf.mxu0
    %v8906 = vadd.f32 %v7964, %v8905
    %v8907 = vpop.f32.mrf.mxu0
    %8908 = vmatprep.mubr.f32.mxu0 0.0
    %8909 = vmatmul.mubr.f32.gmra.mxu0 %v8263
    %v8910 = vpop.f32.mrf.mxu0
    %v8911 = vadd.f32 %v7964, %v8910
    %v8912 = vpop.f32.mrf.mxu0
    %8913 = vmatprep.mubr.f32.mxu0 0.0
    %8914 = vmatmul.mubr.f32.gmra.mxu0 %v8266
    %v8915 = vpop.f32.mrf.mxu0
    %v8916 = vadd.f32 %v7964, %v8915
    %v8917 = vpop.f32.mrf.mxu0
    %8918 = vmatprep.mubr.f32.mxu0 0.0
    %8919 = vmatmul.mubr.f32.gmra.mxu0 %v8269
    %v8920 = vpop.f32.mrf.mxu0
    %v8921 = vadd.f32 %v7964, %v8920
    %v8922 = vpop.f32.mrf.mxu0
    %8923 = vmatprep.mubr.f32.mxu0 0.0
    %8924 = vmatmul.mubr.f32.gmra.mxu0 %v8272
    %v8925 = vpop.f32.mrf.mxu0
    %v8926 = vadd.f32 %v7964, %v8925
    %v8927 = vpop.f32.mrf.mxu0
    %8928 = vmatprep.mubr.f32.mxu0 0.0
    %8929 = vmatmul.mubr.f32.gmra.mxu0 %v8275
    %v8930 = vpop.f32.mrf.mxu0
    %v8931 = vadd.f32 %v7964, %v8930
    %v8932 = vpop.f32.mrf.mxu0
    %8933 = vmatprep.mubr.f32.mxu0 0.0
    %8934 = vmatmul.mubr.f32.gmra.mxu0 %v8278
    %v8935 = vpop.f32.mrf.mxu0
    %v8936 = vadd.f32 %v7964, %v8935
    %v8937 = vpop.f32.mrf.mxu0
    %8938 = vmatprep.mubr.f32.mxu0 0.0
    %8939 = vmatmul.mubr.f32.gmra.mxu0 %v8281
    %v8940 = vpop.f32.mrf.mxu0
    %v8941 = vadd.f32 %v7964, %v8940
    %v8942 = vpop.f32.mrf.mxu0
    %8943 = vmatprep.mubr.f32.mxu0 0.0
    %8944 = vmatmul.mubr.f32.gmra.mxu0 %v8284
    %v8945 = vpop.f32.mrf.mxu0
    %v8946 = vadd.f32 %v7964, %v8945
    %v8947 = vpop.f32.mrf.mxu0
    %8948 = vmatprep.mubr.f32.mxu0 0.0
    %8949 = vmatmul.mubr.f32.gmra.mxu0 %v8287
    %v8950 = vpop.f32.mrf.mxu0
    %v8951 = vadd.f32 %v7964, %v8950
    %v8952 = vpop.f32.mrf.mxu0
    %8953 = vmatprep.mubr.f32.mxu0 0.0
    %8954 = vmatmul.mubr.f32.gmra.mxu0 %v8290
    %v8955 = vpop.f32.mrf.mxu0
    %v8956 = vadd.f32 %v7964, %v8955
    %v8957 = vpop.f32.mrf.mxu0
    %8958 = vmatprep.mubr.f32.mxu0 0.0
    %8959 = vmatmul.mubr.f32.gmra.mxu0 %v8293
    %v8960 = vpop.f32.mrf.mxu0
    %v8961 = vadd.f32 %v7964, %v8960
    %v8962 = vpop.f32.mrf.mxu0
    %8963 = vmatprep.mubr.f32.mxu0 0.0
    %8964 = vmatmul.mubr.f32.gmra.mxu0 %v8296
    %v8965 = vpop.f32.mrf.mxu0
    %v8966 = vadd.f32 %v7964, %v8965
    %v8967 = vpop.f32.mrf.mxu0
    %8968 = vmatprep.mubr.f32.mxu0 0.0
    %8969 = vmatmul.mubr.f32.gmra.mxu0 %v8299
    %v8970 = vpop.f32.mrf.mxu0
    %v8971 = vadd.f32 %v7964, %v8970
    %v8972 = vpop.f32.mrf.mxu0
    %8973 = vmatprep.mubr.f32.mxu0 0.0
    %8974 = vmatmul.mubr.f32.gmra.mxu0 %v8302
    %v8975 = vpop.f32.mrf.mxu0
    %v8976 = vadd.f32 %v7964, %v8975
    %v8977 = vpop.f32.mrf.mxu0
    %8978 = vmatprep.mubr.f32.mxu0 0.0
    %8979 = vmatmul.mubr.f32.gmra.mxu0 %v8305
    %v8980 = vpop.f32.mrf.mxu0
    %v8981 = vadd.f32 %v7964, %v8980
    %v8982 = vpop.f32.mrf.mxu0
    %8983 = vmatprep.mubr.f32.mxu0 0.0
    %8984 = vmatmul.mubr.f32.gmra.mxu0 %v8308
    %v8985 = vpop.f32.mrf.mxu0
    %v8986 = vadd.f32 %v7964, %v8985
    %v8987 = vpop.f32.mrf.mxu0
    %8988 = vmatprep.mubr.f32.mxu0 0.0
    %8989 = vmatmul.mubr.f32.gmra.mxu0 %v8311
    %v8990 = vpop.f32.mrf.mxu0
    %v8991 = vadd.f32 %v7964, %v8990
    %v8992 = vpop.f32.mrf.mxu0
    %8993 = vmatprep.mubr.f32.mxu0 0.0
    %8994 = vmatmul.mubr.f32.gmra.mxu0 %v8314
    %v8995 = vpop.f32.mrf.mxu0
    %v8996 = vadd.f32 %v7964, %v8995
    %v8997 = vpop.f32.mrf.mxu0
    %8998 = vmatprep.mubr.f32.mxu0 0.0
    %8999 = vmatmul.mubr.f32.gmra.mxu0 %v8317
    %v9000 = vpop.f32.mrf.mxu0
    %v9001 = vadd.f32 %v7964, %v9000
    %v9002 = vpop.f32.mrf.mxu0
    %9003 = vmatprep.mubr.f32.mxu0 0.0
    %9004 = vmatmul.mubr.f32.gmra.mxu0 %v8320
    %v9005 = vpop.f32.mrf.mxu0
    %v9006 = vadd.f32 %v7964, %v9005
    %v9007 = vpop.f32.mrf.mxu0
    %9008 = vmatprep.mubr.f32.mxu0 0.0
    %9009 = vmatmul.mubr.f32.gmra.mxu0 %v8323
    %v9010 = vpop.f32.mrf.mxu0
    %v9011 = vadd.f32 %v7964, %v9010
    %v9012 = vpop.f32.mrf.mxu0
    %9013 = vmatprep.mubr.f32.mxu0 0.0
    %9014 = vmatmul.mubr.f32.gmra.mxu0 %v8326
    %v9015 = vpop.f32.mrf.mxu0
    %v9016 = vadd.f32 %v7964, %v9015
    %v9017 = vpop.f32.mrf.mxu0
    %9018 = vmatprep.mubr.f32.mxu0 0.0
    %9019 = vmatmul.mubr.f32.gmra.mxu0 %v8329
    %v9020 = vpop.f32.mrf.mxu0
    %v9021 = vadd.f32 %v7964, %v9020
    %v9022 = vpop.f32.mrf.mxu0
    %9023 = vmatprep.mubr.f32.mxu0 0.0
    %9024 = vmatmul.mubr.f32.gmra.mxu0 %v8332
    %v9025 = vpop.f32.mrf.mxu0
    %v9026 = vadd.f32 %v7964, %v9025
    %v9027 = vpop.f32.mrf.mxu0
    %9028 = vmatprep.mubr.f32.mxu0 0.0
    %9029 = vmatmul.mubr.f32.gmra.mxu0 %v8335
    %v9030 = vpop.f32.mrf.mxu0
    %v9031 = vadd.f32 %v7964, %v9030
    %v9032 = vpop.f32.mrf.mxu0
    %9033 = vmatprep.mubr.f32.mxu0 0.0
    %9034 = vmatmul.mubr.f32.gmra.mxu0 %v8338
    %v9035 = vpop.f32.mrf.mxu0
    %v9036 = vadd.f32 %v7964, %v9035
    %v9037 = vpop.f32.mrf.mxu0
    %9038 = vmatprep.mubr.f32.mxu0 0.0
    %9039 = vmatmul.mubr.f32.gmra.mxu0 %v8341
    %v9040 = vpop.f32.mrf.mxu0
    %v9041 = vadd.f32 %v7964, %v9040
    %v9042 = vpop.f32.mrf.mxu0
    %9043 = vmatprep.mubr.f32.mxu0 0.0
    %9044 = vmatmul.mubr.f32.gmra.mxu0 %v8344
    %v9045 = vpop.f32.mrf.mxu0
    %v9046 = vadd.f32 %v7964, %v9045
    %v9047 = vpop.f32.mrf.mxu0
    %9048 = vmatprep.mubr.f32.mxu0 0.0
    %9049 = vmatmul.mubr.f32.gmra.mxu0 %v8347
    %v9050 = vpop.f32.mrf.mxu0
    %v9051 = vadd.f32 %v7964, %v9050
    %v9052 = vpop.f32.mrf.mxu0
    %9053 = vdwg.mxu0
    %v9054 = vmax.f32 %v8416, 0.0
    %v9055 = vmax.f32 %v8421, 0.0
    %v9056 = vmax.f32 %v8426, 0.0
    %v9057 = vmax.f32 %v8431, 0.0
    %v9058 = vmax.f32 %v8436, 0.0
    %v9059 = vmax.f32 %v8441, 0.0
    %v9060 = vmax.f32 %v8446, 0.0
    %v9061 = vmax.f32 %v8451, 0.0
    %v9062 = vmax.f32 %v8456, 0.0
    %v9063 = vmax.f32 %v8461, 0.0
    %v9064 = vmax.f32 %v8466, 0.0
    %v9065 = vmax.f32 %v8471, 0.0
    %v9066 = vmax.f32 %v8476, 0.0
    %v9067 = vmax.f32 %v8481, 0.0
    %v9068 = vmax.f32 %v8486, 0.0
    %v9069 = vmax.f32 %v8491, 0.0
    %v9070 = vmax.f32 %v8496, 0.0
    %v9071 = vmax.f32 %v8501, 0.0
    %v9072 = vmax.f32 %v8506, 0.0
    %v9073 = vmax.f32 %v8511, 0.0
    %v9074 = vmax.f32 %v8516, 0.0
    %v9075 = vmax.f32 %v8521, 0.0
    %v9076 = vmax.f32 %v8526, 0.0
    %v9077 = vmax.f32 %v8531, 0.0
    %v9078 = vmax.f32 %v8536, 0.0
    %v9079 = vmax.f32 %v8541, 0.0
    %v9080 = vmax.f32 %v8546, 0.0
    %v9081 = vmax.f32 %v8551, 0.0
    %v9082 = vmax.f32 %v8556, 0.0
    %v9083 = vmax.f32 %v8561, 0.0
    %v9084 = vmax.f32 %v8566, 0.0
    %v9085 = vmax.f32 %v8571, 0.0
    %v9086 = vmax.f32 %v8576, 0.0
    %v9087 = vmax.f32 %v8581, 0.0
    %v9088 = vmax.f32 %v8586, 0.0
    %v9089 = vmax.f32 %v8591, 0.0
    %v9090 = vmax.f32 %v8596, 0.0
    %v9091 = vmax.f32 %v8601, 0.0
    %v9092 = vmax.f32 %v8606, 0.0
    %v9093 = vmax.f32 %v8611, 0.0
    %v9094 = vmax.f32 %v8616, 0.0
    %v9095 = vmax.f32 %v8621, 0.0
    %v9096 = vmax.f32 %v8626, 0.0
    %v9097 = vmax.f32 %v8631, 0.0
    %v9098 = vmax.f32 %v8636, 0.0
    %v9099 = vmax.f32 %v8641, 0.0
    %v9100 = vmax.f32 %v8646, 0.0
    %v9101 = vmax.f32 %v8651, 0.0
    %v9102 = vmax.f32 %v8656, 0.0
    %v9103 = vmax.f32 %v8661, 0.0
    %v9104 = vmax.f32 %v8666, 0.0
    %v9105 = vmax.f32 %v8671, 0.0
    %v9106 = vmax.f32 %v8676, 0.0
    %v9107 = vmax.f32 %v8681, 0.0
    %v9108 = vmax.f32 %v8686, 0.0
    %v9109 = vmax.f32 %v8691, 0.0
    %v9110 = vmax.f32 %v8696, 0.0
    %v9111 = vmax.f32 %v8701, 0.0
    %v9112 = vmax.f32 %v8706, 0.0
    %v9113 = vmax.f32 %v8711, 0.0
    %v9114 = vmax.f32 %v8716, 0.0
    %v9115 = vmax.f32 %v8721, 0.0
    %v9116 = vmax.f32 %v8726, 0.0
    %v9117 = vmax.f32 %v8731, 0.0
    %v9118 = vmax.f32 %v8736, 0.0
    %v9119 = vmax.f32 %v8741, 0.0
    %v9120 = vmax.f32 %v8746, 0.0
    %v9121 = vmax.f32 %v8751, 0.0
    %v9122 = vmax.f32 %v8756, 0.0
    %v9123 = vmax.f32 %v8761, 0.0
    %v9124 = vmax.f32 %v8766, 0.0
    %v9125 = vmax.f32 %v8771, 0.0
    %v9126 = vmax.f32 %v8776, 0.0
    %v9127 = vmax.f32 %v8781, 0.0
    %v9128 = vmax.f32 %v8786, 0.0
    %v9129 = vmax.f32 %v8791, 0.0
    %v9130 = vmax.f32 %v8796, 0.0
    %v9131 = vmax.f32 %v8801, 0.0
    %v9132 = vmax.f32 %v8806, 0.0
    %v9133 = vmax.f32 %v8811, 0.0
    %v9134 = vmax.f32 %v8816, 0.0
    %v9135 = vmax.f32 %v8821, 0.0
    %v9136 = vmax.f32 %v8826, 0.0
    %v9137 = vmax.f32 %v8831, 0.0
    %v9138 = vmax.f32 %v8836, 0.0
    %v9139 = vmax.f32 %v8841, 0.0
    %v9140 = vmax.f32 %v8846, 0.0
    %v9141 = vmax.f32 %v8851, 0.0
    %v9142 = vmax.f32 %v8856, 0.0
    %v9143 = vmax.f32 %v8861, 0.0
    %v9144 = vmax.f32 %v8866, 0.0
    %v9145 = vmax.f32 %v8871, 0.0
    %v9146 = vmax.f32 %v8876, 0.0
    %v9147 = vmax.f32 %v8881, 0.0
    %v9148 = vmax.f32 %v8886, 0.0
    %v9149 = vmax.f32 %v8891, 0.0
    %v9150 = vmax.f32 %v8896, 0.0
    %v9151 = vmax.f32 %v8901, 0.0
    %v9152 = vmax.f32 %v8906, 0.0
    %v9153 = vmax.f32 %v8911, 0.0
    %v9154 = vmax.f32 %v8916, 0.0
    %v9155 = vmax.f32 %v8921, 0.0
    %v9156 = vmax.f32 %v8926, 0.0
    %v9157 = vmax.f32 %v8931, 0.0
    %v9158 = vmax.f32 %v8936, 0.0
    %v9159 = vmax.f32 %v8941, 0.0
    %v9160 = vmax.f32 %v8946, 0.0
    %v9161 = vmax.f32 %v8951, 0.0
    %v9162 = vmax.f32 %v8956, 0.0
    %v9163 = vmax.f32 %v8961, 0.0
    %v9164 = vmax.f32 %v8966, 0.0
    %v9165 = vmax.f32 %v8971, 0.0
    %v9166 = vmax.f32 %v8976, 0.0
    %v9167 = vmax.f32 %v8981, 0.0
    %v9168 = vmax.f32 %v8986, 0.0
    %v9169 = vmax.f32 %v8991, 0.0
    %v9170 = vmax.f32 %v8996, 0.0
    %v9171 = vmax.f32 %v9001, 0.0
    %v9172 = vmax.f32 %v9006, 0.0
    %v9173 = vmax.f32 %v9011, 0.0
    %v9174 = vmax.f32 %v9016, 0.0
    %v9175 = vmax.f32 %v9021, 0.0
    %v9176 = vmax.f32 %v9026, 0.0
    %v9177 = vmax.f32 %v9031, 0.0
    %v9178 = vmax.f32 %v9036, 0.0
    %v9179 = vmax.f32 %v9041, 0.0
    %v9180 = vmax.f32 %v9046, 0.0
    %v9181 = vmax.f32 %v9051, 0.0
    %v9182 = vrot.slane %v9054, 7
    %v9183 = vrot.slane %v9055, 7
    %v9184 = vrot.slane %v9056, 7
    %v9185 = vrot.slane %v9057, 7
    %v9186 = vrot.slane %v9058, 7
    %v9187 = vrot.slane %v9059, 7
    %v9188 = vrot.slane %v9060, 7
    %v9189 = vrot.slane %v9061, 7
    %v9190 = vrot.slane %v9062, 7
    %v9191 = vrot.slane %v9063, 7
    %v9192 = vrot.slane %v9064, 7
    %v9193 = vrot.slane %v9065, 7
    %v9194 = vrot.slane %v9066, 7
    %v9195 = vrot.slane %v9067, 7
    %v9196 = vrot.slane %v9068, 7
    %v9197 = vrot.slane %v9069, 7
    %v9198 = vrot.slane %v9070, 7
    %v9199 = vrot.slane %v9071, 7
    %v9200 = vrot.slane %v9072, 7
    %v9201 = vrot.slane %v9073, 7
    %v9202 = vrot.slane %v9074, 7
    %v9203 = vrot.slane %v9075, 7
    %v9204 = vrot.slane %v9076, 7
    %v9205 = vrot.slane %v9077, 7
    %v9206 = vrot.slane %v9078, 7
    %v9207 = vrot.slane %v9079, 7
    %v9208 = vrot.slane %v9080, 7
    %v9209 = vrot.slane %v9081, 7
    %v9210 = vrot.slane %v9082, 7
    %v9211 = vrot.slane %v9083, 7
    %v9212 = vrot.slane %v9084, 7
    %v9213 = vrot.slane %v9085, 7
    %v9214 = vrot.slane %v9086, 7
    %v9215 = vrot.slane %v9087, 7
    %v9216 = vrot.slane %v9088, 7
    %v9217 = vrot.slane %v9089, 7
    %v9218 = vrot.slane %v9090, 7
    %v9219 = vrot.slane %v9091, 7
    %v9220 = vrot.slane %v9092, 7
    %v9221 = vrot.slane %v9093, 7
    %v9222 = vrot.slane %v9094, 7
    %v9223 = vrot.slane %v9095, 7
    %v9224 = vrot.slane %v9096, 7
    %v9225 = vrot.slane %v9097, 7
    %v9226 = vrot.slane %v9098, 7
    %v9227 = vrot.slane %v9099, 7
    %v9228 = vrot.slane %v9100, 7
    %v9229 = vrot.slane %v9101, 7
    %v9230 = vrot.slane %v9102, 7
    %v9231 = vrot.slane %v9103, 7
    %v9232 = vrot.slane %v9104, 7
    %v9233 = vrot.slane %v9105, 7
    %v9234 = vrot.slane %v9106, 7
    %v9235 = vrot.slane %v9107, 7
    %v9236 = vrot.slane %v9108, 7
    %v9237 = vrot.slane %v9109, 7
    %v9238 = vrot.slane %v9110, 7
    %v9239 = vrot.slane %v9111, 7
    %v9240 = vrot.slane %v9112, 7
    %v9241 = vrot.slane %v9113, 7
    %v9242 = vrot.slane %v9114, 7
    %v9243 = vrot.slane %v9115, 7
    %v9244 = vrot.slane %v9116, 7
    %v9245 = vrot.slane %v9117, 7
    %v9246 = vrot.slane %v9118, 7
    %v9247 = vrot.slane %v9119, 7
    %v9248 = vrot.slane %v9120, 7
    %v9249 = vrot.slane %v9121, 7
    %v9250 = vrot.slane %v9122, 7
    %v9251 = vrot.slane %v9123, 7
    %v9252 = vrot.slane %v9124, 7
    %v9253 = vrot.slane %v9125, 7
    %v9254 = vrot.slane %v9126, 7
    %v9255 = vrot.slane %v9127, 7
    %v9256 = vrot.slane %v9128, 7
    %v9257 = vrot.slane %v9129, 7
    %v9258 = vrot.slane %v9130, 7
    %v9259 = vrot.slane %v9131, 7
    %v9260 = vrot.slane %v9132, 7
    %v9261 = vrot.slane %v9133, 7
    %v9262 = vrot.slane %v9134, 7
    %v9263 = vrot.slane %v9135, 7
    %v9264 = vrot.slane %v9136, 7
    %v9265 = vrot.slane %v9137, 7
    %v9266 = vrot.slane %v9138, 7
    %v9267 = vrot.slane %v9139, 7
    %v9268 = vrot.slane %v9140, 7
    %v9269 = vrot.slane %v9141, 7
    %v9270 = vrot.slane %v9142, 7
    %v9271 = vrot.slane %v9143, 7
    %v9272 = vrot.slane %v9144, 7
    %v9273 = vrot.slane %v9145, 7
    %v9274 = vrot.slane %v9146, 7
    %v9275 = vrot.slane %v9147, 7
    %v9276 = vrot.slane %v9148, 7
    %v9277 = vrot.slane %v9149, 7
    %v9278 = vrot.slane %v9150, 7
    %v9279 = vrot.slane %v9151, 7
    %v9280 = vrot.slane %v9152, 7
    %v9281 = vrot.slane %v9153, 7
    %v9282 = vrot.slane %v9154, 7
    %v9283 = vrot.slane %v9155, 7
    %v9284 = vrot.slane %v9156, 7
    %v9285 = vrot.slane %v9157, 7
    %v9286 = vrot.slane %v9158, 7
    %v9287 = vrot.slane %v9159, 7
    %v9288 = vrot.slane %v9160, 7
    %v9289 = vrot.slane %v9161, 7
    %v9290 = vrot.slane %v9162, 7
    %v9291 = vrot.slane %v9163, 7
    %v9292 = vrot.slane %v9164, 7
    %v9293 = vrot.slane %v9165, 7
    %v9294 = vrot.slane %v9166, 7
    %v9295 = vrot.slane %v9167, 7
    %v9296 = vrot.slane %v9168, 7
    %v9297 = vrot.slane %v9169, 7
    %v9298 = vrot.slane %v9170, 7
    %v9299 = vrot.slane %v9171, 7
    %v9300 = vrot.slane %v9172, 7
    %v9301 = vrot.slane %v9173, 7
    %v9302 = vrot.slane %v9174, 7
    %v9303 = vrot.slane %v9175, 7
    %v9304 = vrot.slane %v9176, 7
    %v9305 = vrot.slane %v9177, 7
    %v9306 = vrot.slane %v9178, 7
    %v9307 = vrot.slane %v9179, 7
    %v9308 = vrot.slane %v9180, 7
    %v9309 = vrot.slane %v9181, 7
    %v9310 = vsel %vm2767, %v9308, %v9309
    %v9311 = vsel %vm2767, %v9307, %v9308
    %v9312 = vsel %vm2767, %v9306, %v9307
    %v9313 = vsel %vm2767, %v9305, %v9306
    %v9314 = vsel %vm2767, %v9304, %v9305
    %v9315 = vsel %vm2767, %v9303, %v9304
    %v9316 = vsel %vm2767, %v9302, %v9303
    %v9317 = vsel %vm2767, %v9301, %v9302
    %v9318 = vsel %vm2767, %v9300, %v9301
    %v9319 = vsel %vm2767, %v9299, %v9300
    %v9320 = vsel %vm2767, %v9298, %v9299
    %v9321 = vsel %vm2767, %v9297, %v9298
    %v9322 = vsel %vm2767, %v9296, %v9297
    %v9323 = vsel %vm2767, %v9295, %v9296
    %v9324 = vsel %vm2767, %v9294, %v9295
    %v9325 = vsel %vm2767, %v9293, %v9294
    %v9326 = vsel %vm2767, %v9292, %v9293
    %v9327 = vsel %vm2767, %v9291, %v9292
    %v9328 = vsel %vm2767, %v9290, %v9291
    %v9329 = vsel %vm2767, %v9289, %v9290
    %v9330 = vsel %vm2767, %v9288, %v9289
    %v9331 = vsel %vm2767, %v9287, %v9288
    %v9332 = vsel %vm2767, %v9286, %v9287
    %v9333 = vsel %vm2767, %v9285, %v9286
    %v9334 = vsel %vm2767, %v9284, %v9285
    %v9335 = vsel %vm2767, %v9283, %v9284
    %v9336 = vsel %vm2767, %v9282, %v9283
    %v9337 = vsel %vm2767, %v9281, %v9282
    %v9338 = vsel %vm2767, %v9280, %v9281
    %v9339 = vsel %vm2767, %v9279, %v9280
    %v9340 = vsel %vm2767, %v9278, %v9279
    %v9341 = vsel %vm2767, %v9277, %v9278
    %v9342 = vsel %vm2767, %v9276, %v9277
    %v9343 = vsel %vm2767, %v9275, %v9276
    %v9344 = vsel %vm2767, %v9274, %v9275
    %v9345 = vsel %vm2767, %v9273, %v9274
    %v9346 = vsel %vm2767, %v9272, %v9273
    %v9347 = vsel %vm2767, %v9271, %v9272
    %v9348 = vsel %vm2767, %v9270, %v9271
    %v9349 = vsel %vm2767, %v9269, %v9270
    %v9350 = vsel %vm2767, %v9268, %v9269
    %v9351 = vsel %vm2767, %v9267, %v9268
    %v9352 = vsel %vm2767, %v9266, %v9267
    %v9353 = vsel %vm2767, %v9265, %v9266
    %v9354 = vsel %vm2767, %v9264, %v9265
    %v9355 = vsel %vm2767, %v9263, %v9264
    %v9356 = vsel %vm2767, %v9262, %v9263
    %v9357 = vsel %vm2767, %v9261, %v9262
    %v9358 = vsel %vm2767, %v9260, %v9261
    %v9359 = vsel %vm2767, %v9259, %v9260
    %v9360 = vsel %vm2767, %v9258, %v9259
    %v9361 = vsel %vm2767, %v9257, %v9258
    %v9362 = vsel %vm2767, %v9256, %v9257
    %v9363 = vsel %vm2767, %v9255, %v9256
    %v9364 = vsel %vm2767, %v9254, %v9255
    %v9365 = vsel %vm2767, %v9253, %v9254
    %v9366 = vsel %vm2767, %v9252, %v9253
    %v9367 = vsel %vm2767, %v9251, %v9252
    %v9368 = vsel %vm2767, %v9250, %v9251
    %v9369 = vsel %vm2767, %v9249, %v9250
    %v9370 = vsel %vm2767, %v9248, %v9249
    %v9371 = vsel %vm2767, %v9247, %v9248
    %v9372 = vsel %vm2767, %v9246, %v9247
    %v9373 = vsel %vm2767, %v9245, %v9246
    %v9374 = vsel %vm2767, %v9244, %v9245
    %v9375 = vsel %vm2767, %v9243, %v9244
    %v9376 = vsel %vm2767, %v9242, %v9243
    %v9377 = vsel %vm2767, %v9241, %v9242
    %v9378 = vsel %vm2767, %v9240, %v9241
    %v9379 = vsel %vm2767, %v9239, %v9240
    %v9380 = vsel %vm2767, %v9238, %v9239
    %v9381 = vsel %vm2767, %v9237, %v9238
    %v9382 = vsel %vm2767, %v9236, %v9237
    %v9383 = vsel %vm2767, %v9235, %v9236
    %v9384 = vsel %vm2767, %v9234, %v9235
    %v9385 = vsel %vm2767, %v9233, %v9234
    %v9386 = vsel %vm2767, %v9232, %v9233
    %v9387 = vsel %vm2767, %v9231, %v9232
    %v9388 = vsel %vm2767, %v9230, %v9231
    %v9389 = vsel %vm2767, %v9229, %v9230
    %v9390 = vsel %vm2767, %v9228, %v9229
    %v9391 = vsel %vm2767, %v9227, %v9228
    %v9392 = vsel %vm2767, %v9226, %v9227
    %v9393 = vsel %vm2767, %v9225, %v9226
    %v9394 = vsel %vm2767, %v9224, %v9225
    %v9395 = vsel %vm2767, %v9223, %v9224
    %v9396 = vsel %vm2767, %v9222, %v9223
    %v9397 = vsel %vm2767, %v9221, %v9222
    %v9398 = vsel %vm2767, %v9220, %v9221
    %v9399 = vsel %vm2767, %v9219, %v9220
    %v9400 = vsel %vm2767, %v9218, %v9219
    %v9401 = vsel %vm2767, %v9217, %v9218
    %v9402 = vsel %vm2767, %v9216, %v9217
    %v9403 = vsel %vm2767, %v9215, %v9216
    %v9404 = vsel %vm2767, %v9214, %v9215
    %v9405 = vsel %vm2767, %v9213, %v9214
    %v9406 = vsel %vm2767, %v9212, %v9213
    %v9407 = vsel %vm2767, %v9211, %v9212
    %v9408 = vsel %vm2767, %v9210, %v9211
    %v9409 = vsel %vm2767, %v9209, %v9210
    %v9410 = vsel %vm2767, %v9208, %v9209
    %v9411 = vsel %vm2767, %v9207, %v9208
    %v9412 = vsel %vm2767, %v9206, %v9207
    %v9413 = vsel %vm2767, %v9205, %v9206
    %v9414 = vsel %vm2767, %v9204, %v9205
    %v9415 = vsel %vm2767, %v9203, %v9204
    %v9416 = vsel %vm2767, %v9202, %v9203
    %v9417 = vsel %vm2767, %v9201, %v9202
    %v9418 = vsel %vm2767, %v9200, %v9201
    %v9419 = vsel %vm2767, %v9199, %v9200
    %v9420 = vsel %vm2767, %v9198, %v9199
    %v9421 = vsel %vm2767, %v9197, %v9198
    %v9422 = vsel %vm2767, %v9196, %v9197
    %v9423 = vsel %vm2767, %v9195, %v9196
    %v9424 = vsel %vm2767, %v9194, %v9195
    %v9425 = vsel %vm2767, %v9193, %v9194
    %v9426 = vsel %vm2767, %v9192, %v9193
    %v9427 = vsel %vm2767, %v9191, %v9192
    %v9428 = vsel %vm2767, %v9190, %v9191
    %v9429 = vsel %vm2767, %v9189, %v9190
    %v9430 = vsel %vm2767, %v9188, %v9189
    %v9431 = vsel %vm2767, %v9187, %v9188
    %v9432 = vsel %vm2767, %v9186, %v9187
    %v9433 = vsel %vm2767, %v9185, %v9186
    %v9434 = vsel %vm2767, %v9184, %v9185
    %v9435 = vsel %vm2767, %v9183, %v9184
    %v9436 = vsel %vm2767, %v9182, %v9183
    %v9437 = vsel %vm2767, %v9309, %v9182
    %v9438 = vsel %vm2076, %v9437, 0.0
    %v9439 = vsel %vm2077, %v9436, 0.0
    %v9440 = vsel %vm2078, %v9435, 0.0
    %v9441 = vsel %vm2079, %v9434, 0.0
    %v9442 = vsel %vm2080, %v9433, 0.0
    %v9443 = vsel %vm2081, %v9432, 0.0
    %v9444 = vsel %vm2082, %v9431, 0.0
    %v9445 = vsel %vm2083, %v9430, 0.0
    %v9446 = vsel %vm2084, %v9429, 0.0
    %v9447 = vsel %vm2085, %v9428, 0.0
    %v9448 = vsel %vm2086, %v9427, 0.0
    %v9449 = vsel %vm2087, %v9426, 0.0
    %v9450 = vsel %vm2088, %v9425, 0.0
    %v9451 = vsel %vm2089, %v9424, 0.0
    %v9452 = vsel %vm2090, %v9423, 0.0
    %v9453 = vsel %vm2091, %v9422, 0.0
    %v9454 = vsel %vm2092, %v9421, 0.0
    %v9455 = vsel %vm2093, %v9420, 0.0
    %v9456 = vsel %vm2094, %v9419, 0.0
    %v9457 = vsel %vm2095, %v9418, 0.0
    %v9458 = vsel %vm2096, %v9417, 0.0
    %v9459 = vsel %vm2097, %v9416, 0.0
    %v9460 = vsel %vm2098, %v9415, 0.0
    %v9461 = vsel %vm2099, %v9414, 0.0
    %v9462 = vsel %vm2100, %v9413, 0.0
    %v9463 = vsel %vm2101, %v9412, 0.0
    %v9464 = vsel %vm2102, %v9411, 0.0
    %v9465 = vsel %vm2103, %v9410, 0.0
    %v9466 = vsel %vm2104, %v9409, 0.0
    %v9467 = vsel %vm2105, %v9408, 0.0
    %v9468 = vsel %vm2106, %v9407, 0.0
    %v9469 = vsel %vm2107, %v9406, 0.0
    %v9470 = vsel %vm2108, %v9405, 0.0
    %v9471 = vsel %vm2109, %v9404, 0.0
    %v9472 = vsel %vm2110, %v9403, 0.0
    %v9473 = vsel %vm2111, %v9402, 0.0
    %v9474 = vsel %vm2112, %v9401, 0.0
    %v9475 = vsel %vm2113, %v9400, 0.0
    %v9476 = vsel %vm2114, %v9399, 0.0
    %v9477 = vsel %vm2115, %v9398, 0.0
    %v9478 = vsel %vm2116, %v9397, 0.0
    %v9479 = vsel %vm2117, %v9396, 0.0
    %v9480 = vsel %vm2118, %v9395, 0.0
    %v9481 = vsel %vm2119, %v9394, 0.0
    %v9482 = vsel %vm2120, %v9393, 0.0
    %v9483 = vsel %vm2121, %v9392, 0.0
    %v9484 = vsel %vm2122, %v9391, 0.0
    %v9485 = vsel %vm2123, %v9390, 0.0
    %v9486 = vsel %vm2124, %v9389, 0.0
    %v9487 = vsel %vm2125, %v9388, 0.0
    %v9488 = vsel %vm2126, %v9387, 0.0
    %v9489 = vsel %vm2127, %v9386, 0.0
    %v9490 = vsel %vm2128, %v9385, 0.0
    %v9491 = vsel %vm2129, %v9384, 0.0
    %v9492 = vsel %vm2130, %v9383, 0.0
    %v9493 = vsel %vm2131, %v9382, 0.0
    %v9494 = vsel %vm2132, %v9381, 0.0
    %v9495 = vsel %vm2133, %v9380, 0.0
    %v9496 = vsel %vm2134, %v9379, 0.0
    %v9497 = vsel %vm2135, %v9378, 0.0
    %v9498 = vsel %vm2136, %v9377, 0.0
    %v9499 = vsel %vm2137, %v9376, 0.0
    %v9500 = vsel %vm2138, %v9375, 0.0
    %v9501 = vsel %vm2139, %v9374, 0.0
    %v9502 = vsel %vm2140, %v9373, 0.0
    %v9503 = vsel %vm2141, %v9372, 0.0
    %v9504 = vsel %vm2142, %v9371, 0.0
    %v9505 = vsel %vm2143, %v9370, 0.0
    %v9506 = vsel %vm2144, %v9369, 0.0
    %v9507 = vsel %vm2145, %v9368, 0.0
    %v9508 = vsel %vm2146, %v9367, 0.0
    %v9509 = vsel %vm2147, %v9366, 0.0
    %v9510 = vsel %vm2148, %v9365, 0.0
    %v9511 = vsel %vm2149, %v9364, 0.0
    %v9512 = vsel %vm2150, %v9363, 0.0
    %v9513 = vsel %vm2151, %v9362, 0.0
    %v9514 = vsel %vm2152, %v9361, 0.0
    %v9515 = vsel %vm2153, %v9360, 0.0
    %v9516 = vsel %vm2154, %v9359, 0.0
    %v9517 = vsel %vm2155, %v9358, 0.0
    %v9518 = vsel %vm2156, %v9357, 0.0
    %v9519 = vsel %vm2157, %v9356, 0.0
    %v9520 = vsel %vm2158, %v9355, 0.0
    %v9521 = vsel %vm2159, %v9354, 0.0
    %v9522 = vsel %vm2160, %v9353, 0.0
    %v9523 = vsel %vm2161, %v9352, 0.0
    %v9524 = vsel %vm2162, %v9351, 0.0
    %v9525 = vsel %vm2163, %v9350, 0.0
    %v9526 = vsel %vm2164, %v9349, 0.0
    %v9527 = vsel %vm2165, %v9348, 0.0
    %v9528 = vsel %vm2166, %v9347, 0.0
    %v9529 = vsel %vm2167, %v9346, 0.0
    %v9530 = vsel %vm2168, %v9345, 0.0
    %v9531 = vsel %vm2169, %v9344, 0.0
    %v9532 = vsel %vm2170, %v9343, 0.0
    %v9533 = vsel %vm2171, %v9342, 0.0
    %v9534 = vsel %vm2172, %v9341, 0.0
    %v9535 = vsel %vm2173, %v9340, 0.0
    %v9536 = vsel %vm2174, %v9339, 0.0
    %v9537 = vsel %vm2175, %v9338, 0.0
    %v9538 = vsel %vm2176, %v9337, 0.0
    %v9539 = vsel %vm2177, %v9336, 0.0
    %v9540 = vsel %vm2178, %v9335, 0.0
    %v9541 = vsel %vm2179, %v9334, 0.0
    %v9542 = vsel %vm2180, %v9333, 0.0
    %v9543 = vsel %vm2181, %v9332, 0.0
    %v9544 = vsel %vm2182, %v9331, 0.0
    %v9545 = vsel %vm2183, %v9330, 0.0
    %v9546 = vsel %vm2184, %v9329, 0.0
    %v9547 = vsel %vm2185, %v9328, 0.0
    %v9548 = vsel %vm2186, %v9327, 0.0
    %v9549 = vsel %vm2187, %v9326, 0.0
    %v9550 = vsel %vm2188, %v9325, 0.0
    %v9551 = vsel %vm2189, %v9324, 0.0
    %v9552 = vsel %vm2190, %v9323, 0.0
    %v9553 = vsel %vm2191, %v9322, 0.0
    %v9554 = vsel %vm2192, %v9321, 0.0
    %v9555 = vsel %vm2193, %v9320, 0.0
    %v9556 = vsel %vm2194, %v9319, 0.0
    %v9557 = vsel %vm2195, %v9318, 0.0
    %v9558 = vsel %vm2196, %v9317, 0.0
    %v9559 = vsel %vm2197, %v9316, 0.0
    %v9560 = vsel %vm2198, %v9315, 0.0
    %v9561 = vsel %vm2199, %v9314, 0.0
    %v9562 = vsel %vm2200, %v9313, 0.0
    %v9563 = vsel %vm2201, %v9312, 0.0
    %v9564 = vsel %vm2202, %v9311, 0.0
    %v9565 = vsel %vm2203, %v9310, 0.0
    %v9566 = vrot.slane %v9054, 1
    %v9567 = vrot.slane %v9055, 1
    %v9568 = vrot.slane %v9056, 1
    %v9569 = vrot.slane %v9057, 1
    %v9570 = vrot.slane %v9058, 1
    %v9571 = vrot.slane %v9059, 1
    %v9572 = vrot.slane %v9060, 1
    %v9573 = vrot.slane %v9061, 1
    %v9574 = vrot.slane %v9062, 1
    %v9575 = vrot.slane %v9063, 1
    %v9576 = vrot.slane %v9064, 1
    %v9577 = vrot.slane %v9065, 1
    %v9578 = vrot.slane %v9066, 1
    %v9579 = vrot.slane %v9067, 1
    %v9580 = vrot.slane %v9068, 1
    %v9581 = vrot.slane %v9069, 1
    %v9582 = vrot.slane %v9070, 1
    %v9583 = vrot.slane %v9071, 1
    %v9584 = vrot.slane %v9072, 1
    %v9585 = vrot.slane %v9073, 1
    %v9586 = vrot.slane %v9074, 1
    %v9587 = vrot.slane %v9075, 1
    %v9588 = vrot.slane %v9076, 1
    %v9589 = vrot.slane %v9077, 1
    %v9590 = vrot.slane %v9078, 1
    %v9591 = vrot.slane %v9079, 1
    %v9592 = vrot.slane %v9080, 1
    %v9593 = vrot.slane %v9081, 1
    %v9594 = vrot.slane %v9082, 1
    %v9595 = vrot.slane %v9083, 1
    %v9596 = vrot.slane %v9084, 1
    %v9597 = vrot.slane %v9085, 1
    %v9598 = vrot.slane %v9086, 1
    %v9599 = vrot.slane %v9087, 1
    %v9600 = vrot.slane %v9088, 1
    %v9601 = vrot.slane %v9089, 1
    %v9602 = vrot.slane %v9090, 1
    %v9603 = vrot.slane %v9091, 1
    %v9604 = vrot.slane %v9092, 1
    %v9605 = vrot.slane %v9093, 1
    %v9606 = vrot.slane %v9094, 1
    %v9607 = vrot.slane %v9095, 1
    %v9608 = vrot.slane %v9096, 1
    %v9609 = vrot.slane %v9097, 1
    %v9610 = vrot.slane %v9098, 1
    %v9611 = vrot.slane %v9099, 1
    %v9612 = vrot.slane %v9100, 1
    %v9613 = vrot.slane %v9101, 1
    %v9614 = vrot.slane %v9102, 1
    %v9615 = vrot.slane %v9103, 1
    %v9616 = vrot.slane %v9104, 1
    %v9617 = vrot.slane %v9105, 1
    %v9618 = vrot.slane %v9106, 1
    %v9619 = vrot.slane %v9107, 1
    %v9620 = vrot.slane %v9108, 1
    %v9621 = vrot.slane %v9109, 1
    %v9622 = vrot.slane %v9110, 1
    %v9623 = vrot.slane %v9111, 1
    %v9624 = vrot.slane %v9112, 1
    %v9625 = vrot.slane %v9113, 1
    %v9626 = vrot.slane %v9114, 1
    %v9627 = vrot.slane %v9115, 1
    %v9628 = vrot.slane %v9116, 1
    %v9629 = vrot.slane %v9117, 1
    %v9630 = vrot.slane %v9118, 1
    %v9631 = vrot.slane %v9119, 1
    %v9632 = vrot.slane %v9120, 1
    %v9633 = vrot.slane %v9121, 1
    %v9634 = vrot.slane %v9122, 1
    %v9635 = vrot.slane %v9123, 1
    %v9636 = vrot.slane %v9124, 1
    %v9637 = vrot.slane %v9125, 1
    %v9638 = vrot.slane %v9126, 1
    %v9639 = vrot.slane %v9127, 1
    %v9640 = vrot.slane %v9128, 1
    %v9641 = vrot.slane %v9129, 1
    %v9642 = vrot.slane %v9130, 1
    %v9643 = vrot.slane %v9131, 1
    %v9644 = vrot.slane %v9132, 1
    %v9645 = vrot.slane %v9133, 1
    %v9646 = vrot.slane %v9134, 1
    %v9647 = vrot.slane %v9135, 1
    %v9648 = vrot.slane %v9136, 1
    %v9649 = vrot.slane %v9137, 1
    %v9650 = vrot.slane %v9138, 1
    %v9651 = vrot.slane %v9139, 1
    %v9652 = vrot.slane %v9140, 1
    %v9653 = vrot.slane %v9141, 1
    %v9654 = vrot.slane %v9142, 1
    %v9655 = vrot.slane %v9143, 1
    %v9656 = vrot.slane %v9144, 1
    %v9657 = vrot.slane %v9145, 1
    %v9658 = vrot.slane %v9146, 1
    %v9659 = vrot.slane %v9147, 1
    %v9660 = vrot.slane %v9148, 1
    %v9661 = vrot.slane %v9149, 1
    %v9662 = vrot.slane %v9150, 1
    %v9663 = vrot.slane %v9151, 1
    %v9664 = vrot.slane %v9152, 1
    %v9665 = vrot.slane %v9153, 1
    %v9666 = vrot.slane %v9154, 1
    %v9667 = vrot.slane %v9155, 1
    %v9668 = vrot.slane %v9156, 1
    %v9669 = vrot.slane %v9157, 1
    %v9670 = vrot.slane %v9158, 1
    %v9671 = vrot.slane %v9159, 1
    %v9672 = vrot.slane %v9160, 1
    %v9673 = vrot.slane %v9161, 1
    %v9674 = vrot.slane %v9162, 1
    %v9675 = vrot.slane %v9163, 1
    %v9676 = vrot.slane %v9164, 1
    %v9677 = vrot.slane %v9165, 1
    %v9678 = vrot.slane %v9166, 1
    %v9679 = vrot.slane %v9167, 1
    %v9680 = vrot.slane %v9168, 1
    %v9681 = vrot.slane %v9169, 1
    %v9682 = vrot.slane %v9170, 1
    %v9683 = vrot.slane %v9171, 1
    %v9684 = vrot.slane %v9172, 1
    %v9685 = vrot.slane %v9173, 1
    %v9686 = vrot.slane %v9174, 1
    %v9687 = vrot.slane %v9175, 1
    %v9688 = vrot.slane %v9176, 1
    %v9689 = vrot.slane %v9177, 1
    %v9690 = vrot.slane %v9178, 1
    %v9691 = vrot.slane %v9179, 1
    %v9692 = vrot.slane %v9180, 1
    %v9693 = vrot.slane %v9181, 1
    %v9694 = vsel %vm3152, %v9692, %v9693
    %v9695 = vsel %vm3152, %v9691, %v9692
    %v9696 = vsel %vm3152, %v9690, %v9691
    %v9697 = vsel %vm3152, %v9689, %v9690
    %v9698 = vsel %vm3152, %v9688, %v9689
    %v9699 = vsel %vm3152, %v9687, %v9688
    %v9700 = vsel %vm3152, %v9686, %v9687
    %v9701 = vsel %vm3152, %v9685, %v9686
    %v9702 = vsel %vm3152, %v9684, %v9685
    %v9703 = vsel %vm3152, %v9683, %v9684
    %v9704 = vsel %vm3152, %v9682, %v9683
    %v9705 = vsel %vm3152, %v9681, %v9682
    %v9706 = vsel %vm3152, %v9680, %v9681
    %v9707 = vsel %vm3152, %v9679, %v9680
    %v9708 = vsel %vm3152, %v9678, %v9679
    %v9709 = vsel %vm3152, %v9677, %v9678
    %v9710 = vsel %vm3152, %v9676, %v9677
    %v9711 = vsel %vm3152, %v9675, %v9676
    %v9712 = vsel %vm3152, %v9674, %v9675
    %v9713 = vsel %vm3152, %v9673, %v9674
    %v9714 = vsel %vm3152, %v9672, %v9673
    %v9715 = vsel %vm3152, %v9671, %v9672
    %v9716 = vsel %vm3152, %v9670, %v9671
    %v9717 = vsel %vm3152, %v9669, %v9670
    %v9718 = vsel %vm3152, %v9668, %v9669
    %v9719 = vsel %vm3152, %v9667, %v9668
    %v9720 = vsel %vm3152, %v9666, %v9667
    %v9721 = vsel %vm3152, %v9665, %v9666
    %v9722 = vsel %vm3152, %v9664, %v9665
    %v9723 = vsel %vm3152, %v9663, %v9664
    %v9724 = vsel %vm3152, %v9662, %v9663
    %v9725 = vsel %vm3152, %v9661, %v9662
    %v9726 = vsel %vm3152, %v9660, %v9661
    %v9727 = vsel %vm3152, %v9659, %v9660
    %v9728 = vsel %vm3152, %v9658, %v9659
    %v9729 = vsel %vm3152, %v9657, %v9658
    %v9730 = vsel %vm3152, %v9656, %v9657
    %v9731 = vsel %vm3152, %v9655, %v9656
    %v9732 = vsel %vm3152, %v9654, %v9655
    %v9733 = vsel %vm3152, %v9653, %v9654
    %v9734 = vsel %vm3152, %v9652, %v9653
    %v9735 = vsel %vm3152, %v9651, %v9652
    %v9736 = vsel %vm3152, %v9650, %v9651
    %v9737 = vsel %vm3152, %v9649, %v9650
    %v9738 = vsel %vm3152, %v9648, %v9649
    %v9739 = vsel %vm3152, %v9647, %v9648
    %v9740 = vsel %vm3152, %v9646, %v9647
    %v9741 = vsel %vm3152, %v9645, %v9646
    %v9742 = vsel %vm3152, %v9644, %v9645
    %v9743 = vsel %vm3152, %v9643, %v9644
    %v9744 = vsel %vm3152, %v9642, %v9643
    %v9745 = vsel %vm3152, %v9641, %v9642
    %v9746 = vsel %vm3152, %v9640, %v9641
    %v9747 = vsel %vm3152, %v9639, %v9640
    %v9748 = vsel %vm3152, %v9638, %v9639
    %v9749 = vsel %vm3152, %v9637, %v9638
    %v9750 = vsel %vm3152, %v9636, %v9637
    %v9751 = vsel %vm3152, %v9635, %v9636
    %v9752 = vsel %vm3152, %v9634, %v9635
    %v9753 = vsel %vm3152, %v9633, %v9634
    %v9754 = vsel %vm3152, %v9632, %v9633
    %v9755 = vsel %vm3152, %v9631, %v9632
    %v9756 = vsel %vm3152, %v9630, %v9631
    %v9757 = vsel %vm3152, %v9629, %v9630
    %v9758 = vsel %vm3152, %v9628, %v9629
    %v9759 = vsel %vm3152, %v9627, %v9628
    %v9760 = vsel %vm3152, %v9626, %v9627
    %v9761 = vsel %vm3152, %v9625, %v9626
    %v9762 = vsel %vm3152, %v9624, %v9625
    %v9763 = vsel %vm3152, %v9623, %v9624
    %v9764 = vsel %vm3152, %v9622, %v9623
    %v9765 = vsel %vm3152, %v9621, %v9622
    %v9766 = vsel %vm3152, %v9620, %v9621
    %v9767 = vsel %vm3152, %v9619, %v9620
    %v9768 = vsel %vm3152, %v9618, %v9619
    %v9769 = vsel %vm3152, %v9617, %v9618
    %v9770 = vsel %vm3152, %v9616, %v9617
    %v9771 = vsel %vm3152, %v9615, %v9616
    %v9772 = vsel %vm3152, %v9614, %v9615
    %v9773 = vsel %vm3152, %v9613, %v9614
    %v9774 = vsel %vm3152, %v9612, %v9613
    %v9775 = vsel %vm3152, %v9611, %v9612
    %v9776 = vsel %vm3152, %v9610, %v9611
    %v9777 = vsel %vm3152, %v9609, %v9610
    %v9778 = vsel %vm3152, %v9608, %v9609
    %v9779 = vsel %vm3152, %v9607, %v9608
    %v9780 = vsel %vm3152, %v9606, %v9607
    %v9781 = vsel %vm3152, %v9605, %v9606
    %v9782 = vsel %vm3152, %v9604, %v9605
    %v9783 = vsel %vm3152, %v9603, %v9604
    %v9784 = vsel %vm3152, %v9602, %v9603
    %v9785 = vsel %vm3152, %v9601, %v9602
    %v9786 = vsel %vm3152, %v9600, %v9601
    %v9787 = vsel %vm3152, %v9599, %v9600
    %v9788 = vsel %vm3152, %v9598, %v9599
    %v9789 = vsel %vm3152, %v9597, %v9598
    %v9790 = vsel %vm3152, %v9596, %v9597
    %v9791 = vsel %vm3152, %v9595, %v9596
    %v9792 = vsel %vm3152, %v9594, %v9595
    %v9793 = vsel %vm3152, %v9593, %v9594
    %v9794 = vsel %vm3152, %v9592, %v9593
    %v9795 = vsel %vm3152, %v9591, %v9592
    %v9796 = vsel %vm3152, %v9590, %v9591
    %v9797 = vsel %vm3152, %v9589, %v9590
    %v9798 = vsel %vm3152, %v9588, %v9589
    %v9799 = vsel %vm3152, %v9587, %v9588
    %v9800 = vsel %vm3152, %v9586, %v9587
    %v9801 = vsel %vm3152, %v9585, %v9586
    %v9802 = vsel %vm3152, %v9584, %v9585
    %v9803 = vsel %vm3152, %v9583, %v9584
    %v9804 = vsel %vm3152, %v9582, %v9583
    %v9805 = vsel %vm3152, %v9581, %v9582
    %v9806 = vsel %vm3152, %v9580, %v9581
    %v9807 = vsel %vm3152, %v9579, %v9580
    %v9808 = vsel %vm3152, %v9578, %v9579
    %v9809 = vsel %vm3152, %v9577, %v9578
    %v9810 = vsel %vm3152, %v9576, %v9577
    %v9811 = vsel %vm3152, %v9575, %v9576
    %v9812 = vsel %vm3152, %v9574, %v9575
    %v9813 = vsel %vm3152, %v9573, %v9574
    %v9814 = vsel %vm3152, %v9572, %v9573
    %v9815 = vsel %vm3152, %v9571, %v9572
    %v9816 = vsel %vm3152, %v9570, %v9571
    %v9817 = vsel %vm3152, %v9569, %v9570
    %v9818 = vsel %vm3152, %v9568, %v9569
    %v9819 = vsel %vm3152, %v9567, %v9568
    %v9820 = vsel %vm3152, %v9566, %v9567
    %v9821 = vsel %vm3152, %v9693, %v9566
    %v9822 = vsel %vm2332, %v9820, 0.0
    %v9823 = vsel %vm2333, %v9819, 0.0
    %v9824 = vsel %vm2334, %v9818, 0.0
    %v9825 = vsel %vm2335, %v9817, 0.0
    %v9826 = vsel %vm2336, %v9816, 0.0
    %v9827 = vsel %vm2337, %v9815, 0.0
    %v9828 = vsel %vm2338, %v9814, 0.0
    %v9829 = vsel %vm2339, %v9813, 0.0
    %v9830 = vsel %vm2340, %v9812, 0.0
    %v9831 = vsel %vm2341, %v9811, 0.0
    %v9832 = vsel %vm2342, %v9810, 0.0
    %v9833 = vsel %vm2343, %v9809, 0.0
    %v9834 = vsel %vm2344, %v9808, 0.0
    %v9835 = vsel %vm2345, %v9807, 0.0
    %v9836 = vsel %vm2346, %v9806, 0.0
    %v9837 = vsel %vm2347, %v9805, 0.0
    %v9838 = vsel %vm2348, %v9804, 0.0
    %v9839 = vsel %vm2349, %v9803, 0.0
    %v9840 = vsel %vm2350, %v9802, 0.0
    %v9841 = vsel %vm2351, %v9801, 0.0
    %v9842 = vsel %vm2352, %v9800, 0.0
    %v9843 = vsel %vm2353, %v9799, 0.0
    %v9844 = vsel %vm2354, %v9798, 0.0
    %v9845 = vsel %vm2355, %v9797, 0.0
    %v9846 = vsel %vm2356, %v9796, 0.0
    %v9847 = vsel %vm2357, %v9795, 0.0
    %v9848 = vsel %vm2358, %v9794, 0.0
    %v9849 = vsel %vm2359, %v9793, 0.0
    %v9850 = vsel %vm2360, %v9792, 0.0
    %v9851 = vsel %vm2361, %v9791, 0.0
    %v9852 = vsel %vm2362, %v9790, 0.0
    %v9853 = vsel %vm2363, %v9789, 0.0
    %v9854 = vsel %vm2364, %v9788, 0.0
    %v9855 = vsel %vm2365, %v9787, 0.0
    %v9856 = vsel %vm2366, %v9786, 0.0
    %v9857 = vsel %vm2367, %v9785, 0.0
    %v9858 = vsel %vm2368, %v9784, 0.0
    %v9859 = vsel %vm2369, %v9783, 0.0
    %v9860 = vsel %vm2370, %v9782, 0.0
    %v9861 = vsel %vm2371, %v9781, 0.0
    %v9862 = vsel %vm2372, %v9780, 0.0
    %v9863 = vsel %vm2373, %v9779, 0.0
    %v9864 = vsel %vm2374, %v9778, 0.0
    %v9865 = vsel %vm2375, %v9777, 0.0
    %v9866 = vsel %vm2376, %v9776, 0.0
    %v9867 = vsel %vm2377, %v9775, 0.0
    %v9868 = vsel %vm2378, %v9774, 0.0
    %v9869 = vsel %vm2379, %v9773, 0.0
    %v9870 = vsel %vm2380, %v9772, 0.0
    %v9871 = vsel %vm2381, %v9771, 0.0
    %v9872 = vsel %vm2382, %v9770, 0.0
    %v9873 = vsel %vm2383, %v9769, 0.0
    %v9874 = vsel %vm2384, %v9768, 0.0
    %v9875 = vsel %vm2385, %v9767, 0.0
    %v9876 = vsel %vm2386, %v9766, 0.0
    %v9877 = vsel %vm2387, %v9765, 0.0
    %v9878 = vsel %vm2388, %v9764, 0.0
    %v9879 = vsel %vm2389, %v9763, 0.0
    %v9880 = vsel %vm2390, %v9762, 0.0
    %v9881 = vsel %vm2391, %v9761, 0.0
    %v9882 = vsel %vm2392, %v9760, 0.0
    %v9883 = vsel %vm2393, %v9759, 0.0
    %v9884 = vsel %vm2394, %v9758, 0.0
    %v9885 = vsel %vm2395, %v9757, 0.0
    %v9886 = vsel %vm2396, %v9756, 0.0
    %v9887 = vsel %vm2397, %v9755, 0.0
    %v9888 = vsel %vm2398, %v9754, 0.0
    %v9889 = vsel %vm2399, %v9753, 0.0
    %v9890 = vsel %vm2400, %v9752, 0.0
    %v9891 = vsel %vm2401, %v9751, 0.0
    %v9892 = vsel %vm2402, %v9750, 0.0
    %v9893 = vsel %vm2403, %v9749, 0.0
    %v9894 = vsel %vm2404, %v9748, 0.0
    %v9895 = vsel %vm2405, %v9747, 0.0
    %v9896 = vsel %vm2406, %v9746, 0.0
    %v9897 = vsel %vm2407, %v9745, 0.0
    %v9898 = vsel %vm2408, %v9744, 0.0
    %v9899 = vsel %vm2409, %v9743, 0.0
    %v9900 = vsel %vm2410, %v9742, 0.0
    %v9901 = vsel %vm2411, %v9741, 0.0
    %v9902 = vsel %vm2412, %v9740, 0.0
    %v9903 = vsel %vm2413, %v9739, 0.0
    %v9904 = vsel %vm2414, %v9738, 0.0
    %v9905 = vsel %vm2415, %v9737, 0.0
    %v9906 = vsel %vm2416, %v9736, 0.0
    %v9907 = vsel %vm2417, %v9735, 0.0
    %v9908 = vsel %vm2418, %v9734, 0.0
    %v9909 = vsel %vm2419, %v9733, 0.0
    %v9910 = vsel %vm2420, %v9732, 0.0
    %v9911 = vsel %vm2421, %v9731, 0.0
    %v9912 = vsel %vm2422, %v9730, 0.0
    %v9913 = vsel %vm2423, %v9729, 0.0
    %v9914 = vsel %vm2424, %v9728, 0.0
    %v9915 = vsel %vm2425, %v9727, 0.0
    %v9916 = vsel %vm2426, %v9726, 0.0
    %v9917 = vsel %vm2427, %v9725, 0.0
    %v9918 = vsel %vm2428, %v9724, 0.0
    %v9919 = vsel %vm2429, %v9723, 0.0
    %v9920 = vsel %vm2430, %v9722, 0.0
    %v9921 = vsel %vm2431, %v9721, 0.0
    %v9922 = vsel %vm2432, %v9720, 0.0
    %v9923 = vsel %vm2433, %v9719, 0.0
    %v9924 = vsel %vm2434, %v9718, 0.0
    %v9925 = vsel %vm2435, %v9717, 0.0
    %v9926 = vsel %vm2436, %v9716, 0.0
    %v9927 = vsel %vm2437, %v9715, 0.0
    %v9928 = vsel %vm2438, %v9714, 0.0
    %v9929 = vsel %vm2439, %v9713, 0.0
    %v9930 = vsel %vm2440, %v9712, 0.0
    %v9931 = vsel %vm2441, %v9711, 0.0
    %v9932 = vsel %vm2442, %v9710, 0.0
    %v9933 = vsel %vm2443, %v9709, 0.0
    %v9934 = vsel %vm2444, %v9708, 0.0
    %v9935 = vsel %vm2445, %v9707, 0.0
    %v9936 = vsel %vm2446, %v9706, 0.0
    %v9937 = vsel %vm2447, %v9705, 0.0
    %v9938 = vsel %vm2448, %v9704, 0.0
    %v9939 = vsel %vm2449, %v9703, 0.0
    %v9940 = vsel %vm2450, %v9702, 0.0
    %v9941 = vsel %vm2451, %v9701, 0.0
    %v9942 = vsel %vm2452, %v9700, 0.0
    %v9943 = vsel %vm2453, %v9699, 0.0
    %v9944 = vsel %vm2454, %v9698, 0.0
    %v9945 = vsel %vm2455, %v9697, 0.0
    %v9946 = vsel %vm2456, %v9696, 0.0
    %v9947 = vsel %vm2457, %v9695, 0.0
    %v9948 = vsel %vm2458, %v9694, 0.0
    %v9949 = vsel %vm2459, %v9821, 0.0
    %10078 = vrot.lane.b32.xlu0 %v9054, 32
    %v10079 = vpop.permute.xlu0 %10078
    %10080 = vrot.lane.b32.xlu0 %v9055, 32
    %v10081 = vpop.permute.xlu0 %10080
    %10082 = vrot.lane.b32.xlu0 %v9056, 32
    %v10083 = vpop.permute.xlu0 %10082
    %10084 = vrot.lane.b32.xlu0 %v9057, 32
    %v10085 = vpop.permute.xlu0 %10084
    %10086 = vrot.lane.b32.xlu0 %v9058, 32
    %v10087 = vpop.permute.xlu0 %10086
    %10088 = vrot.lane.b32.xlu0 %v9059, 32
    %v10089 = vpop.permute.xlu0 %10088
    %10090 = vrot.lane.b32.xlu0 %v9060, 32
    %v10091 = vpop.permute.xlu0 %10090
    %10092 = vrot.lane.b32.xlu0 %v9061, 32
    %v10093 = vpop.permute.xlu0 %10092
    %10094 = vrot.lane.b32.xlu0 %v9062, 32
    %v10095 = vpop.permute.xlu0 %10094
    %10096 = vrot.lane.b32.xlu0 %v9063, 32
    %v10097 = vpop.permute.xlu0 %10096
    %10098 = vrot.lane.b32.xlu0 %v9064, 32
    %v10099 = vpop.permute.xlu0 %10098
    %10100 = vrot.lane.b32.xlu0 %v9065, 32
    %v10101 = vpop.permute.xlu0 %10100
    %10102 = vrot.lane.b32.xlu0 %v9066, 32
    %v10103 = vpop.permute.xlu0 %10102
    %10104 = vrot.lane.b32.xlu0 %v9067, 32
    %v10105 = vpop.permute.xlu0 %10104
    %10106 = vrot.lane.b32.xlu0 %v9068, 32
    %v10107 = vpop.permute.xlu0 %10106
    %10108 = vrot.lane.b32.xlu0 %v9069, 32
    %v10109 = vpop.permute.xlu0 %10108
    %10110 = vrot.lane.b32.xlu0 %v9070, 32
    %v10111 = vpop.permute.xlu0 %10110
    %10112 = vrot.lane.b32.xlu0 %v9071, 32
    %v10113 = vpop.permute.xlu0 %10112
    %10114 = vrot.lane.b32.xlu0 %v9072, 32
    %v10115 = vpop.permute.xlu0 %10114
    %10116 = vrot.lane.b32.xlu0 %v9073, 32
    %v10117 = vpop.permute.xlu0 %10116
    %10118 = vrot.lane.b32.xlu0 %v9074, 32
    %v10119 = vpop.permute.xlu0 %10118
    %10120 = vrot.lane.b32.xlu0 %v9075, 32
    %v10121 = vpop.permute.xlu0 %10120
    %10122 = vrot.lane.b32.xlu0 %v9076, 32
    %v10123 = vpop.permute.xlu0 %10122
    %10124 = vrot.lane.b32.xlu0 %v9077, 32
    %v10125 = vpop.permute.xlu0 %10124
    %10126 = vrot.lane.b32.xlu0 %v9078, 32
    %v10127 = vpop.permute.xlu0 %10126
    %10128 = vrot.lane.b32.xlu0 %v9079, 32
    %v10129 = vpop.permute.xlu0 %10128
    %10130 = vrot.lane.b32.xlu0 %v9080, 32
    %v10131 = vpop.permute.xlu0 %10130
    %10132 = vrot.lane.b32.xlu0 %v9081, 32
    %v10133 = vpop.permute.xlu0 %10132
    %10134 = vrot.lane.b32.xlu0 %v9082, 32
    %v10135 = vpop.permute.xlu0 %10134
    %10136 = vrot.lane.b32.xlu0 %v9083, 32
    %v10137 = vpop.permute.xlu0 %10136
    %10138 = vrot.lane.b32.xlu0 %v9084, 32
    %v10139 = vpop.permute.xlu0 %10138
    %10140 = vrot.lane.b32.xlu0 %v9085, 32
    %v10141 = vpop.permute.xlu0 %10140
    %10142 = vrot.lane.b32.xlu0 %v9086, 32
    %v10143 = vpop.permute.xlu0 %10142
    %10144 = vrot.lane.b32.xlu0 %v9087, 32
    %v10145 = vpop.permute.xlu0 %10144
    %10146 = vrot.lane.b32.xlu0 %v9088, 32
    %v10147 = vpop.permute.xlu0 %10146
    %10148 = vrot.lane.b32.xlu0 %v9089, 32
    %v10149 = vpop.permute.xlu0 %10148
    %10150 = vrot.lane.b32.xlu0 %v9090, 32
    %v10151 = vpop.permute.xlu0 %10150
    %10152 = vrot.lane.b32.xlu0 %v9091, 32
    %v10153 = vpop.permute.xlu0 %10152
    %10154 = vrot.lane.b32.xlu0 %v9092, 32
    %v10155 = vpop.permute.xlu0 %10154
    %10156 = vrot.lane.b32.xlu0 %v9093, 32
    %v10157 = vpop.permute.xlu0 %10156
    %10158 = vrot.lane.b32.xlu0 %v9094, 32
    %v10159 = vpop.permute.xlu0 %10158
    %10160 = vrot.lane.b32.xlu0 %v9095, 32
    %v10161 = vpop.permute.xlu0 %10160
    %10162 = vrot.lane.b32.xlu0 %v9096, 32
    %v10163 = vpop.permute.xlu0 %10162
    %10164 = vrot.lane.b32.xlu0 %v9097, 32
    %v10165 = vpop.permute.xlu0 %10164
    %10166 = vrot.lane.b32.xlu0 %v9098, 32
    %v10167 = vpop.permute.xlu0 %10166
    %10168 = vrot.lane.b32.xlu0 %v9099, 32
    %v10169 = vpop.permute.xlu0 %10168
    %10170 = vrot.lane.b32.xlu0 %v9100, 32
    %v10171 = vpop.permute.xlu0 %10170
    %10172 = vrot.lane.b32.xlu0 %v9101, 32
    %v10173 = vpop.permute.xlu0 %10172
    %10174 = vrot.lane.b32.xlu0 %v9102, 32
    %v10175 = vpop.permute.xlu0 %10174
    %10176 = vrot.lane.b32.xlu0 %v9103, 32
    %v10177 = vpop.permute.xlu0 %10176
    %10178 = vrot.lane.b32.xlu0 %v9104, 32
    %v10179 = vpop.permute.xlu0 %10178
    %10180 = vrot.lane.b32.xlu0 %v9105, 32
    %v10181 = vpop.permute.xlu0 %10180
    %10182 = vrot.lane.b32.xlu0 %v9106, 32
    %v10183 = vpop.permute.xlu0 %10182
    %10184 = vrot.lane.b32.xlu0 %v9107, 32
    %v10185 = vpop.permute.xlu0 %10184
    %10186 = vrot.lane.b32.xlu0 %v9108, 32
    %v10187 = vpop.permute.xlu0 %10186
    %10188 = vrot.lane.b32.xlu0 %v9109, 32
    %v10189 = vpop.permute.xlu0 %10188
    %10190 = vrot.lane.b32.xlu0 %v9110, 32
    %v10191 = vpop.permute.xlu0 %10190
    %10192 = vrot.lane.b32.xlu0 %v9111, 32
    %v10193 = vpop.permute.xlu0 %10192
    %10194 = vrot.lane.b32.xlu0 %v9112, 32
    %v10195 = vpop.permute.xlu0 %10194
    %10196 = vrot.lane.b32.xlu0 %v9113, 32
    %v10197 = vpop.permute.xlu0 %10196
    %10198 = vrot.lane.b32.xlu0 %v9114, 32
    %v10199 = vpop.permute.xlu0 %10198
    %10200 = vrot.lane.b32.xlu0 %v9115, 32
    %v10201 = vpop.permute.xlu0 %10200
    %10202 = vrot.lane.b32.xlu0 %v9116, 32
    %v10203 = vpop.permute.xlu0 %10202
    %10204 = vrot.lane.b32.xlu0 %v9117, 32
    %v10205 = vpop.permute.xlu0 %10204
    %10206 = vrot.lane.b32.xlu0 %v9118, 32
    %v10207 = vpop.permute.xlu0 %10206
    %10208 = vrot.lane.b32.xlu0 %v9119, 32
    %v10209 = vpop.permute.xlu0 %10208
    %10210 = vrot.lane.b32.xlu0 %v9120, 32
    %v10211 = vpop.permute.xlu0 %10210
    %10212 = vrot.lane.b32.xlu0 %v9121, 32
    %v10213 = vpop.permute.xlu0 %10212
    %10214 = vrot.lane.b32.xlu0 %v9122, 32
    %v10215 = vpop.permute.xlu0 %10214
    %10216 = vrot.lane.b32.xlu0 %v9123, 32
    %v10217 = vpop.permute.xlu0 %10216
    %10218 = vrot.lane.b32.xlu0 %v9124, 32
    %v10219 = vpop.permute.xlu0 %10218
    %10220 = vrot.lane.b32.xlu0 %v9125, 32
    %v10221 = vpop.permute.xlu0 %10220
    %10222 = vrot.lane.b32.xlu0 %v9126, 32
    %v10223 = vpop.permute.xlu0 %10222
    %10224 = vrot.lane.b32.xlu0 %v9127, 32
    %v10225 = vpop.permute.xlu0 %10224
    %10226 = vrot.lane.b32.xlu0 %v9128, 32
    %v10227 = vpop.permute.xlu0 %10226
    %10228 = vrot.lane.b32.xlu0 %v9129, 32
    %v10229 = vpop.permute.xlu0 %10228
    %10230 = vrot.lane.b32.xlu0 %v9130, 32
    %v10231 = vpop.permute.xlu0 %10230
    %10232 = vrot.lane.b32.xlu0 %v9131, 32
    %v10233 = vpop.permute.xlu0 %10232
    %10234 = vrot.lane.b32.xlu0 %v9132, 32
    %v10235 = vpop.permute.xlu0 %10234
    %10236 = vrot.lane.b32.xlu0 %v9133, 32
    %v10237 = vpop.permute.xlu0 %10236
    %10238 = vrot.lane.b32.xlu0 %v9134, 32
    %v10239 = vpop.permute.xlu0 %10238
    %10240 = vrot.lane.b32.xlu0 %v9135, 32
    %v10241 = vpop.permute.xlu0 %10240
    %10242 = vrot.lane.b32.xlu0 %v9136, 32
    %v10243 = vpop.permute.xlu0 %10242
    %10244 = vrot.lane.b32.xlu0 %v9137, 32
    %v10245 = vpop.permute.xlu0 %10244
    %10246 = vrot.lane.b32.xlu0 %v9138, 32
    %v10247 = vpop.permute.xlu0 %10246
    %10248 = vrot.lane.b32.xlu0 %v9139, 32
    %v10249 = vpop.permute.xlu0 %10248
    %10250 = vrot.lane.b32.xlu0 %v9140, 32
    %v10251 = vpop.permute.xlu0 %10250
    %10252 = vrot.lane.b32.xlu0 %v9141, 32
    %v10253 = vpop.permute.xlu0 %10252
    %10254 = vrot.lane.b32.xlu0 %v9142, 32
    %v10255 = vpop.permute.xlu0 %10254
    %10256 = vrot.lane.b32.xlu0 %v9143, 32
    %v10257 = vpop.permute.xlu0 %10256
    %10258 = vrot.lane.b32.xlu0 %v9144, 32
    %v10259 = vpop.permute.xlu0 %10258
    %10260 = vrot.lane.b32.xlu0 %v9145, 32
    %v10261 = vpop.permute.xlu0 %10260
    %10262 = vrot.lane.b32.xlu0 %v9146, 32
    %v10263 = vpop.permute.xlu0 %10262
    %10264 = vrot.lane.b32.xlu0 %v9147, 32
    %v10265 = vpop.permute.xlu0 %10264
    %10266 = vrot.lane.b32.xlu0 %v9148, 32
    %v10267 = vpop.permute.xlu0 %10266
    %10268 = vrot.lane.b32.xlu0 %v9149, 32
    %v10269 = vpop.permute.xlu0 %10268
    %10270 = vrot.lane.b32.xlu0 %v9150, 32
    %v10271 = vpop.permute.xlu0 %10270
    %10272 = vrot.lane.b32.xlu0 %v9151, 32
    %v10273 = vpop.permute.xlu0 %10272
    %10274 = vrot.lane.b32.xlu0 %v9152, 32
    %v10275 = vpop.permute.xlu0 %10274
    %10276 = vrot.lane.b32.xlu0 %v9153, 32
    %v10277 = vpop.permute.xlu0 %10276
    %10278 = vrot.lane.b32.xlu0 %v9154, 32
    %v10279 = vpop.permute.xlu0 %10278
    %10280 = vrot.lane.b32.xlu0 %v9155, 32
    %v10281 = vpop.permute.xlu0 %10280
    %10282 = vrot.lane.b32.xlu0 %v9156, 32
    %v10283 = vpop.permute.xlu0 %10282
    %10284 = vrot.lane.b32.xlu0 %v9157, 32
    %v10285 = vpop.permute.xlu0 %10284
    %10286 = vrot.lane.b32.xlu0 %v9158, 32
    %v10287 = vpop.permute.xlu0 %10286
    %10288 = vrot.lane.b32.xlu0 %v9159, 32
    %v10289 = vpop.permute.xlu0 %10288
    %10290 = vrot.lane.b32.xlu0 %v9160, 32
    %v10291 = vpop.permute.xlu0 %10290
    %10292 = vrot.lane.b32.xlu0 %v9161, 32
    %v10293 = vpop.permute.xlu0 %10292
    %10294 = vrot.lane.b32.xlu0 %v9162, 32
    %v10295 = vpop.permute.xlu0 %10294
    %10296 = vrot.lane.b32.xlu0 %v9163, 32
    %v10297 = vpop.permute.xlu0 %10296
    %10298 = vrot.lane.b32.xlu0 %v9164, 32
    %v10299 = vpop.permute.xlu0 %10298
    %10300 = vrot.lane.b32.xlu0 %v9165, 32
    %v10301 = vpop.permute.xlu0 %10300
    %10302 = vrot.lane.b32.xlu0 %v9166, 32
    %v10303 = vpop.permute.xlu0 %10302
    %10304 = vrot.lane.b32.xlu0 %v9167, 32
    %v10305 = vpop.permute.xlu0 %10304
    %10306 = vrot.lane.b32.xlu0 %v9168, 32
    %v10307 = vpop.permute.xlu0 %10306
    %10308 = vrot.lane.b32.xlu0 %v9169, 32
    %v10309 = vpop.permute.xlu0 %10308
    %10310 = vrot.lane.b32.xlu0 %v9170, 32
    %v10311 = vpop.permute.xlu0 %10310
    %10312 = vrot.lane.b32.xlu0 %v9171, 32
    %v10313 = vpop.permute.xlu0 %10312
    %10314 = vrot.lane.b32.xlu0 %v9172, 32
    %v10315 = vpop.permute.xlu0 %10314
    %10316 = vrot.lane.b32.xlu0 %v9173, 32
    %v10317 = vpop.permute.xlu0 %10316
    %10318 = vrot.lane.b32.xlu0 %v9174, 32
    %v10319 = vpop.permute.xlu0 %10318
    %10320 = vrot.lane.b32.xlu0 %v9175, 32
    %v10321 = vpop.permute.xlu0 %10320
    %10322 = vrot.lane.b32.xlu0 %v9176, 32
    %v10323 = vpop.permute.xlu0 %10322
    %10324 = vrot.lane.b32.xlu0 %v9177, 32
    %v10325 = vpop.permute.xlu0 %10324
    %10326 = vrot.lane.b32.xlu0 %v9178, 32
    %v10327 = vpop.permute.xlu0 %10326
    %10328 = vrot.lane.b32.xlu0 %v9179, 32
    %v10329 = vpop.permute.xlu0 %10328
    %10330 = vrot.lane.b32.xlu0 %v9180, 32
    %v10331 = vpop.permute.xlu0 %10330
    %10332 = vrot.lane.b32.xlu0 %v9181, 32
    %v10333 = vpop.permute.xlu0 %10332
    %10590 = vrot.lane.b32.xlu0 %v9822, 64
    %v10591 = vpop.permute.xlu0 %10590
    %10592 = vrot.lane.b32.xlu0 %v9823, 64
    %v10593 = vpop.permute.xlu0 %10592
    %10594 = vrot.lane.b32.xlu0 %v9824, 64
    %v10595 = vpop.permute.xlu0 %10594
    %10596 = vrot.lane.b32.xlu0 %v9825, 64
    %v10597 = vpop.permute.xlu0 %10596
    %10598 = vrot.lane.b32.xlu0 %v9826, 64
    %v10599 = vpop.permute.xlu0 %10598
    %10600 = vrot.lane.b32.xlu0 %v9827, 64
    %v10601 = vpop.permute.xlu0 %10600
    %10602 = vrot.lane.b32.xlu0 %v9828, 64
    %v10603 = vpop.permute.xlu0 %10602
    %10604 = vrot.lane.b32.xlu0 %v9829, 64
    %v10605 = vpop.permute.xlu0 %10604
    %10606 = vrot.lane.b32.xlu0 %v9830, 64
    %v10607 = vpop.permute.xlu0 %10606
    %10608 = vrot.lane.b32.xlu0 %v9831, 64
    %v10609 = vpop.permute.xlu0 %10608
    %10610 = vrot.lane.b32.xlu0 %v9832, 64
    %v10611 = vpop.permute.xlu0 %10610
    %10612 = vrot.lane.b32.xlu0 %v9833, 64
    %v10613 = vpop.permute.xlu0 %10612
    %10614 = vrot.lane.b32.xlu0 %v9834, 64
    %v10615 = vpop.permute.xlu0 %10614
    %10616 = vrot.lane.b32.xlu0 %v9835, 64
    %v10617 = vpop.permute.xlu0 %10616
    %10618 = vrot.lane.b32.xlu0 %v9836, 64
    %v10619 = vpop.permute.xlu0 %10618
    %10620 = vrot.lane.b32.xlu0 %v9837, 64
    %v10621 = vpop.permute.xlu0 %10620
    %10622 = vrot.lane.b32.xlu0 %v9838, 64
    %v10623 = vpop.permute.xlu0 %10622
    %10624 = vrot.lane.b32.xlu0 %v9839, 64
    %v10625 = vpop.permute.xlu0 %10624
    %10626 = vrot.lane.b32.xlu0 %v9840, 64
    %v10627 = vpop.permute.xlu0 %10626
    %10628 = vrot.lane.b32.xlu0 %v9841, 64
    %v10629 = vpop.permute.xlu0 %10628
    %10630 = vrot.lane.b32.xlu0 %v9842, 64
    %v10631 = vpop.permute.xlu0 %10630
    %10632 = vrot.lane.b32.xlu0 %v9843, 64
    %v10633 = vpop.permute.xlu0 %10632
    %10634 = vrot.lane.b32.xlu0 %v9844, 64
    %v10635 = vpop.permute.xlu0 %10634
    %10636 = vrot.lane.b32.xlu0 %v9845, 64
    %v10637 = vpop.permute.xlu0 %10636
    %10638 = vrot.lane.b32.xlu0 %v9846, 64
    %v10639 = vpop.permute.xlu0 %10638
    %10640 = vrot.lane.b32.xlu0 %v9847, 64
    %v10641 = vpop.permute.xlu0 %10640
    %10642 = vrot.lane.b32.xlu0 %v9848, 64
    %v10643 = vpop.permute.xlu0 %10642
    %10644 = vrot.lane.b32.xlu0 %v9849, 64
    %v10645 = vpop.permute.xlu0 %10644
    %10646 = vrot.lane.b32.xlu0 %v9850, 64
    %v10647 = vpop.permute.xlu0 %10646
    %10648 = vrot.lane.b32.xlu0 %v9851, 64
    %v10649 = vpop.permute.xlu0 %10648
    %10650 = vrot.lane.b32.xlu0 %v9852, 64
    %v10651 = vpop.permute.xlu0 %10650
    %10652 = vrot.lane.b32.xlu0 %v9853, 64
    %v10653 = vpop.permute.xlu0 %10652
    %10654 = vrot.lane.b32.xlu0 %v9854, 64
    %v10655 = vpop.permute.xlu0 %10654
    %10656 = vrot.lane.b32.xlu0 %v9855, 64
    %v10657 = vpop.permute.xlu0 %10656
    %10658 = vrot.lane.b32.xlu0 %v9856, 64
    %v10659 = vpop.permute.xlu0 %10658
    %10660 = vrot.lane.b32.xlu0 %v9857, 64
    %v10661 = vpop.permute.xlu0 %10660
    %10662 = vrot.lane.b32.xlu0 %v9858, 64
    %v10663 = vpop.permute.xlu0 %10662
    %10664 = vrot.lane.b32.xlu0 %v9859, 64
    %v10665 = vpop.permute.xlu0 %10664
    %10666 = vrot.lane.b32.xlu0 %v9860, 64
    %v10667 = vpop.permute.xlu0 %10666
    %10668 = vrot.lane.b32.xlu0 %v9861, 64
    %v10669 = vpop.permute.xlu0 %10668
    %10670 = vrot.lane.b32.xlu0 %v9862, 64
    %v10671 = vpop.permute.xlu0 %10670
    %10672 = vrot.lane.b32.xlu0 %v9863, 64
    %v10673 = vpop.permute.xlu0 %10672
    %10674 = vrot.lane.b32.xlu0 %v9864, 64
    %v10675 = vpop.permute.xlu0 %10674
    %10676 = vrot.lane.b32.xlu0 %v9865, 64
    %v10677 = vpop.permute.xlu0 %10676
    %10678 = vrot.lane.b32.xlu0 %v9866, 64
    %v10679 = vpop.permute.xlu0 %10678
    %10680 = vrot.lane.b32.xlu0 %v9867, 64
    %v10681 = vpop.permute.xlu0 %10680
    %10682 = vrot.lane.b32.xlu0 %v9868, 64
    %v10683 = vpop.permute.xlu0 %10682
    %10684 = vrot.lane.b32.xlu0 %v9869, 64
    %v10685 = vpop.permute.xlu0 %10684
    %10686 = vrot.lane.b32.xlu0 %v9870, 64
    %v10687 = vpop.permute.xlu0 %10686
    %10688 = vrot.lane.b32.xlu0 %v9871, 64
    %v10689 = vpop.permute.xlu0 %10688
    %10690 = vrot.lane.b32.xlu0 %v9872, 64
    %v10691 = vpop.permute.xlu0 %10690
    %10692 = vrot.lane.b32.xlu0 %v9873, 64
    %v10693 = vpop.permute.xlu0 %10692
    %10694 = vrot.lane.b32.xlu0 %v9874, 64
    %v10695 = vpop.permute.xlu0 %10694
    %10696 = vrot.lane.b32.xlu0 %v9875, 64
    %v10697 = vpop.permute.xlu0 %10696
    %10698 = vrot.lane.b32.xlu0 %v9876, 64
    %v10699 = vpop.permute.xlu0 %10698
    %10700 = vrot.lane.b32.xlu0 %v9877, 64
    %v10701 = vpop.permute.xlu0 %10700
    %10702 = vrot.lane.b32.xlu0 %v9878, 64
    %v10703 = vpop.permute.xlu0 %10702
    %10704 = vrot.lane.b32.xlu0 %v9879, 64
    %v10705 = vpop.permute.xlu0 %10704
    %10706 = vrot.lane.b32.xlu0 %v9880, 64
    %v10707 = vpop.permute.xlu0 %10706
    %10708 = vrot.lane.b32.xlu0 %v9881, 64
    %v10709 = vpop.permute.xlu0 %10708
    %10710 = vrot.lane.b32.xlu0 %v9882, 64
    %v10711 = vpop.permute.xlu0 %10710
    %10712 = vrot.lane.b32.xlu0 %v9883, 64
    %v10713 = vpop.permute.xlu0 %10712
    %10714 = vrot.lane.b32.xlu0 %v9884, 64
    %v10715 = vpop.permute.xlu0 %10714
    %10716 = vrot.lane.b32.xlu0 %v9885, 64
    %v10717 = vpop.permute.xlu0 %10716
    %10718 = vrot.lane.b32.xlu0 %v9886, 64
    %v10719 = vpop.permute.xlu0 %10718
    %10720 = vrot.lane.b32.xlu0 %v9887, 64
    %v10721 = vpop.permute.xlu0 %10720
    %10722 = vrot.lane.b32.xlu0 %v9888, 64
    %v10723 = vpop.permute.xlu0 %10722
    %10724 = vrot.lane.b32.xlu0 %v9889, 64
    %v10725 = vpop.permute.xlu0 %10724
    %10726 = vrot.lane.b32.xlu0 %v9890, 64
    %v10727 = vpop.permute.xlu0 %10726
    %10728 = vrot.lane.b32.xlu0 %v9891, 64
    %v10729 = vpop.permute.xlu0 %10728
    %10730 = vrot.lane.b32.xlu0 %v9892, 64
    %v10731 = vpop.permute.xlu0 %10730
    %10732 = vrot.lane.b32.xlu0 %v9893, 64
    %v10733 = vpop.permute.xlu0 %10732
    %10734 = vrot.lane.b32.xlu0 %v9894, 64
    %v10735 = vpop.permute.xlu0 %10734
    %10736 = vrot.lane.b32.xlu0 %v9895, 64
    %v10737 = vpop.permute.xlu0 %10736
    %10738 = vrot.lane.b32.xlu0 %v9896, 64
    %v10739 = vpop.permute.xlu0 %10738
    %10740 = vrot.lane.b32.xlu0 %v9897, 64
    %v10741 = vpop.permute.xlu0 %10740
    %10742 = vrot.lane.b32.xlu0 %v9898, 64
    %v10743 = vpop.permute.xlu0 %10742
    %10744 = vrot.lane.b32.xlu0 %v9899, 64
    %v10745 = vpop.permute.xlu0 %10744
    %10746 = vrot.lane.b32.xlu0 %v9900, 64
    %v10747 = vpop.permute.xlu0 %10746
    %10748 = vrot.lane.b32.xlu0 %v9901, 64
    %v10749 = vpop.permute.xlu0 %10748
    %10750 = vrot.lane.b32.xlu0 %v9902, 64
    %v10751 = vpop.permute.xlu0 %10750
    %10752 = vrot.lane.b32.xlu0 %v9903, 64
    %v10753 = vpop.permute.xlu0 %10752
    %10754 = vrot.lane.b32.xlu0 %v9904, 64
    %v10755 = vpop.permute.xlu0 %10754
    %10756 = vrot.lane.b32.xlu0 %v9905, 64
    %v10757 = vpop.permute.xlu0 %10756
    %10758 = vrot.lane.b32.xlu0 %v9906, 64
    %v10759 = vpop.permute.xlu0 %10758
    %10760 = vrot.lane.b32.xlu0 %v9907, 64
    %v10761 = vpop.permute.xlu0 %10760
    %10762 = vrot.lane.b32.xlu0 %v9908, 64
    %v10763 = vpop.permute.xlu0 %10762
    %10764 = vrot.lane.b32.xlu0 %v9909, 64
    %v10765 = vpop.permute.xlu0 %10764
    %10766 = vrot.lane.b32.xlu0 %v9910, 64
    %v10767 = vpop.permute.xlu0 %10766
    %10768 = vrot.lane.b32.xlu0 %v9911, 64
    %v10769 = vpop.permute.xlu0 %10768
    %10770 = vrot.lane.b32.xlu0 %v9912, 64
    %v10771 = vpop.permute.xlu0 %10770
    %10772 = vrot.lane.b32.xlu0 %v9913, 64
    %v10773 = vpop.permute.xlu0 %10772
    %10774 = vrot.lane.b32.xlu0 %v9914, 64
    %v10775 = vpop.permute.xlu0 %10774
    %10776 = vrot.lane.b32.xlu0 %v9915, 64
    %v10777 = vpop.permute.xlu0 %10776
    %10778 = vrot.lane.b32.xlu0 %v9916, 64
    %v10779 = vpop.permute.xlu0 %10778
    %10780 = vrot.lane.b32.xlu0 %v9917, 64
    %v10781 = vpop.permute.xlu0 %10780
    %10782 = vrot.lane.b32.xlu0 %v9918, 64
    %v10783 = vpop.permute.xlu0 %10782
    %10784 = vrot.lane.b32.xlu0 %v9919, 64
    %v10785 = vpop.permute.xlu0 %10784
    %10786 = vrot.lane.b32.xlu0 %v9920, 64
    %v10787 = vpop.permute.xlu0 %10786
    %10788 = vrot.lane.b32.xlu0 %v9921, 64
    %v10789 = vpop.permute.xlu0 %10788
    %10790 = vrot.lane.b32.xlu0 %v9922, 64
    %v10791 = vpop.permute.xlu0 %10790
    %10792 = vrot.lane.b32.xlu0 %v9923, 64
    %v10793 = vpop.permute.xlu0 %10792
    %10794 = vrot.lane.b32.xlu0 %v9924, 64
    %v10795 = vpop.permute.xlu0 %10794
    %10796 = vrot.lane.b32.xlu0 %v9925, 64
    %v10797 = vpop.permute.xlu0 %10796
    %10798 = vrot.lane.b32.xlu0 %v9926, 64
    %v10799 = vpop.permute.xlu0 %10798
    %10800 = vrot.lane.b32.xlu0 %v9927, 64
    %v10801 = vpop.permute.xlu0 %10800
    %10802 = vrot.lane.b32.xlu0 %v9928, 64
    %v10803 = vpop.permute.xlu0 %10802
    %10804 = vrot.lane.b32.xlu0 %v9929, 64
    %v10805 = vpop.permute.xlu0 %10804
    %10806 = vrot.lane.b32.xlu0 %v9930, 64
    %v10807 = vpop.permute.xlu0 %10806
    %10808 = vrot.lane.b32.xlu0 %v9931, 64
    %v10809 = vpop.permute.xlu0 %10808
    %10810 = vrot.lane.b32.xlu0 %v9932, 64
    %v10811 = vpop.permute.xlu0 %10810
    %10812 = vrot.lane.b32.xlu0 %v9933, 64
    %v10813 = vpop.permute.xlu0 %10812
    %10814 = vrot.lane.b32.xlu0 %v9934, 64
    %v10815 = vpop.permute.xlu0 %10814
    %10816 = vrot.lane.b32.xlu0 %v9935, 64
    %v10817 = vpop.permute.xlu0 %10816
    %10818 = vrot.lane.b32.xlu0 %v9936, 64
    %v10819 = vpop.permute.xlu0 %10818
    %10820 = vrot.lane.b32.xlu0 %v9937, 64
    %v10821 = vpop.permute.xlu0 %10820
    %10822 = vrot.lane.b32.xlu0 %v9938, 64
    %v10823 = vpop.permute.xlu0 %10822
    %10824 = vrot.lane.b32.xlu0 %v9939, 64
    %v10825 = vpop.permute.xlu0 %10824
    %10826 = vrot.lane.b32.xlu0 %v9940, 64
    %v10827 = vpop.permute.xlu0 %10826
    %10828 = vrot.lane.b32.xlu0 %v9941, 64
    %v10829 = vpop.permute.xlu0 %10828
    %10830 = vrot.lane.b32.xlu0 %v9942, 64
    %v10831 = vpop.permute.xlu0 %10830
    %10832 = vrot.lane.b32.xlu0 %v9943, 64
    %v10833 = vpop.permute.xlu0 %10832
    %10834 = vrot.lane.b32.xlu0 %v9944, 64
    %v10835 = vpop.permute.xlu0 %10834
    %10836 = vrot.lane.b32.xlu0 %v9945, 64
    %v10837 = vpop.permute.xlu0 %10836
    %10838 = vrot.lane.b32.xlu0 %v9946, 64
    %v10839 = vpop.permute.xlu0 %10838
    %10840 = vrot.lane.b32.xlu0 %v9947, 64
    %v10841 = vpop.permute.xlu0 %10840
    %10842 = vrot.lane.b32.xlu0 %v9948, 64
    %v10843 = vpop.permute.xlu0 %10842
    %10844 = vrot.lane.b32.xlu0 %v9949, 64
    %v10845 = vpop.permute.xlu0 %10844
    %v10974 = vsel %vm4433, %v9438, %v10079
    %v10975 = vsel %vm4433, %v9439, %v10081
    %v10976 = vsel %vm4433, %v9440, %v10083
    %v10977 = vsel %vm4433, %v9441, %v10085
    %v10978 = vsel %vm4433, %v9442, %v10087
    %v10979 = vsel %vm4433, %v9443, %v10089
    %v10980 = vsel %vm4433, %v9444, %v10091
    %v10981 = vsel %vm4433, %v9445, %v10093
    %v10982 = vsel %vm4433, %v9446, %v10095
    %v10983 = vsel %vm4433, %v9447, %v10097
    %v10984 = vsel %vm4433, %v9448, %v10099
    %v10985 = vsel %vm4433, %v9449, %v10101
    %v10986 = vsel %vm4433, %v9450, %v10103
    %v10987 = vsel %vm4433, %v9451, %v10105
    %v10988 = vsel %vm4433, %v9452, %v10107
    %v10989 = vsel %vm4433, %v9453, %v10109
    %v10990 = vsel %vm4433, %v9454, %v10111
    %v10991 = vsel %vm4433, %v9455, %v10113
    %v10992 = vsel %vm4433, %v9456, %v10115
    %v10993 = vsel %vm4433, %v9457, %v10117
    %v10994 = vsel %vm4433, %v9458, %v10119
    %v10995 = vsel %vm4433, %v9459, %v10121
    %v10996 = vsel %vm4433, %v9460, %v10123
    %v10997 = vsel %vm4433, %v9461, %v10125
    %v10998 = vsel %vm4433, %v9462, %v10127
    %v10999 = vsel %vm4433, %v9463, %v10129
    %v11000 = vsel %vm4433, %v9464, %v10131
    %v11001 = vsel %vm4433, %v9465, %v10133
    %v11002 = vsel %vm4433, %v9466, %v10135
    %v11003 = vsel %vm4433, %v9467, %v10137
    %v11004 = vsel %vm4433, %v9468, %v10139
    %v11005 = vsel %vm4433, %v9469, %v10141
    %v11006 = vsel %vm4433, %v9470, %v10143
    %v11007 = vsel %vm4433, %v9471, %v10145
    %v11008 = vsel %vm4433, %v9472, %v10147
    %v11009 = vsel %vm4433, %v9473, %v10149
    %v11010 = vsel %vm4433, %v9474, %v10151
    %v11011 = vsel %vm4433, %v9475, %v10153
    %v11012 = vsel %vm4433, %v9476, %v10155
    %v11013 = vsel %vm4433, %v9477, %v10157
    %v11014 = vsel %vm4433, %v9478, %v10159
    %v11015 = vsel %vm4433, %v9479, %v10161
    %v11016 = vsel %vm4433, %v9480, %v10163
    %v11017 = vsel %vm4433, %v9481, %v10165
    %v11018 = vsel %vm4433, %v9482, %v10167
    %v11019 = vsel %vm4433, %v9483, %v10169
    %v11020 = vsel %vm4433, %v9484, %v10171
    %v11021 = vsel %vm4433, %v9485, %v10173
    %v11022 = vsel %vm4433, %v9486, %v10175
    %v11023 = vsel %vm4433, %v9487, %v10177
    %v11024 = vsel %vm4433, %v9488, %v10179
    %v11025 = vsel %vm4433, %v9489, %v10181
    %v11026 = vsel %vm4433, %v9490, %v10183
    %v11027 = vsel %vm4433, %v9491, %v10185
    %v11028 = vsel %vm4433, %v9492, %v10187
    %v11029 = vsel %vm4433, %v9493, %v10189
    %v11030 = vsel %vm4433, %v9494, %v10191
    %v11031 = vsel %vm4433, %v9495, %v10193
    %v11032 = vsel %vm4433, %v9496, %v10195
    %v11033 = vsel %vm4433, %v9497, %v10197
    %v11034 = vsel %vm4433, %v9498, %v10199
    %v11035 = vsel %vm4433, %v9499, %v10201
    %v11036 = vsel %vm4433, %v9500, %v10203
    %v11037 = vsel %vm4433, %v9501, %v10205
    %v11038 = vsel %vm4433, %v9502, %v10207
    %v11039 = vsel %vm4433, %v9503, %v10209
    %v11040 = vsel %vm4433, %v9504, %v10211
    %v11041 = vsel %vm4433, %v9505, %v10213
    %v11042 = vsel %vm4433, %v9506, %v10215
    %v11043 = vsel %vm4433, %v9507, %v10217
    %v11044 = vsel %vm4433, %v9508, %v10219
    %v11045 = vsel %vm4433, %v9509, %v10221
    %v11046 = vsel %vm4433, %v9510, %v10223
    %v11047 = vsel %vm4433, %v9511, %v10225
    %v11048 = vsel %vm4433, %v9512, %v10227
    %v11049 = vsel %vm4433, %v9513, %v10229
    %v11050 = vsel %vm4433, %v9514, %v10231
    %v11051 = vsel %vm4433, %v9515, %v10233
    %v11052 = vsel %vm4433, %v9516, %v10235
    %v11053 = vsel %vm4433, %v9517, %v10237
    %v11054 = vsel %vm4433, %v9518, %v10239
    %v11055 = vsel %vm4433, %v9519, %v10241
    %v11056 = vsel %vm4433, %v9520, %v10243
    %v11057 = vsel %vm4433, %v9521, %v10245
    %v11058 = vsel %vm4433, %v9522, %v10247
    %v11059 = vsel %vm4433, %v9523, %v10249
    %v11060 = vsel %vm4433, %v9524, %v10251
    %v11061 = vsel %vm4433, %v9525, %v10253
    %v11062 = vsel %vm4433, %v9526, %v10255
    %v11063 = vsel %vm4433, %v9527, %v10257
    %v11064 = vsel %vm4433, %v9528, %v10259
    %v11065 = vsel %vm4433, %v9529, %v10261
    %v11066 = vsel %vm4433, %v9530, %v10263
    %v11067 = vsel %vm4433, %v9531, %v10265
    %v11068 = vsel %vm4433, %v9532, %v10267
    %v11069 = vsel %vm4433, %v9533, %v10269
    %v11070 = vsel %vm4433, %v9534, %v10271
    %v11071 = vsel %vm4433, %v9535, %v10273
    %v11072 = vsel %vm4433, %v9536, %v10275
    %v11073 = vsel %vm4433, %v9537, %v10277
    %v11074 = vsel %vm4433, %v9538, %v10279
    %v11075 = vsel %vm4433, %v9539, %v10281
    %v11076 = vsel %vm4433, %v9540, %v10283
    %v11077 = vsel %vm4433, %v9541, %v10285
    %v11078 = vsel %vm4433, %v9542, %v10287
    %v11079 = vsel %vm4433, %v9543, %v10289
    %v11080 = vsel %vm4433, %v9544, %v10291
    %v11081 = vsel %vm4433, %v9545, %v10293
    %v11082 = vsel %vm4433, %v9546, %v10295
    %v11083 = vsel %vm4433, %v9547, %v10297
    %v11084 = vsel %vm4433, %v9548, %v10299
    %v11085 = vsel %vm4433, %v9549, %v10301
    %v11086 = vsel %vm4433, %v9550, %v10303
    %v11087 = vsel %vm4433, %v9551, %v10305
    %v11088 = vsel %vm4433, %v9552, %v10307
    %v11089 = vsel %vm4433, %v9553, %v10309
    %v11090 = vsel %vm4433, %v9554, %v10311
    %v11091 = vsel %vm4433, %v9555, %v10313
    %v11092 = vsel %vm4433, %v9556, %v10315
    %v11093 = vsel %vm4433, %v9557, %v10317
    %v11094 = vsel %vm4433, %v9558, %v10319
    %v11095 = vsel %vm4433, %v9559, %v10321
    %v11096 = vsel %vm4433, %v9560, %v10323
    %v11097 = vsel %vm4433, %v9561, %v10325
    %v11098 = vsel %vm4433, %v9562, %v10327
    %v11099 = vsel %vm4433, %v9563, %v10329
    %v11100 = vsel %vm4433, %v9564, %v10331
    %v11101 = vsel %vm4433, %v9565, %v10333
    %v11102 = vsel %vm4562, %v10974, %v10591
    %v11103 = vsel %vm4562, %v10975, %v10593
    %v11104 = vsel %vm4562, %v10976, %v10595
    %v11105 = vsel %vm4562, %v10977, %v10597
    %v11106 = vsel %vm4562, %v10978, %v10599
    %v11107 = vsel %vm4562, %v10979, %v10601
    %v11108 = vsel %vm4562, %v10980, %v10603
    %v11109 = vsel %vm4562, %v10981, %v10605
    %v11110 = vsel %vm4562, %v10982, %v10607
    %v11111 = vsel %vm4562, %v10983, %v10609
    %v11112 = vsel %vm4562, %v10984, %v10611
    %v11113 = vsel %vm4562, %v10985, %v10613
    %v11114 = vsel %vm4562, %v10986, %v10615
    %v11115 = vsel %vm4562, %v10987, %v10617
    %v11116 = vsel %vm4562, %v10988, %v10619
    %v11117 = vsel %vm4562, %v10989, %v10621
    %v11118 = vsel %vm4562, %v10990, %v10623
    %v11119 = vsel %vm4562, %v10991, %v10625
    %v11120 = vsel %vm4562, %v10992, %v10627
    %v11121 = vsel %vm4562, %v10993, %v10629
    %v11122 = vsel %vm4562, %v10994, %v10631
    %v11123 = vsel %vm4562, %v10995, %v10633
    %v11124 = vsel %vm4562, %v10996, %v10635
    %v11125 = vsel %vm4562, %v10997, %v10637
    %v11126 = vsel %vm4562, %v10998, %v10639
    %v11127 = vsel %vm4562, %v10999, %v10641
    %v11128 = vsel %vm4562, %v11000, %v10643
    %v11129 = vsel %vm4562, %v11001, %v10645
    %v11130 = vsel %vm4562, %v11002, %v10647
    %v11131 = vsel %vm4562, %v11003, %v10649
    %v11132 = vsel %vm4562, %v11004, %v10651
    %v11133 = vsel %vm4562, %v11005, %v10653
    %v11134 = vsel %vm4562, %v11006, %v10655
    %v11135 = vsel %vm4562, %v11007, %v10657
    %v11136 = vsel %vm4562, %v11008, %v10659
    %v11137 = vsel %vm4562, %v11009, %v10661
    %v11138 = vsel %vm4562, %v11010, %v10663
    %v11139 = vsel %vm4562, %v11011, %v10665
    %v11140 = vsel %vm4562, %v11012, %v10667
    %v11141 = vsel %vm4562, %v11013, %v10669
    %v11142 = vsel %vm4562, %v11014, %v10671
    %v11143 = vsel %vm4562, %v11015, %v10673
    %v11144 = vsel %vm4562, %v11016, %v10675
    %v11145 = vsel %vm4562, %v11017, %v10677
    %v11146 = vsel %vm4562, %v11018, %v10679
    %v11147 = vsel %vm4562, %v11019, %v10681
    %v11148 = vsel %vm4562, %v11020, %v10683
    %v11149 = vsel %vm4562, %v11021, %v10685
    %v11150 = vsel %vm4562, %v11022, %v10687
    %v11151 = vsel %vm4562, %v11023, %v10689
    %v11152 = vsel %vm4562, %v11024, %v10691
    %v11153 = vsel %vm4562, %v11025, %v10693
    %v11154 = vsel %vm4562, %v11026, %v10695
    %v11155 = vsel %vm4562, %v11027, %v10697
    %v11156 = vsel %vm4562, %v11028, %v10699
    %v11157 = vsel %vm4562, %v11029, %v10701
    %v11158 = vsel %vm4562, %v11030, %v10703
    %v11159 = vsel %vm4562, %v11031, %v10705
    %v11160 = vsel %vm4562, %v11032, %v10707
    %v11161 = vsel %vm4562, %v11033, %v10709
    %v11162 = vsel %vm4562, %v11034, %v10711
    %v11163 = vsel %vm4562, %v11035, %v10713
    %v11164 = vsel %vm4562, %v11036, %v10715
    %v11165 = vsel %vm4562, %v11037, %v10717
    %v11166 = vsel %vm4562, %v11038, %v10719
    %v11167 = vsel %vm4562, %v11039, %v10721
    %v11168 = vsel %vm4562, %v11040, %v10723
    %v11169 = vsel %vm4562, %v11041, %v10725
    %v11170 = vsel %vm4562, %v11042, %v10727
    %v11171 = vsel %vm4562, %v11043, %v10729
    %v11172 = vsel %vm4562, %v11044, %v10731
    %v11173 = vsel %vm4562, %v11045, %v10733
    %v11174 = vsel %vm4562, %v11046, %v10735
    %v11175 = vsel %vm4562, %v11047, %v10737
    %v11176 = vsel %vm4562, %v11048, %v10739
    %v11177 = vsel %vm4562, %v11049, %v10741
    %v11178 = vsel %vm4562, %v11050, %v10743
    %v11179 = vsel %vm4562, %v11051, %v10745
    %v11180 = vsel %vm4562, %v11052, %v10747
    %v11181 = vsel %vm4562, %v11053, %v10749
    %v11182 = vsel %vm4562, %v11054, %v10751
    %v11183 = vsel %vm4562, %v11055, %v10753
    %v11184 = vsel %vm4562, %v11056, %v10755
    %v11185 = vsel %vm4562, %v11057, %v10757
    %v11186 = vsel %vm4562, %v11058, %v10759
    %v11187 = vsel %vm4562, %v11059, %v10761
    %v11188 = vsel %vm4562, %v11060, %v10763
    %v11189 = vsel %vm4562, %v11061, %v10765
    %v11190 = vsel %vm4562, %v11062, %v10767
    %v11191 = vsel %vm4562, %v11063, %v10769
    %v11192 = vsel %vm4562, %v11064, %v10771
    %v11193 = vsel %vm4562, %v11065, %v10773
    %v11194 = vsel %vm4562, %v11066, %v10775
    %v11195 = vsel %vm4562, %v11067, %v10777
    %v11196 = vsel %vm4562, %v11068, %v10779
    %v11197 = vsel %vm4562, %v11069, %v10781
    %v11198 = vsel %vm4562, %v11070, %v10783
    %v11199 = vsel %vm4562, %v11071, %v10785
    %v11200 = vsel %vm4562, %v11072, %v10787
    %v11201 = vsel %vm4562, %v11073, %v10789
    %v11202 = vsel %vm4562, %v11074, %v10791
    %v11203 = vsel %vm4562, %v11075, %v10793
    %v11204 = vsel %vm4562, %v11076, %v10795
    %v11205 = vsel %vm4562, %v11077, %v10797
    %v11206 = vsel %vm4562, %v11078, %v10799
    %v11207 = vsel %vm4562, %v11079, %v10801
    %v11208 = vsel %vm4562, %v11080, %v10803
    %v11209 = vsel %vm4562, %v11081, %v10805
    %v11210 = vsel %vm4562, %v11082, %v10807
    %v11211 = vsel %vm4562, %v11083, %v10809
    %v11212 = vsel %vm4562, %v11084, %v10811
    %v11213 = vsel %vm4562, %v11085, %v10813
    %v11214 = vsel %vm4562, %v11086, %v10815
    %v11215 = vsel %vm4562, %v11087, %v10817
    %v11216 = vsel %vm4562, %v11088, %v10819
    %v11217 = vsel %vm4562, %v11089, %v10821
    %v11218 = vsel %vm4562, %v11090, %v10823
    %v11219 = vsel %vm4562, %v11091, %v10825
    %v11220 = vsel %vm4562, %v11092, %v10827
    %v11221 = vsel %vm4562, %v11093, %v10829
    %v11222 = vsel %vm4562, %v11094, %v10831
    %v11223 = vsel %vm4562, %v11095, %v10833
    %v11224 = vsel %vm4562, %v11096, %v10835
    %v11225 = vsel %vm4562, %v11097, %v10837
    %v11226 = vsel %vm4562, %v11098, %v10839
    %v11227 = vsel %vm4562, %v11099, %v10841
    %v11228 = vsel %vm4562, %v11100, %v10843
    %v11229 = vsel %vm4562, %v11101, %v10845
    %v11230 = vlaneseq
    %v11231 = vshrl.u32 %v11230, 7
    %v11232 = vsub.s32 2, %v11231
    %v11233 = vrot.slane %v2498, %v11232
    %v11235 = vsel %vm4695, %v11102, 0
    %v11238 = vsel %vm4695, %v11103, 0
    %v11241 = vsel %vm4695, %v11104, 0
    %v11244 = vsel %vm4695, %v11105, 0
    %v11247 = vsel %vm4695, %v11106, 0
    %v11250 = vsel %vm4695, %v11107, 0
    %v11253 = vsel %vm4695, %v11108, 0
    %v11256 = vsel %vm4695, %v11109, 0
    %v11259 = vsel %vm4695, %v11110, 0
    %v11262 = vsel %vm4695, %v11111, 0
    %v11265 = vsel %vm4695, %v11112, 0
    %v11268 = vsel %vm4695, %v11113, 0
    %v11271 = vsel %vm4695, %v11114, 0
    %v11274 = vsel %vm4695, %v11115, 0
    %v11277 = vsel %vm4695, %v11116, 0
    %v11280 = vsel %vm4695, %v11117, 0
    %v11283 = vsel %vm4695, %v11118, 0
    %v11286 = vsel %vm4695, %v11119, 0
    %v11289 = vsel %vm4695, %v11120, 0
    %v11292 = vsel %vm4695, %v11121, 0
    %v11295 = vsel %vm4695, %v11122, 0
    %v11298 = vsel %vm4695, %v11123, 0
    %v11301 = vsel %vm4695, %v11124, 0
    %v11304 = vsel %vm4695, %v11125, 0
    %v11307 = vsel %vm4695, %v11126, 0
    %v11310 = vsel %vm4695, %v11127, 0
    %v11313 = vsel %vm4695, %v11128, 0
    %v11316 = vsel %vm4695, %v11129, 0
    %v11319 = vsel %vm4695, %v11130, 0
    %v11322 = vsel %vm4695, %v11131, 0
    %v11325 = vsel %vm4695, %v11132, 0
    %v11328 = vsel %vm4695, %v11133, 0
    %v11331 = vsel %vm4695, %v11134, 0
    %v11334 = vsel %vm4695, %v11135, 0
    %v11337 = vsel %vm4695, %v11136, 0
    %v11340 = vsel %vm4695, %v11137, 0
    %v11343 = vsel %vm4695, %v11138, 0
    %v11346 = vsel %vm4695, %v11139, 0
    %v11349 = vsel %vm4695, %v11140, 0
    %v11352 = vsel %vm4695, %v11141, 0
    %v11355 = vsel %vm4695, %v11142, 0
    %v11358 = vsel %vm4695, %v11143, 0
    %v11361 = vsel %vm4695, %v11144, 0
    %v11364 = vsel %vm4695, %v11145, 0
    %v11367 = vsel %vm4695, %v11146, 0
    %v11370 = vsel %vm4695, %v11147, 0
    %v11373 = vsel %vm4695, %v11148, 0
    %v11376 = vsel %vm4695, %v11149, 0
    %v11379 = vsel %vm4695, %v11150, 0
    %v11382 = vsel %vm4695, %v11151, 0
    %v11385 = vsel %vm4695, %v11152, 0
    %v11388 = vsel %vm4695, %v11153, 0
    %v11391 = vsel %vm4695, %v11154, 0
    %v11394 = vsel %vm4695, %v11155, 0
    %v11397 = vsel %vm4695, %v11156, 0
    %v11400 = vsel %vm4695, %v11157, 0
    %v11403 = vsel %vm4695, %v11158, 0
    %v11406 = vsel %vm4695, %v11159, 0
    %v11409 = vsel %vm4695, %v11160, 0
    %v11412 = vsel %vm4695, %v11161, 0
    %v11415 = vsel %vm4695, %v11162, 0
    %v11418 = vsel %vm4695, %v11163, 0
    %v11421 = vsel %vm4695, %v11164, 0
    %v11424 = vsel %vm4695, %v11165, 0
    %v11427 = vsel %vm4695, %v11166, 0
    %v11430 = vsel %vm4695, %v11167, 0
    %v11433 = vsel %vm4695, %v11168, 0
    %v11436 = vsel %vm4695, %v11169, 0
    %v11439 = vsel %vm4695, %v11170, 0
    %v11442 = vsel %vm4695, %v11171, 0
    %v11445 = vsel %vm4695, %v11172, 0
    %v11448 = vsel %vm4695, %v11173, 0
    %v11451 = vsel %vm4695, %v11174, 0
    %v11454 = vsel %vm4695, %v11175, 0
    %v11457 = vsel %vm4695, %v11176, 0
    %v11460 = vsel %vm4695, %v11177, 0
    %v11463 = vsel %vm4695, %v11178, 0
    %v11466 = vsel %vm4695, %v11179, 0
    %v11469 = vsel %vm4695, %v11180, 0
    %v11472 = vsel %vm4695, %v11181, 0
    %v11475 = vsel %vm4695, %v11182, 0
    %v11478 = vsel %vm4695, %v11183, 0
    %v11481 = vsel %vm4695, %v11184, 0
    %v11484 = vsel %vm4695, %v11185, 0
    %v11487 = vsel %vm4695, %v11186, 0
    %v11490 = vsel %vm4695, %v11187, 0
    %v11493 = vsel %vm4695, %v11188, 0
    %v11496 = vsel %vm4695, %v11189, 0
    %v11499 = vsel %vm4695, %v11190, 0
    %v11502 = vsel %vm4695, %v11191, 0
    %v11505 = vsel %vm4695, %v11192, 0
    %v11508 = vsel %vm4695, %v11193, 0
    %v11511 = vsel %vm4695, %v11194, 0
    %v11514 = vsel %vm4695, %v11195, 0
    %v11517 = vsel %vm4695, %v11196, 0
    %v11520 = vsel %vm4695, %v11197, 0
    %v11523 = vsel %vm4695, %v11198, 0
    %v11526 = vsel %vm4695, %v11199, 0
    %v11529 = vsel %vm4695, %v11200, 0
    %v11532 = vsel %vm4695, %v11201, 0
    %v11535 = vsel %vm4695, %v11202, 0
    %v11538 = vsel %vm4695, %v11203, 0
    %v11541 = vsel %vm4695, %v11204, 0
    %v11544 = vsel %vm4695, %v11205, 0
    %v11547 = vsel %vm4695, %v11206, 0
    %v11550 = vsel %vm4695, %v11207, 0
    %v11553 = vsel %vm4695, %v11208, 0
    %v11556 = vsel %vm4695, %v11209, 0
    %v11559 = vsel %vm4695, %v11210, 0
    %v11562 = vsel %vm4695, %v11211, 0
    %v11565 = vsel %vm4695, %v11212, 0
    %v11568 = vsel %vm4695, %v11213, 0
    %v11571 = vsel %vm4695, %v11214, 0
    %v11574 = vsel %vm4695, %v11215, 0
    %v11577 = vsel %vm4695, %v11216, 0
    %v11580 = vsel %vm4695, %v11217, 0
    %v11583 = vsel %vm4695, %v11218, 0
    %v11586 = vsel %vm4695, %v11219, 0
    %v11589 = vsel %vm4695, %v11220, 0
    %v11592 = vsel %vm4695, %v11221, 0
    %v11595 = vsel %vm4695, %v11222, 0
    %v11598 = vsel %vm4695, %v11223, 0
    %v11601 = vsel %vm4695, %v11224, 0
    %v11604 = vsel %vm4695, %v11225, 0
    %v11607 = vsel %vm4695, %v11226, 0
    %v11610 = vsel %vm4695, %v11227, 0
    %v11613 = vsel %vm4695, %v11228, 0
    %v11616 = vsel %vm4695, %v11229, 0
    %11618 = vmatprep.subr.mxu0 0.0
    %11619 = vmatpush1.msra.mxu0 0.0
    %11620 = vmatprep.subr.mxu0 0.0
    %11621 = vmatpush1.msra.mxu0 0.0
    %11622 = vmatprep.subr.mxu0 0.0
    %11623 = vmatpush1.msra.mxu0 0.0
    %11624 = vmatprep.subr.mxu0 0.0
    %11625 = vmatpush1.msra.mxu0 0.0
    %11626 = vmatprep.subr.mxu0 0.0
    %11627 = vmatpush1.msra.mxu0 %v2484
    %11628 = vmatprep.subr.mxu0 0.0
    %11629 = vmatpush1.msra.mxu0 %v2483
    %11630 = vmatprep.subr.mxu0 0.0
    %11631 = vmatpush1.msra.mxu0 %v2482
    %11632 = vmatprep.subr.mxu0 0.0
    %11633 = vmatpush1.msra.mxu0 %v2481
    %11634 = vmatprep.subr.mxu0 0.0
    %11635 = vmatpush1.msra.mxu0 %v2480
    %11636 = vmatprep.subr.mxu0 0.0
    %11637 = vmatpush1.msra.mxu0 %v2479
    %11638 = vmatprep.subr.mxu0 0.0
    %11639 = vmatpush1.msra.mxu0 %v2478
    %11640 = vmatprep.subr.mxu0 0.0
    %11641 = vmatpush1.msra.mxu0 %v2477
    %11642 = vmatprep.subr.mxu0 0.0
    %11643 = vmatpush1.msra.mxu0 %v2476
    %11644 = vmatprep.subr.mxu0 0.0
    %11645 = vmatpush1.msra.mxu0 %v2475
    %11646 = vmatprep.subr.mxu0 0.0
    %11647 = vmatpush1.msra.mxu0 %v2474
    %11648 = vmatprep.subr.mxu0 0.0
    %11649 = vmatpush1.msra.mxu0 %v2473
    %11650 = vmatprep.subr.mxu0 0.0
    %11651 = vmatpush2.msra.mxu0 0.0
    %11652 = vmatprep.subr.mxu0 0.0
    %11653 = vmatpush2.msra.mxu0 0.0
    %11654 = vmatprep.subr.mxu0 0.0
    %11655 = vmatpush2.msra.mxu0 0.0
    %11656 = vmatprep.subr.mxu0 0.0
    %11657 = vmatpush2.msra.mxu0 0.0
    %11658 = vmatprep.subr.mxu0 0.0
    %11659 = vmatpush2.msra.mxu0 0.0
    %11660 = vmatprep.subr.mxu0 0.0
    %11661 = vmatpush2.msra.mxu0 0.0
    %11662 = vmatprep.subr.mxu0 0.0
    %11663 = vmatpush2.msra.mxu0 0.0
    %11664 = vmatprep.subr.mxu0 0.0
    %11665 = vmatpush2.msra.mxu0 0.0
    %11666 = vmatprep.subr.mxu0 0.0
    %11667 = vmatpush2.msra.mxu0 0.0
    %11668 = vmatprep.subr.mxu0 0.0
    %11669 = vmatpush2.msra.mxu0 0.0
    %11670 = vmatprep.subr.mxu0 0.0
    %11671 = vmatpush2.msra.mxu0 0.0
    %11672 = vmatprep.subr.mxu0 0.0
    %11673 = vmatpush2.msra.mxu0 0.0
    %11674 = vmatprep.subr.mxu0 0.0
    %11675 = vmatpush2.msra.mxu0 0.0
    %11676 = vmatprep.subr.mxu0 0.0
    %11677 = vmatpush2.msra.mxu0 0.0
    %11678 = vmatprep.subr.mxu0 0.0
    %11679 = vmatpush2.msra.mxu0 0.0
    %11680 = vmatprep.subr.mxu0 0.0
    %11681 = vmatpush2.msra.mxu0 0.0
    %11682 = vmatprep.mubr.f32.mxu0 0.0
    %11683 = vmatmul.mubr.f32.gmra.mxu0 %v11235
    %v11684 = vpop.f32.mrf.mxu0
    %v11685 = vadd.f32 %v11233, %v11684
    %v11686 = vpop.f32.mrf.mxu0
    %11687 = vmatprep.mubr.f32.mxu0 0.0
    %11688 = vmatmul.mubr.f32.gmra.mxu0 %v11238
    %v11689 = vpop.f32.mrf.mxu0
    %v11690 = vadd.f32 %v11233, %v11689
    %v11691 = vpop.f32.mrf.mxu0
    %11692 = vmatprep.mubr.f32.mxu0 0.0
    %11693 = vmatmul.mubr.f32.gmra.mxu0 %v11241
    %v11694 = vpop.f32.mrf.mxu0
    %v11695 = vadd.f32 %v11233, %v11694
    %v11696 = vpop.f32.mrf.mxu0
    %11697 = vmatprep.mubr.f32.mxu0 0.0
    %11698 = vmatmul.mubr.f32.gmra.mxu0 %v11244
    %v11699 = vpop.f32.mrf.mxu0
    %v11700 = vadd.f32 %v11233, %v11699
    %v11701 = vpop.f32.mrf.mxu0
    %11702 = vmatprep.mubr.f32.mxu0 0.0
    %11703 = vmatmul.mubr.f32.gmra.mxu0 %v11247
    %v11704 = vpop.f32.mrf.mxu0
    %v11705 = vadd.f32 %v11233, %v11704
    %v11706 = vpop.f32.mrf.mxu0
    %11707 = vmatprep.mubr.f32.mxu0 0.0
    %11708 = vmatmul.mubr.f32.gmra.mxu0 %v11250
    %v11709 = vpop.f32.mrf.mxu0
    %v11710 = vadd.f32 %v11233, %v11709
    %v11711 = vpop.f32.mrf.mxu0
    %11712 = vmatprep.mubr.f32.mxu0 0.0
    %11713 = vmatmul.mubr.f32.gmra.mxu0 %v11253
    %v11714 = vpop.f32.mrf.mxu0
    %v11715 = vadd.f32 %v11233, %v11714
    %v11716 = vpop.f32.mrf.mxu0
    %11717 = vmatprep.mubr.f32.mxu0 0.0
    %11718 = vmatmul.mubr.f32.gmra.mxu0 %v11256
    %v11719 = vpop.f32.mrf.mxu0
    %v11720 = vadd.f32 %v11233, %v11719
    %v11721 = vpop.f32.mrf.mxu0
    %11722 = vmatprep.mubr.f32.mxu0 0.0
    %11723 = vmatmul.mubr.f32.gmra.mxu0 %v11259
    %v11724 = vpop.f32.mrf.mxu0
    %v11725 = vadd.f32 %v11233, %v11724
    %v11726 = vpop.f32.mrf.mxu0
    %11727 = vmatprep.mubr.f32.mxu0 0.0
    %11728 = vmatmul.mubr.f32.gmra.mxu0 %v11262
    %v11729 = vpop.f32.mrf.mxu0
    %v11730 = vadd.f32 %v11233, %v11729
    %v11731 = vpop.f32.mrf.mxu0
    %11732 = vmatprep.mubr.f32.mxu0 0.0
    %11733 = vmatmul.mubr.f32.gmra.mxu0 %v11265
    %v11734 = vpop.f32.mrf.mxu0
    %v11735 = vadd.f32 %v11233, %v11734
    %v11736 = vpop.f32.mrf.mxu0
    %11737 = vmatprep.mubr.f32.mxu0 0.0
    %11738 = vmatmul.mubr.f32.gmra.mxu0 %v11268
    %v11739 = vpop.f32.mrf.mxu0
    %v11740 = vadd.f32 %v11233, %v11739
    %v11741 = vpop.f32.mrf.mxu0
    %11742 = vmatprep.mubr.f32.mxu0 0.0
    %11743 = vmatmul.mubr.f32.gmra.mxu0 %v11271
    %v11744 = vpop.f32.mrf.mxu0
    %v11745 = vadd.f32 %v11233, %v11744
    %v11746 = vpop.f32.mrf.mxu0
    %11747 = vmatprep.mubr.f32.mxu0 0.0
    %11748 = vmatmul.mubr.f32.gmra.mxu0 %v11274
    %v11749 = vpop.f32.mrf.mxu0
    %v11750 = vadd.f32 %v11233, %v11749
    %v11751 = vpop.f32.mrf.mxu0
    %11752 = vmatprep.mubr.f32.mxu0 0.0
    %11753 = vmatmul.mubr.f32.gmra.mxu0 %v11277
    %v11754 = vpop.f32.mrf.mxu0
    %v11755 = vadd.f32 %v11233, %v11754
    %v11756 = vpop.f32.mrf.mxu0
    %11757 = vmatprep.mubr.f32.mxu0 0.0
    %11758 = vmatmul.mubr.f32.gmra.mxu0 %v11280
    %v11759 = vpop.f32.mrf.mxu0
    %v11760 = vadd.f32 %v11233, %v11759
    %v11761 = vpop.f32.mrf.mxu0
    %11762 = vmatprep.mubr.f32.mxu0 0.0
    %11763 = vmatmul.mubr.f32.gmra.mxu0 %v11283
    %v11764 = vpop.f32.mrf.mxu0
    %v11765 = vadd.f32 %v11233, %v11764
    %v11766 = vpop.f32.mrf.mxu0
    %11767 = vmatprep.mubr.f32.mxu0 0.0
    %11768 = vmatmul.mubr.f32.gmra.mxu0 %v11286
    %v11769 = vpop.f32.mrf.mxu0
    %v11770 = vadd.f32 %v11233, %v11769
    %v11771 = vpop.f32.mrf.mxu0
    %11772 = vmatprep.mubr.f32.mxu0 0.0
    %11773 = vmatmul.mubr.f32.gmra.mxu0 %v11289
    %v11774 = vpop.f32.mrf.mxu0
    %v11775 = vadd.f32 %v11233, %v11774
    %v11776 = vpop.f32.mrf.mxu0
    %11777 = vmatprep.mubr.f32.mxu0 0.0
    %11778 = vmatmul.mubr.f32.gmra.mxu0 %v11292
    %v11779 = vpop.f32.mrf.mxu0
    %v11780 = vadd.f32 %v11233, %v11779
    %v11781 = vpop.f32.mrf.mxu0
    %11782 = vmatprep.mubr.f32.mxu0 0.0
    %11783 = vmatmul.mubr.f32.gmra.mxu0 %v11295
    %v11784 = vpop.f32.mrf.mxu0
    %v11785 = vadd.f32 %v11233, %v11784
    %v11786 = vpop.f32.mrf.mxu0
    %11787 = vmatprep.mubr.f32.mxu0 0.0
    %11788 = vmatmul.mubr.f32.gmra.mxu0 %v11298
    %v11789 = vpop.f32.mrf.mxu0
    %v11790 = vadd.f32 %v11233, %v11789
    %v11791 = vpop.f32.mrf.mxu0
    %11792 = vmatprep.mubr.f32.mxu0 0.0
    %11793 = vmatmul.mubr.f32.gmra.mxu0 %v11301
    %v11794 = vpop.f32.mrf.mxu0
    %v11795 = vadd.f32 %v11233, %v11794
    %v11796 = vpop.f32.mrf.mxu0
    %11797 = vmatprep.mubr.f32.mxu0 0.0
    %11798 = vmatmul.mubr.f32.gmra.mxu0 %v11304
    %v11799 = vpop.f32.mrf.mxu0
    %v11800 = vadd.f32 %v11233, %v11799
    %v11801 = vpop.f32.mrf.mxu0
    %11802 = vmatprep.mubr.f32.mxu0 0.0
    %11803 = vmatmul.mubr.f32.gmra.mxu0 %v11307
    %v11804 = vpop.f32.mrf.mxu0
    %v11805 = vadd.f32 %v11233, %v11804
    %v11806 = vpop.f32.mrf.mxu0
    %11807 = vmatprep.mubr.f32.mxu0 0.0
    %11808 = vmatmul.mubr.f32.gmra.mxu0 %v11310
    %v11809 = vpop.f32.mrf.mxu0
    %v11810 = vadd.f32 %v11233, %v11809
    %v11811 = vpop.f32.mrf.mxu0
    %11812 = vmatprep.mubr.f32.mxu0 0.0
    %11813 = vmatmul.mubr.f32.gmra.mxu0 %v11313
    %v11814 = vpop.f32.mrf.mxu0
    %v11815 = vadd.f32 %v11233, %v11814
    %v11816 = vpop.f32.mrf.mxu0
    %11817 = vmatprep.mubr.f32.mxu0 0.0
    %11818 = vmatmul.mubr.f32.gmra.mxu0 %v11316
    %v11819 = vpop.f32.mrf.mxu0
    %v11820 = vadd.f32 %v11233, %v11819
    %v11821 = vpop.f32.mrf.mxu0
    %11822 = vmatprep.mubr.f32.mxu0 0.0
    %11823 = vmatmul.mubr.f32.gmra.mxu0 %v11319
    %v11824 = vpop.f32.mrf.mxu0
    %v11825 = vadd.f32 %v11233, %v11824
    %v11826 = vpop.f32.mrf.mxu0
    %11827 = vmatprep.mubr.f32.mxu0 0.0
    %11828 = vmatmul.mubr.f32.gmra.mxu0 %v11322
    %v11829 = vpop.f32.mrf.mxu0
    %v11830 = vadd.f32 %v11233, %v11829
    %v11831 = vpop.f32.mrf.mxu0
    %11832 = vmatprep.mubr.f32.mxu0 0.0
    %11833 = vmatmul.mubr.f32.gmra.mxu0 %v11325
    %v11834 = vpop.f32.mrf.mxu0
    %v11835 = vadd.f32 %v11233, %v11834
    %v11836 = vpop.f32.mrf.mxu0
    %11837 = vmatprep.mubr.f32.mxu0 0.0
    %11838 = vmatmul.mubr.f32.gmra.mxu0 %v11328
    %v11839 = vpop.f32.mrf.mxu0
    %v11840 = vadd.f32 %v11233, %v11839
    %v11841 = vpop.f32.mrf.mxu0
    %11842 = vmatprep.mubr.f32.mxu0 0.0
    %11843 = vmatmul.mubr.f32.gmra.mxu0 %v11331
    %v11844 = vpop.f32.mrf.mxu0
    %v11845 = vadd.f32 %v11233, %v11844
    %v11846 = vpop.f32.mrf.mxu0
    %11847 = vmatprep.mubr.f32.mxu0 0.0
    %11848 = vmatmul.mubr.f32.gmra.mxu0 %v11334
    %v11849 = vpop.f32.mrf.mxu0
    %v11850 = vadd.f32 %v11233, %v11849
    %v11851 = vpop.f32.mrf.mxu0
    %11852 = vmatprep.mubr.f32.mxu0 0.0
    %11853 = vmatmul.mubr.f32.gmra.mxu0 %v11337
    %v11854 = vpop.f32.mrf.mxu0
    %v11855 = vadd.f32 %v11233, %v11854
    %v11856 = vpop.f32.mrf.mxu0
    %11857 = vmatprep.mubr.f32.mxu0 0.0
    %11858 = vmatmul.mubr.f32.gmra.mxu0 %v11340
    %v11859 = vpop.f32.mrf.mxu0
    %v11860 = vadd.f32 %v11233, %v11859
    %v11861 = vpop.f32.mrf.mxu0
    %11862 = vmatprep.mubr.f32.mxu0 0.0
    %11863 = vmatmul.mubr.f32.gmra.mxu0 %v11343
    %v11864 = vpop.f32.mrf.mxu0
    %v11865 = vadd.f32 %v11233, %v11864
    %v11866 = vpop.f32.mrf.mxu0
    %11867 = vmatprep.mubr.f32.mxu0 0.0
    %11868 = vmatmul.mubr.f32.gmra.mxu0 %v11346
    %v11869 = vpop.f32.mrf.mxu0
    %v11870 = vadd.f32 %v11233, %v11869
    %v11871 = vpop.f32.mrf.mxu0
    %11872 = vmatprep.mubr.f32.mxu0 0.0
    %11873 = vmatmul.mubr.f32.gmra.mxu0 %v11349
    %v11874 = vpop.f32.mrf.mxu0
    %v11875 = vadd.f32 %v11233, %v11874
    %v11876 = vpop.f32.mrf.mxu0
    %11877 = vmatprep.mubr.f32.mxu0 0.0
    %11878 = vmatmul.mubr.f32.gmra.mxu0 %v11352
    %v11879 = vpop.f32.mrf.mxu0
    %v11880 = vadd.f32 %v11233, %v11879
    %v11881 = vpop.f32.mrf.mxu0
    %11882 = vmatprep.mubr.f32.mxu0 0.0
    %11883 = vmatmul.mubr.f32.gmra.mxu0 %v11355
    %v11884 = vpop.f32.mrf.mxu0
    %v11885 = vadd.f32 %v11233, %v11884
    %v11886 = vpop.f32.mrf.mxu0
    %11887 = vmatprep.mubr.f32.mxu0 0.0
    %11888 = vmatmul.mubr.f32.gmra.mxu0 %v11358
    %v11889 = vpop.f32.mrf.mxu0
    %v11890 = vadd.f32 %v11233, %v11889
    %v11891 = vpop.f32.mrf.mxu0
    %11892 = vmatprep.mubr.f32.mxu0 0.0
    %11893 = vmatmul.mubr.f32.gmra.mxu0 %v11361
    %v11894 = vpop.f32.mrf.mxu0
    %v11895 = vadd.f32 %v11233, %v11894
    %v11896 = vpop.f32.mrf.mxu0
    %11897 = vmatprep.mubr.f32.mxu0 0.0
    %11898 = vmatmul.mubr.f32.gmra.mxu0 %v11364
    %v11899 = vpop.f32.mrf.mxu0
    %v11900 = vadd.f32 %v11233, %v11899
    %v11901 = vpop.f32.mrf.mxu0
    %11902 = vmatprep.mubr.f32.mxu0 0.0
    %11903 = vmatmul.mubr.f32.gmra.mxu0 %v11367
    %v11904 = vpop.f32.mrf.mxu0
    %v11905 = vadd.f32 %v11233, %v11904
    %v11906 = vpop.f32.mrf.mxu0
    %11907 = vmatprep.mubr.f32.mxu0 0.0
    %11908 = vmatmul.mubr.f32.gmra.mxu0 %v11370
    %v11909 = vpop.f32.mrf.mxu0
    %v11910 = vadd.f32 %v11233, %v11909
    %v11911 = vpop.f32.mrf.mxu0
    %11912 = vmatprep.mubr.f32.mxu0 0.0
    %11913 = vmatmul.mubr.f32.gmra.mxu0 %v11373
    %v11914 = vpop.f32.mrf.mxu0
    %v11915 = vadd.f32 %v11233, %v11914
    %v11916 = vpop.f32.mrf.mxu0
    %11917 = vmatprep.mubr.f32.mxu0 0.0
    %11918 = vmatmul.mubr.f32.gmra.mxu0 %v11376
    %v11919 = vpop.f32.mrf.mxu0
    %v11920 = vadd.f32 %v11233, %v11919
    %v11921 = vpop.f32.mrf.mxu0
    %11922 = vmatprep.mubr.f32.mxu0 0.0
    %11923 = vmatmul.mubr.f32.gmra.mxu0 %v11379
    %v11924 = vpop.f32.mrf.mxu0
    %v11925 = vadd.f32 %v11233, %v11924
    %v11926 = vpop.f32.mrf.mxu0
    %11927 = vmatprep.mubr.f32.mxu0 0.0
    %11928 = vmatmul.mubr.f32.gmra.mxu0 %v11382
    %v11929 = vpop.f32.mrf.mxu0
    %v11930 = vadd.f32 %v11233, %v11929
    %v11931 = vpop.f32.mrf.mxu0
    %11932 = vmatprep.mubr.f32.mxu0 0.0
    %11933 = vmatmul.mubr.f32.gmra.mxu0 %v11385
    %v11934 = vpop.f32.mrf.mxu0
    %v11935 = vadd.f32 %v11233, %v11934
    %v11936 = vpop.f32.mrf.mxu0
    %11937 = vmatprep.mubr.f32.mxu0 0.0
    %11938 = vmatmul.mubr.f32.gmra.mxu0 %v11388
    %v11939 = vpop.f32.mrf.mxu0
    %v11940 = vadd.f32 %v11233, %v11939
    %v11941 = vpop.f32.mrf.mxu0
    %11942 = vmatprep.mubr.f32.mxu0 0.0
    %11943 = vmatmul.mubr.f32.gmra.mxu0 %v11391
    %v11944 = vpop.f32.mrf.mxu0
    %v11945 = vadd.f32 %v11233, %v11944
    %v11946 = vpop.f32.mrf.mxu0
    %11947 = vmatprep.mubr.f32.mxu0 0.0
    %11948 = vmatmul.mubr.f32.gmra.mxu0 %v11394
    %v11949 = vpop.f32.mrf.mxu0
    %v11950 = vadd.f32 %v11233, %v11949
    %v11951 = vpop.f32.mrf.mxu0
    %11952 = vmatprep.mubr.f32.mxu0 0.0
    %11953 = vmatmul.mubr.f32.gmra.mxu0 %v11397
    %v11954 = vpop.f32.mrf.mxu0
    %v11955 = vadd.f32 %v11233, %v11954
    %v11956 = vpop.f32.mrf.mxu0
    %11957 = vmatprep.mubr.f32.mxu0 0.0
    %11958 = vmatmul.mubr.f32.gmra.mxu0 %v11400
    %v11959 = vpop.f32.mrf.mxu0
    %v11960 = vadd.f32 %v11233, %v11959
    %v11961 = vpop.f32.mrf.mxu0
    %11962 = vmatprep.mubr.f32.mxu0 0.0
    %11963 = vmatmul.mubr.f32.gmra.mxu0 %v11403
    %v11964 = vpop.f32.mrf.mxu0
    %v11965 = vadd.f32 %v11233, %v11964
    %v11966 = vpop.f32.mrf.mxu0
    %11967 = vmatprep.mubr.f32.mxu0 0.0
    %11968 = vmatmul.mubr.f32.gmra.mxu0 %v11406
    %v11969 = vpop.f32.mrf.mxu0
    %v11970 = vadd.f32 %v11233, %v11969
    %v11971 = vpop.f32.mrf.mxu0
    %11972 = vmatprep.mubr.f32.mxu0 0.0
    %11973 = vmatmul.mubr.f32.gmra.mxu0 %v11409
    %v11974 = vpop.f32.mrf.mxu0
    %v11975 = vadd.f32 %v11233, %v11974
    %v11976 = vpop.f32.mrf.mxu0
    %11977 = vmatprep.mubr.f32.mxu0 0.0
    %11978 = vmatmul.mubr.f32.gmra.mxu0 %v11412
    %v11979 = vpop.f32.mrf.mxu0
    %v11980 = vadd.f32 %v11233, %v11979
    %v11981 = vpop.f32.mrf.mxu0
    %11982 = vmatprep.mubr.f32.mxu0 0.0
    %11983 = vmatmul.mubr.f32.gmra.mxu0 %v11415
    %v11984 = vpop.f32.mrf.mxu0
    %v11985 = vadd.f32 %v11233, %v11984
    %v11986 = vpop.f32.mrf.mxu0
    %11987 = vmatprep.mubr.f32.mxu0 0.0
    %11988 = vmatmul.mubr.f32.gmra.mxu0 %v11418
    %v11989 = vpop.f32.mrf.mxu0
    %v11990 = vadd.f32 %v11233, %v11989
    %v11991 = vpop.f32.mrf.mxu0
    %11992 = vmatprep.mubr.f32.mxu0 0.0
    %11993 = vmatmul.mubr.f32.gmra.mxu0 %v11421
    %v11994 = vpop.f32.mrf.mxu0
    %v11995 = vadd.f32 %v11233, %v11994
    %v11996 = vpop.f32.mrf.mxu0
    %11997 = vmatprep.mubr.f32.mxu0 0.0
    %11998 = vmatmul.mubr.f32.gmra.mxu0 %v11424
    %v11999 = vpop.f32.mrf.mxu0
    %v12000 = vadd.f32 %v11233, %v11999
    %v12001 = vpop.f32.mrf.mxu0
    %12002 = vmatprep.mubr.f32.mxu0 0.0
    %12003 = vmatmul.mubr.f32.gmra.mxu0 %v11427
    %v12004 = vpop.f32.mrf.mxu0
    %v12005 = vadd.f32 %v11233, %v12004
    %v12006 = vpop.f32.mrf.mxu0
    %12007 = vmatprep.mubr.f32.mxu0 0.0
    %12008 = vmatmul.mubr.f32.gmra.mxu0 %v11430
    %v12009 = vpop.f32.mrf.mxu0
    %v12010 = vadd.f32 %v11233, %v12009
    %v12011 = vpop.f32.mrf.mxu0
    %12012 = vmatprep.mubr.f32.mxu0 0.0
    %12013 = vmatmul.mubr.f32.gmra.mxu0 %v11433
    %v12014 = vpop.f32.mrf.mxu0
    %v12015 = vadd.f32 %v11233, %v12014
    %v12016 = vpop.f32.mrf.mxu0
    %12017 = vmatprep.mubr.f32.mxu0 0.0
    %12018 = vmatmul.mubr.f32.gmra.mxu0 %v11436
    %v12019 = vpop.f32.mrf.mxu0
    %v12020 = vadd.f32 %v11233, %v12019
    %v12021 = vpop.f32.mrf.mxu0
    %12022 = vmatprep.mubr.f32.mxu0 0.0
    %12023 = vmatmul.mubr.f32.gmra.mxu0 %v11439
    %v12024 = vpop.f32.mrf.mxu0
    %v12025 = vadd.f32 %v11233, %v12024
    %v12026 = vpop.f32.mrf.mxu0
    %12027 = vmatprep.mubr.f32.mxu0 0.0
    %12028 = vmatmul.mubr.f32.gmra.mxu0 %v11442
    %v12029 = vpop.f32.mrf.mxu0
    %v12030 = vadd.f32 %v11233, %v12029
    %v12031 = vpop.f32.mrf.mxu0
    %12032 = vmatprep.mubr.f32.mxu0 0.0
    %12033 = vmatmul.mubr.f32.gmra.mxu0 %v11445
    %v12034 = vpop.f32.mrf.mxu0
    %v12035 = vadd.f32 %v11233, %v12034
    %v12036 = vpop.f32.mrf.mxu0
    %12037 = vmatprep.mubr.f32.mxu0 0.0
    %12038 = vmatmul.mubr.f32.gmra.mxu0 %v11448
    %v12039 = vpop.f32.mrf.mxu0
    %v12040 = vadd.f32 %v11233, %v12039
    %v12041 = vpop.f32.mrf.mxu0
    %12042 = vmatprep.mubr.f32.mxu0 0.0
    %12043 = vmatmul.mubr.f32.gmra.mxu0 %v11451
    %v12044 = vpop.f32.mrf.mxu0
    %v12045 = vadd.f32 %v11233, %v12044
    %v12046 = vpop.f32.mrf.mxu0
    %12047 = vmatprep.mubr.f32.mxu0 0.0
    %12048 = vmatmul.mubr.f32.gmra.mxu0 %v11454
    %v12049 = vpop.f32.mrf.mxu0
    %v12050 = vadd.f32 %v11233, %v12049
    %v12051 = vpop.f32.mrf.mxu0
    %12052 = vmatprep.mubr.f32.mxu0 0.0
    %12053 = vmatmul.mubr.f32.gmra.mxu0 %v11457
    %v12054 = vpop.f32.mrf.mxu0
    %v12055 = vadd.f32 %v11233, %v12054
    %v12056 = vpop.f32.mrf.mxu0
    %12057 = vmatprep.mubr.f32.mxu0 0.0
    %12058 = vmatmul.mubr.f32.gmra.mxu0 %v11460
    %v12059 = vpop.f32.mrf.mxu0
    %v12060 = vadd.f32 %v11233, %v12059
    %v12061 = vpop.f32.mrf.mxu0
    %12062 = vmatprep.mubr.f32.mxu0 0.0
    %12063 = vmatmul.mubr.f32.gmra.mxu0 %v11463
    %v12064 = vpop.f32.mrf.mxu0
    %v12065 = vadd.f32 %v11233, %v12064
    %v12066 = vpop.f32.mrf.mxu0
    %12067 = vmatprep.mubr.f32.mxu0 0.0
    %12068 = vmatmul.mubr.f32.gmra.mxu0 %v11466
    %v12069 = vpop.f32.mrf.mxu0
    %v12070 = vadd.f32 %v11233, %v12069
    %v12071 = vpop.f32.mrf.mxu0
    %12072 = vmatprep.mubr.f32.mxu0 0.0
    %12073 = vmatmul.mubr.f32.gmra.mxu0 %v11469
    %v12074 = vpop.f32.mrf.mxu0
    %v12075 = vadd.f32 %v11233, %v12074
    %v12076 = vpop.f32.mrf.mxu0
    %12077 = vmatprep.mubr.f32.mxu0 0.0
    %12078 = vmatmul.mubr.f32.gmra.mxu0 %v11472
    %v12079 = vpop.f32.mrf.mxu0
    %v12080 = vadd.f32 %v11233, %v12079
    %v12081 = vpop.f32.mrf.mxu0
    %12082 = vmatprep.mubr.f32.mxu0 0.0
    %12083 = vmatmul.mubr.f32.gmra.mxu0 %v11475
    %v12084 = vpop.f32.mrf.mxu0
    %v12085 = vadd.f32 %v11233, %v12084
    %v12086 = vpop.f32.mrf.mxu0
    %12087 = vmatprep.mubr.f32.mxu0 0.0
    %12088 = vmatmul.mubr.f32.gmra.mxu0 %v11478
    %v12089 = vpop.f32.mrf.mxu0
    %v12090 = vadd.f32 %v11233, %v12089
    %v12091 = vpop.f32.mrf.mxu0
    %12092 = vmatprep.mubr.f32.mxu0 0.0
    %12093 = vmatmul.mubr.f32.gmra.mxu0 %v11481
    %v12094 = vpop.f32.mrf.mxu0
    %v12095 = vadd.f32 %v11233, %v12094
    %v12096 = vpop.f32.mrf.mxu0
    %12097 = vmatprep.mubr.f32.mxu0 0.0
    %12098 = vmatmul.mubr.f32.gmra.mxu0 %v11484
    %v12099 = vpop.f32.mrf.mxu0
    %v12100 = vadd.f32 %v11233, %v12099
    %v12101 = vpop.f32.mrf.mxu0
    %12102 = vmatprep.mubr.f32.mxu0 0.0
    %12103 = vmatmul.mubr.f32.gmra.mxu0 %v11487
    %v12104 = vpop.f32.mrf.mxu0
    %v12105 = vadd.f32 %v11233, %v12104
    %v12106 = vpop.f32.mrf.mxu0
    %12107 = vmatprep.mubr.f32.mxu0 0.0
    %12108 = vmatmul.mubr.f32.gmra.mxu0 %v11490
    %v12109 = vpop.f32.mrf.mxu0
    %v12110 = vadd.f32 %v11233, %v12109
    %v12111 = vpop.f32.mrf.mxu0
    %12112 = vmatprep.mubr.f32.mxu0 0.0
    %12113 = vmatmul.mubr.f32.gmra.mxu0 %v11493
    %v12114 = vpop.f32.mrf.mxu0
    %v12115 = vadd.f32 %v11233, %v12114
    %v12116 = vpop.f32.mrf.mxu0
    %12117 = vmatprep.mubr.f32.mxu0 0.0
    %12118 = vmatmul.mubr.f32.gmra.mxu0 %v11496
    %v12119 = vpop.f32.mrf.mxu0
    %v12120 = vadd.f32 %v11233, %v12119
    %v12121 = vpop.f32.mrf.mxu0
    %12122 = vmatprep.mubr.f32.mxu0 0.0
    %12123 = vmatmul.mubr.f32.gmra.mxu0 %v11499
    %v12124 = vpop.f32.mrf.mxu0
    %v12125 = vadd.f32 %v11233, %v12124
    %v12126 = vpop.f32.mrf.mxu0
    %12127 = vmatprep.mubr.f32.mxu0 0.0
    %12128 = vmatmul.mubr.f32.gmra.mxu0 %v11502
    %v12129 = vpop.f32.mrf.mxu0
    %v12130 = vadd.f32 %v11233, %v12129
    %v12131 = vpop.f32.mrf.mxu0
    %12132 = vmatprep.mubr.f32.mxu0 0.0
    %12133 = vmatmul.mubr.f32.gmra.mxu0 %v11505
    %v12134 = vpop.f32.mrf.mxu0
    %v12135 = vadd.f32 %v11233, %v12134
    %v12136 = vpop.f32.mrf.mxu0
    %12137 = vmatprep.mubr.f32.mxu0 0.0
    %12138 = vmatmul.mubr.f32.gmra.mxu0 %v11508
    %v12139 = vpop.f32.mrf.mxu0
    %v12140 = vadd.f32 %v11233, %v12139
    %v12141 = vpop.f32.mrf.mxu0
    %12142 = vmatprep.mubr.f32.mxu0 0.0
    %12143 = vmatmul.mubr.f32.gmra.mxu0 %v11511
    %v12144 = vpop.f32.mrf.mxu0
    %v12145 = vadd.f32 %v11233, %v12144
    %v12146 = vpop.f32.mrf.mxu0
    %12147 = vmatprep.mubr.f32.mxu0 0.0
    %12148 = vmatmul.mubr.f32.gmra.mxu0 %v11514
    %v12149 = vpop.f32.mrf.mxu0
    %v12150 = vadd.f32 %v11233, %v12149
    %v12151 = vpop.f32.mrf.mxu0
    %12152 = vmatprep.mubr.f32.mxu0 0.0
    %12153 = vmatmul.mubr.f32.gmra.mxu0 %v11517
    %v12154 = vpop.f32.mrf.mxu0
    %v12155 = vadd.f32 %v11233, %v12154
    %v12156 = vpop.f32.mrf.mxu0
    %12157 = vmatprep.mubr.f32.mxu0 0.0
    %12158 = vmatmul.mubr.f32.gmra.mxu0 %v11520
    %v12159 = vpop.f32.mrf.mxu0
    %v12160 = vadd.f32 %v11233, %v12159
    %v12161 = vpop.f32.mrf.mxu0
    %12162 = vmatprep.mubr.f32.mxu0 0.0
    %12163 = vmatmul.mubr.f32.gmra.mxu0 %v11523
    %v12164 = vpop.f32.mrf.mxu0
    %v12165 = vadd.f32 %v11233, %v12164
    %v12166 = vpop.f32.mrf.mxu0
    %12167 = vmatprep.mubr.f32.mxu0 0.0
    %12168 = vmatmul.mubr.f32.gmra.mxu0 %v11526
    %v12169 = vpop.f32.mrf.mxu0
    %v12170 = vadd.f32 %v11233, %v12169
    %v12171 = vpop.f32.mrf.mxu0
    %12172 = vmatprep.mubr.f32.mxu0 0.0
    %12173 = vmatmul.mubr.f32.gmra.mxu0 %v11529
    %v12174 = vpop.f32.mrf.mxu0
    %v12175 = vadd.f32 %v11233, %v12174
    %v12176 = vpop.f32.mrf.mxu0
    %12177 = vmatprep.mubr.f32.mxu0 0.0
    %12178 = vmatmul.mubr.f32.gmra.mxu0 %v11532
    %v12179 = vpop.f32.mrf.mxu0
    %v12180 = vadd.f32 %v11233, %v12179
    %v12181 = vpop.f32.mrf.mxu0
    %12182 = vmatprep.mubr.f32.mxu0 0.0
    %12183 = vmatmul.mubr.f32.gmra.mxu0 %v11535
    %v12184 = vpop.f32.mrf.mxu0
    %v12185 = vadd.f32 %v11233, %v12184
    %v12186 = vpop.f32.mrf.mxu0
    %12187 = vmatprep.mubr.f32.mxu0 0.0
    %12188 = vmatmul.mubr.f32.gmra.mxu0 %v11538
    %v12189 = vpop.f32.mrf.mxu0
    %v12190 = vadd.f32 %v11233, %v12189
    %v12191 = vpop.f32.mrf.mxu0
    %12192 = vmatprep.mubr.f32.mxu0 0.0
    %12193 = vmatmul.mubr.f32.gmra.mxu0 %v11541
    %v12194 = vpop.f32.mrf.mxu0
    %v12195 = vadd.f32 %v11233, %v12194
    %v12196 = vpop.f32.mrf.mxu0
    %12197 = vmatprep.mubr.f32.mxu0 0.0
    %12198 = vmatmul.mubr.f32.gmra.mxu0 %v11544
    %v12199 = vpop.f32.mrf.mxu0
    %v12200 = vadd.f32 %v11233, %v12199
    %v12201 = vpop.f32.mrf.mxu0
    %12202 = vmatprep.mubr.f32.mxu0 0.0
    %12203 = vmatmul.mubr.f32.gmra.mxu0 %v11547
    %v12204 = vpop.f32.mrf.mxu0
    %v12205 = vadd.f32 %v11233, %v12204
    %v12206 = vpop.f32.mrf.mxu0
    %12207 = vmatprep.mubr.f32.mxu0 0.0
    %12208 = vmatmul.mubr.f32.gmra.mxu0 %v11550
    %v12209 = vpop.f32.mrf.mxu0
    %v12210 = vadd.f32 %v11233, %v12209
    %v12211 = vpop.f32.mrf.mxu0
    %12212 = vmatprep.mubr.f32.mxu0 0.0
    %12213 = vmatmul.mubr.f32.gmra.mxu0 %v11553
    %v12214 = vpop.f32.mrf.mxu0
    %v12215 = vadd.f32 %v11233, %v12214
    %v12216 = vpop.f32.mrf.mxu0
    %12217 = vmatprep.mubr.f32.mxu0 0.0
    %12218 = vmatmul.mubr.f32.gmra.mxu0 %v11556
    %v12219 = vpop.f32.mrf.mxu0
    %v12220 = vadd.f32 %v11233, %v12219
    %v12221 = vpop.f32.mrf.mxu0
    %12222 = vmatprep.mubr.f32.mxu0 0.0
    %12223 = vmatmul.mubr.f32.gmra.mxu0 %v11559
    %v12224 = vpop.f32.mrf.mxu0
    %v12225 = vadd.f32 %v11233, %v12224
    %v12226 = vpop.f32.mrf.mxu0
    %12227 = vmatprep.mubr.f32.mxu0 0.0
    %12228 = vmatmul.mubr.f32.gmra.mxu0 %v11562
    %v12229 = vpop.f32.mrf.mxu0
    %v12230 = vadd.f32 %v11233, %v12229
    %v12231 = vpop.f32.mrf.mxu0
    %12232 = vmatprep.mubr.f32.mxu0 0.0
    %12233 = vmatmul.mubr.f32.gmra.mxu0 %v11565
    %v12234 = vpop.f32.mrf.mxu0
    %v12235 = vadd.f32 %v11233, %v12234
    %v12236 = vpop.f32.mrf.mxu0
    %12237 = vmatprep.mubr.f32.mxu0 0.0
    %12238 = vmatmul.mubr.f32.gmra.mxu0 %v11568
    %v12239 = vpop.f32.mrf.mxu0
    %v12240 = vadd.f32 %v11233, %v12239
    %v12241 = vpop.f32.mrf.mxu0
    %12242 = vmatprep.mubr.f32.mxu0 0.0
    %12243 = vmatmul.mubr.f32.gmra.mxu0 %v11571
    %v12244 = vpop.f32.mrf.mxu0
    %v12245 = vadd.f32 %v11233, %v12244
    %v12246 = vpop.f32.mrf.mxu0
    %12247 = vmatprep.mubr.f32.mxu0 0.0
    %12248 = vmatmul.mubr.f32.gmra.mxu0 %v11574
    %v12249 = vpop.f32.mrf.mxu0
    %v12250 = vadd.f32 %v11233, %v12249
    %v12251 = vpop.f32.mrf.mxu0
    %12252 = vmatprep.mubr.f32.mxu0 0.0
    %12253 = vmatmul.mubr.f32.gmra.mxu0 %v11577
    %v12254 = vpop.f32.mrf.mxu0
    %v12255 = vadd.f32 %v11233, %v12254
    %v12256 = vpop.f32.mrf.mxu0
    %12257 = vmatprep.mubr.f32.mxu0 0.0
    %12258 = vmatmul.mubr.f32.gmra.mxu0 %v11580
    %v12259 = vpop.f32.mrf.mxu0
    %v12260 = vadd.f32 %v11233, %v12259
    %v12261 = vpop.f32.mrf.mxu0
    %12262 = vmatprep.mubr.f32.mxu0 0.0
    %12263 = vmatmul.mubr.f32.gmra.mxu0 %v11583
    %v12264 = vpop.f32.mrf.mxu0
    %v12265 = vadd.f32 %v11233, %v12264
    %v12266 = vpop.f32.mrf.mxu0
    %12267 = vmatprep.mubr.f32.mxu0 0.0
    %12268 = vmatmul.mubr.f32.gmra.mxu0 %v11586
    %v12269 = vpop.f32.mrf.mxu0
    %v12270 = vadd.f32 %v11233, %v12269
    %v12271 = vpop.f32.mrf.mxu0
    %12272 = vmatprep.mubr.f32.mxu0 0.0
    %12273 = vmatmul.mubr.f32.gmra.mxu0 %v11589
    %v12274 = vpop.f32.mrf.mxu0
    %v12275 = vadd.f32 %v11233, %v12274
    %v12276 = vpop.f32.mrf.mxu0
    %12277 = vmatprep.mubr.f32.mxu0 0.0
    %12278 = vmatmul.mubr.f32.gmra.mxu0 %v11592
    %v12279 = vpop.f32.mrf.mxu0
    %v12280 = vadd.f32 %v11233, %v12279
    %v12281 = vpop.f32.mrf.mxu0
    %12282 = vmatprep.mubr.f32.mxu0 0.0
    %12283 = vmatmul.mubr.f32.gmra.mxu0 %v11595
    %v12284 = vpop.f32.mrf.mxu0
    %v12285 = vadd.f32 %v11233, %v12284
    %v12286 = vpop.f32.mrf.mxu0
    %12287 = vmatprep.mubr.f32.mxu0 0.0
    %12288 = vmatmul.mubr.f32.gmra.mxu0 %v11598
    %v12289 = vpop.f32.mrf.mxu0
    %v12290 = vadd.f32 %v11233, %v12289
    %v12291 = vpop.f32.mrf.mxu0
    %12292 = vmatprep.mubr.f32.mxu0 0.0
    %12293 = vmatmul.mubr.f32.gmra.mxu0 %v11601
    %v12294 = vpop.f32.mrf.mxu0
    %v12295 = vadd.f32 %v11233, %v12294
    %v12296 = vpop.f32.mrf.mxu0
    %12297 = vmatprep.mubr.f32.mxu0 0.0
    %12298 = vmatmul.mubr.f32.gmra.mxu0 %v11604
    %v12299 = vpop.f32.mrf.mxu0
    %v12300 = vadd.f32 %v11233, %v12299
    %v12301 = vpop.f32.mrf.mxu0
    %12302 = vmatprep.mubr.f32.mxu0 0.0
    %12303 = vmatmul.mubr.f32.gmra.mxu0 %v11607
    %v12304 = vpop.f32.mrf.mxu0
    %v12305 = vadd.f32 %v11233, %v12304
    %v12306 = vpop.f32.mrf.mxu0
    %12307 = vmatprep.mubr.f32.mxu0 0.0
    %12308 = vmatmul.mubr.f32.gmra.mxu0 %v11610
    %v12309 = vpop.f32.mrf.mxu0
    %v12310 = vadd.f32 %v11233, %v12309
    %v12311 = vpop.f32.mrf.mxu0
    %12312 = vmatprep.mubr.f32.mxu0 0.0
    %12313 = vmatmul.mubr.f32.gmra.mxu0 %v11613
    %v12314 = vpop.f32.mrf.mxu0
    %v12315 = vadd.f32 %v11233, %v12314
    %v12316 = vpop.f32.mrf.mxu0
    %12317 = vmatprep.mubr.f32.mxu0 0.0
    %12318 = vmatmul.mubr.f32.gmra.mxu0 %v11616
    %v12319 = vpop.f32.mrf.mxu0
    %v12320 = vadd.f32 %v11233, %v12319
    %v12321 = vpop.f32.mrf.mxu0
    %12322 = vdwg.mxu0
    %v12323 = vmax.f32 %v11685, 0.0
    %v12324 = vmax.f32 %v11690, 0.0
    %v12325 = vmax.f32 %v11695, 0.0
    %v12326 = vmax.f32 %v11700, 0.0
    %v12327 = vmax.f32 %v11705, 0.0
    %v12328 = vmax.f32 %v11710, 0.0
    %v12329 = vmax.f32 %v11715, 0.0
    %v12330 = vmax.f32 %v11720, 0.0
    %v12331 = vmax.f32 %v11725, 0.0
    %v12332 = vmax.f32 %v11730, 0.0
    %v12333 = vmax.f32 %v11735, 0.0
    %v12334 = vmax.f32 %v11740, 0.0
    %v12335 = vmax.f32 %v11745, 0.0
    %v12336 = vmax.f32 %v11750, 0.0
    %v12337 = vmax.f32 %v11755, 0.0
    %v12338 = vmax.f32 %v11760, 0.0
    %v12339 = vmax.f32 %v11765, 0.0
    %v12340 = vmax.f32 %v11770, 0.0
    %v12341 = vmax.f32 %v11775, 0.0
    %v12342 = vmax.f32 %v11780, 0.0
    %v12343 = vmax.f32 %v11785, 0.0
    %v12344 = vmax.f32 %v11790, 0.0
    %v12345 = vmax.f32 %v11795, 0.0
    %v12346 = vmax.f32 %v11800, 0.0
    %v12347 = vmax.f32 %v11805, 0.0
    %v12348 = vmax.f32 %v11810, 0.0
    %v12349 = vmax.f32 %v11815, 0.0
    %v12350 = vmax.f32 %v11820, 0.0
    %v12351 = vmax.f32 %v11825, 0.0
    %v12352 = vmax.f32 %v11830, 0.0
    %v12353 = vmax.f32 %v11835, 0.0
    %v12354 = vmax.f32 %v11840, 0.0
    %v12355 = vmax.f32 %v11845, 0.0
    %v12356 = vmax.f32 %v11850, 0.0
    %v12357 = vmax.f32 %v11855, 0.0
    %v12358 = vmax.f32 %v11860, 0.0
    %v12359 = vmax.f32 %v11865, 0.0
    %v12360 = vmax.f32 %v11870, 0.0
    %v12361 = vmax.f32 %v11875, 0.0
    %v12362 = vmax.f32 %v11880, 0.0
    %v12363 = vmax.f32 %v11885, 0.0
    %v12364 = vmax.f32 %v11890, 0.0
    %v12365 = vmax.f32 %v11895, 0.0
    %v12366 = vmax.f32 %v11900, 0.0
    %v12367 = vmax.f32 %v11905, 0.0
    %v12368 = vmax.f32 %v11910, 0.0
    %v12369 = vmax.f32 %v11915, 0.0
    %v12370 = vmax.f32 %v11920, 0.0
    %v12371 = vmax.f32 %v11925, 0.0
    %v12372 = vmax.f32 %v11930, 0.0
    %v12373 = vmax.f32 %v11935, 0.0
    %v12374 = vmax.f32 %v11940, 0.0
    %v12375 = vmax.f32 %v11945, 0.0
    %v12376 = vmax.f32 %v11950, 0.0
    %v12377 = vmax.f32 %v11955, 0.0
    %v12378 = vmax.f32 %v11960, 0.0
    %v12379 = vmax.f32 %v11965, 0.0
    %v12380 = vmax.f32 %v11970, 0.0
    %v12381 = vmax.f32 %v11975, 0.0
    %v12382 = vmax.f32 %v11980, 0.0
    %v12383 = vmax.f32 %v11985, 0.0
    %v12384 = vmax.f32 %v11990, 0.0
    %v12385 = vmax.f32 %v11995, 0.0
    %v12386 = vmax.f32 %v12000, 0.0
    %v12387 = vmax.f32 %v12005, 0.0
    %v12388 = vmax.f32 %v12010, 0.0
    %v12389 = vmax.f32 %v12015, 0.0
    %v12390 = vmax.f32 %v12020, 0.0
    %v12391 = vmax.f32 %v12025, 0.0
    %v12392 = vmax.f32 %v12030, 0.0
    %v12393 = vmax.f32 %v12035, 0.0
    %v12394 = vmax.f32 %v12040, 0.0
    %v12395 = vmax.f32 %v12045, 0.0
    %v12396 = vmax.f32 %v12050, 0.0
    %v12397 = vmax.f32 %v12055, 0.0
    %v12398 = vmax.f32 %v12060, 0.0
    %v12399 = vmax.f32 %v12065, 0.0
    %v12400 = vmax.f32 %v12070, 0.0
    %v12401 = vmax.f32 %v12075, 0.0
    %v12402 = vmax.f32 %v12080, 0.0
    %v12403 = vmax.f32 %v12085, 0.0
    %v12404 = vmax.f32 %v12090, 0.0
    %v12405 = vmax.f32 %v12095, 0.0
    %v12406 = vmax.f32 %v12100, 0.0
    %v12407 = vmax.f32 %v12105, 0.0
    %v12408 = vmax.f32 %v12110, 0.0
    %v12409 = vmax.f32 %v12115, 0.0
    %v12410 = vmax.f32 %v12120, 0.0
    %v12411 = vmax.f32 %v12125, 0.0
    %v12412 = vmax.f32 %v12130, 0.0
    %v12413 = vmax.f32 %v12135, 0.0
    %v12414 = vmax.f32 %v12140, 0.0
    %v12415 = vmax.f32 %v12145, 0.0
    %v12416 = vmax.f32 %v12150, 0.0
    %v12417 = vmax.f32 %v12155, 0.0
    %v12418 = vmax.f32 %v12160, 0.0
    %v12419 = vmax.f32 %v12165, 0.0
    %v12420 = vmax.f32 %v12170, 0.0
    %v12421 = vmax.f32 %v12175, 0.0
    %v12422 = vmax.f32 %v12180, 0.0
    %v12423 = vmax.f32 %v12185, 0.0
    %v12424 = vmax.f32 %v12190, 0.0
    %v12425 = vmax.f32 %v12195, 0.0
    %v12426 = vmax.f32 %v12200, 0.0
    %v12427 = vmax.f32 %v12205, 0.0
    %v12428 = vmax.f32 %v12210, 0.0
    %v12429 = vmax.f32 %v12215, 0.0
    %v12430 = vmax.f32 %v12220, 0.0
    %v12431 = vmax.f32 %v12225, 0.0
    %v12432 = vmax.f32 %v12230, 0.0
    %v12433 = vmax.f32 %v12235, 0.0
    %v12434 = vmax.f32 %v12240, 0.0
    %v12435 = vmax.f32 %v12245, 0.0
    %v12436 = vmax.f32 %v12250, 0.0
    %v12437 = vmax.f32 %v12255, 0.0
    %v12438 = vmax.f32 %v12260, 0.0
    %v12439 = vmax.f32 %v12265, 0.0
    %v12440 = vmax.f32 %v12270, 0.0
    %v12441 = vmax.f32 %v12275, 0.0
    %v12442 = vmax.f32 %v12280, 0.0
    %v12443 = vmax.f32 %v12285, 0.0
    %v12444 = vmax.f32 %v12290, 0.0
    %v12445 = vmax.f32 %v12295, 0.0
    %v12446 = vmax.f32 %v12300, 0.0
    %v12447 = vmax.f32 %v12305, 0.0
    %v12448 = vmax.f32 %v12310, 0.0
    %v12449 = vmax.f32 %v12315, 0.0
    %v12450 = vmax.f32 %v12320, 0.0
    %v12451 = vsel %vm4433, %v12323, 0.0
    %v12452 = vsel %vm4433, %v12324, 0.0
    %v12453 = vadd.f32 %v12451, %v12452
    %v12454 = vrot.slane %v12453, 4
    %v12455 = vadd.f32 %v12453, %v12454
    %v12456 = vrot.slane %v12455, 2
    %v12457 = vadd.f32 %v12455, %v12456
    %v12458 = vrot.slane %v12457, 1
    %v12459 = vadd.f32 %v12457, %v12458
    %v12460 = vsel %vm4433, %v12325, 0.0
    %v12461 = vsel %vm4433, %v12326, 0.0
    %v12462 = vadd.f32 %v12460, %v12461
    %v12463 = vrot.slane %v12462, 4
    %v12464 = vadd.f32 %v12462, %v12463
    %v12465 = vrot.slane %v12464, 2
    %v12466 = vadd.f32 %v12464, %v12465
    %v12467 = vrot.slane %v12466, 1
    %v12468 = vadd.f32 %v12466, %v12467
    %v12469 = vsel %vm4433, %v12327, 0.0
    %v12470 = vsel %vm4433, %v12328, 0.0
    %v12471 = vadd.f32 %v12469, %v12470
    %v12472 = vrot.slane %v12471, 4
    %v12473 = vadd.f32 %v12471, %v12472
    %v12474 = vrot.slane %v12473, 2
    %v12475 = vadd.f32 %v12473, %v12474
    %v12476 = vrot.slane %v12475, 1
    %v12477 = vadd.f32 %v12475, %v12476
    %v12478 = vsel %vm4433, %v12329, 0.0
    %v12479 = vsel %vm4433, %v12330, 0.0
    %v12480 = vadd.f32 %v12478, %v12479
    %v12481 = vrot.slane %v12480, 4
    %v12482 = vadd.f32 %v12480, %v12481
    %v12483 = vrot.slane %v12482, 2
    %v12484 = vadd.f32 %v12482, %v12483
    %v12485 = vrot.slane %v12484, 1
    %v12486 = vadd.f32 %v12484, %v12485
    %v12487 = vsel %vm4433, %v12331, 0.0
    %v12488 = vsel %vm4433, %v12332, 0.0
    %v12489 = vadd.f32 %v12487, %v12488
    %v12490 = vrot.slane %v12489, 4
    %v12491 = vadd.f32 %v12489, %v12490
    %v12492 = vrot.slane %v12491, 2
    %v12493 = vadd.f32 %v12491, %v12492
    %v12494 = vrot.slane %v12493, 1
    %v12495 = vadd.f32 %v12493, %v12494
    %v12496 = vsel %vm4433, %v12333, 0.0
    %v12497 = vsel %vm4433, %v12334, 0.0
    %v12498 = vadd.f32 %v12496, %v12497
    %v12499 = vrot.slane %v12498, 4
    %v12500 = vadd.f32 %v12498, %v12499
    %v12501 = vrot.slane %v12500, 2
    %v12502 = vadd.f32 %v12500, %v12501
    %v12503 = vrot.slane %v12502, 1
    %v12504 = vadd.f32 %v12502, %v12503
    %v12505 = vsel %vm4433, %v12335, 0.0
    %v12506 = vsel %vm4433, %v12336, 0.0
    %v12507 = vadd.f32 %v12505, %v12506
    %v12508 = vrot.slane %v12507, 4
    %v12509 = vadd.f32 %v12507, %v12508
    %v12510 = vrot.slane %v12509, 2
    %v12511 = vadd.f32 %v12509, %v12510
    %v12512 = vrot.slane %v12511, 1
    %v12513 = vadd.f32 %v12511, %v12512
    %v12514 = vsel %vm4433, %v12337, 0.0
    %v12515 = vsel %vm4433, %v12338, 0.0
    %v12516 = vadd.f32 %v12514, %v12515
    %v12517 = vrot.slane %v12516, 4
    %v12518 = vadd.f32 %v12516, %v12517
    %v12519 = vrot.slane %v12518, 2
    %v12520 = vadd.f32 %v12518, %v12519
    %v12521 = vrot.slane %v12520, 1
    %v12522 = vadd.f32 %v12520, %v12521
    %v12523 = vsel %vm4433, %v12339, 0.0
    %v12524 = vsel %vm4433, %v12340, 0.0
    %v12525 = vadd.f32 %v12523, %v12524
    %v12526 = vrot.slane %v12525, 4
    %v12527 = vadd.f32 %v12525, %v12526
    %v12528 = vrot.slane %v12527, 2
    %v12529 = vadd.f32 %v12527, %v12528
    %v12530 = vrot.slane %v12529, 1
    %v12531 = vadd.f32 %v12529, %v12530
    %v12532 = vsel %vm4433, %v12341, 0.0
    %v12533 = vsel %vm4433, %v12342, 0.0
    %v12534 = vadd.f32 %v12532, %v12533
    %v12535 = vrot.slane %v12534, 4
    %v12536 = vadd.f32 %v12534, %v12535
    %v12537 = vrot.slane %v12536, 2
    %v12538 = vadd.f32 %v12536, %v12537
    %v12539 = vrot.slane %v12538, 1
    %v12540 = vadd.f32 %v12538, %v12539
    %v12541 = vsel %vm4433, %v12343, 0.0
    %v12542 = vsel %vm4433, %v12344, 0.0
    %v12543 = vadd.f32 %v12541, %v12542
    %v12544 = vrot.slane %v12543, 4
    %v12545 = vadd.f32 %v12543, %v12544
    %v12546 = vrot.slane %v12545, 2
    %v12547 = vadd.f32 %v12545, %v12546
    %v12548 = vrot.slane %v12547, 1
    %v12549 = vadd.f32 %v12547, %v12548
    %v12550 = vsel %vm4433, %v12345, 0.0
    %v12551 = vsel %vm4433, %v12346, 0.0
    %v12552 = vadd.f32 %v12550, %v12551
    %v12553 = vrot.slane %v12552, 4
    %v12554 = vadd.f32 %v12552, %v12553
    %v12555 = vrot.slane %v12554, 2
    %v12556 = vadd.f32 %v12554, %v12555
    %v12557 = vrot.slane %v12556, 1
    %v12558 = vadd.f32 %v12556, %v12557
    %v12559 = vsel %vm4433, %v12347, 0.0
    %v12560 = vsel %vm4433, %v12348, 0.0
    %v12561 = vadd.f32 %v12559, %v12560
    %v12562 = vrot.slane %v12561, 4
    %v12563 = vadd.f32 %v12561, %v12562
    %v12564 = vrot.slane %v12563, 2
    %v12565 = vadd.f32 %v12563, %v12564
    %v12566 = vrot.slane %v12565, 1
    %v12567 = vadd.f32 %v12565, %v12566
    %v12568 = vsel %vm4433, %v12349, 0.0
    %v12569 = vsel %vm4433, %v12350, 0.0
    %v12570 = vadd.f32 %v12568, %v12569
    %v12571 = vrot.slane %v12570, 4
    %v12572 = vadd.f32 %v12570, %v12571
    %v12573 = vrot.slane %v12572, 2
    %v12574 = vadd.f32 %v12572, %v12573
    %v12575 = vrot.slane %v12574, 1
    %v12576 = vadd.f32 %v12574, %v12575
    %v12577 = vsel %vm4433, %v12351, 0.0
    %v12578 = vsel %vm4433, %v12352, 0.0
    %v12579 = vadd.f32 %v12577, %v12578
    %v12580 = vrot.slane %v12579, 4
    %v12581 = vadd.f32 %v12579, %v12580
    %v12582 = vrot.slane %v12581, 2
    %v12583 = vadd.f32 %v12581, %v12582
    %v12584 = vrot.slane %v12583, 1
    %v12585 = vadd.f32 %v12583, %v12584
    %v12586 = vsel %vm4433, %v12353, 0.0
    %v12587 = vsel %vm4433, %v12354, 0.0
    %v12588 = vadd.f32 %v12586, %v12587
    %v12589 = vrot.slane %v12588, 4
    %v12590 = vadd.f32 %v12588, %v12589
    %v12591 = vrot.slane %v12590, 2
    %v12592 = vadd.f32 %v12590, %v12591
    %v12593 = vrot.slane %v12592, 1
    %v12594 = vadd.f32 %v12592, %v12593
    %v12595 = vsel %vm4433, %v12355, 0.0
    %v12596 = vsel %vm4433, %v12356, 0.0
    %v12597 = vadd.f32 %v12595, %v12596
    %v12598 = vrot.slane %v12597, 4
    %v12599 = vadd.f32 %v12597, %v12598
    %v12600 = vrot.slane %v12599, 2
    %v12601 = vadd.f32 %v12599, %v12600
    %v12602 = vrot.slane %v12601, 1
    %v12603 = vadd.f32 %v12601, %v12602
    %v12604 = vsel %vm4433, %v12357, 0.0
    %v12605 = vsel %vm4433, %v12358, 0.0
    %v12606 = vadd.f32 %v12604, %v12605
    %v12607 = vrot.slane %v12606, 4
    %v12608 = vadd.f32 %v12606, %v12607
    %v12609 = vrot.slane %v12608, 2
    %v12610 = vadd.f32 %v12608, %v12609
    %v12611 = vrot.slane %v12610, 1
    %v12612 = vadd.f32 %v12610, %v12611
    %v12613 = vsel %vm4433, %v12359, 0.0
    %v12614 = vsel %vm4433, %v12360, 0.0
    %v12615 = vadd.f32 %v12613, %v12614
    %v12616 = vrot.slane %v12615, 4
    %v12617 = vadd.f32 %v12615, %v12616
    %v12618 = vrot.slane %v12617, 2
    %v12619 = vadd.f32 %v12617, %v12618
    %v12620 = vrot.slane %v12619, 1
    %v12621 = vadd.f32 %v12619, %v12620
    %v12622 = vsel %vm4433, %v12361, 0.0
    %v12623 = vsel %vm4433, %v12362, 0.0
    %v12624 = vadd.f32 %v12622, %v12623
    %v12625 = vrot.slane %v12624, 4
    %v12626 = vadd.f32 %v12624, %v12625
    %v12627 = vrot.slane %v12626, 2
    %v12628 = vadd.f32 %v12626, %v12627
    %v12629 = vrot.slane %v12628, 1
    %v12630 = vadd.f32 %v12628, %v12629
    %v12631 = vsel %vm4433, %v12363, 0.0
    %v12632 = vsel %vm4433, %v12364, 0.0
    %v12633 = vadd.f32 %v12631, %v12632
    %v12634 = vrot.slane %v12633, 4
    %v12635 = vadd.f32 %v12633, %v12634
    %v12636 = vrot.slane %v12635, 2
    %v12637 = vadd.f32 %v12635, %v12636
    %v12638 = vrot.slane %v12637, 1
    %v12639 = vadd.f32 %v12637, %v12638
    %v12640 = vsel %vm4433, %v12365, 0.0
    %v12641 = vsel %vm4433, %v12366, 0.0
    %v12642 = vadd.f32 %v12640, %v12641
    %v12643 = vrot.slane %v12642, 4
    %v12644 = vadd.f32 %v12642, %v12643
    %v12645 = vrot.slane %v12644, 2
    %v12646 = vadd.f32 %v12644, %v12645
    %v12647 = vrot.slane %v12646, 1
    %v12648 = vadd.f32 %v12646, %v12647
    %v12649 = vsel %vm4433, %v12367, 0.0
    %v12650 = vsel %vm4433, %v12368, 0.0
    %v12651 = vadd.f32 %v12649, %v12650
    %v12652 = vrot.slane %v12651, 4
    %v12653 = vadd.f32 %v12651, %v12652
    %v12654 = vrot.slane %v12653, 2
    %v12655 = vadd.f32 %v12653, %v12654
    %v12656 = vrot.slane %v12655, 1
    %v12657 = vadd.f32 %v12655, %v12656
    %v12658 = vsel %vm4433, %v12369, 0.0
    %v12659 = vsel %vm4433, %v12370, 0.0
    %v12660 = vadd.f32 %v12658, %v12659
    %v12661 = vrot.slane %v12660, 4
    %v12662 = vadd.f32 %v12660, %v12661
    %v12663 = vrot.slane %v12662, 2
    %v12664 = vadd.f32 %v12662, %v12663
    %v12665 = vrot.slane %v12664, 1
    %v12666 = vadd.f32 %v12664, %v12665
    %v12667 = vsel %vm4433, %v12371, 0.0
    %v12668 = vsel %vm4433, %v12372, 0.0
    %v12669 = vadd.f32 %v12667, %v12668
    %v12670 = vrot.slane %v12669, 4
    %v12671 = vadd.f32 %v12669, %v12670
    %v12672 = vrot.slane %v12671, 2
    %v12673 = vadd.f32 %v12671, %v12672
    %v12674 = vrot.slane %v12673, 1
    %v12675 = vadd.f32 %v12673, %v12674
    %v12676 = vsel %vm4433, %v12373, 0.0
    %v12677 = vsel %vm4433, %v12374, 0.0
    %v12678 = vadd.f32 %v12676, %v12677
    %v12679 = vrot.slane %v12678, 4
    %v12680 = vadd.f32 %v12678, %v12679
    %v12681 = vrot.slane %v12680, 2
    %v12682 = vadd.f32 %v12680, %v12681
    %v12683 = vrot.slane %v12682, 1
    %v12684 = vadd.f32 %v12682, %v12683
    %v12685 = vsel %vm4433, %v12375, 0.0
    %v12686 = vsel %vm4433, %v12376, 0.0
    %v12687 = vadd.f32 %v12685, %v12686
    %v12688 = vrot.slane %v12687, 4
    %v12689 = vadd.f32 %v12687, %v12688
    %v12690 = vrot.slane %v12689, 2
    %v12691 = vadd.f32 %v12689, %v12690
    %v12692 = vrot.slane %v12691, 1
    %v12693 = vadd.f32 %v12691, %v12692
    %v12694 = vsel %vm4433, %v12377, 0.0
    %v12695 = vsel %vm4433, %v12378, 0.0
    %v12696 = vadd.f32 %v12694, %v12695
    %v12697 = vrot.slane %v12696, 4
    %v12698 = vadd.f32 %v12696, %v12697
    %v12699 = vrot.slane %v12698, 2
    %v12700 = vadd.f32 %v12698, %v12699
    %v12701 = vrot.slane %v12700, 1
    %v12702 = vadd.f32 %v12700, %v12701
    %v12703 = vsel %vm4433, %v12379, 0.0
    %v12704 = vsel %vm4433, %v12380, 0.0
    %v12705 = vadd.f32 %v12703, %v12704
    %v12706 = vrot.slane %v12705, 4
    %v12707 = vadd.f32 %v12705, %v12706
    %v12708 = vrot.slane %v12707, 2
    %v12709 = vadd.f32 %v12707, %v12708
    %v12710 = vrot.slane %v12709, 1
    %v12711 = vadd.f32 %v12709, %v12710
    %v12712 = vsel %vm4433, %v12381, 0.0
    %v12713 = vsel %vm4433, %v12382, 0.0
    %v12714 = vadd.f32 %v12712, %v12713
    %v12715 = vrot.slane %v12714, 4
    %v12716 = vadd.f32 %v12714, %v12715
    %v12717 = vrot.slane %v12716, 2
    %v12718 = vadd.f32 %v12716, %v12717
    %v12719 = vrot.slane %v12718, 1
    %v12720 = vadd.f32 %v12718, %v12719
    %v12721 = vsel %vm4433, %v12383, 0.0
    %v12722 = vsel %vm4433, %v12384, 0.0
    %v12723 = vadd.f32 %v12721, %v12722
    %v12724 = vrot.slane %v12723, 4
    %v12725 = vadd.f32 %v12723, %v12724
    %v12726 = vrot.slane %v12725, 2
    %v12727 = vadd.f32 %v12725, %v12726
    %v12728 = vrot.slane %v12727, 1
    %v12729 = vadd.f32 %v12727, %v12728
    %v12730 = vsel %vm4433, %v12385, 0.0
    %v12731 = vsel %vm4433, %v12386, 0.0
    %v12732 = vadd.f32 %v12730, %v12731
    %v12733 = vrot.slane %v12732, 4
    %v12734 = vadd.f32 %v12732, %v12733
    %v12735 = vrot.slane %v12734, 2
    %v12736 = vadd.f32 %v12734, %v12735
    %v12737 = vrot.slane %v12736, 1
    %v12738 = vadd.f32 %v12736, %v12737
    %v12739 = vsel %vm4433, %v12387, 0.0
    %v12740 = vsel %vm4433, %v12388, 0.0
    %v12741 = vadd.f32 %v12739, %v12740
    %v12742 = vrot.slane %v12741, 4
    %v12743 = vadd.f32 %v12741, %v12742
    %v12744 = vrot.slane %v12743, 2
    %v12745 = vadd.f32 %v12743, %v12744
    %v12746 = vrot.slane %v12745, 1
    %v12747 = vadd.f32 %v12745, %v12746
    %v12748 = vsel %vm4433, %v12389, 0.0
    %v12749 = vsel %vm4433, %v12390, 0.0
    %v12750 = vadd.f32 %v12748, %v12749
    %v12751 = vrot.slane %v12750, 4
    %v12752 = vadd.f32 %v12750, %v12751
    %v12753 = vrot.slane %v12752, 2
    %v12754 = vadd.f32 %v12752, %v12753
    %v12755 = vrot.slane %v12754, 1
    %v12756 = vadd.f32 %v12754, %v12755
    %v12757 = vsel %vm4433, %v12391, 0.0
    %v12758 = vsel %vm4433, %v12392, 0.0
    %v12759 = vadd.f32 %v12757, %v12758
    %v12760 = vrot.slane %v12759, 4
    %v12761 = vadd.f32 %v12759, %v12760
    %v12762 = vrot.slane %v12761, 2
    %v12763 = vadd.f32 %v12761, %v12762
    %v12764 = vrot.slane %v12763, 1
    %v12765 = vadd.f32 %v12763, %v12764
    %v12766 = vsel %vm4433, %v12393, 0.0
    %v12767 = vsel %vm4433, %v12394, 0.0
    %v12768 = vadd.f32 %v12766, %v12767
    %v12769 = vrot.slane %v12768, 4
    %v12770 = vadd.f32 %v12768, %v12769
    %v12771 = vrot.slane %v12770, 2
    %v12772 = vadd.f32 %v12770, %v12771
    %v12773 = vrot.slane %v12772, 1
    %v12774 = vadd.f32 %v12772, %v12773
    %v12775 = vsel %vm4433, %v12395, 0.0
    %v12776 = vsel %vm4433, %v12396, 0.0
    %v12777 = vadd.f32 %v12775, %v12776
    %v12778 = vrot.slane %v12777, 4
    %v12779 = vadd.f32 %v12777, %v12778
    %v12780 = vrot.slane %v12779, 2
    %v12781 = vadd.f32 %v12779, %v12780
    %v12782 = vrot.slane %v12781, 1
    %v12783 = vadd.f32 %v12781, %v12782
    %v12784 = vsel %vm4433, %v12397, 0.0
    %v12785 = vsel %vm4433, %v12398, 0.0
    %v12786 = vadd.f32 %v12784, %v12785
    %v12787 = vrot.slane %v12786, 4
    %v12788 = vadd.f32 %v12786, %v12787
    %v12789 = vrot.slane %v12788, 2
    %v12790 = vadd.f32 %v12788, %v12789
    %v12791 = vrot.slane %v12790, 1
    %v12792 = vadd.f32 %v12790, %v12791
    %v12793 = vsel %vm4433, %v12399, 0.0
    %v12794 = vsel %vm4433, %v12400, 0.0
    %v12795 = vadd.f32 %v12793, %v12794
    %v12796 = vrot.slane %v12795, 4
    %v12797 = vadd.f32 %v12795, %v12796
    %v12798 = vrot.slane %v12797, 2
    %v12799 = vadd.f32 %v12797, %v12798
    %v12800 = vrot.slane %v12799, 1
    %v12801 = vadd.f32 %v12799, %v12800
    %v12802 = vsel %vm4433, %v12401, 0.0
    %v12803 = vsel %vm4433, %v12402, 0.0
    %v12804 = vadd.f32 %v12802, %v12803
    %v12805 = vrot.slane %v12804, 4
    %v12806 = vadd.f32 %v12804, %v12805
    %v12807 = vrot.slane %v12806, 2
    %v12808 = vadd.f32 %v12806, %v12807
    %v12809 = vrot.slane %v12808, 1
    %v12810 = vadd.f32 %v12808, %v12809
    %v12811 = vsel %vm4433, %v12403, 0.0
    %v12812 = vsel %vm4433, %v12404, 0.0
    %v12813 = vadd.f32 %v12811, %v12812
    %v12814 = vrot.slane %v12813, 4
    %v12815 = vadd.f32 %v12813, %v12814
    %v12816 = vrot.slane %v12815, 2
    %v12817 = vadd.f32 %v12815, %v12816
    %v12818 = vrot.slane %v12817, 1
    %v12819 = vadd.f32 %v12817, %v12818
    %v12820 = vsel %vm4433, %v12405, 0.0
    %v12821 = vsel %vm4433, %v12406, 0.0
    %v12822 = vadd.f32 %v12820, %v12821
    %v12823 = vrot.slane %v12822, 4
    %v12824 = vadd.f32 %v12822, %v12823
    %v12825 = vrot.slane %v12824, 2
    %v12826 = vadd.f32 %v12824, %v12825
    %v12827 = vrot.slane %v12826, 1
    %v12828 = vadd.f32 %v12826, %v12827
    %v12829 = vsel %vm4433, %v12407, 0.0
    %v12830 = vsel %vm4433, %v12408, 0.0
    %v12831 = vadd.f32 %v12829, %v12830
    %v12832 = vrot.slane %v12831, 4
    %v12833 = vadd.f32 %v12831, %v12832
    %v12834 = vrot.slane %v12833, 2
    %v12835 = vadd.f32 %v12833, %v12834
    %v12836 = vrot.slane %v12835, 1
    %v12837 = vadd.f32 %v12835, %v12836
    %v12838 = vsel %vm4433, %v12409, 0.0
    %v12839 = vsel %vm4433, %v12410, 0.0
    %v12840 = vadd.f32 %v12838, %v12839
    %v12841 = vrot.slane %v12840, 4
    %v12842 = vadd.f32 %v12840, %v12841
    %v12843 = vrot.slane %v12842, 2
    %v12844 = vadd.f32 %v12842, %v12843
    %v12845 = vrot.slane %v12844, 1
    %v12846 = vadd.f32 %v12844, %v12845
    %v12847 = vsel %vm4433, %v12411, 0.0
    %v12848 = vsel %vm4433, %v12412, 0.0
    %v12849 = vadd.f32 %v12847, %v12848
    %v12850 = vrot.slane %v12849, 4
    %v12851 = vadd.f32 %v12849, %v12850
    %v12852 = vrot.slane %v12851, 2
    %v12853 = vadd.f32 %v12851, %v12852
    %v12854 = vrot.slane %v12853, 1
    %v12855 = vadd.f32 %v12853, %v12854
    %v12856 = vsel %vm4433, %v12413, 0.0
    %v12857 = vsel %vm4433, %v12414, 0.0
    %v12858 = vadd.f32 %v12856, %v12857
    %v12859 = vrot.slane %v12858, 4
    %v12860 = vadd.f32 %v12858, %v12859
    %v12861 = vrot.slane %v12860, 2
    %v12862 = vadd.f32 %v12860, %v12861
    %v12863 = vrot.slane %v12862, 1
    %v12864 = vadd.f32 %v12862, %v12863
    %v12865 = vsel %vm4433, %v12415, 0.0
    %v12866 = vsel %vm4433, %v12416, 0.0
    %v12867 = vadd.f32 %v12865, %v12866
    %v12868 = vrot.slane %v12867, 4
    %v12869 = vadd.f32 %v12867, %v12868
    %v12870 = vrot.slane %v12869, 2
    %v12871 = vadd.f32 %v12869, %v12870
    %v12872 = vrot.slane %v12871, 1
    %v12873 = vadd.f32 %v12871, %v12872
    %v12874 = vsel %vm4433, %v12417, 0.0
    %v12875 = vsel %vm4433, %v12418, 0.0
    %v12876 = vadd.f32 %v12874, %v12875
    %v12877 = vrot.slane %v12876, 4
    %v12878 = vadd.f32 %v12876, %v12877
    %v12879 = vrot.slane %v12878, 2
    %v12880 = vadd.f32 %v12878, %v12879
    %v12881 = vrot.slane %v12880, 1
    %v12882 = vadd.f32 %v12880, %v12881
    %v12883 = vsel %vm4433, %v12419, 0.0
    %v12884 = vsel %vm4433, %v12420, 0.0
    %v12885 = vadd.f32 %v12883, %v12884
    %v12886 = vrot.slane %v12885, 4
    %v12887 = vadd.f32 %v12885, %v12886
    %v12888 = vrot.slane %v12887, 2
    %v12889 = vadd.f32 %v12887, %v12888
    %v12890 = vrot.slane %v12889, 1
    %v12891 = vadd.f32 %v12889, %v12890
    %v12892 = vsel %vm4433, %v12421, 0.0
    %v12893 = vsel %vm4433, %v12422, 0.0
    %v12894 = vadd.f32 %v12892, %v12893
    %v12895 = vrot.slane %v12894, 4
    %v12896 = vadd.f32 %v12894, %v12895
    %v12897 = vrot.slane %v12896, 2
    %v12898 = vadd.f32 %v12896, %v12897
    %v12899 = vrot.slane %v12898, 1
    %v12900 = vadd.f32 %v12898, %v12899
    %v12901 = vsel %vm4433, %v12423, 0.0
    %v12902 = vsel %vm4433, %v12424, 0.0
    %v12903 = vadd.f32 %v12901, %v12902
    %v12904 = vrot.slane %v12903, 4
    %v12905 = vadd.f32 %v12903, %v12904
    %v12906 = vrot.slane %v12905, 2
    %v12907 = vadd.f32 %v12905, %v12906
    %v12908 = vrot.slane %v12907, 1
    %v12909 = vadd.f32 %v12907, %v12908
    %v12910 = vsel %vm4433, %v12425, 0.0
    %v12911 = vsel %vm4433, %v12426, 0.0
    %v12912 = vadd.f32 %v12910, %v12911
    %v12913 = vrot.slane %v12912, 4
    %v12914 = vadd.f32 %v12912, %v12913
    %v12915 = vrot.slane %v12914, 2
    %v12916 = vadd.f32 %v12914, %v12915
    %v12917 = vrot.slane %v12916, 1
    %v12918 = vadd.f32 %v12916, %v12917
    %v12919 = vsel %vm4433, %v12427, 0.0
    %v12920 = vsel %vm4433, %v12428, 0.0
    %v12921 = vadd.f32 %v12919, %v12920
    %v12922 = vrot.slane %v12921, 4
    %v12923 = vadd.f32 %v12921, %v12922
    %v12924 = vrot.slane %v12923, 2
    %v12925 = vadd.f32 %v12923, %v12924
    %v12926 = vrot.slane %v12925, 1
    %v12927 = vadd.f32 %v12925, %v12926
    %v12928 = vsel %vm4433, %v12429, 0.0
    %v12929 = vsel %vm4433, %v12430, 0.0
    %v12930 = vadd.f32 %v12928, %v12929
    %v12931 = vrot.slane %v12930, 4
    %v12932 = vadd.f32 %v12930, %v12931
    %v12933 = vrot.slane %v12932, 2
    %v12934 = vadd.f32 %v12932, %v12933
    %v12935 = vrot.slane %v12934, 1
    %v12936 = vadd.f32 %v12934, %v12935
    %v12937 = vsel %vm4433, %v12431, 0.0
    %v12938 = vsel %vm4433, %v12432, 0.0
    %v12939 = vadd.f32 %v12937, %v12938
    %v12940 = vrot.slane %v12939, 4
    %v12941 = vadd.f32 %v12939, %v12940
    %v12942 = vrot.slane %v12941, 2
    %v12943 = vadd.f32 %v12941, %v12942
    %v12944 = vrot.slane %v12943, 1
    %v12945 = vadd.f32 %v12943, %v12944
    %v12946 = vsel %vm4433, %v12433, 0.0
    %v12947 = vsel %vm4433, %v12434, 0.0
    %v12948 = vadd.f32 %v12946, %v12947
    %v12949 = vrot.slane %v12948, 4
    %v12950 = vadd.f32 %v12948, %v12949
    %v12951 = vrot.slane %v12950, 2
    %v12952 = vadd.f32 %v12950, %v12951
    %v12953 = vrot.slane %v12952, 1
    %v12954 = vadd.f32 %v12952, %v12953
    %v12955 = vsel %vm4433, %v12435, 0.0
    %v12956 = vsel %vm4433, %v12436, 0.0
    %v12957 = vadd.f32 %v12955, %v12956
    %v12958 = vrot.slane %v12957, 4
    %v12959 = vadd.f32 %v12957, %v12958
    %v12960 = vrot.slane %v12959, 2
    %v12961 = vadd.f32 %v12959, %v12960
    %v12962 = vrot.slane %v12961, 1
    %v12963 = vadd.f32 %v12961, %v12962
    %v12964 = vsel %vm4433, %v12437, 0.0
    %v12965 = vsel %vm4433, %v12438, 0.0
    %v12966 = vadd.f32 %v12964, %v12965
    %v12967 = vrot.slane %v12966, 4
    %v12968 = vadd.f32 %v12966, %v12967
    %v12969 = vrot.slane %v12968, 2
    %v12970 = vadd.f32 %v12968, %v12969
    %v12971 = vrot.slane %v12970, 1
    %v12972 = vadd.f32 %v12970, %v12971
    %v12973 = vsel %vm4433, %v12439, 0.0
    %v12974 = vsel %vm4433, %v12440, 0.0
    %v12975 = vadd.f32 %v12973, %v12974
    %v12976 = vrot.slane %v12975, 4
    %v12977 = vadd.f32 %v12975, %v12976
    %v12978 = vrot.slane %v12977, 2
    %v12979 = vadd.f32 %v12977, %v12978
    %v12980 = vrot.slane %v12979, 1
    %v12981 = vadd.f32 %v12979, %v12980
    %v12982 = vsel %vm4433, %v12441, 0.0
    %v12983 = vsel %vm4433, %v12442, 0.0
    %v12984 = vadd.f32 %v12982, %v12983
    %v12985 = vrot.slane %v12984, 4
    %v12986 = vadd.f32 %v12984, %v12985
    %v12987 = vrot.slane %v12986, 2
    %v12988 = vadd.f32 %v12986, %v12987
    %v12989 = vrot.slane %v12988, 1
    %v12990 = vadd.f32 %v12988, %v12989
    %v12991 = vsel %vm4433, %v12443, 0.0
    %v12992 = vsel %vm4433, %v12444, 0.0
    %v12993 = vadd.f32 %v12991, %v12992
    %v12994 = vrot.slane %v12993, 4
    %v12995 = vadd.f32 %v12993, %v12994
    %v12996 = vrot.slane %v12995, 2
    %v12997 = vadd.f32 %v12995, %v12996
    %v12998 = vrot.slane %v12997, 1
    %v12999 = vadd.f32 %v12997, %v12998
    %v13000 = vsel %vm4433, %v12445, 0.0
    %v13001 = vsel %vm4433, %v12446, 0.0
    %v13002 = vadd.f32 %v13000, %v13001
    %v13003 = vrot.slane %v13002, 4
    %v13004 = vadd.f32 %v13002, %v13003
    %v13005 = vrot.slane %v13004, 2
    %v13006 = vadd.f32 %v13004, %v13005
    %v13007 = vrot.slane %v13006, 1
    %v13008 = vadd.f32 %v13006, %v13007
    %v13009 = vsel %vm4433, %v12447, 0.0
    %v13010 = vsel %vm4433, %v12448, 0.0
    %v13011 = vadd.f32 %v13009, %v13010
    %v13012 = vrot.slane %v13011, 4
    %v13013 = vadd.f32 %v13011, %v13012
    %v13014 = vrot.slane %v13013, 2
    %v13015 = vadd.f32 %v13013, %v13014
    %v13016 = vrot.slane %v13015, 1
    %v13017 = vadd.f32 %v13015, %v13016
    %v13018 = vsel %vm4433, %v12449, 0.0
    %v13019 = vsel %vm4433, %v12450, 0.0
    %v13020 = vadd.f32 %v13018, %v13019
    %v13021 = vrot.slane %v13020, 4
    %v13022 = vadd.f32 %v13020, %v13021
    %v13023 = vrot.slane %v13022, 2
    %v13024 = vadd.f32 %v13022, %v13023
    %v13025 = vrot.slane %v13024, 1
    %v13026 = vadd.f32 %v13024, %v13025
    %v13027 = vrcp.pop 16.0
    %v13028 = vmul.f32 %v12459, %v13027
    %v13029 = vmul.f32 %v12468, %v13027
    %v13030 = vmul.f32 %v12477, %v13027
    %v13031 = vmul.f32 %v12486, %v13027
    %v13032 = vmul.f32 %v12495, %v13027
    %v13033 = vmul.f32 %v12504, %v13027
    %v13034 = vmul.f32 %v12513, %v13027
    %v13035 = vmul.f32 %v12522, %v13027
    %v13036 = vmul.f32 %v12531, %v13027
    %v13037 = vmul.f32 %v12540, %v13027
    %v13038 = vmul.f32 %v12549, %v13027
    %v13039 = vmul.f32 %v12558, %v13027
    %v13040 = vmul.f32 %v12567, %v13027
    %v13041 = vmul.f32 %v12576, %v13027
    %v13042 = vmul.f32 %v12585, %v13027
    %v13043 = vmul.f32 %v12594, %v13027
    %v13044 = vmul.f32 %v12603, %v13027
    %v13045 = vmul.f32 %v12612, %v13027
    %v13046 = vmul.f32 %v12621, %v13027
    %v13047 = vmul.f32 %v12630, %v13027
    %v13048 = vmul.f32 %v12639, %v13027
    %v13049 = vmul.f32 %v12648, %v13027
    %v13050 = vmul.f32 %v12657, %v13027
    %v13051 = vmul.f32 %v12666, %v13027
    %v13052 = vmul.f32 %v12675, %v13027
    %v13053 = vmul.f32 %v12684, %v13027
    %v13054 = vmul.f32 %v12693, %v13027
    %v13055 = vmul.f32 %v12702, %v13027
    %v13056 = vmul.f32 %v12711, %v13027
    %v13057 = vmul.f32 %v12720, %v13027
    %v13058 = vmul.f32 %v12729, %v13027
    %v13059 = vmul.f32 %v12738, %v13027
    %v13060 = vmul.f32 %v12747, %v13027
    %v13061 = vmul.f32 %v12756, %v13027
    %v13062 = vmul.f32 %v12765, %v13027
    %v13063 = vmul.f32 %v12774, %v13027
    %v13064 = vmul.f32 %v12783, %v13027
    %v13065 = vmul.f32 %v12792, %v13027
    %v13066 = vmul.f32 %v12801, %v13027
    %v13067 = vmul.f32 %v12810, %v13027
    %v13068 = vmul.f32 %v12819, %v13027
    %v13069 = vmul.f32 %v12828, %v13027
    %v13070 = vmul.f32 %v12837, %v13027
    %v13071 = vmul.f32 %v12846, %v13027
    %v13072 = vmul.f32 %v12855, %v13027
    %v13073 = vmul.f32 %v12864, %v13027
    %v13074 = vmul.f32 %v12873, %v13027
    %v13075 = vmul.f32 %v12882, %v13027
    %v13076 = vmul.f32 %v12891, %v13027
    %v13077 = vmul.f32 %v12900, %v13027
    %v13078 = vmul.f32 %v12909, %v13027
    %v13079 = vmul.f32 %v12918, %v13027
    %v13080 = vmul.f32 %v12927, %v13027
    %v13081 = vmul.f32 %v12936, %v13027
    %v13082 = vmul.f32 %v12945, %v13027
    %v13083 = vmul.f32 %v12954, %v13027
    %v13084 = vmul.f32 %v12963, %v13027
    %v13085 = vmul.f32 %v12972, %v13027
    %v13086 = vmul.f32 %v12981, %v13027
    %v13087 = vmul.f32 %v12990, %v13027
    %v13088 = vmul.f32 %v12999, %v13027
    %v13089 = vmul.f32 %v13008, %v13027
    %v13090 = vmul.f32 %v13017, %v13027
    %v13091 = vmul.f32 %v13026, %v13027
    %v13092 = vsel %vm4433, %v12323, -inf
    %v13093 = vsel %vm4433, %v12324, -inf
    %v13094 = vmax.f32 %v13092, %v13093
    %v13095 = vrot.slane %v13094, 4
    %v13096 = vmax.f32 %v13094, %v13095
    %v13097 = vrot.slane %v13096, 2
    %v13098 = vmax.f32 %v13096, %v13097
    %v13099 = vrot.slane %v13098, 1
    %v13100 = vmax.f32 %v13098, %v13099
    %v13101 = vsel %vm4433, %v12325, -inf
    %v13102 = vsel %vm4433, %v12326, -inf
    %v13103 = vmax.f32 %v13101, %v13102
    %v13104 = vrot.slane %v13103, 4
    %v13105 = vmax.f32 %v13103, %v13104
    %v13106 = vrot.slane %v13105, 2
    %v13107 = vmax.f32 %v13105, %v13106
    %v13108 = vrot.slane %v13107, 1
    %v13109 = vmax.f32 %v13107, %v13108
    %v13110 = vsel %vm4433, %v12327, -inf
    %v13111 = vsel %vm4433, %v12328, -inf
    %v13112 = vmax.f32 %v13110, %v13111
    %v13113 = vrot.slane %v13112, 4
    %v13114 = vmax.f32 %v13112, %v13113
    %v13115 = vrot.slane %v13114, 2
    %v13116 = vmax.f32 %v13114, %v13115
    %v13117 = vrot.slane %v13116, 1
    %v13118 = vmax.f32 %v13116, %v13117
    %v13119 = vsel %vm4433, %v12329, -inf
    %v13120 = vsel %vm4433, %v12330, -inf
    %v13121 = vmax.f32 %v13119, %v13120
    %v13122 = vrot.slane %v13121, 4
    %v13123 = vmax.f32 %v13121, %v13122
    %v13124 = vrot.slane %v13123, 2
    %v13125 = vmax.f32 %v13123, %v13124
    %v13126 = vrot.slane %v13125, 1
    %v13127 = vmax.f32 %v13125, %v13126
    %v13128 = vsel %vm4433, %v12331, -inf
    %v13129 = vsel %vm4433, %v12332, -inf
    %v13130 = vmax.f32 %v13128, %v13129
    %v13131 = vrot.slane %v13130, 4
    %v13132 = vmax.f32 %v13130, %v13131
    %v13133 = vrot.slane %v13132, 2
    %v13134 = vmax.f32 %v13132, %v13133
    %v13135 = vrot.slane %v13134, 1
    %v13136 = vmax.f32 %v13134, %v13135
    %v13137 = vsel %vm4433, %v12333, -inf
    %v13138 = vsel %vm4433, %v12334, -inf
    %v13139 = vmax.f32 %v13137, %v13138
    %v13140 = vrot.slane %v13139, 4
    %v13141 = vmax.f32 %v13139, %v13140
    %v13142 = vrot.slane %v13141, 2
    %v13143 = vmax.f32 %v13141, %v13142
    %v13144 = vrot.slane %v13143, 1
    %v13145 = vmax.f32 %v13143, %v13144
    %v13146 = vsel %vm4433, %v12335, -inf
    %v13147 = vsel %vm4433, %v12336, -inf
    %v13148 = vmax.f32 %v13146, %v13147
    %v13149 = vrot.slane %v13148, 4
    %v13150 = vmax.f32 %v13148, %v13149
    %v13151 = vrot.slane %v13150, 2
    %v13152 = vmax.f32 %v13150, %v13151
    %v13153 = vrot.slane %v13152, 1
    %v13154 = vmax.f32 %v13152, %v13153
    %v13155 = vsel %vm4433, %v12337, -inf
    %v13156 = vsel %vm4433, %v12338, -inf
    %v13157 = vmax.f32 %v13155, %v13156
    %v13158 = vrot.slane %v13157, 4
    %v13159 = vmax.f32 %v13157, %v13158
    %v13160 = vrot.slane %v13159, 2
    %v13161 = vmax.f32 %v13159, %v13160
    %v13162 = vrot.slane %v13161, 1
    %v13163 = vmax.f32 %v13161, %v13162
    %v13164 = vsel %vm4433, %v12339, -inf
    %v13165 = vsel %vm4433, %v12340, -inf
    %v13166 = vmax.f32 %v13164, %v13165
    %v13167 = vrot.slane %v13166, 4
    %v13168 = vmax.f32 %v13166, %v13167
    %v13169 = vrot.slane %v13168, 2
    %v13170 = vmax.f32 %v13168, %v13169
    %v13171 = vrot.slane %v13170, 1
    %v13172 = vmax.f32 %v13170, %v13171
    %v13173 = vsel %vm4433, %v12341, -inf
    %v13174 = vsel %vm4433, %v12342, -inf
    %v13175 = vmax.f32 %v13173, %v13174
    %v13176 = vrot.slane %v13175, 4
    %v13177 = vmax.f32 %v13175, %v13176
    %v13178 = vrot.slane %v13177, 2
    %v13179 = vmax.f32 %v13177, %v13178
    %v13180 = vrot.slane %v13179, 1
    %v13181 = vmax.f32 %v13179, %v13180
    %v13182 = vsel %vm4433, %v12343, -inf
    %v13183 = vsel %vm4433, %v12344, -inf
    %v13184 = vmax.f32 %v13182, %v13183
    %v13185 = vrot.slane %v13184, 4
    %v13186 = vmax.f32 %v13184, %v13185
    %v13187 = vrot.slane %v13186, 2
    %v13188 = vmax.f32 %v13186, %v13187
    %v13189 = vrot.slane %v13188, 1
    %v13190 = vmax.f32 %v13188, %v13189
    %v13191 = vsel %vm4433, %v12345, -inf
    %v13192 = vsel %vm4433, %v12346, -inf
    %v13193 = vmax.f32 %v13191, %v13192
    %v13194 = vrot.slane %v13193, 4
    %v13195 = vmax.f32 %v13193, %v13194
    %v13196 = vrot.slane %v13195, 2
    %v13197 = vmax.f32 %v13195, %v13196
    %v13198 = vrot.slane %v13197, 1
    %v13199 = vmax.f32 %v13197, %v13198
    %v13200 = vsel %vm4433, %v12347, -inf
    %v13201 = vsel %vm4433, %v12348, -inf
    %v13202 = vmax.f32 %v13200, %v13201
    %v13203 = vrot.slane %v13202, 4
    %v13204 = vmax.f32 %v13202, %v13203
    %v13205 = vrot.slane %v13204, 2
    %v13206 = vmax.f32 %v13204, %v13205
    %v13207 = vrot.slane %v13206, 1
    %v13208 = vmax.f32 %v13206, %v13207
    %v13209 = vsel %vm4433, %v12349, -inf
    %v13210 = vsel %vm4433, %v12350, -inf
    %v13211 = vmax.f32 %v13209, %v13210
    %v13212 = vrot.slane %v13211, 4
    %v13213 = vmax.f32 %v13211, %v13212
    %v13214 = vrot.slane %v13213, 2
    %v13215 = vmax.f32 %v13213, %v13214
    %v13216 = vrot.slane %v13215, 1
    %v13217 = vmax.f32 %v13215, %v13216
    %v13218 = vsel %vm4433, %v12351, -inf
    %v13219 = vsel %vm4433, %v12352, -inf
    %v13220 = vmax.f32 %v13218, %v13219
    %v13221 = vrot.slane %v13220, 4
    %v13222 = vmax.f32 %v13220, %v13221
    %v13223 = vrot.slane %v13222, 2
    %v13224 = vmax.f32 %v13222, %v13223
    %v13225 = vrot.slane %v13224, 1
    %v13226 = vmax.f32 %v13224, %v13225
    %v13227 = vsel %vm4433, %v12353, -inf
    %v13228 = vsel %vm4433, %v12354, -inf
    %v13229 = vmax.f32 %v13227, %v13228
    %v13230 = vrot.slane %v13229, 4
    %v13231 = vmax.f32 %v13229, %v13230
    %v13232 = vrot.slane %v13231, 2
    %v13233 = vmax.f32 %v13231, %v13232
    %v13234 = vrot.slane %v13233, 1
    %v13235 = vmax.f32 %v13233, %v13234
    %v13236 = vsel %vm4433, %v12355, -inf
    %v13237 = vsel %vm4433, %v12356, -inf
    %v13238 = vmax.f32 %v13236, %v13237
    %v13239 = vrot.slane %v13238, 4
    %v13240 = vmax.f32 %v13238, %v13239
    %v13241 = vrot.slane %v13240, 2
    %v13242 = vmax.f32 %v13240, %v13241
    %v13243 = vrot.slane %v13242, 1
    %v13244 = vmax.f32 %v13242, %v13243
    %v13245 = vsel %vm4433, %v12357, -inf
    %v13246 = vsel %vm4433, %v12358, -inf
    %v13247 = vmax.f32 %v13245, %v13246
    %v13248 = vrot.slane %v13247, 4
    %v13249 = vmax.f32 %v13247, %v13248
    %v13250 = vrot.slane %v13249, 2
    %v13251 = vmax.f32 %v13249, %v13250
    %v13252 = vrot.slane %v13251, 1
    %v13253 = vmax.f32 %v13251, %v13252
    %v13254 = vsel %vm4433, %v12359, -inf
    %v13255 = vsel %vm4433, %v12360, -inf
    %v13256 = vmax.f32 %v13254, %v13255
    %v13257 = vrot.slane %v13256, 4
    %v13258 = vmax.f32 %v13256, %v13257
    %v13259 = vrot.slane %v13258, 2
    %v13260 = vmax.f32 %v13258, %v13259
    %v13261 = vrot.slane %v13260, 1
    %v13262 = vmax.f32 %v13260, %v13261
    %v13263 = vsel %vm4433, %v12361, -inf
    %v13264 = vsel %vm4433, %v12362, -inf
    %v13265 = vmax.f32 %v13263, %v13264
    %v13266 = vrot.slane %v13265, 4
    %v13267 = vmax.f32 %v13265, %v13266
    %v13268 = vrot.slane %v13267, 2
    %v13269 = vmax.f32 %v13267, %v13268
    %v13270 = vrot.slane %v13269, 1
    %v13271 = vmax.f32 %v13269, %v13270
    %v13272 = vsel %vm4433, %v12363, -inf
    %v13273 = vsel %vm4433, %v12364, -inf
    %v13274 = vmax.f32 %v13272, %v13273
    %v13275 = vrot.slane %v13274, 4
    %v13276 = vmax.f32 %v13274, %v13275
    %v13277 = vrot.slane %v13276, 2
    %v13278 = vmax.f32 %v13276, %v13277
    %v13279 = vrot.slane %v13278, 1
    %v13280 = vmax.f32 %v13278, %v13279
    %v13281 = vsel %vm4433, %v12365, -inf
    %v13282 = vsel %vm4433, %v12366, -inf
    %v13283 = vmax.f32 %v13281, %v13282
    %v13284 = vrot.slane %v13283, 4
    %v13285 = vmax.f32 %v13283, %v13284
    %v13286 = vrot.slane %v13285, 2
    %v13287 = vmax.f32 %v13285, %v13286
    %v13288 = vrot.slane %v13287, 1
    %v13289 = vmax.f32 %v13287, %v13288
    %v13290 = vsel %vm4433, %v12367, -inf
    %v13291 = vsel %vm4433, %v12368, -inf
    %v13292 = vmax.f32 %v13290, %v13291
    %v13293 = vrot.slane %v13292, 4
    %v13294 = vmax.f32 %v13292, %v13293
    %v13295 = vrot.slane %v13294, 2
    %v13296 = vmax.f32 %v13294, %v13295
    %v13297 = vrot.slane %v13296, 1
    %v13298 = vmax.f32 %v13296, %v13297
    %v13299 = vsel %vm4433, %v12369, -inf
    %v13300 = vsel %vm4433, %v12370, -inf
    %v13301 = vmax.f32 %v13299, %v13300
    %v13302 = vrot.slane %v13301, 4
    %v13303 = vmax.f32 %v13301, %v13302
    %v13304 = vrot.slane %v13303, 2
    %v13305 = vmax.f32 %v13303, %v13304
    %v13306 = vrot.slane %v13305, 1
    %v13307 = vmax.f32 %v13305, %v13306
    %v13308 = vsel %vm4433, %v12371, -inf
    %v13309 = vsel %vm4433, %v12372, -inf
    %v13310 = vmax.f32 %v13308, %v13309
    %v13311 = vrot.slane %v13310, 4
    %v13312 = vmax.f32 %v13310, %v13311
    %v13313 = vrot.slane %v13312, 2
    %v13314 = vmax.f32 %v13312, %v13313
    %v13315 = vrot.slane %v13314, 1
    %v13316 = vmax.f32 %v13314, %v13315
    %v13317 = vsel %vm4433, %v12373, -inf
    %v13318 = vsel %vm4433, %v12374, -inf
    %v13319 = vmax.f32 %v13317, %v13318
    %v13320 = vrot.slane %v13319, 4
    %v13321 = vmax.f32 %v13319, %v13320
    %v13322 = vrot.slane %v13321, 2
    %v13323 = vmax.f32 %v13321, %v13322
    %v13324 = vrot.slane %v13323, 1
    %v13325 = vmax.f32 %v13323, %v13324
    %v13326 = vsel %vm4433, %v12375, -inf
    %v13327 = vsel %vm4433, %v12376, -inf
    %v13328 = vmax.f32 %v13326, %v13327
    %v13329 = vrot.slane %v13328, 4
    %v13330 = vmax.f32 %v13328, %v13329
    %v13331 = vrot.slane %v13330, 2
    %v13332 = vmax.f32 %v13330, %v13331
    %v13333 = vrot.slane %v13332, 1
    %v13334 = vmax.f32 %v13332, %v13333
    %v13335 = vsel %vm4433, %v12377, -inf
    %v13336 = vsel %vm4433, %v12378, -inf
    %v13337 = vmax.f32 %v13335, %v13336
    %v13338 = vrot.slane %v13337, 4
    %v13339 = vmax.f32 %v13337, %v13338
    %v13340 = vrot.slane %v13339, 2
    %v13341 = vmax.f32 %v13339, %v13340
    %v13342 = vrot.slane %v13341, 1
    %v13343 = vmax.f32 %v13341, %v13342
    %v13344 = vsel %vm4433, %v12379, -inf
    %v13345 = vsel %vm4433, %v12380, -inf
    %v13346 = vmax.f32 %v13344, %v13345
    %v13347 = vrot.slane %v13346, 4
    %v13348 = vmax.f32 %v13346, %v13347
    %v13349 = vrot.slane %v13348, 2
    %v13350 = vmax.f32 %v13348, %v13349
    %v13351 = vrot.slane %v13350, 1
    %v13352 = vmax.f32 %v13350, %v13351
    %v13353 = vsel %vm4433, %v12381, -inf
    %v13354 = vsel %vm4433, %v12382, -inf
    %v13355 = vmax.f32 %v13353, %v13354
    %v13356 = vrot.slane %v13355, 4
    %v13357 = vmax.f32 %v13355, %v13356
    %v13358 = vrot.slane %v13357, 2
    %v13359 = vmax.f32 %v13357, %v13358
    %v13360 = vrot.slane %v13359, 1
    %v13361 = vmax.f32 %v13359, %v13360
    %v13362 = vsel %vm4433, %v12383, -inf
    %v13363 = vsel %vm4433, %v12384, -inf
    %v13364 = vmax.f32 %v13362, %v13363
    %v13365 = vrot.slane %v13364, 4
    %v13366 = vmax.f32 %v13364, %v13365
    %v13367 = vrot.slane %v13366, 2
    %v13368 = vmax.f32 %v13366, %v13367
    %v13369 = vrot.slane %v13368, 1
    %v13370 = vmax.f32 %v13368, %v13369
    %v13371 = vsel %vm4433, %v12385, -inf
    %v13372 = vsel %vm4433, %v12386, -inf
    %v13373 = vmax.f32 %v13371, %v13372
    %v13374 = vrot.slane %v13373, 4
    %v13375 = vmax.f32 %v13373, %v13374
    %v13376 = vrot.slane %v13375, 2
    %v13377 = vmax.f32 %v13375, %v13376
    %v13378 = vrot.slane %v13377, 1
    %v13379 = vmax.f32 %v13377, %v13378
    %v13380 = vsel %vm4433, %v12387, -inf
    %v13381 = vsel %vm4433, %v12388, -inf
    %v13382 = vmax.f32 %v13380, %v13381
    %v13383 = vrot.slane %v13382, 4
    %v13384 = vmax.f32 %v13382, %v13383
    %v13385 = vrot.slane %v13384, 2
    %v13386 = vmax.f32 %v13384, %v13385
    %v13387 = vrot.slane %v13386, 1
    %v13388 = vmax.f32 %v13386, %v13387
    %v13389 = vsel %vm4433, %v12389, -inf
    %v13390 = vsel %vm4433, %v12390, -inf
    %v13391 = vmax.f32 %v13389, %v13390
    %v13392 = vrot.slane %v13391, 4
    %v13393 = vmax.f32 %v13391, %v13392
    %v13394 = vrot.slane %v13393, 2
    %v13395 = vmax.f32 %v13393, %v13394
    %v13396 = vrot.slane %v13395, 1
    %v13397 = vmax.f32 %v13395, %v13396
    %v13398 = vsel %vm4433, %v12391, -inf
    %v13399 = vsel %vm4433, %v12392, -inf
    %v13400 = vmax.f32 %v13398, %v13399
    %v13401 = vrot.slane %v13400, 4
    %v13402 = vmax.f32 %v13400, %v13401
    %v13403 = vrot.slane %v13402, 2
    %v13404 = vmax.f32 %v13402, %v13403
    %v13405 = vrot.slane %v13404, 1
    %v13406 = vmax.f32 %v13404, %v13405
    %v13407 = vsel %vm4433, %v12393, -inf
    %v13408 = vsel %vm4433, %v12394, -inf
    %v13409 = vmax.f32 %v13407, %v13408
    %v13410 = vrot.slane %v13409, 4
    %v13411 = vmax.f32 %v13409, %v13410
    %v13412 = vrot.slane %v13411, 2
    %v13413 = vmax.f32 %v13411, %v13412
    %v13414 = vrot.slane %v13413, 1
    %v13415 = vmax.f32 %v13413, %v13414
    %v13416 = vsel %vm4433, %v12395, -inf
    %v13417 = vsel %vm4433, %v12396, -inf
    %v13418 = vmax.f32 %v13416, %v13417
    %v13419 = vrot.slane %v13418, 4
    %v13420 = vmax.f32 %v13418, %v13419
    %v13421 = vrot.slane %v13420, 2
    %v13422 = vmax.f32 %v13420, %v13421
    %v13423 = vrot.slane %v13422, 1
    %v13424 = vmax.f32 %v13422, %v13423
    %v13425 = vsel %vm4433, %v12397, -inf
    %v13426 = vsel %vm4433, %v12398, -inf
    %v13427 = vmax.f32 %v13425, %v13426
    %v13428 = vrot.slane %v13427, 4
    %v13429 = vmax.f32 %v13427, %v13428
    %v13430 = vrot.slane %v13429, 2
    %v13431 = vmax.f32 %v13429, %v13430
    %v13432 = vrot.slane %v13431, 1
    %v13433 = vmax.f32 %v13431, %v13432
    %v13434 = vsel %vm4433, %v12399, -inf
    %v13435 = vsel %vm4433, %v12400, -inf
    %v13436 = vmax.f32 %v13434, %v13435
    %v13437 = vrot.slane %v13436, 4
    %v13438 = vmax.f32 %v13436, %v13437
    %v13439 = vrot.slane %v13438, 2
    %v13440 = vmax.f32 %v13438, %v13439
    %v13441 = vrot.slane %v13440, 1
    %v13442 = vmax.f32 %v13440, %v13441
    %v13443 = vsel %vm4433, %v12401, -inf
    %v13444 = vsel %vm4433, %v12402, -inf
    %v13445 = vmax.f32 %v13443, %v13444
    %v13446 = vrot.slane %v13445, 4
    %v13447 = vmax.f32 %v13445, %v13446
    %v13448 = vrot.slane %v13447, 2
    %v13449 = vmax.f32 %v13447, %v13448
    %v13450 = vrot.slane %v13449, 1
    %v13451 = vmax.f32 %v13449, %v13450
    %v13452 = vsel %vm4433, %v12403, -inf
    %v13453 = vsel %vm4433, %v12404, -inf
    %v13454 = vmax.f32 %v13452, %v13453
    %v13455 = vrot.slane %v13454, 4
    %v13456 = vmax.f32 %v13454, %v13455
    %v13457 = vrot.slane %v13456, 2
    %v13458 = vmax.f32 %v13456, %v13457
    %v13459 = vrot.slane %v13458, 1
    %v13460 = vmax.f32 %v13458, %v13459
    %v13461 = vsel %vm4433, %v12405, -inf
    %v13462 = vsel %vm4433, %v12406, -inf
    %v13463 = vmax.f32 %v13461, %v13462
    %v13464 = vrot.slane %v13463, 4
    %v13465 = vmax.f32 %v13463, %v13464
    %v13466 = vrot.slane %v13465, 2
    %v13467 = vmax.f32 %v13465, %v13466
    %v13468 = vrot.slane %v13467, 1
    %v13469 = vmax.f32 %v13467, %v13468
    %v13470 = vsel %vm4433, %v12407, -inf
    %v13471 = vsel %vm4433, %v12408, -inf
    %v13472 = vmax.f32 %v13470, %v13471
    %v13473 = vrot.slane %v13472, 4
    %v13474 = vmax.f32 %v13472, %v13473
    %v13475 = vrot.slane %v13474, 2
    %v13476 = vmax.f32 %v13474, %v13475
    %v13477 = vrot.slane %v13476, 1
    %v13478 = vmax.f32 %v13476, %v13477
    %v13479 = vsel %vm4433, %v12409, -inf
    %v13480 = vsel %vm4433, %v12410, -inf
    %v13481 = vmax.f32 %v13479, %v13480
    %v13482 = vrot.slane %v13481, 4
    %v13483 = vmax.f32 %v13481, %v13482
    %v13484 = vrot.slane %v13483, 2
    %v13485 = vmax.f32 %v13483, %v13484
    %v13486 = vrot.slane %v13485, 1
    %v13487 = vmax.f32 %v13485, %v13486
    %v13488 = vsel %vm4433, %v12411, -inf
    %v13489 = vsel %vm4433, %v12412, -inf
    %v13490 = vmax.f32 %v13488, %v13489
    %v13491 = vrot.slane %v13490, 4
    %v13492 = vmax.f32 %v13490, %v13491
    %v13493 = vrot.slane %v13492, 2
    %v13494 = vmax.f32 %v13492, %v13493
    %v13495 = vrot.slane %v13494, 1
    %v13496 = vmax.f32 %v13494, %v13495
    %v13497 = vsel %vm4433, %v12413, -inf
    %v13498 = vsel %vm4433, %v12414, -inf
    %v13499 = vmax.f32 %v13497, %v13498
    %v13500 = vrot.slane %v13499, 4
    %v13501 = vmax.f32 %v13499, %v13500
    %v13502 = vrot.slane %v13501, 2
    %v13503 = vmax.f32 %v13501, %v13502
    %v13504 = vrot.slane %v13503, 1
    %v13505 = vmax.f32 %v13503, %v13504
    %v13506 = vsel %vm4433, %v12415, -inf
    %v13507 = vsel %vm4433, %v12416, -inf
    %v13508 = vmax.f32 %v13506, %v13507
    %v13509 = vrot.slane %v13508, 4
    %v13510 = vmax.f32 %v13508, %v13509
    %v13511 = vrot.slane %v13510, 2
    %v13512 = vmax.f32 %v13510, %v13511
    %v13513 = vrot.slane %v13512, 1
    %v13514 = vmax.f32 %v13512, %v13513
    %v13515 = vsel %vm4433, %v12417, -inf
    %v13516 = vsel %vm4433, %v12418, -inf
    %v13517 = vmax.f32 %v13515, %v13516
    %v13518 = vrot.slane %v13517, 4
    %v13519 = vmax.f32 %v13517, %v13518
    %v13520 = vrot.slane %v13519, 2
    %v13521 = vmax.f32 %v13519, %v13520
    %v13522 = vrot.slane %v13521, 1
    %v13523 = vmax.f32 %v13521, %v13522
    %v13524 = vsel %vm4433, %v12419, -inf
    %v13525 = vsel %vm4433, %v12420, -inf
    %v13526 = vmax.f32 %v13524, %v13525
    %v13527 = vrot.slane %v13526, 4
    %v13528 = vmax.f32 %v13526, %v13527
    %v13529 = vrot.slane %v13528, 2
    %v13530 = vmax.f32 %v13528, %v13529
    %v13531 = vrot.slane %v13530, 1
    %v13532 = vmax.f32 %v13530, %v13531
    %v13533 = vsel %vm4433, %v12421, -inf
    %v13534 = vsel %vm4433, %v12422, -inf
    %v13535 = vmax.f32 %v13533, %v13534
    %v13536 = vrot.slane %v13535, 4
    %v13537 = vmax.f32 %v13535, %v13536
    %v13538 = vrot.slane %v13537, 2
    %v13539 = vmax.f32 %v13537, %v13538
    %v13540 = vrot.slane %v13539, 1
    %v13541 = vmax.f32 %v13539, %v13540
    %v13542 = vsel %vm4433, %v12423, -inf
    %v13543 = vsel %vm4433, %v12424, -inf
    %v13544 = vmax.f32 %v13542, %v13543
    %v13545 = vrot.slane %v13544, 4
    %v13546 = vmax.f32 %v13544, %v13545
    %v13547 = vrot.slane %v13546, 2
    %v13548 = vmax.f32 %v13546, %v13547
    %v13549 = vrot.slane %v13548, 1
    %v13550 = vmax.f32 %v13548, %v13549
    %v13551 = vsel %vm4433, %v12425, -inf
    %v13552 = vsel %vm4433, %v12426, -inf
    %v13553 = vmax.f32 %v13551, %v13552
    %v13554 = vrot.slane %v13553, 4
    %v13555 = vmax.f32 %v13553, %v13554
    %v13556 = vrot.slane %v13555, 2
    %v13557 = vmax.f32 %v13555, %v13556
    %v13558 = vrot.slane %v13557, 1
    %v13559 = vmax.f32 %v13557, %v13558
    %v13560 = vsel %vm4433, %v12427, -inf
    %v13561 = vsel %vm4433, %v12428, -inf
    %v13562 = vmax.f32 %v13560, %v13561
    %v13563 = vrot.slane %v13562, 4
    %v13564 = vmax.f32 %v13562, %v13563
    %v13565 = vrot.slane %v13564, 2
    %v13566 = vmax.f32 %v13564, %v13565
    %v13567 = vrot.slane %v13566, 1
    %v13568 = vmax.f32 %v13566, %v13567
    %v13569 = vsel %vm4433, %v12429, -inf
    %v13570 = vsel %vm4433, %v12430, -inf
    %v13571 = vmax.f32 %v13569, %v13570
    %v13572 = vrot.slane %v13571, 4
    %v13573 = vmax.f32 %v13571, %v13572
    %v13574 = vrot.slane %v13573, 2
    %v13575 = vmax.f32 %v13573, %v13574
    %v13576 = vrot.slane %v13575, 1
    %v13577 = vmax.f32 %v13575, %v13576
    %v13578 = vsel %vm4433, %v12431, -inf
    %v13579 = vsel %vm4433, %v12432, -inf
    %v13580 = vmax.f32 %v13578, %v13579
    %v13581 = vrot.slane %v13580, 4
    %v13582 = vmax.f32 %v13580, %v13581
    %v13583 = vrot.slane %v13582, 2
    %v13584 = vmax.f32 %v13582, %v13583
    %v13585 = vrot.slane %v13584, 1
    %v13586 = vmax.f32 %v13584, %v13585
    %v13587 = vsel %vm4433, %v12433, -inf
    %v13588 = vsel %vm4433, %v12434, -inf
    %v13589 = vmax.f32 %v13587, %v13588
    %v13590 = vrot.slane %v13589, 4
    %v13591 = vmax.f32 %v13589, %v13590
    %v13592 = vrot.slane %v13591, 2
    %v13593 = vmax.f32 %v13591, %v13592
    %v13594 = vrot.slane %v13593, 1
    %v13595 = vmax.f32 %v13593, %v13594
    %v13596 = vsel %vm4433, %v12435, -inf
    %v13597 = vsel %vm4433, %v12436, -inf
    %v13598 = vmax.f32 %v13596, %v13597
    %v13599 = vrot.slane %v13598, 4
    %v13600 = vmax.f32 %v13598, %v13599
    %v13601 = vrot.slane %v13600, 2
    %v13602 = vmax.f32 %v13600, %v13601
    %v13603 = vrot.slane %v13602, 1
    %v13604 = vmax.f32 %v13602, %v13603
    %v13605 = vsel %vm4433, %v12437, -inf
    %v13606 = vsel %vm4433, %v12438, -inf
    %v13607 = vmax.f32 %v13605, %v13606
    %v13608 = vrot.slane %v13607, 4
    %v13609 = vmax.f32 %v13607, %v13608
    %v13610 = vrot.slane %v13609, 2
    %v13611 = vmax.f32 %v13609, %v13610
    %v13612 = vrot.slane %v13611, 1
    %v13613 = vmax.f32 %v13611, %v13612
    %v13614 = vsel %vm4433, %v12439, -inf
    %v13615 = vsel %vm4433, %v12440, -inf
    %v13616 = vmax.f32 %v13614, %v13615
    %v13617 = vrot.slane %v13616, 4
    %v13618 = vmax.f32 %v13616, %v13617
    %v13619 = vrot.slane %v13618, 2
    %v13620 = vmax.f32 %v13618, %v13619
    %v13621 = vrot.slane %v13620, 1
    %v13622 = vmax.f32 %v13620, %v13621
    %v13623 = vsel %vm4433, %v12441, -inf
    %v13624 = vsel %vm4433, %v12442, -inf
    %v13625 = vmax.f32 %v13623, %v13624
    %v13626 = vrot.slane %v13625, 4
    %v13627 = vmax.f32 %v13625, %v13626
    %v13628 = vrot.slane %v13627, 2
    %v13629 = vmax.f32 %v13627, %v13628
    %v13630 = vrot.slane %v13629, 1
    %v13631 = vmax.f32 %v13629, %v13630
    %v13632 = vsel %vm4433, %v12443, -inf
    %v13633 = vsel %vm4433, %v12444, -inf
    %v13634 = vmax.f32 %v13632, %v13633
    %v13635 = vrot.slane %v13634, 4
    %v13636 = vmax.f32 %v13634, %v13635
    %v13637 = vrot.slane %v13636, 2
    %v13638 = vmax.f32 %v13636, %v13637
    %v13639 = vrot.slane %v13638, 1
    %v13640 = vmax.f32 %v13638, %v13639
    %v13641 = vsel %vm4433, %v12445, -inf
    %v13642 = vsel %vm4433, %v12446, -inf
    %v13643 = vmax.f32 %v13641, %v13642
    %v13644 = vrot.slane %v13643, 4
    %v13645 = vmax.f32 %v13643, %v13644
    %v13646 = vrot.slane %v13645, 2
    %v13647 = vmax.f32 %v13645, %v13646
    %v13648 = vrot.slane %v13647, 1
    %v13649 = vmax.f32 %v13647, %v13648
    %v13650 = vsel %vm4433, %v12447, -inf
    %v13651 = vsel %vm4433, %v12448, -inf
    %v13652 = vmax.f32 %v13650, %v13651
    %v13653 = vrot.slane %v13652, 4
    %v13654 = vmax.f32 %v13652, %v13653
    %v13655 = vrot.slane %v13654, 2
    %v13656 = vmax.f32 %v13654, %v13655
    %v13657 = vrot.slane %v13656, 1
    %v13658 = vmax.f32 %v13656, %v13657
    %v13659 = vsel %vm4433, %v12449, -inf
    %v13660 = vsel %vm4433, %v12450, -inf
    %v13661 = vmax.f32 %v13659, %v13660
    %v13662 = vrot.slane %v13661, 4
    %v13663 = vmax.f32 %v13661, %v13662
    %v13664 = vrot.slane %v13663, 2
    %v13665 = vmax.f32 %v13663, %v13664
    %v13666 = vrot.slane %v13665, 1
    %v13667 = vmax.f32 %v13665, %v13666
    %vm13732 = vcmask 1041409
    %v13733 = vsel %vm13732, %v13029, %v13028
    %vm13734 = vcmask 1042434
    %v13735 = vsel %vm13734, %v13030, %v13733
    %vm13736 = vcmask 1043459
    %v13737 = vsel %vm13736, %v13031, %v13735
    %vm13738 = vcmask 1044484
    %v13739 = vsel %vm13738, %v13032, %v13737
    %vm13740 = vcmask 1045509
    %v13741 = vsel %vm13740, %v13033, %v13739
    %vm13742 = vcmask 1046534
    %v13743 = vsel %vm13742, %v13034, %v13741
    %vm13744 = vcmask 1047559
    %v13745 = vsel %vm13744, %v13035, %v13743
    %v13746 = vsel %vm13732, %v13037, %v13036
    %v13747 = vsel %vm13734, %v13038, %v13746
    %v13748 = vsel %vm13736, %v13039, %v13747
    %v13749 = vsel %vm13738, %v13040, %v13748
    %v13750 = vsel %vm13740, %v13041, %v13749
    %v13751 = vsel %vm13742, %v13042, %v13750
    %v13752 = vsel %vm13744, %v13043, %v13751
    %v13753 = vsel %vm13732, %v13045, %v13044
    %v13754 = vsel %vm13734, %v13046, %v13753
    %v13755 = vsel %vm13736, %v13047, %v13754
    %v13756 = vsel %vm13738, %v13048, %v13755
    %v13757 = vsel %vm13740, %v13049, %v13756
    %v13758 = vsel %vm13742, %v13050, %v13757
    %v13759 = vsel %vm13744, %v13051, %v13758
    %v13760 = vsel %vm13732, %v13053, %v13052
    %v13761 = vsel %vm13734, %v13054, %v13760
    %v13762 = vsel %vm13736, %v13055, %v13761
    %v13763 = vsel %vm13738, %v13056, %v13762
    %v13764 = vsel %vm13740, %v13057, %v13763
    %v13765 = vsel %vm13742, %v13058, %v13764
    %v13766 = vsel %vm13744, %v13059, %v13765
    %v13767 = vsel %vm13732, %v13061, %v13060
    %v13768 = vsel %vm13734, %v13062, %v13767
    %v13769 = vsel %vm13736, %v13063, %v13768
    %v13770 = vsel %vm13738, %v13064, %v13769
    %v13771 = vsel %vm13740, %v13065, %v13770
    %v13772 = vsel %vm13742, %v13066, %v13771
    %v13773 = vsel %vm13744, %v13067, %v13772
    %v13774 = vsel %vm13732, %v13069, %v13068
    %v13775 = vsel %vm13734, %v13070, %v13774
    %v13776 = vsel %vm13736, %v13071, %v13775
    %v13777 = vsel %vm13738, %v13072, %v13776
    %v13778 = vsel %vm13740, %v13073, %v13777
    %v13779 = vsel %vm13742, %v13074, %v13778
    %v13780 = vsel %vm13744, %v13075, %v13779
    %v13781 = vsel %vm13732, %v13077, %v13076
    %v13782 = vsel %vm13734, %v13078, %v13781
    %v13783 = vsel %vm13736, %v13079, %v13782
    %v13784 = vsel %vm13738, %v13080, %v13783
    %v13785 = vsel %vm13740, %v13081, %v13784
    %v13786 = vsel %vm13742, %v13082, %v13785
    %v13787 = vsel %vm13744, %v13083, %v13786
    %v13788 = vsel %vm13732, %v13085, %v13084
    %v13789 = vsel %vm13734, %v13086, %v13788
    %v13790 = vsel %vm13736, %v13087, %v13789
    %v13791 = vsel %vm13738, %v13088, %v13790
    %v13792 = vsel %vm13740, %v13089, %v13791
    %v13793 = vsel %vm13742, %v13090, %v13792
    %v13794 = vsel %vm13744, %v13091, %v13793
    %v13867 = vsel %vm13732, %v13109, %v13100
    %v13868 = vsel %vm13734, %v13118, %v13867
    %v13869 = vsel %vm13736, %v13127, %v13868
    %v13870 = vsel %vm13738, %v13136, %v13869
    %v13871 = vsel %vm13740, %v13145, %v13870
    %v13872 = vsel %vm13742, %v13154, %v13871
    %v13873 = vsel %vm13744, %v13163, %v13872
    %v13874 = vsel %vm13732, %v13181, %v13172
    %v13875 = vsel %vm13734, %v13190, %v13874
    %v13876 = vsel %vm13736, %v13199, %v13875
    %v13877 = vsel %vm13738, %v13208, %v13876
    %v13878 = vsel %vm13740, %v13217, %v13877
    %v13879 = vsel %vm13742, %v13226, %v13878
    %v13880 = vsel %vm13744, %v13235, %v13879
    %v13881 = vsel %vm13732, %v13253, %v13244
    %v13882 = vsel %vm13734, %v13262, %v13881
    %v13883 = vsel %vm13736, %v13271, %v13882
    %v13884 = vsel %vm13738, %v13280, %v13883
    %v13885 = vsel %vm13740, %v13289, %v13884
    %v13886 = vsel %vm13742, %v13298, %v13885
    %v13887 = vsel %vm13744, %v13307, %v13886
    %v13888 = vsel %vm13732, %v13325, %v13316
    %v13889 = vsel %vm13734, %v13334, %v13888
    %v13890 = vsel %vm13736, %v13343, %v13889
    %v13891 = vsel %vm13738, %v13352, %v13890
    %v13892 = vsel %vm13740, %v13361, %v13891
    %v13893 = vsel %vm13742, %v13370, %v13892
    %v13894 = vsel %vm13744, %v13379, %v13893
    %v13895 = vsel %vm13732, %v13397, %v13388
    %v13896 = vsel %vm13734, %v13406, %v13895
    %v13897 = vsel %vm13736, %v13415, %v13896
    %v13898 = vsel %vm13738, %v13424, %v13897
    %v13899 = vsel %vm13740, %v13433, %v13898
    %v13900 = vsel %vm13742, %v13442, %v13899
    %v13901 = vsel %vm13744, %v13451, %v13900
    %v13902 = vsel %vm13732, %v13469, %v13460
    %v13903 = vsel %vm13734, %v13478, %v13902
    %v13904 = vsel %vm13736, %v13487, %v13903
    %v13905 = vsel %vm13738, %v13496, %v13904
    %v13906 = vsel %vm13740, %v13505, %v13905
    %v13907 = vsel %vm13742, %v13514, %v13906
    %v13908 = vsel %vm13744, %v13523, %v13907
    %v13909 = vsel %vm13732, %v13541, %v13532
    %v13910 = vsel %vm13734, %v13550, %v13909
    %v13911 = vsel %vm13736, %v13559, %v13910
    %v13912 = vsel %vm13738, %v13568, %v13911
    %v13913 = vsel %vm13740, %v13577, %v13912
    %v13914 = vsel %vm13742, %v13586, %v13913
    %v13915 = vsel %vm13744, %v13595, %v13914
    %v13916 = vsel %vm13732, %v13613, %v13604
    %v13917 = vsel %vm13734, %v13622, %v13916
    %v13918 = vsel %vm13736, %v13631, %v13917
    %v13919 = vsel %vm13738, %v13640, %v13918
    %v13920 = vsel %vm13740, %v13649, %v13919
    %v13921 = vsel %vm13742, %v13658, %v13920
    %v13922 = vsel %vm13744, %v13667, %v13921
    %13923 = vrot.lane.b32.xlu0 %v13873, 32
    %v13924 = vpop.permute.xlu0 %13923
    %13925 = vrot.lane.b32.xlu0 %v13880, 32
    %v13926 = vpop.permute.xlu0 %13925
    %13927 = vrot.lane.b32.xlu0 %v13887, 32
    %v13928 = vpop.permute.xlu0 %13927
    %13929 = vrot.lane.b32.xlu0 %v13894, 32
    %v13930 = vpop.permute.xlu0 %13929
    %13931 = vrot.lane.b32.xlu0 %v13901, 32
    %v13932 = vpop.permute.xlu0 %13931
    %13933 = vrot.lane.b32.xlu0 %v13908, 32
    %v13934 = vpop.permute.xlu0 %13933
    %13935 = vrot.lane.b32.xlu0 %v13915, 32
    %v13936 = vpop.permute.xlu0 %13935
    %13937 = vrot.lane.b32.xlu0 %v13922, 32
    %v13938 = vpop.permute.xlu0 %13937
    %v14011 = vrot.slane %v12324, 7
    %v14012 = vrot.slane %v12326, 6
    %v14013 = vsel %vm13732, %v14012, %v14011
    %v14014 = vrot.slane %v12328, 5
    %v14015 = vsel %vm13734, %v14014, %v14013
    %v14016 = vrot.slane %v12330, 4
    %v14017 = vsel %vm13736, %v14016, %v14015
    %v14018 = vrot.slane %v12332, 3
    %v14019 = vsel %vm13738, %v14018, %v14017
    %v14020 = vrot.slane %v12334, 2
    %v14021 = vsel %vm13740, %v14020, %v14019
    %v14022 = vrot.slane %v12336, 1
    %v14023 = vsel %vm13742, %v14022, %v14021
    %v14024 = vsel %vm13744, %v12338, %v14023
    %v14025 = vrot.slane %v12340, 7
    %v14026 = vrot.slane %v12342, 6
    %v14027 = vsel %vm13732, %v14026, %v14025
    %v14028 = vrot.slane %v12344, 5
    %v14029 = vsel %vm13734, %v14028, %v14027
    %v14030 = vrot.slane %v12346, 4
    %v14031 = vsel %vm13736, %v14030, %v14029
    %v14032 = vrot.slane %v12348, 3
    %v14033 = vsel %vm13738, %v14032, %v14031
    %v14034 = vrot.slane %v12350, 2
    %v14035 = vsel %vm13740, %v14034, %v14033
    %v14036 = vrot.slane %v12352, 1
    %v14037 = vsel %vm13742, %v14036, %v14035
    %v14038 = vsel %vm13744, %v12354, %v14037
    %v14039 = vrot.slane %v12356, 7
    %v14040 = vrot.slane %v12358, 6
    %v14041 = vsel %vm13732, %v14040, %v14039
    %v14042 = vrot.slane %v12360, 5
    %v14043 = vsel %vm13734, %v14042, %v14041
    %v14044 = vrot.slane %v12362, 4
    %v14045 = vsel %vm13736, %v14044, %v14043
    %v14046 = vrot.slane %v12364, 3
    %v14047 = vsel %vm13738, %v14046, %v14045
    %v14048 = vrot.slane %v12366, 2
    %v14049 = vsel %vm13740, %v14048, %v14047
    %v14050 = vrot.slane %v12368, 1
    %v14051 = vsel %vm13742, %v14050, %v14049
    %v14052 = vsel %vm13744, %v12370, %v14051
    %v14053 = vrot.slane %v12372, 7
    %v14054 = vrot.slane %v12374, 6
    %v14055 = vsel %vm13732, %v14054, %v14053
    %v14056 = vrot.slane %v12376, 5
    %v14057 = vsel %vm13734, %v14056, %v14055
    %v14058 = vrot.slane %v12378, 4
    %v14059 = vsel %vm13736, %v14058, %v14057
    %v14060 = vrot.slane %v12380, 3
    %v14061 = vsel %vm13738, %v14060, %v14059
    %v14062 = vrot.slane %v12382, 2
    %v14063 = vsel %vm13740, %v14062, %v14061
    %v14064 = vrot.slane %v12384, 1
    %v14065 = vsel %vm13742, %v14064, %v14063
    %v14066 = vsel %vm13744, %v12386, %v14065
    %v14067 = vrot.slane %v12388, 7
    %v14068 = vrot.slane %v12390, 6
    %v14069 = vsel %vm13732, %v14068, %v14067
    %v14070 = vrot.slane %v12392, 5
    %v14071 = vsel %vm13734, %v14070, %v14069
    %v14072 = vrot.slane %v12394, 4
    %v14073 = vsel %vm13736, %v14072, %v14071
    %v14074 = vrot.slane %v12396, 3
    %v14075 = vsel %vm13738, %v14074, %v14073
    %v14076 = vrot.slane %v12398, 2
    %v14077 = vsel %vm13740, %v14076, %v14075
    %v14078 = vrot.slane %v12400, 1
    %v14079 = vsel %vm13742, %v14078, %v14077
    %v14080 = vsel %vm13744, %v12402, %v14079
    %v14081 = vrot.slane %v12404, 7
    %v14082 = vrot.slane %v12406, 6
    %v14083 = vsel %vm13732, %v14082, %v14081
    %v14084 = vrot.slane %v12408, 5
    %v14085 = vsel %vm13734, %v14084, %v14083
    %v14086 = vrot.slane %v12410, 4
    %v14087 = vsel %vm13736, %v14086, %v14085
    %v14088 = vrot.slane %v12412, 3
    %v14089 = vsel %vm13738, %v14088, %v14087
    %v14090 = vrot.slane %v12414, 2
    %v14091 = vsel %vm13740, %v14090, %v14089
    %v14092 = vrot.slane %v12416, 1
    %v14093 = vsel %vm13742, %v14092, %v14091
    %v14094 = vsel %vm13744, %v12418, %v14093
    %v14095 = vrot.slane %v12420, 7
    %v14096 = vrot.slane %v12422, 6
    %v14097 = vsel %vm13732, %v14096, %v14095
    %v14098 = vrot.slane %v12424, 5
    %v14099 = vsel %vm13734, %v14098, %v14097
    %v14100 = vrot.slane %v12426, 4
    %v14101 = vsel %vm13736, %v14100, %v14099
    %v14102 = vrot.slane %v12428, 3
    %v14103 = vsel %vm13738, %v14102, %v14101
    %v14104 = vrot.slane %v12430, 2
    %v14105 = vsel %vm13740, %v14104, %v14103
    %v14106 = vrot.slane %v12432, 1
    %v14107 = vsel %vm13742, %v14106, %v14105
    %v14108 = vsel %vm13744, %v12434, %v14107
    %v14109 = vrot.slane %v12436, 7
    %v14110 = vrot.slane %v12438, 6
    %v14111 = vsel %vm13732, %v14110, %v14109
    %v14112 = vrot.slane %v12440, 5
    %v14113 = vsel %vm13734, %v14112, %v14111
    %v14114 = vrot.slane %v12442, 4
    %v14115 = vsel %vm13736, %v14114, %v14113
    %v14116 = vrot.slane %v12444, 3
    %v14117 = vsel %vm13738, %v14116, %v14115
    %v14118 = vrot.slane %v12446, 2
    %v14119 = vsel %vm13740, %v14118, %v14117
    %v14120 = vrot.slane %v12448, 1
    %v14121 = vsel %vm13742, %v14120, %v14119
    %v14122 = vsel %vm13744, %v12450, %v14121
    %14123 = vrot.lane.b32.xlu0 %v14024, 64
    %v14124 = vpop.permute.xlu0 %14123
    %14125 = vrot.lane.b32.xlu0 %v14038, 64
    %v14126 = vpop.permute.xlu0 %14125
    %14127 = vrot.lane.b32.xlu0 %v14052, 64
    %v14128 = vpop.permute.xlu0 %14127
    %14129 = vrot.lane.b32.xlu0 %v14066, 64
    %v14130 = vpop.permute.xlu0 %14129
    %14131 = vrot.lane.b32.xlu0 %v14080, 64
    %v14132 = vpop.permute.xlu0 %14131
    %14133 = vrot.lane.b32.xlu0 %v14094, 64
    %v14134 = vpop.permute.xlu0 %14133
    %14135 = vrot.lane.b32.xlu0 %v14108, 64
    %v14136 = vpop.permute.xlu0 %14135
    %14137 = vrot.lane.b32.xlu0 %v14122, 64
    %v14138 = vpop.permute.xlu0 %14137
    %v14147 = vsel %vm4433, %v13745, %v13924
    %v14148 = vsel %vm4433, %v13752, %v13926
    %v14149 = vsel %vm4433, %v13759, %v13928
    %v14150 = vsel %vm4433, %v13766, %v13930
    %v14151 = vsel %vm4433, %v13773, %v13932
    %v14152 = vsel %vm4433, %v13780, %v13934
    %v14153 = vsel %vm4433, %v13787, %v13936
    %v14154 = vsel %vm4433, %v13794, %v13938
    %v14155 = vsel %vm4562, %v14147, %v14124
    %v14156 = vsel %vm4562, %v14148, %v14126
    %v14157 = vsel %vm4562, %v14149, %v14128
    %v14158 = vsel %vm4562, %v14150, %v14130
    %v14159 = vsel %vm4562, %v14151, %v14132
    %v14160 = vsel %vm4562, %v14152, %v14134
    %v14161 = vsel %vm4562, %v14153, %v14136
    %v14162 = vsel %vm4562, %v14154, %v14138
    %v14163 = vlaneseq
    %v14164 = vshrl.u32 %v14163, 7
    %v14165 = vsub.s32 3, %v14164
    %v14166 = vrot.slane %v2498, %v14165
    %v14168 = vsel %vm4695, %v14155, 0
    %v14171 = vsel %vm4695, %v14156, 0
    %v14174 = vsel %vm4695, %v14157, 0
    %v14177 = vsel %vm4695, %v14158, 0
    %v14180 = vsel %vm4695, %v14159, 0
    %v14183 = vsel %vm4695, %v14160, 0
    %v14186 = vsel %vm4695, %v14161, 0
    %v14189 = vsel %vm4695, %v14162, 0
    %14191 = vmatprep.subr.mxu0 0.0
    %14192 = vmatpush1.msra.mxu0 0.0
    %14193 = vmatprep.subr.mxu0 0.0
    %14194 = vmatpush1.msra.mxu0 0.0
    %14195 = vmatprep.subr.mxu0 0.0
    %14196 = vmatpush1.msra.mxu0 0.0
    %14197 = vmatprep.subr.mxu0 0.0
    %14198 = vmatpush1.msra.mxu0 0.0
    %14199 = vmatprep.subr.mxu0 0.0
    %14200 = vmatpush1.msra.mxu0 %v2497
    %14201 = vmatprep.subr.mxu0 0.0
    %14202 = vmatpush1.msra.mxu0 %v2496
    %14203 = vmatprep.subr.mxu0 0.0
    %14204 = vmatpush1.msra.mxu0 %v2495
    %14205 = vmatprep.subr.mxu0 0.0
    %14206 = vmatpush1.msra.mxu0 %v2494
    %14207 = vmatprep.subr.mxu0 0.0
    %14208 = vmatpush1.msra.mxu0 %v2493
    %14209 = vmatprep.subr.mxu0 0.0
    %14210 = vmatpush1.msra.mxu0 %v2492
    %14211 = vmatprep.subr.mxu0 0.0
    %14212 = vmatpush1.msra.mxu0 %v2491
    %14213 = vmatprep.subr.mxu0 0.0
    %14214 = vmatpush1.msra.mxu0 %v2490
    %14215 = vmatprep.subr.mxu0 0.0
    %14216 = vmatpush1.msra.mxu0 %v2489
    %14217 = vmatprep.subr.mxu0 0.0
    %14218 = vmatpush1.msra.mxu0 %v2488
    %14219 = vmatprep.subr.mxu0 0.0
    %14220 = vmatpush1.msra.mxu0 %v2487
    %14221 = vmatprep.subr.mxu0 0.0
    %14222 = vmatpush1.msra.mxu0 %v2486
    %14223 = vmatprep.subr.mxu0 0.0
    %14224 = vmatpush2.msra.mxu0 0.0
    %14225 = vmatprep.subr.mxu0 0.0
    %14226 = vmatpush2.msra.mxu0 0.0
    %14227 = vmatprep.subr.mxu0 0.0
    %14228 = vmatpush2.msra.mxu0 0.0
    %14229 = vmatprep.subr.mxu0 0.0
    %14230 = vmatpush2.msra.mxu0 0.0
    %14231 = vmatprep.subr.mxu0 0.0
    %14232 = vmatpush2.msra.mxu0 0.0
    %14233 = vmatprep.subr.mxu0 0.0
    %14234 = vmatpush2.msra.mxu0 0.0
    %14235 = vmatprep.subr.mxu0 0.0
    %14236 = vmatpush2.msra.mxu0 0.0
    %14237 = vmatprep.subr.mxu0 0.0
    %14238 = vmatpush2.msra.mxu0 0.0
    %14239 = vmatprep.subr.mxu0 0.0
    %14240 = vmatpush2.msra.mxu0 0.0
    %14241 = vmatprep.subr.mxu0 0.0
    %14242 = vmatpush2.msra.mxu0 0.0
    %14243 = vmatprep.subr.mxu0 0.0
    %14244 = vmatpush2.msra.mxu0 0.0
    %14245 = vmatprep.subr.mxu0 0.0
    %14246 = vmatpush2.msra.mxu0 0.0
    %14247 = vmatprep.subr.mxu0 0.0
    %14248 = vmatpush2.msra.mxu0 0.0
    %14249 = vmatprep.subr.mxu0 0.0
    %14250 = vmatpush2.msra.mxu0 0.0
    %14251 = vmatprep.subr.mxu0 0.0
    %14252 = vmatpush2.msra.mxu0 0.0
    %14253 = vmatprep.subr.mxu0 0.0
    %14254 = vmatpush2.msra.mxu0 0.0
    %14255 = vmatprep.mubr.f32.mxu0 0.0
    %14256 = vmatmul.mubr.f32.gmra.mxu0 %v14168
    %v14257 = vpop.f32.mrf.mxu0
    %v14258 = vadd.f32 %v14166, %v14257
    %v14259 = vpop.f32.mrf.mxu0
    %14260 = vmatprep.mubr.f32.mxu0 0.0
    %14261 = vmatmul.mubr.f32.gmra.mxu0 %v14171
    %v14262 = vpop.f32.mrf.mxu0
    %v14263 = vadd.f32 %v14166, %v14262
    %v14264 = vpop.f32.mrf.mxu0
    %14265 = vmatprep.mubr.f32.mxu0 0.0
    %14266 = vmatmul.mubr.f32.gmra.mxu0 %v14174
    %v14267 = vpop.f32.mrf.mxu0
    %v14268 = vadd.f32 %v14166, %v14267
    %v14269 = vpop.f32.mrf.mxu0
    %14270 = vmatprep.mubr.f32.mxu0 0.0
    %14271 = vmatmul.mubr.f32.gmra.mxu0 %v14177
    %v14272 = vpop.f32.mrf.mxu0
    %v14273 = vadd.f32 %v14166, %v14272
    %v14274 = vpop.f32.mrf.mxu0
    %14275 = vmatprep.mubr.f32.mxu0 0.0
    %14276 = vmatmul.mubr.f32.gmra.mxu0 %v14180
    %v14277 = vpop.f32.mrf.mxu0
    %v14278 = vadd.f32 %v14166, %v14277
    %v14279 = vpop.f32.mrf.mxu0
    %14280 = vmatprep.mubr.f32.mxu0 0.0
    %14281 = vmatmul.mubr.f32.gmra.mxu0 %v14183
    %v14282 = vpop.f32.mrf.mxu0
    %v14283 = vadd.f32 %v14166, %v14282
    %v14284 = vpop.f32.mrf.mxu0
    %14285 = vmatprep.mubr.f32.mxu0 0.0
    %14286 = vmatmul.mubr.f32.gmra.mxu0 %v14186
    %v14287 = vpop.f32.mrf.mxu0
    %v14288 = vadd.f32 %v14166, %v14287
    %v14289 = vpop.f32.mrf.mxu0
    %14290 = vmatprep.mubr.f32.mxu0 0.0
    %14291 = vmatmul.mubr.f32.gmra.mxu0 %v14189
    %v14292 = vpop.f32.mrf.mxu0
    %v14293 = vadd.f32 %v14166, %v14292
    %v14294 = vpop.f32.mrf.mxu0
    %14295 = vdwg.mxu0
    %v14296 = vmax.f32 %v14258, 0.0
    %v14297 = vmax.f32 %v14263, 0.0
    %v14298 = vmax.f32 %v14268, 0.0
    %v14299 = vmax.f32 %v14273, 0.0
    %v14300 = vmax.f32 %v14278, 0.0
    %v14301 = vmax.f32 %v14283, 0.0
    %v14302 = vmax.f32 %v14288, 0.0
    %v14303 = vmax.f32 %v14293, 0.0
    %v14304 = vld [vmem:[%s3] sm:$0xff]
    %v14305 = vld [vmem:[%s3 + $0x8] sm:$0xff]
    %v14306 = vld [vmem:[%s3 + $0x10] sm:$0xff]
    %v14307 = vld [vmem:[%s3 + $0x18] sm:$0xff]
    %v14308 = vlaneseq
    %v14309 = vshrl.u32 %v14308, 7
    %v14310 = vsub.s32 4, %v14309
    %v14311 = vrot.slane %v2498, %v14310
    %v14313 = vsel %vm4433, %v14296, 0
    %v14316 = vsel %vm4433, %v14297, 0
    %v14319 = vsel %vm4433, %v14298, 0
    %v14322 = vsel %vm4433, %v14299, 0
    %v14325 = vsel %vm4433, %v14300, 0
    %v14328 = vsel %vm4433, %v14301, 0
    %v14331 = vsel %vm4433, %v14302, 0
    %v14334 = vsel %vm4433, %v14303, 0
    %14336 = vmatprep.subr.mxu0 0.0
    %14337 = vmatpush1.msra.mxu0 0.0
    %14338 = vmatprep.subr.mxu0 0.0
    %14339 = vmatpush1.msra.mxu0 0.0
    %14340 = vmatprep.subr.mxu0 0.0
    %14341 = vmatpush1.msra.mxu0 0.0
    %14342 = vmatprep.subr.mxu0 0.0
    %14343 = vmatpush1.msra.mxu0 0.0
    %14344 = vmatprep.subr.mxu0 0.0
    %14345 = vmatpush1.msra.mxu0 0.0
    %14346 = vmatprep.subr.mxu0 0.0
    %14347 = vmatpush1.msra.mxu0 0.0
    %14348 = vmatprep.subr.mxu0 0.0
    %14349 = vmatpush1.msra.mxu0 0.0
    %14350 = vmatprep.subr.mxu0 0.0
    %14351 = vmatpush1.msra.mxu0 0.0
    %14352 = vmatprep.subr.mxu0 0.0
    %14353 = vmatpush1.msra.mxu0 0.0
    %14354 = vmatprep.subr.mxu0 0.0
    %14355 = vmatpush1.msra.mxu0 0.0
    %14356 = vmatprep.subr.mxu0 0.0
    %14357 = vmatpush1.msra.mxu0 0.0
    %14358 = vmatprep.subr.mxu0 0.0
    %14359 = vmatpush1.msra.mxu0 0.0
    %14360 = vmatprep.subr.mxu0 0.0
    %14361 = vmatpush1.msra.mxu0 %v14307
    %14362 = vmatprep.subr.mxu0 0.0
    %14363 = vmatpush1.msra.mxu0 %v14306
    %14364 = vmatprep.subr.mxu0 0.0
    %14365 = vmatpush1.msra.mxu0 %v14305
    %14366 = vmatprep.subr.mxu0 0.0
    %14367 = vmatpush1.msra.mxu0 %v14304
    %14368 = vmatprep.subr.mxu0 0.0
    %14369 = vmatpush2.msra.mxu0 0.0
    %14370 = vmatprep.subr.mxu0 0.0
    %14371 = vmatpush2.msra.mxu0 0.0
    %14372 = vmatprep.subr.mxu0 0.0
    %14373 = vmatpush2.msra.mxu0 0.0
    %14374 = vmatprep.subr.mxu0 0.0
    %14375 = vmatpush2.msra.mxu0 0.0
    %14376 = vmatprep.subr.mxu0 0.0
    %14377 = vmatpush2.msra.mxu0 0.0
    %14378 = vmatprep.subr.mxu0 0.0
    %14379 = vmatpush2.msra.mxu0 0.0
    %14380 = vmatprep.subr.mxu0 0.0
    %14381 = vmatpush2.msra.mxu0 0.0
    %14382 = vmatprep.subr.mxu0 0.0
    %14383 = vmatpush2.msra.mxu0 0.0
    %14384 = vmatprep.subr.mxu0 0.0
    %14385 = vmatpush2.msra.mxu0 0.0
    %14386 = vmatprep.subr.mxu0 0.0
    %14387 = vmatpush2.msra.mxu0 0.0
    %14388 = vmatprep.subr.mxu0 0.0
    %14389 = vmatpush2.msra.mxu0 0.0
    %14390 = vmatprep.subr.mxu0 0.0
    %14391 = vmatpush2.msra.mxu0 0.0
    %14392 = vmatprep.subr.mxu0 0.0
    %14393 = vmatpush2.msra.mxu0 0.0
    %14394 = vmatprep.subr.mxu0 0.0
    %14395 = vmatpush2.msra.mxu0 0.0
    %14396 = vmatprep.subr.mxu0 0.0
    %14397 = vmatpush2.msra.mxu0 0.0
    %14398 = vmatprep.subr.mxu0 0.0
    %14399 = vmatpush2.msra.mxu0 0.0
    %14400 = vmatprep.mubr.f32.mxu0 0.0
    %14401 = vmatmul.mubr.f32.gmra.mxu0 %v14313
    %v14402 = vpop.f32.mrf.mxu0
    %v14403 = vadd.f32 %v14311, %v14402
    %v14404 = vpop.f32.mrf.mxu0
    %14405 = vmatprep.mubr.f32.mxu0 0.0
    %14406 = vmatmul.mubr.f32.gmra.mxu0 %v14316
    %v14407 = vpop.f32.mrf.mxu0
    %v14408 = vadd.f32 %v14311, %v14407
    %v14409 = vpop.f32.mrf.mxu0
    %14410 = vmatprep.mubr.f32.mxu0 0.0
    %14411 = vmatmul.mubr.f32.gmra.mxu0 %v14319
    %v14412 = vpop.f32.mrf.mxu0
    %v14413 = vadd.f32 %v14311, %v14412
    %v14414 = vpop.f32.mrf.mxu0
    %14415 = vmatprep.mubr.f32.mxu0 0.0
    %14416 = vmatmul.mubr.f32.gmra.mxu0 %v14322
    %v14417 = vpop.f32.mrf.mxu0
    %v14418 = vadd.f32 %v14311, %v14417
    %v14419 = vpop.f32.mrf.mxu0
    %14420 = vmatprep.mubr.f32.mxu0 0.0
    %14421 = vmatmul.mubr.f32.gmra.mxu0 %v14325
    %v14422 = vpop.f32.mrf.mxu0
    %v14423 = vadd.f32 %v14311, %v14422
    %v14424 = vpop.f32.mrf.mxu0
    %14425 = vmatprep.mubr.f32.mxu0 0.0
    %14426 = vmatmul.mubr.f32.gmra.mxu0 %v14328
    %v14427 = vpop.f32.mrf.mxu0
    %v14428 = vadd.f32 %v14311, %v14427
    %v14429 = vpop.f32.mrf.mxu0
    %14430 = vmatprep.mubr.f32.mxu0 0.0
    %14431 = vmatmul.mubr.f32.gmra.mxu0 %v14331
    %v14432 = vpop.f32.mrf.mxu0
    %v14433 = vadd.f32 %v14311, %v14432
    %v14434 = vpop.f32.mrf.mxu0
    %14435 = vmatprep.mubr.f32.mxu0 0.0
    %14436 = vmatmul.mubr.f32.gmra.mxu0 %v14334
    %v14437 = vpop.f32.mrf.mxu0
    %v14438 = vadd.f32 %v14311, %v14437
    %v14439 = vpop.f32.mrf.mxu0
    %14440 = vdwg.mxu0
    %v14441 = vmax.f32 %v14403, 0.0
    %v14442 = vmax.f32 %v14408, 0.0
    %v14443 = vmax.f32 %v14413, 0.0
    %v14444 = vmax.f32 %v14418, 0.0
    %v14445 = vmax.f32 %v14423, 0.0
    %v14446 = vmax.f32 %v14428, 0.0
    %v14447 = vmax.f32 %v14433, 0.0
    %v14448 = vmax.f32 %v14438, 0.0
    %v14449 = vld [vmem:[%s4] sm:$0xff]
    %v14450 = vld [vmem:[%s4 + $0x8] sm:$0xff]
    %v14451 = vld [vmem:[%s4 + $0x10] sm:$0xff]
    %v14452 = vld [vmem:[%s4 + $0x18] sm:$0xff]
    %v14453 = vld [vmem:[%s6] sm:$0x1]
    %v14455 = vlaneseq
    %v14456 = vshrl.u32 %v14455, 7
    %v14457 = vsub.s32 0, %v14456
    %v14458 = vrot.slane %v14453, %v14457
    %v14461 = vsel %vm4433, %v14441, 0
    %v14464 = vsel %vm4433, %v14442, 0
    %v14467 = vsel %vm4433, %v14443, 0
    %v14470 = vsel %vm4433, %v14444, 0
    %v14473 = vsel %vm4433, %v14445, 0
    %v14476 = vsel %vm4433, %v14446, 0
    %v14479 = vsel %vm4433, %v14447, 0
    %v14482 = vsel %vm4433, %v14448, 0
    %14484 = vmatprep.subr.mxu0 0.0
    %14485 = vmatpush1.msra.mxu0 0.0
    %14486 = vmatprep.subr.mxu0 0.0
    %14487 = vmatpush1.msra.mxu0 0.0
    %14488 = vmatprep.subr.mxu0 0.0
    %14489 = vmatpush1.msra.mxu0 0.0
    %14490 = vmatprep.subr.mxu0 0.0
    %14491 = vmatpush1.msra.mxu0 0.0
    %14492 = vmatprep.subr.mxu0 0.0
    %14493 = vmatpush1.msra.mxu0 0.0
    %14494 = vmatprep.subr.mxu0 0.0
    %14495 = vmatpush1.msra.mxu0 0.0
    %14496 = vmatprep.subr.mxu0 0.0
    %14497 = vmatpush1.msra.mxu0 0.0
    %14498 = vmatprep.subr.mxu0 0.0
    %14499 = vmatpush1.msra.mxu0 0.0
    %14500 = vmatprep.subr.mxu0 0.0
    %14501 = vmatpush1.msra.mxu0 0.0
    %14502 = vmatprep.subr.mxu0 0.0
    %14503 = vmatpush1.msra.mxu0 0.0
    %14504 = vmatprep.subr.mxu0 0.0
    %14505 = vmatpush1.msra.mxu0 0.0
    %14506 = vmatprep.subr.mxu0 0.0
    %14507 = vmatpush1.msra.mxu0 0.0
    %14508 = vmatprep.subr.mxu0 0.0
    %14509 = vmatpush1.msra.mxu0 %v14452
    %14510 = vmatprep.subr.mxu0 0.0
    %14511 = vmatpush1.msra.mxu0 %v14451
    %14512 = vmatprep.subr.mxu0 0.0
    %14513 = vmatpush1.msra.mxu0 %v14450
    %14514 = vmatprep.subr.mxu0 0.0
    %14515 = vmatpush1.msra.mxu0 %v14449
    %14516 = vmatprep.subr.mxu0 0.0
    %14517 = vmatpush2.msra.mxu0 0.0
    %14518 = vmatprep.subr.mxu0 0.0
    %14519 = vmatpush2.msra.mxu0 0.0
    %14520 = vmatprep.subr.mxu0 0.0
    %14521 = vmatpush2.msra.mxu0 0.0
    %14522 = vmatprep.subr.mxu0 0.0
    %14523 = vmatpush2.msra.mxu0 0.0
    %14524 = vmatprep.subr.mxu0 0.0
    %14525 = vmatpush2.msra.mxu0 0.0
    %14526 = vmatprep.subr.mxu0 0.0
    %14527 = vmatpush2.msra.mxu0 0.0
    %14528 = vmatprep.subr.mxu0 0.0
    %14529 = vmatpush2.msra.mxu0 0.0
    %14530 = vmatprep.subr.mxu0 0.0
    %14531 = vmatpush2.msra.mxu0 0.0
    %14532 = vmatprep.subr.mxu0 0.0
    %14533 = vmatpush2.msra.mxu0 0.0
    %14534 = vmatprep.subr.mxu0 0.0
    %14535 = vmatpush2.msra.mxu0 0.0
    %14536 = vmatprep.subr.mxu0 0.0
    %14537 = vmatpush2.msra.mxu0 0.0
    %14538 = vmatprep.subr.mxu0 0.0
    %14539 = vmatpush2.msra.mxu0 0.0
    %14540 = vmatprep.subr.mxu0 0.0
    %14541 = vmatpush2.msra.mxu0 0.0
    %14542 = vmatprep.subr.mxu0 0.0
    %14543 = vmatpush2.msra.mxu0 0.0
    %14544 = vmatprep.subr.mxu0 0.0
    %14545 = vmatpush2.msra.mxu0 0.0
    %14546 = vmatprep.subr.mxu0 0.0
    %14547 = vmatpush2.msra.mxu0 0.0
    %14548 = vmatprep.mubr.f32.mxu0 0.0
    %14549 = vmatmul.mubr.f32.gmra.mxu0 %v14461
    %v14550 = vpop.f32.mrf.mxu0
    %v14551 = vadd.f32 %v14458, %v14550
    %v14552 = vpop.f32.mrf.mxu0
    %14553 = vmatprep.mubr.f32.mxu0 0.0
    %14554 = vmatmul.mubr.f32.gmra.mxu0 %v14464
    %v14555 = vpop.f32.mrf.mxu0
    %v14556 = vadd.f32 %v14458, %v14555
    %v14557 = vpop.f32.mrf.mxu0
    %14558 = vmatprep.mubr.f32.mxu0 0.0
    %14559 = vmatmul.mubr.f32.gmra.mxu0 %v14467
    %v14560 = vpop.f32.mrf.mxu0
    %v14561 = vadd.f32 %v14458, %v14560
    %v14562 = vpop.f32.mrf.mxu0
    %14563 = vmatprep.mubr.f32.mxu0 0.0
    %14564 = vmatmul.mubr.f32.gmra.mxu0 %v14470
    %v14565 = vpop.f32.mrf.mxu0
    %v14566 = vadd.f32 %v14458, %v14565
    %v14567 = vpop.f32.mrf.mxu0
    %14568 = vmatprep.mubr.f32.mxu0 0.0
    %14569 = vmatmul.mubr.f32.gmra.mxu0 %v14473
    %v14570 = vpop.f32.mrf.mxu0
    %v14571 = vadd.f32 %v14458, %v14570
    %v14572 = vpop.f32.mrf.mxu0
    %14573 = vmatprep.mubr.f32.mxu0 0.0
    %14574 = vmatmul.mubr.f32.gmra.mxu0 %v14476
    %v14575 = vpop.f32.mrf.mxu0
    %v14576 = vadd.f32 %v14458, %v14575
    %v14577 = vpop.f32.mrf.mxu0
    %14578 = vmatprep.mubr.f32.mxu0 0.0
    %14579 = vmatmul.mubr.f32.gmra.mxu0 %v14479
    %v14580 = vpop.f32.mrf.mxu0
    %v14581 = vadd.f32 %v14458, %v14580
    %v14582 = vpop.f32.mrf.mxu0
    %14583 = vmatprep.mubr.f32.mxu0 0.0
    %14584 = vmatmul.mubr.f32.gmra.mxu0 %v14482
    %v14585 = vpop.f32.mrf.mxu0
    %v14586 = vadd.f32 %v14458, %v14585
    %v14587 = vpop.f32.mrf.mxu0
    %14588 = vdwg.mxu0
    %14589 = vst [vmem:[#allocation2] sm:$0xff] %v14551
    %14590 = vst [vmem:[#allocation2 + $0x8] sm:$0xff] %v14556
    %14591 = vst [vmem:[#allocation2 + $0x10] sm:$0xff] %v14561
    %14592 = vst [vmem:[#allocation2 + $0x18] sm:$0xff] %v14566
    %14593 = vst [vmem:[#allocation2 + $0x20] sm:$0xff] %v14571
    %14594 = vst [vmem:[#allocation2 + $0x28] sm:$0xff] %v14576
    %14595 = vst [vmem:[#allocation2 + $0x30] sm:$0xff] %v14581
    %14596 = vst [vmem:[#allocation2 + $0x38] sm:$0xff] %v14586
    // Predicated region
    $region30: #{tpu_custom_call.1} parent=1 // pred_check
      _
    $region31: #{tpu_custom_call.1} parent=1 // pred_check_branch
      %14598 = sbr.rel (0) target = $region33
    $region32: #{tpu_custom_call.1} parent=1 // pred_region
      %s14600 = ssub.s32 1024, 1024
      %14601 = vsyncadd [#allocation3], %s14600
      %s14602 = sshll.u32 [#allocation2], 4
      %s14603 = int_to_ptr.vmem [resolvable:$true] %s14602
      %14608 = dma.vmem_to_hbm [thread:$0]  %s14603, 1024, %s7, [#allocation3], 128, 128, 8
    $region33: #{tpu_custom_call.1} parent=1 // pred_fallthru
      _
    // Predicated region
    $region34: #{tpu_custom_call.1} parent=1 // pred_check
      _
    $region35: #{tpu_custom_call.1} parent=1 // pred_check_branch
      %14610 = sbr.rel (0) target = $region37
    $region36: #{tpu_custom_call.1} parent=1 // pred_region
      %14611 = dma.done [#allocation3], 1024
    $region37: #{tpu_custom_call.1} parent=1 // pred_fallthru
      _
    %14612 = vsyncpa [#allocation3], 1

</llo_original>
